<compile_context>
chip_gen: v5e
topology: v5e:2x2
jax: 0.10.0
libtpu: 0.0.40
codegen_flags: <defaults>
</compile_context>

<pallas_src>
import jax
import jax.numpy as jnp
from jax.experimental import pallas as pl
from jax.experimental.pallas import tpu as pltpu

LANE = 128


def _round_up(x, m):
    return (x + m - 1) // m * m


# ----------------------------- fused BasicBlock kernel -----------------------------

def _make_block_kernel(*, s, hh, ww, cin, cout, equal):
    """Per-image fused BasicBlock.

    x_ref   : (hh//s, s, ww//s, s*cin) bf16  -- phase-split view of the raw input
    w1_ref  : (9*cin, cout) bf16             -- conv1 weights, im2col-packed, resident
    w2_ref  : (9*cout, cout) bf16            -- conv2 weights, im2col-packed, resident
    s1/b1   : (1, cin)  f32                  -- folded bn1 scale/bias
    s2/b2   : (1, cout) f32                  -- folded bn2 scale/bias
    wsc_ref : (cin, cout) bf16               -- 1x1 shortcut weights (only if not equal)
    o_ref   : (1, ho, wo, cout) bf16
    """
    ho, wo = hh // s, ww // s
    m = ho * wo

    def body(x_ref, w1_ref, w2_ref, s1_ref, b1_ref, s2_ref, b2_ref, wsc_ref,
             o_ref, apre_ref, col1_ref, hpad_ref, col2_ref):
        # Zero the padding rings every step: scratch persists across grid steps and on
        # megacore a core that owns a later batch slice never executes step 0, so a
        # pl.when(i==0) init would be wrong.  The interior is overwritten below.
        apre_ref[...] = jnp.zeros_like(apre_ref)
        hpad_ref[...] = jnp.zeros_like(hpad_ref)

        # ---- bn1 + relu prologue, computed ONCE per image, stored phase-split+padded.
        # Original pixel (s*r+py, s*c+px) lives at padded (s*r+py+1, s*c+px+1), i.e.
        # phase ((py+1)%s, (px+1)%s), index (r + (py+1)//s, c + (px+1)//s).
        for py in range(s):
            for px in range(s):
                xs = x_ref[:, py, :, pl.ds(px * cin, cin)]            # (hh//s, ww//s, cin)
                a = xs.reshape((hh // s) * (ww // s), cin).astype(jnp.float32)
                a = jnp.maximum(a * s1_ref[...] + b1_ref[...], 0.0)
                ph = ((py + 1) % s) * s + ((px + 1) % s)
                apre_ref[ph,
                         pl.ds((py + 1) // s, hh // s),
                         pl.ds((px + 1) // s, ww // s), :] = (
                    a.reshape(hh // s, ww // s, cin).astype(jnp.bfloat16))

        # ---- conv1: im2col into VMEM, then one K = 9*cin matmul on the MXU.
        # Tap (ky,kx) for output (oy,ox) reads padded (s*oy+ky, s*ox+kx)
        #   -> phase (ky%s, kx%s), contiguous window starting at (ky//s, kx//s).
        for ky in range(3):
            for kx in range(3):
                t = ky * 3 + kx
                ph = (ky % s) * s + (kx % s)
                win = apre_ref[ph, pl.ds(ky // s, ho), pl.ds(kx // s, wo), :]
                col1_ref[:, pl.ds(t * cin, cin)] = win.reshape(m, cin)

        hmid = jnp.dot(col1_ref[...], w1_ref[...], preferred_element_type=jnp.float32)
        hmid = jnp.maximum(hmid * s2_ref[...] + b2_ref[...], 0.0)     # bn2 + relu epilogue
        # TODO(synk): dropRate>0 dropout would apply here (default 0.0 => identity).
        hpad_ref[pl.ds(1, ho), pl.ds(1, wo), :] = (
            hmid.reshape(ho, wo, cout).astype(jnp.bfloat16))

        # ---- conv2: im2col from the padded mid scratch, one K = 9*cout matmul.
        for ky in range(3):
            for kx in range(3):
                t = ky * 3 + kx
                win = hpad_ref[pl.ds(ky, ho), pl.ds(kx, wo), :]
                col2_ref[:, pl.ds(t * cout, cout)] = win.reshape(m, cout)

        # ---- residual / shortcut, fused into the final add.
        if equal:
            res = x_ref[:, 0, :, :].reshape(m, cout).astype(jnp.float32)
        else:
            # 1x1 stride-s conv of relu(bn1(x)): samples original (s*oy, s*ox), which is
            # padded (s*oy+1, s*ox+1) -> phase (1%s, 1%s), offset (1//s, 1//s).
            ph = (1 % s) * s + (1 % s)
            a_sc = apre_ref[ph, pl.ds(1 // s, ho), pl.ds(1 // s, wo), :].reshape(m, cin)
            res = jnp.dot(a_sc, wsc_ref[...], preferred_element_type=jnp.float32)

        y = jnp.dot(col2_ref[...], w2_ref[...], preferred_element_type=jnp.float32) + res
        o_ref[...] = y.reshape(o_ref.shape).astype(o_ref.dtype)

    if equal:
        def kernel(x_ref, w1_ref, w2_ref, s1_ref, b1_ref, s2_ref, b2_ref,
                   o_ref, apre_ref, col1_ref, hpad_ref, col2_ref):
            body(x_ref, w1_ref, w2_ref, s1_ref, b1_ref, s2_ref, b2_ref, None,
                 o_ref, apre_ref, col1_ref, hpad_ref, col2_ref)
        return kernel
    return body


# ----------------------------- pallas_call wrapper -----------------------------

def basic_block_forward(x, p):
    """x: (N, H, W, Cin_padded) bf16 -> (N, Ho, Wo, Cout_padded) bf16."""
    n, h, w, cin = x.shape
    s = p["stride"]
    cout = p["s2"].shape[-1]
    assert h % s == 0 and w % s == 0
    ho, wo = h // s, w // s
    hps, wps = (h + 2) // s, (w + 2) // s
    m = ho * wo

    # Pure row-major reshape (no data movement): rows -> (row_block, row_phase),
    # cols+channels -> (col_block, col_phase*chan).
    x4 = x.reshape(n * ho, s, wo, s * cin)

    kernel = _make_block_kernel(s=s, hh=h, ww=w, cin=cin, cout=cout, equal=p["equal"])

    in_specs = [
        pl.BlockSpec((ho, s, wo, s * cin), lambda i: (i, 0, 0, 0)),
        pl.BlockSpec((9 * cin, cout), lambda i: (0, 0)),   # resident across the grid
        pl.BlockSpec((9 * cout, cout), lambda i: (0, 0)),
        pl.BlockSpec((1, cin), lambda i: (0, 0)),
        pl.BlockSpec((1, cin), lambda i: (0, 0)),
        pl.BlockSpec((1, cout), lambda i: (0, 0)),
        pl.BlockSpec((1, cout), lambda i: (0, 0)),
    ]
    args = [x4, p["w1"], p["w2"], p["s1"], p["b1"], p["s2"], p["b2"]]
    if not p["equal"]:
        in_specs.append(pl.BlockSpec((cin, cout), lambda i: (0, 0)))
        args.append(p["wsc"])

    flops = 2 * n * m * (9 * cin) * cout + 2 * n * m * (9 * cout) * cout
    if not p["equal"]:
        flops += 2 * n * m * cin * cout
    bytes_accessed = 2 * (n * h * w * cin + n * m * cout + 9 * cin * cout
                          + 9 * cout * cout + (0 if p["equal"] else cin * cout))

    return pl.pallas_call(
        kernel,
        out_shape=jax.ShapeDtypeStruct((n, ho, wo, cout), jnp.bfloat16),
        grid=(n,),
        in_specs=in_specs,
        out_specs=pl.BlockSpec((1, ho, wo, cout), lambda i: (i, 0, 0, 0)),
        scratch_shapes=[
            pltpu.VMEM((s * s, hps, wps, cin), jnp.bfloat16),   # padded relu(bn1(x)), phase-split
            pltpu.VMEM((m, 9 * cin), jnp.bfloat16),             # conv1 im2col
            pltpu.VMEM((ho + 2, wo + 2, cout), jnp.bfloat16),   # padded relu(bn2(conv1))
            pltpu.VMEM((m, 9 * cout), jnp.bfloat16),            # conv2 im2col
        ],
        compiler_params=pltpu.CompilerParams(
            dimension_semantics=("parallel",),
            vmem_limit_bytes=48 * 1024 * 1024),
        cost_estimate=pl.CostEstimate(flops=flops, transcendentals=0,
                                      bytes_accessed=bytes_accessed),
    )(*args)


def network_block_forward(x_nchw, prepared, in_planes, out_planes):
    cp_in = _round_up(in_planes, LANE)
    x = jnp.transpose(x_nchw, (0, 2, 3, 1))                          # NCHW -> NHWC
    x = jnp.pad(x, ((0, 0), (0, 0), (0, 0), (0, cp_in - in_planes))).astype(jnp.bfloat16)
    for p in prepared:
        x = basic_block_forward(x, p)
    x = x[..., :out_planes].astype(jnp.float32)
    return jnp.transpose(x, (0, 3, 1, 2))                            # NHWC -> NCHW


# ----------------------------- hoisted parameter preparation -----------------------------

def _fold_bn(bn, eps=1e-5):
    gamma, beta, mean, var = bn
    scale = gamma / jnp.sqrt(var + eps)
    bias = beta - mean * scale
    return scale, bias


def _pad_vec(v, cp):
    return jnp.pad(v, (0, cp - v.shape[0])).reshape(1, cp).astype(jnp.float32)


def _pack_w3x3(w_oihw, cp_in, cp_out):
    """(Cout, Cin, 3, 3) -> (9*cp_in, cp_out) bf16, row index = (ky*3+kx)*cp_in + c."""
    cout, cin = w_oihw.shape[:2]
    k = jnp.transpose(w_oihw, (2, 3, 1, 0))                          # (3,3,Cin,Cout)
    k = jnp.pad(k, ((0, 0), (0, 0), (0, cp_in - cin), (0, cp_out - cout)))
    return k.reshape(9 * cp_in, cp_out).astype(jnp.bfloat16)


def prepare_network_block(raw_params, in_planes, out_planes):
    prepared = []
    for i, raw in enumerate(raw_params):
        cin = in_planes if i == 0 else out_planes
        cp_in = _round_up(cin, LANE)
        cp_out = _round_up(out_planes, LANE)
        if raw["equal"]:
            assert raw["stride"] == 1, "identity shortcut requires stride 1"
        s1, b1 = _fold_bn(raw["bn1"])
        s2, b2 = _fold_bn(raw["bn2"])
        p = {
            "equal": raw["equal"],
            "stride": raw["stride"],
            "s1": _pad_vec(s1, cp_in), "b1": _pad_vec(b1, cp_in),
            "s2": _pad_vec(s2, cp_out), "b2": _pad_vec(b2, cp_out),
            "w1": _pack_w3x3(raw["w1"], cp_in, cp_out),
            "w2": _pack_w3x3(raw["w2"], cp_out, cp_out),
        }
        if not raw["equal"]:
            wsc = jnp.transpose(raw["w_sc"][:, :, 0, 0])             # (Cin, Cout)
            p["wsc"] = jnp.pad(wsc, ((0, cp_in - wsc.shape[0]),
                                     (0, cp_out - wsc.shape[1]))).astype(jnp.bfloat16)
        prepared.append(p)
    return prepared


# ----------------------------- deterministic param init -----------------------------

def _init_bn(key, c):
    k1, k2, k3, k4 = jax.random.split(key, 4)
    gamma = jax.random.uniform(k1, (c,), jnp.float32, 0.5, 1.5)
    beta = 0.1 * jax.random.normal(k2, (c,), jnp.float32)
    mean = 0.1 * jax.random.normal(k3, (c,), jnp.float32)
    var = jax.random.uniform(k4, (c,), jnp.float32, 0.5, 1.5)
    return (gamma, beta, mean, var)


def init_network_block(key, nb_layers, in_planes, out_planes, stride):
    params = []
    for i in range(nb_layers):
        cin = in_planes if i == 0 else out_planes
        s = stride if i == 0 else 1
        key, k1, k2, k3, k4, k5 = jax.random.split(key, 6)
        p = {
            "equal": cin == out_planes,
            "stride": s,
            "bn1": _init_bn(k1, cin),
            "w1": jax.random.normal(k2, (out_planes, cin, 3, 3), jnp.float32)
                  * (2.0 / (9 * cin)) ** 0.5,
            "bn2": _init_bn(k3, out_planes),
            "w2": jax.random.normal(k4, (out_planes, out_planes, 3, 3), jnp.float32)
                  * (2.0 / (9 * out_planes)) ** 0.5,
        }
        if cin != out_planes:
            p["w_sc"] = (jax.random.normal(k5, (out_planes, cin, 1, 1), jnp.float32)
                         * (2.0 / cin) ** 0.5)
        params.append(p)
    return params


# ----------------------------- pure-JAX references -----------------------------

def _bn_relu_ref(x, gamma, beta, mean, var, eps=1e-5):
    scale = gamma / jnp.sqrt(var + eps)
    return jnp.maximum(x * scale + (beta - mean * scale), 0.0)


def _conv_ref(x_nhwc, w_oihw, stride, pad, use_bf16):
    w = jnp.transpose(w_oihw, (2, 3, 1, 0))
    if use_bf16:
        x_nhwc = x_nhwc.astype(jnp.bfloat16)
        w = w.astype(jnp.bfloat16)
    return jax.lax.conv_general_dilated(
        x_nhwc, w, window_strides=(stride, stride),
        padding=((pad, pad), (pad, pad)),
        dimension_numbers=("NHWC", "HWIO", "NHWC"),
        preferred_element_type=jnp.float32)


def network_block_ref(x_nchw, params, use_bf16=False):
    """use_bf16=False: exact f32 PyTorch-equivalent.  use_bf16=True: mirrors the
    kernel's bf16-inputs / f32-accumulation numerics for a tight comparison."""
    x = jnp.transpose(x_nchw, (0, 2, 3, 1))
    if use_bf16:
        x = x.astype(jnp.bfloat16).astype(jnp.float32)
    for p in params:
        if not p["equal"]:
            x = _bn_relu_ref(x, *p["bn1"])
            pre = x
        else:
            pre = _bn_relu_ref(x, *p["bn1"])
        out = _bn_relu_ref(_conv_ref(pre, p["w1"], p["stride"], 1, use_bf16), *p["bn2"])
        if use_bf16:
            out = out.astype(jnp.bfloat16).astype(jnp.float32)
        out = _conv_ref(out, p["w2"], 1, 1, use_bf16)
        sc = x if p["equal"] else _conv_ref(x, p["w_sc"], p["stride"], 0, use_bf16)
        x = sc + out
        if use_bf16:
            x = x.astype(jnp.bfloat16).astype(jnp.float32)
    return jnp.transpose(x, (0, 3, 1, 2))


# ----------------------------- main -----------------------------

if __name__ == "__main__":
    key = jax.random.PRNGKey(0)
    kx_, kp_ = jax.random.split(key)

    # NetworkBlock(nb_layers=2, in_planes=4, out_planes=8, block=BasicBlock, stride=2)
    x = jax.random.normal(kx_, (2, 4, 16, 16), jnp.float32)          # NCHW, like PyTorch
    raw = init_network_block(kp_, nb_layers=2, in_planes=4, out_planes=8, stride=2)
    prepared = prepare_network_block(raw, in_planes=4, out_planes=8)

    fwd = jax.jit(lambda a: network_block_forward(a, prepared, 4, 8))
    out = jax.block_until_ready(fwd(x))

    assert out.shape == (2, 8, 8, 8), out.shape
    assert bool(jnp.all(jnp.isfinite(out)))

    # Tight check vs a reference that mirrors the kernel's bf16-in / f32-acc numerics.
    ref_bf16 = network_block_ref(x, raw, use_bf16=True)
    err = float(jnp.max(jnp.abs(out - ref_bf16)))
    assert jnp.allclose(out, ref_bf16, atol=1e-2, rtol=1e-2), err

    # Coarse check vs the pure-f32 module semantics (difference = bf16 quantization).
    ref_f32 = network_block_ref(x, raw, use_bf16=False)
    err32 = float(jnp.max(jnp.abs(out - ref_f32)))
    assert jnp.allclose(out, ref_f32, atol=3e-1, rtol=1e-1), err32

    print("KERNEL_OK")
</pallas_src>

<mosaic_0001>
module attributes {stable_mosaic.version = 11 : i64} {
  func.func @kernel(%arg0: i32, %arg1: memref<8x1x8x128xbf16, #tpu.memory_space<vmem>>, %arg2: memref<1152x128xbf16, #tpu.memory_space<vmem>>, %arg3: memref<1152x128xbf16, #tpu.memory_space<vmem>>, %arg4: memref<1x128xf32, #tpu.memory_space<vmem>>, %arg5: memref<1x128xf32, #tpu.memory_space<vmem>>, %arg6: memref<1x128xf32, #tpu.memory_space<vmem>>, %arg7: memref<1x128xf32, #tpu.memory_space<vmem>>, %arg8: memref<1x8x8x128xbf16, #tpu.memory_space<vmem>>, %arg9: memref<1x10x10x128xbf16, #tpu.memory_space<vmem>>, %arg10: memref<64x1152xbf16, #tpu.memory_space<vmem>>, %arg11: memref<10x10x128xbf16, #tpu.memory_space<vmem>>, %arg12: memref<64x1152xbf16, #tpu.memory_space<vmem>>) attributes {dimension_semantics = [#tpu.dimension_semantics<parallel>], iteration_bounds = array<i64: 2>, scalar_prefetch = 0 : i64, scratch_operands = 4 : i64, tpu.core_type = #tpu.core_type<tc>, window_params = [{transform_indices = @transform_0, window_bounds = array<i64: 8, 1, 8, 128>}, {pipeline_mode = #tpu.pipeline_mode<synchronous>, transform_indices = @transform_1, window_bounds = array<i64: 1152, 128>}, {pipeline_mode = #tpu.pipeline_mode<synchronous>, transform_indices = @transform_2, window_bounds = array<i64: 1152, 128>}, {pipeline_mode = #tpu.pipeline_mode<synchronous>, transform_indices = @transform_3, window_bounds = array<i64: 1, 128>}, {pipeline_mode = #tpu.pipeline_mode<synchronous>, transform_indices = @transform_4, window_bounds = array<i64: 1, 128>}, {pipeline_mode = #tpu.pipeline_mode<synchronous>, transform_indices = @transform_5, window_bounds = array<i64: 1, 128>}, {pipeline_mode = #tpu.pipeline_mode<synchronous>, transform_indices = @transform_6, window_bounds = array<i64: 1, 128>}, {transform_indices = @transform_7, window_bounds = array<i64: 1, 8, 8, 128>}]} {
    %cst = arith.constant 0.000000e+00 : bf16
    %0 = vector.broadcast %cst : bf16 to vector<1x10x10x128xbf16>
    %c0 = arith.constant 0 : index
    %c0_0 = arith.constant 0 : index
    %c0_1 = arith.constant 0 : index
    %c0_2 = arith.constant 0 : index
    %1 = vector.load %arg9[%c0, %c0_0, %c0_1, %c0_2] : memref<1x10x10x128xbf16, #tpu.memory_space<vmem>>, vector<1x10x10x128xbf16>
    tpu.vector_store %arg9[%c0, %c0_0, %c0_1, %c0_2], %0 {strides = array<i32>} : memref<1x10x10x128xbf16, #tpu.memory_space<vmem>>, vector<1x10x10x128xbf16>,
    %cst_3 = arith.constant 0.000000e+00 : bf16
    %2 = vector.broadcast %cst_3 : bf16 to vector<10x10x128xbf16>
    %c0_4 = arith.constant 0 : index
    %c0_5 = arith.constant 0 : index
    %c0_6 = arith.constant 0 : index
    %3 = vector.load %arg11[%c0_4, %c0_5, %c0_6] : memref<10x10x128xbf16, #tpu.memory_space<vmem>>, vector<10x10x128xbf16>
    tpu.vector_store %arg11[%c0_4, %c0_5, %c0_6], %2 {strides = array<i32>} : memref<10x10x128xbf16, #tpu.memory_space<vmem>>, vector<10x10x128xbf16>,
    %c0_7 = arith.constant 0 : index
    %c0_8 = arith.constant 0 : index
    %c0_9 = arith.constant 0 : index
    %c0_10 = arith.constant 0 : index
    %4 = vector.load %arg1[%c0_7, %c0_8, %c0_9, %c0_10] : memref<8x1x8x128xbf16, #tpu.memory_space<vmem>>, vector<8x1x8x128xbf16>
    %5 = vector.shape_cast %4 : vector<8x1x8x128xbf16> to vector<8x8x128xbf16>
    %6 = vector.shape_cast %5 : vector<8x8x128xbf16> to vector<64x128xbf16>
    %7 = arith.extf %6 : vector<64x128xbf16> to vector<64x128xf32>
    %c0_11 = arith.constant 0 : index
    %c0_12 = arith.constant 0 : index
    %8 = vector.load %arg4[%c0_11, %c0_12] : memref<1x128xf32, #tpu.memory_space<vmem>>, vector<1x128xf32>
    %9 = vector.broadcast %8 : vector<1x128xf32> to vector<64x128xf32>
    %10 = arith.mulf %7, %9 : vector<64x128xf32>
    %c0_13 = arith.constant 0 : index
    %c0_14 = arith.constant 0 : index
    %11 = vector.load %arg5[%c0_13, %c0_14] : memref<1x128xf32, #tpu.memory_space<vmem>>, vector<1x128xf32>
    %12 = vector.broadcast %11 : vector<1x128xf32> to vector<64x128xf32>
    %13 = arith.addf %10, %12 : vector<64x128xf32>
    %cst_15 = arith.constant 0.000000e+00 : f32
    %14 = vector.broadcast %cst_15 : f32 to vector<64x128xf32>
    %15 = arith.maximumf %13, %14 : vector<64x128xf32>
    %16 = vector.shape_cast %15 : vector<64x128xf32> to vector<8x8x128xf32>
    %17 = arith.truncf %16 : vector<8x8x128xf32> to vector<8x8x128xbf16>
    %c0_16 = arith.constant 0 : index
    %c1 = arith.constant 1 : index
    %c1_17 = arith.constant 1 : index
    %c0_18 = arith.constant 0 : index
    %18 = vector.load %arg9[%c0_16, %c1, %c1_17, %c0_18] : memref<1x10x10x128xbf16, #tpu.memory_space<vmem>>, vector<1x8x8x128xbf16>
    %19 = vector.shape_cast %18 : vector<1x8x8x128xbf16> to vector<8x8x128xbf16>
    %20 = vector.shape_cast %17 : vector<8x8x128xbf16> to vector<1x8x8x128xbf16>
    tpu.vector_store %arg9[%c0_16, %c1, %c1_17, %c0_18], %20 {strides = array<i32>} : memref<1x10x10x128xbf16, #tpu.memory_space<vmem>>, vector<1x8x8x128xbf16>,
    %c0_19 = arith.constant 0 : index
    %c0_20 = arith.constant 0 : index
    %c0_21 = arith.constant 0 : index
    %c0_22 = arith.constant 0 : index
    %21 = vector.load %arg9[%c0_19, %c0_20, %c0_21, %c0_22] : memref<1x10x10x128xbf16, #tpu.memory_space<vmem>>, vector<1x8x8x128xbf16>
    %22 = vector.shape_cast %21 : vector<1x8x8x128xbf16> to vector<8x8x128xbf16>
    %23 = vector.shape_cast %22 : vector<8x8x128xbf16> to vector<64x128xbf16>
    %c0_23 = arith.constant 0 : index
    %c0_24 = arith.constant 0 : index
    %24 = vector.load %arg10[%c0_23, %c0_24] : memref<64x1152xbf16, #tpu.memory_space<vmem>>, vector<64x128xbf16>
    tpu.vector_store %arg10[%c0_23, %c0_24], %23 {strides = array<i32>} : memref<64x1152xbf16, #tpu.memory_space<vmem>>, vector<64x128xbf16>,
    %c0_25 = arith.constant 0 : index
    %c0_26 = arith.constant 0 : index
    %c1_27 = arith.constant 1 : index
    %c0_28 = arith.constant 0 : index
    %25 = vector.load %arg9[%c0_25, %c0_26, %c1_27, %c0_28] : memref<1x10x10x128xbf16, #tpu.memory_space<vmem>>, vector<1x8x8x128xbf16>
    %26 = vector.shape_cast %25 : vector<1x8x8x128xbf16> to vector<8x8x128xbf16>
    %27 = vector.shape_cast %26 : vector<8x8x128xbf16> to vector<64x128xbf16>
    %c0_29 = arith.constant 0 : index
    %c128 = arith.constant 128 : index
    %28 = vector.load %arg10[%c0_29, %c128] : memref<64x1152xbf16, #tpu.memory_space<vmem>>, vector<64x128xbf16>
    tpu.vector_store %arg10[%c0_29, %c128], %27 {strides = array<i32>} : memref<64x1152xbf16, #tpu.memory_space<vmem>>, vector<64x128xbf16>,
    %c0_30 = arith.constant 0 : index
    %c0_31 = arith.constant 0 : index
    %c2 = arith.constant 2 : index
    %c0_32 = arith.constant 0 : index
    %29 = vector.load %arg9[%c0_30, %c0_31, %c2, %c0_32] : memref<1x10x10x128xbf16, #tpu.memory_space<vmem>>, vector<1x8x8x128xbf16>
    %30 = vector.shape_cast %29 : vector<1x8x8x128xbf16> to vector<8x8x128xbf16>
    %31 = vector.shape_cast %30 : vector<8x8x128xbf16> to vector<64x128xbf16>
    %c0_33 = arith.constant 0 : index
    %c256 = arith.constant 256 : index
    %32 = vector.load %arg10[%c0_33, %c256] : memref<64x1152xbf16, #tpu.memory_space<vmem>>, vector<64x128xbf16>
    tpu.vector_store %arg10[%c0_33, %c256], %31 {strides = array<i32>} : memref<64x1152xbf16, #tpu.memory_space<vmem>>, vector<64x128xbf16>,
    %c0_34 = arith.constant 0 : index
    %c1_35 = arith.constant 1 : index
    %c0_36 = arith.constant 0 : index
    %c0_37 = arith.constant 0 : index
    %33 = vector.load %arg9[%c0_34, %c1_35, %c0_36, %c0_37] : memref<1x10x10x128xbf16, #tpu.memory_space<vmem>>, vector<1x8x8x128xbf16>
    %34 = vector.shape_cast %33 : vector<1x8x8x128xbf16> to vector<8x8x128xbf16>
    %35 = vector.shape_cast %34 : vector<8x8x128xbf16> to vector<64x128xbf16>
    %c0_38 = arith.constant 0 : index
    %c384 = arith.constant 384 : index
    %36 = vector.load %arg10[%c0_38, %c384] : memref<64x1152xbf16, #tpu.memory_space<vmem>>, vector<64x128xbf16>
    tpu.vector_store %arg10[%c0_38, %c384], %35 {strides = array<i32>} : memref<64x1152xbf16, #tpu.memory_space<vmem>>, vector<64x128xbf16>,
    %c0_39 = arith.constant 0 : index
    %c1_40 = arith.constant 1 : index
    %c1_41 = arith.constant 1 : index
    %c0_42 = arith.constant 0 : index
    %37 = vector.load %arg9[%c0_39, %c1_40, %c1_41, %c0_42] : memref<1x10x10x128xbf16, #tpu.memory_space<vmem>>, vector<1x8x8x128xbf16>
    %38 = vector.shape_cast %37 : vector<1x8x8x128xbf16> to vector<8x8x128xbf16>
    %39 = vector.shape_cast %38 : vector<8x8x128xbf16> to vector<64x128xbf16>
    %c0_43 = arith.constant 0 : index
    %c512 = arith.constant 512 : index
    %40 = vector.load %arg10[%c0_43, %c512] : memref<64x1152xbf16, #tpu.memory_space<vmem>>, vector<64x128xbf16>
    tpu.vector_store %arg10[%c0_43, %c512], %39 {strides = array<i32>} : memref<64x1152xbf16, #tpu.memory_space<vmem>>, vector<64x128xbf16>,
    %c0_44 = arith.constant 0 : index
    %c1_45 = arith.constant 1 : index
    %c2_46 = arith.constant 2 : index
    %c0_47 = arith.constant 0 : index
    %41 = vector.load %arg9[%c0_44, %c1_45, %c2_46, %c0_47] : memref<1x10x10x128xbf16, #tpu.memory_space<vmem>>, vector<1x8x8x128xbf16>
    %42 = vector.shape_cast %41 : vector<1x8x8x128xbf16> to vector<8x8x128xbf16>
    %43 = vector.shape_cast %42 : vector<8x8x128xbf16> to vector<64x128xbf16>
    %c0_48 = arith.constant 0 : index
    %c640 = arith.constant 640 : index
    %44 = vector.load %arg10[%c0_48, %c640] : memref<64x1152xbf16, #tpu.memory_space<vmem>>, vector<64x128xbf16>
    tpu.vector_store %arg10[%c0_48, %c640], %43 {strides = array<i32>} : memref<64x1152xbf16, #tpu.memory_space<vmem>>, vector<64x128xbf16>,
    %c0_49 = arith.constant 0 : index
    %c2_50 = arith.constant 2 : index
    %c0_51 = arith.constant 0 : index
    %c0_52 = arith.constant 0 : index
    %45 = vector.load %arg9[%c0_49, %c2_50, %c0_51, %c0_52] : memref<1x10x10x128xbf16, #tpu.memory_space<vmem>>, vector<1x8x8x128xbf16>
    %46 = vector.shape_cast %45 : vector<1x8x8x128xbf16> to vector<8x8x128xbf16>
    %47 = vector.shape_cast %46 : vector<8x8x128xbf16> to vector<64x128xbf16>
    %c0_53 = arith.constant 0 : index
    %c768 = arith.constant 768 : index
    %48 = vector.load %arg10[%c0_53, %c768] : memref<64x1152xbf16, #tpu.memory_space<vmem>>, vector<64x128xbf16>
    tpu.vector_store %arg10[%c0_53, %c768], %47 {strides = array<i32>} : memref<64x1152xbf16, #tpu.memory_space<vmem>>, vector<64x128xbf16>,
    %c0_54 = arith.constant 0 : index
    %c2_55 = arith.constant 2 : index
    %c1_56 = arith.constant 1 : index
    %c0_57 = arith.constant 0 : index
    %49 = vector.load %arg9[%c0_54, %c2_55, %c1_56, %c0_57] : memref<1x10x10x128xbf16, #tpu.memory_space<vmem>>, vector<1x8x8x128xbf16>
    %50 = vector.shape_cast %49 : vector<1x8x8x128xbf16> to vector<8x8x128xbf16>
    %51 = vector.shape_cast %50 : vector<8x8x128xbf16> to vector<64x128xbf16>
    %c0_58 = arith.constant 0 : index
    %c896 = arith.constant 896 : index
    %52 = vector.load %arg10[%c0_58, %c896] : memref<64x1152xbf16, #tpu.memory_space<vmem>>, vector<64x128xbf16>
    tpu.vector_store %arg10[%c0_58, %c896], %51 {strides = array<i32>} : memref<64x1152xbf16, #tpu.memory_space<vmem>>, vector<64x128xbf16>,
    %c0_59 = arith.constant 0 : index
    %c2_60 = arith.constant 2 : index
    %c2_61 = arith.constant 2 : index
    %c0_62 = arith.constant 0 : index
    %53 = vector.load %arg9[%c0_59, %c2_60, %c2_61, %c0_62] : memref<1x10x10x128xbf16, #tpu.memory_space<vmem>>, vector<1x8x8x128xbf16>
    %54 = vector.shape_cast %53 : vector<1x8x8x128xbf16> to vector<8x8x128xbf16>
    %55 = vector.shape_cast %54 : vector<8x8x128xbf16> to vector<64x128xbf16>
    %c0_63 = arith.constant 0 : index
    %c1024 = arith.constant 1024 : index
    %56 = vector.load %arg10[%c0_63, %c1024] : memref<64x1152xbf16, #tpu.memory_space<vmem>>, vector<64x128xbf16>
    tpu.vector_store %arg10[%c0_63, %c1024], %55 {strides = array<i32>} : memref<64x1152xbf16, #tpu.memory_space<vmem>>, vector<64x128xbf16>,
    %c0_64 = arith.constant 0 : index
    %c0_65 = arith.constant 0 : index
    %57 = vector.load %arg10[%c0_64, %c0_65] : memref<64x1152xbf16, #tpu.memory_space<vmem>>, vector<64x1152xbf16>
    %c0_66 = arith.constant 0 : index
    %c0_67 = arith.constant 0 : index
    %58 = vector.load %arg2[%c0_66, %c0_67] : memref<1152x128xbf16, #tpu.memory_space<vmem>>, vector<1152x128xbf16>
    %cst_68 = arith.constant dense<0.000000e+00> : vector<64x128xf32>
    %59 = tpu.matmul %57, %58, %cst_68 {dimension_numbers = #tpu.dot_dimension_numbers<[1], [0], [0], [1], [0, 0, 1, 1], [], []>} : vector<64x1152xbf16>, vector<1152x128xbf16>, vector<64x128xf32> -> vector<64x128xf32>
    %c0_69 = arith.constant 0 : index
    %c0_70 = arith.constant 0 : index
    %60 = vector.load %arg6[%c0_69, %c0_70] : memref<1x128xf32, #tpu.memory_space<vmem>>, vector<1x128xf32>
    %61 = vector.broadcast %60 : vector<1x128xf32> to vector<64x128xf32>
    %62 = arith.mulf %59, %61 : vector<64x128xf32>
    %c0_71 = arith.constant 0 : index
    %c0_72 = arith.constant 0 : index
    %63 = vector.load %arg7[%c0_71, %c0_72] : memref<1x128xf32, #tpu.memory_space<vmem>>, vector<1x128xf32>
    %64 = vector.broadcast %63 : vector<1x128xf32> to vector<64x128xf32>
    %65 = arith.addf %62, %64 : vector<64x128xf32>
    %cst_73 = arith.constant 0.000000e+00 : f32
    %66 = vector.broadcast %cst_73 : f32 to vector<64x128xf32>
    %67 = arith.maximumf %65, %66 : vector<64x128xf32>
    %68 = vector.shape_cast %67 : vector<64x128xf32> to vector<8x8x128xf32>
    %69 = arith.truncf %68 : vector<8x8x128xf32> to vector<8x8x128xbf16>
    %c1_74 = arith.constant 1 : index
    %c1_75 = arith.constant 1 : index
    %c0_76 = arith.constant 0 : index
    %70 = vector.load %arg11[%c1_74, %c1_75, %c0_76] : memref<10x10x128xbf16, #tpu.memory_space<vmem>>, vector<8x8x128xbf16>
    tpu.vector_store %arg11[%c1_74, %c1_75, %c0_76], %69 {strides = array<i32>} : memref<10x10x128xbf16, #tpu.memory_space<vmem>>, vector<8x8x128xbf16>,
    %c0_77 = arith.constant 0 : index
    %c0_78 = arith.constant 0 : index
    %c0_79 = arith.constant 0 : index
    %71 = vector.load %arg11[%c0_77, %c0_78, %c0_79] : memref<10x10x128xbf16, #tpu.memory_space<vmem>>, vector<8x8x128xbf16>
    %72 = vector.shape_cast %71 : vector<8x8x128xbf16> to vector<64x128xbf16>
    %c0_80 = arith.constant 0 : index
    %c0_81 = arith.constant 0 : index
    %73 = vector.load %arg12[%c0_80, %c0_81] : memref<64x1152xbf16, #tpu.memory_space<vmem>>, vector<64x128xbf16>
    tpu.vector_store %arg12[%c0_80, %c0_81], %72 {strides = array<i32>} : memref<64x1152xbf16, #tpu.memory_space<vmem>>, vector<64x128xbf16>,
    %c0_82 = arith.constant 0 : index
    %c1_83 = arith.constant 1 : index
    %c0_84 = arith.constant 0 : index
    %74 = vector.load %arg11[%c0_82, %c1_83, %c0_84] : memref<10x10x128xbf16, #tpu.memory_space<vmem>>, vector<8x8x128xbf16>
    %75 = vector.shape_cast %74 : vector<8x8x128xbf16> to vector<64x128xbf16>
    %c0_85 = arith.constant 0 : index
    %c128_86 = arith.constant 128 : index
    %76 = vector.load %arg12[%c0_85, %c128_86] : memref<64x1152xbf16, #tpu.memory_space<vmem>>, vector<64x128xbf16>
    tpu.vector_store %arg12[%c0_85, %c128_86], %75 {strides = array<i32>} : memref<64x1152xbf16, #tpu.memory_space<vmem>>, vector<64x128xbf16>,
    %c0_87 = arith.constant 0 : index
    %c2_88 = arith.constant 2 : index
    %c0_89 = arith.constant 0 : index
    %77 = vector.load %arg11[%c0_87, %c2_88, %c0_89] : memref<10x10x128xbf16, #tpu.memory_space<vmem>>, vector<8x8x128xbf16>
    %78 = vector.shape_cast %77 : vector<8x8x128xbf16> to vector<64x128xbf16>
    %c0_90 = arith.constant 0 : index
    %c256_91 = arith.constant 256 : index
    %79 = vector.load %arg12[%c0_90, %c256_91] : memref<64x1152xbf16, #tpu.memory_space<vmem>>, vector<64x128xbf16>
    tpu.vector_store %arg12[%c0_90, %c256_91], %78 {strides = array<i32>} : memref<64x1152xbf16, #tpu.memory_space<vmem>>, vector<64x128xbf16>,
    %c1_92 = arith.constant 1 : index
    %c0_93 = arith.constant 0 : index
    %c0_94 = arith.constant 0 : index
    %80 = vector.load %arg11[%c1_92, %c0_93, %c0_94] : memref<10x10x128xbf16, #tpu.memory_space<vmem>>, vector<8x8x128xbf16>
    %81 = vector.shape_cast %80 : vector<8x8x128xbf16> to vector<64x128xbf16>
    %c0_95 = arith.constant 0 : index
    %c384_96 = arith.constant 384 : index
    %82 = vector.load %arg12[%c0_95, %c384_96] : memref<64x1152xbf16, #tpu.memory_space<vmem>>, vector<64x128xbf16>
    tpu.vector_store %arg12[%c0_95, %c384_96], %81 {strides = array<i32>} : memref<64x1152xbf16, #tpu.memory_space<vmem>>, vector<64x128xbf16>,
    %c1_97 = arith.constant 1 : index
    %c1_98 = arith.constant 1 : index
    %c0_99 = arith.constant 0 : index
    %83 = vector.load %arg11[%c1_97, %c1_98, %c0_99] : memref<10x10x128xbf16, #tpu.memory_space<vmem>>, vector<8x8x128xbf16>
    %84 = vector.shape_cast %83 : vector<8x8x128xbf16> to vector<64x128xbf16>
    %c0_100 = arith.constant 0 : index
    %c512_101 = arith.constant 512 : index
    %85 = vector.load %arg12[%c0_100, %c512_101] : memref<64x1152xbf16, #tpu.memory_space<vmem>>, vector<64x128xbf16>
    tpu.vector_store %arg12[%c0_100, %c512_101], %84 {strides = array<i32>} : memref<64x1152xbf16, #tpu.memory_space<vmem>>, vector<64x128xbf16>,
    %c1_102 = arith.constant 1 : index
    %c2_103 = arith.constant 2 : index
    %c0_104 = arith.constant 0 : index
    %86 = vector.load %arg11[%c1_102, %c2_103, %c0_104] : memref<10x10x128xbf16, #tpu.memory_space<vmem>>, vector<8x8x128xbf16>
    %87 = vector.shape_cast %86 : vector<8x8x128xbf16> to vector<64x128xbf16>
    %c0_105 = arith.constant 0 : index
    %c640_106 = arith.constant 640 : index
    %88 = vector.load %arg12[%c0_105, %c640_106] : memref<64x1152xbf16, #tpu.memory_space<vmem>>, vector<64x128xbf16>
    tpu.vector_store %arg12[%c0_105, %c640_106], %87 {strides = array<i32>} : memref<64x1152xbf16, #tpu.memory_space<vmem>>, vector<64x128xbf16>,
    %c2_107 = arith.constant 2 : index
    %c0_108 = arith.constant 0 : index
    %c0_109 = arith.constant 0 : index
    %89 = vector.load %arg11[%c2_107, %c0_108, %c0_109] : memref<10x10x128xbf16, #tpu.memory_space<vmem>>, vector<8x8x128xbf16>
    %90 = vector.shape_cast %89 : vector<8x8x128xbf16> to vector<64x128xbf16>
    %c0_110 = arith.constant 0 : index
    %c768_111 = arith.constant 768 : index
    %91 = vector.load %arg12[%c0_110, %c768_111] : memref<64x1152xbf16, #tpu.memory_space<vmem>>, vector<64x128xbf16>
    tpu.vector_store %arg12[%c0_110, %c768_111], %90 {strides = array<i32>} : memref<64x1152xbf16, #tpu.memory_space<vmem>>, vector<64x128xbf16>,
    %c2_112 = arith.constant 2 : index
    %c1_113 = arith.constant 1 : index
    %c0_114 = arith.constant 0 : index
    %92 = vector.load %arg11[%c2_112, %c1_113, %c0_114] : memref<10x10x128xbf16, #tpu.memory_space<vmem>>, vector<8x8x128xbf16>
    %93 = vector.shape_cast %92 : vector<8x8x128xbf16> to vector<64x128xbf16>
    %c0_115 = arith.constant 0 : index
    %c896_116 = arith.constant 896 : index
    %94 = vector.load %arg12[%c0_115, %c896_116] : memref<64x1152xbf16, #tpu.memory_space<vmem>>, vector<64x128xbf16>
    tpu.vector_store %arg12[%c0_115, %c896_116], %93 {strides = array<i32>} : memref<64x1152xbf16, #tpu.memory_space<vmem>>, vector<64x128xbf16>,
    %c2_117 = arith.constant 2 : index
    %c2_118 = arith.constant 2 : index
    %c0_119 = arith.constant 0 : index
    %95 = vector.load %arg11[%c2_117, %c2_118, %c0_119] : memref<10x10x128xbf16, #tpu.memory_space<vmem>>, vector<8x8x128xbf16>
    %96 = vector.shape_cast %95 : vector<8x8x128xbf16> to vector<64x128xbf16>
    %c0_120 = arith.constant 0 : index
    %c1024_121 = arith.constant 1024 : index
    %97 = vector.load %arg12[%c0_120, %c1024_121] : memref<64x1152xbf16, #tpu.memory_space<vmem>>, vector<64x128xbf16>
    tpu.vector_store %arg12[%c0_120, %c1024_121], %96 {strides = array<i32>} : memref<64x1152xbf16, #tpu.memory_space<vmem>>, vector<64x128xbf16>,
    %c0_122 = arith.constant 0 : index
    %c0_123 = arith.constant 0 : index
    %c0_124 = arith.constant 0 : index
    %c0_125 = arith.constant 0 : index
    %98 = vector.load %arg1[%c0_122, %c0_123, %c0_124, %c0_125] : memref<8x1x8x128xbf16, #tpu.memory_space<vmem>>, vector<8x1x8x128xbf16>
    %99 = vector.shape_cast %98 : vector<8x1x8x128xbf16> to vector<8x8x128xbf16>
    %100 = vector.shape_cast %99 : vector<8x8x128xbf16> to vector<64x128xbf16>
    %101 = arith.extf %100 : vector<64x128xbf16> to vector<64x128xf32>
    %c0_126 = arith.constant 0 : index
    %c0_127 = arith.constant 0 : index
    %102 = vector.load %arg12[%c0_126, %c0_127] : memref<64x1152xbf16, #tpu.memory_space<vmem>>, vector<64x1152xbf16>
    %c0_128 = arith.constant 0 : index
    %c0_129 = arith.constant 0 : index
    %103 = vector.load %arg3[%c0_128, %c0_129] : memref<1152x128xbf16, #tpu.memory_space<vmem>>, vector<1152x128xbf16>
    %cst_130 = arith.constant dense<0.000000e+00> : vector<64x128xf32>
    %104 = tpu.matmul %102, %103, %cst_130 {dimension_numbers = #tpu.dot_dimension_numbers<[1], [0], [0], [1], [0, 0, 1, 1], [], []>} : vector<64x1152xbf16>, vector<1152x128xbf16>, vector<64x128xf32> -> vector<64x128xf32>
    %105 = arith.addf %104, %101 : vector<64x128xf32>
    %106 = vector.shape_cast %105 : vector<64x128xf32> to vector<1x8x8x128xf32>
    %107 = arith.truncf %106 : vector<1x8x8x128xf32> to vector<1x8x8x128xbf16>
    %c0_131 = arith.constant 0 : index
    %c0_132 = arith.constant 0 : index
    %c0_133 = arith.constant 0 : index
    %c0_134 = arith.constant 0 : index
    %108 = vector.load %arg8[%c0_131, %c0_132, %c0_133, %c0_134] : memref<1x8x8x128xbf16, #tpu.memory_space<vmem>>, vector<1x8x8x128xbf16>
    tpu.vector_store %arg8[%c0_131, %c0_132, %c0_133, %c0_134], %107 {strides = array<i32>} : memref<1x8x8x128xbf16, #tpu.memory_space<vmem>>, vector<1x8x8x128xbf16>,
    return
  }
  func.func @transform_0(%arg0: i32) -> (i32, i32, i32, i32) {
    %c0_i32 = arith.constant 0 : i32
    %c0_i32_0 = arith.constant 0 : i32
    %c0_i32_1 = arith.constant 0 : i32
    %c0_i32_2 = arith.constant 0 : i32
    return %arg0, %c0_i32, %c0_i32_0, %c0_i32_1 : i32, i32, i32, i32
  }
  func.func @transform_1(%arg0: i32) -> (i32, i32) {
    %c0_i32 = arith.constant 0 : i32
    %c0_i32_0 = arith.constant 0 : i32
    %c0_i32_1 = arith.constant 0 : i32
    return %c0_i32, %c0_i32_0 : i32, i32
  }
  func.func @transform_2(%arg0: i32) -> (i32, i32) {
    %c0_i32 = arith.constant 0 : i32
    %c0_i32_0 = arith.constant 0 : i32
    %c0_i32_1 = arith.constant 0 : i32
    return %c0_i32, %c0_i32_0 : i32, i32
  }
  func.func @transform_3(%arg0: i32) -> (i32, i32) {
    %c0_i32 = arith.constant 0 : i32
    %c0_i32_0 = arith.constant 0 : i32
    %c0_i32_1 = arith.constant 0 : i32
    return %c0_i32, %c0_i32_0 : i32, i32
  }
  func.func @transform_4(%arg0: i32) -> (i32, i32) {
    %c0_i32 = arith.constant 0 : i32
    %c0_i32_0 = arith.constant 0 : i32
    %c0_i32_1 = arith.constant 0 : i32
    return %c0_i32, %c0_i32_0 : i32, i32
  }
  func.func @transform_5(%arg0: i32) -> (i32, i32) {
    %c0_i32 = arith.constant 0 : i32
    %c0_i32_0 = arith.constant 0 : i32
    %c0_i32_1 = arith.constant 0 : i32
    return %c0_i32, %c0_i32_0 : i32, i32
  }
  func.func @transform_6(%arg0: i32) -> (i32, i32) {
    %c0_i32 = arith.constant 0 : i32
    %c0_i32_0 = arith.constant 0 : i32
    %c0_i32_1 = arith.constant 0 : i32
    return %c0_i32, %c0_i32_0 : i32, i32
  }
  func.func @transform_7(%arg0: i32) -> (i32, i32, i32, i32) {
    %c0_i32 = arith.constant 0 : i32
    %c0_i32_0 = arith.constant 0 : i32
    %c0_i32_1 = arith.constant 0 : i32
    %c0_i32_2 = arith.constant 0 : i32
    return %arg0, %c0_i32, %c0_i32_0, %c0_i32_1 : i32, i32, i32, i32
  }
}

module attributes {stable_mosaic.version = 11 : i64} {
  func.func @body(%arg0: i32, %arg1: memref<8x2x8x256xbf16, #tpu.memory_space<vmem>>, %arg2: memref<1152x128xbf16, #tpu.memory_space<vmem>>, %arg3: memref<1152x128xbf16, #tpu.memory_space<vmem>>, %arg4: memref<1x128xf32, #tpu.memory_space<vmem>>, %arg5: memref<1x128xf32, #tpu.memory_space<vmem>>, %arg6: memref<1x128xf32, #tpu.memory_space<vmem>>, %arg7: memref<1x128xf32, #tpu.memory_space<vmem>>, %arg8: memref<128x128xbf16, #tpu.memory_space<vmem>>, %arg9: memref<1x8x8x128xbf16, #tpu.memory_space<vmem>>, %arg10: memref<4x9x9x128xbf16, #tpu.memory_space<vmem>>, %arg11: memref<64x1152xbf16, #tpu.memory_space<vmem>>, %arg12: memref<10x10x128xbf16, #tpu.memory_space<vmem>>, %arg13: memref<64x1152xbf16, #tpu.memory_space<vmem>>) attributes {dimension_semantics = [#tpu.dimension_semantics<parallel>], iteration_bounds = array<i64: 2>, scalar_prefetch = 0 : i64, scratch_operands = 4 : i64, tpu.core_type = #tpu.core_type<tc>, window_params = [{transform_indices = @transform_0, window_bounds = array<i64: 8, 2, 8, 256>}, {pipeline_mode = #tpu.pipeline_mode<synchronous>, transform_indices = @transform_1, window_bounds = array<i64: 1152, 128>}, {pipeline_mode = #tpu.pipeline_mode<synchronous>, transform_indices = @transform_2, window_bounds = array<i64: 1152, 128>}, {pipeline_mode = #tpu.pipeline_mode<synchronous>, transform_indices = @transform_3, window_bounds = array<i64: 1, 128>}, {pipeline_mode = #tpu.pipeline_mode<synchronous>, transform_indices = @transform_4, window_bounds = array<i64: 1, 128>}, {pipeline_mode = #tpu.pipeline_mode<synchronous>, transform_indices = @transform_5, window_bounds = array<i64: 1, 128>}, {pipeline_mode = #tpu.pipeline_mode<synchronous>, transform_indices = @transform_6, window_bounds = array<i64: 1, 128>}, {pipeline_mode = #tpu.pipeline_mode<synchronous>, transform_indices = @transform_7, window_bounds = array<i64: 128, 128>}, {transform_indices = @transform_8, window_bounds = array<i64: 1, 8, 8, 128>}]} {
    %cst = arith.constant 0.000000e+00 : bf16
    %0 = vector.broadcast %cst : bf16 to vector<4x9x9x128xbf16>
    %c0 = arith.constant 0 : index
    %c0_0 = arith.constant 0 : index
    %c0_1 = arith.constant 0 : index
    %c0_2 = arith.constant 0 : index
    %1 = vector.load %arg10[%c0, %c0_0, %c0_1, %c0_2] : memref<4x9x9x128xbf16, #tpu.memory_space<vmem>>, vector<4x9x9x128xbf16>
    tpu.vector_store %arg10[%c0, %c0_0, %c0_1, %c0_2], %0 {strides = array<i32>} : memref<4x9x9x128xbf16, #tpu.memory_space<vmem>>, vector<4x9x9x128xbf16>,
    %cst_3 = arith.constant 0.000000e+00 : bf16
    %2 = vector.broadcast %cst_3 : bf16 to vector<10x10x128xbf16>
    %c0_4 = arith.constant 0 : index
    %c0_5 = arith.constant 0 : index
    %c0_6 = arith.constant 0 : index
    %3 = vector.load %arg12[%c0_4, %c0_5, %c0_6] : memref<10x10x128xbf16, #tpu.memory_space<vmem>>, vector<10x10x128xbf16>
    tpu.vector_store %arg12[%c0_4, %c0_5, %c0_6], %2 {strides = array<i32>} : memref<10x10x128xbf16, #tpu.memory_space<vmem>>, vector<10x10x128xbf16>,
    %c0_7 = arith.constant 0 : index
    %c0_8 = arith.constant 0 : index
    %c0_9 = arith.constant 0 : index
    %c0_10 = arith.constant 0 : index
    %4 = vector.load %arg1[%c0_7, %c0_8, %c0_9, %c0_10] : memref<8x2x8x256xbf16, #tpu.memory_space<vmem>>, vector<8x1x8x128xbf16>
    %5 = vector.shape_cast %4 : vector<8x1x8x128xbf16> to vector<8x8x128xbf16>
    %6 = vector.shape_cast %5 : vector<8x8x128xbf16> to vector<64x128xbf16>
    %7 = arith.extf %6 : vector<64x128xbf16> to vector<64x128xf32>
    %c0_11 = arith.constant 0 : index
    %c0_12 = arith.constant 0 : index
    %8 = vector.load %arg4[%c0_11, %c0_12] : memref<1x128xf32, #tpu.memory_space<vmem>>, vector<1x128xf32>
    %9 = vector.broadcast %8 : vector<1x128xf32> to vector<64x128xf32>
    %10 = arith.mulf %7, %9 : vector<64x128xf32>
    %c0_13 = arith.constant 0 : index
    %c0_14 = arith.constant 0 : index
    %11 = vector.load %arg5[%c0_13, %c0_14] : memref<1x128xf32, #tpu.memory_space<vmem>>, vector<1x128xf32>
    %12 = vector.broadcast %11 : vector<1x128xf32> to vector<64x128xf32>
    %13 = arith.addf %10, %12 : vector<64x128xf32>
    %cst_15 = arith.constant 0.000000e+00 : f32
    %14 = vector.broadcast %cst_15 : f32 to vector<64x128xf32>
    %15 = arith.maximumf %13, %14 : vector<64x128xf32>
    %16 = vector.shape_cast %15 : vector<64x128xf32> to vector<8x8x128xf32>
    %17 = arith.truncf %16 : vector<8x8x128xf32> to vector<8x8x128xbf16>
    %c3 = arith.constant 3 : index
    %c0_16 = arith.constant 0 : index
    %c0_17 = arith.constant 0 : index
    %c0_18 = arith.constant 0 : index
    %18 = vector.load %arg10[%c3, %c0_16, %c0_17, %c0_18] : memref<4x9x9x128xbf16, #tpu.memory_space<vmem>>, vector<1x8x8x128xbf16>
    %19 = vector.shape_cast %18 : vector<1x8x8x128xbf16> to vector<8x8x128xbf16>
    %20 = vector.shape_cast %17 : vector<8x8x128xbf16> to vector<1x8x8x128xbf16>
    tpu.vector_store %arg10[%c3, %c0_16, %c0_17, %c0_18], %20 {strides = array<i32>} : memref<4x9x9x128xbf16, #tpu.memory_space<vmem>>, vector<1x8x8x128xbf16>,
    %c0_19 = arith.constant 0 : index
    %c0_20 = arith.constant 0 : index
    %c0_21 = arith.constant 0 : index
    %c128 = arith.constant 128 : index
    %21 = vector.load %arg1[%c0_19, %c0_20, %c0_21, %c128] : memref<8x2x8x256xbf16, #tpu.memory_space<vmem>>, vector<8x1x8x128xbf16>
    %22 = vector.shape_cast %21 : vector<8x1x8x128xbf16> to vector<8x8x128xbf16>
    %23 = vector.shape_cast %22 : vector<8x8x128xbf16> to vector<64x128xbf16>
    %24 = arith.extf %23 : vector<64x128xbf16> to vector<64x128xf32>
    %c0_22 = arith.constant 0 : index
    %c0_23 = arith.constant 0 : index
    %25 = vector.load %arg4[%c0_22, %c0_23] : memref<1x128xf32, #tpu.memory_space<vmem>>, vector<1x128xf32>
    %26 = vector.broadcast %25 : vector<1x128xf32> to vector<64x128xf32>
    %27 = arith.mulf %24, %26 : vector<64x128xf32>
    %c0_24 = arith.constant 0 : index
    %c0_25 = arith.constant 0 : index
    %28 = vector.load %arg5[%c0_24, %c0_25] : memref<1x128xf32, #tpu.memory_space<vmem>>, vector<1x128xf32>
    %29 = vector.broadcast %28 : vector<1x128xf32> to vector<64x128xf32>
    %30 = arith.addf %27, %29 : vector<64x128xf32>
    %cst_26 = arith.constant 0.000000e+00 : f32
    %31 = vector.broadcast %cst_26 : f32 to vector<64x128xf32>
    %32 = arith.maximumf %30, %31 : vector<64x128xf32>
    %33 = vector.shape_cast %32 : vector<64x128xf32> to vector<8x8x128xf32>
    %34 = arith.truncf %33 : vector<8x8x128xf32> to vector<8x8x128xbf16>
    %c2 = arith.constant 2 : index
    %c0_27 = arith.constant 0 : index
    %c1 = arith.constant 1 : index
    %c0_28 = arith.constant 0 : index
    %35 = vector.load %arg10[%c2, %c0_27, %c1, %c0_28] : memref<4x9x9x128xbf16, #tpu.memory_space<vmem>>, vector<1x8x8x128xbf16>
    %36 = vector.shape_cast %35 : vector<1x8x8x128xbf16> to vector<8x8x128xbf16>
    %37 = vector.shape_cast %34 : vector<8x8x128xbf16> to vector<1x8x8x128xbf16>
    tpu.vector_store %arg10[%c2, %c0_27, %c1, %c0_28], %37 {strides = array<i32>} : memref<4x9x9x128xbf16, #tpu.memory_space<vmem>>, vector<1x8x8x128xbf16>,
    %c0_29 = arith.constant 0 : index
    %c1_30 = arith.constant 1 : index
    %c0_31 = arith.constant 0 : index
    %c0_32 = arith.constant 0 : index
    %38 = vector.load %arg1[%c0_29, %c1_30, %c0_31, %c0_32] : memref<8x2x8x256xbf16, #tpu.memory_space<vmem>>, vector<8x1x8x128xbf16>
    %39 = vector.shape_cast %38 : vector<8x1x8x128xbf16> to vector<8x8x128xbf16>
    %40 = vector.shape_cast %39 : vector<8x8x128xbf16> to vector<64x128xbf16>
    %41 = arith.extf %40 : vector<64x128xbf16> to vector<64x128xf32>
    %c0_33 = arith.constant 0 : index
    %c0_34 = arith.constant 0 : index
    %42 = vector.load %arg4[%c0_33, %c0_34] : memref<1x128xf32, #tpu.memory_space<vmem>>, vector<1x128xf32>
    %43 = vector.broadcast %42 : vector<1x128xf32> to vector<64x128xf32>
    %44 = arith.mulf %41, %43 : vector<64x128xf32>
    %c0_35 = arith.constant 0 : index
    %c0_36 = arith.constant 0 : index
    %45 = vector.load %arg5[%c0_35, %c0_36] : memref<1x128xf32, #tpu.memory_space<vmem>>, vector<1x128xf32>
    %46 = vector.broadcast %45 : vector<1x128xf32> to vector<64x128xf32>
    %47 = arith.addf %44, %46 : vector<64x128xf32>
    %cst_37 = arith.constant 0.000000e+00 : f32
    %48 = vector.broadcast %cst_37 : f32 to vector<64x128xf32>
    %49 = arith.maximumf %47, %48 : vector<64x128xf32>
    %50 = vector.shape_cast %49 : vector<64x128xf32> to vector<8x8x128xf32>
    %51 = arith.truncf %50 : vector<8x8x128xf32> to vector<8x8x128xbf16>
    %c1_38 = arith.constant 1 : index
    %c1_39 = arith.constant 1 : index
    %c0_40 = arith.constant 0 : index
    %c0_41 = arith.constant 0 : index
    %52 = vector.load %arg10[%c1_38, %c1_39, %c0_40, %c0_41] : memref<4x9x9x128xbf16, #tpu.memory_space<vmem>>, vector<1x8x8x128xbf16>
    %53 = vector.shape_cast %52 : vector<1x8x8x128xbf16> to vector<8x8x128xbf16>
    %54 = vector.shape_cast %51 : vector<8x8x128xbf16> to vector<1x8x8x128xbf16>
    tpu.vector_store %arg10[%c1_38, %c1_39, %c0_40, %c0_41], %54 {strides = array<i32>} : memref<4x9x9x128xbf16, #tpu.memory_space<vmem>>, vector<1x8x8x128xbf16>,
    %c0_42 = arith.constant 0 : index
    %c1_43 = arith.constant 1 : index
    %c0_44 = arith.constant 0 : index
    %c128_45 = arith.constant 128 : index
    %55 = vector.load %arg1[%c0_42, %c1_43, %c0_44, %c128_45] : memref<8x2x8x256xbf16, #tpu.memory_space<vmem>>, vector<8x1x8x128xbf16>
    %56 = vector.shape_cast %55 : vector<8x1x8x128xbf16> to vector<8x8x128xbf16>
    %57 = vector.shape_cast %56 : vector<8x8x128xbf16> to vector<64x128xbf16>
    %58 = arith.extf %57 : vector<64x128xbf16> to vector<64x128xf32>
    %c0_46 = arith.constant 0 : index
    %c0_47 = arith.constant 0 : index
    %59 = vector.load %arg4[%c0_46, %c0_47] : memref<1x128xf32, #tpu.memory_space<vmem>>, vector<1x128xf32>
    %60 = vector.broadcast %59 : vector<1x128xf32> to vector<64x128xf32>
    %61 = arith.mulf %58, %60 : vector<64x128xf32>
    %c0_48 = arith.constant 0 : index
    %c0_49 = arith.constant 0 : index
    %62 = vector.load %arg5[%c0_48, %c0_49] : memref<1x128xf32, #tpu.memory_space<vmem>>, vector<1x128xf32>
    %63 = vector.broadcast %62 : vector<1x128xf32> to vector<64x128xf32>
    %64 = arith.addf %61, %63 : vector<64x128xf32>
    %cst_50 = arith.constant 0.000000e+00 : f32
    %65 = vector.broadcast %cst_50 : f32 to vector<64x128xf32>
    %66 = arith.maximumf %64, %65 : vector<64x128xf32>
    %67 = vector.shape_cast %66 : vector<64x128xf32> to vector<8x8x128xf32>
    %68 = arith.truncf %67 : vector<8x8x128xf32> to vector<8x8x128xbf16>
    %c0_51 = arith.constant 0 : index
    %c1_52 = arith.constant 1 : index
    %c1_53 = arith.constant 1 : index
    %c0_54 = arith.constant 0 : index
    %69 = vector.load %arg10[%c0_51, %c1_52, %c1_53, %c0_54] : memref<4x9x9x128xbf16, #tpu.memory_space<vmem>>, vector<1x8x8x128xbf16>
    %70 = vector.shape_cast %69 : vector<1x8x8x128xbf16> to vector<8x8x128xbf16>
    %71 = vector.shape_cast %68 : vector<8x8x128xbf16> to vector<1x8x8x128xbf16>
    tpu.vector_store %arg10[%c0_51, %c1_52, %c1_53, %c0_54], %71 {strides = array<i32>} : memref<4x9x9x128xbf16, #tpu.memory_space<vmem>>, vector<1x8x8x128xbf16>,
    %c0_55 = arith.constant 0 : index
    %c0_56 = arith.constant 0 : index
    %c0_57 = arith.constant 0 : index
    %c0_58 = arith.constant 0 : index
    %72 = vector.load %arg10[%c0_55, %c0_56, %c0_57, %c0_58] : memref<4x9x9x128xbf16, #tpu.memory_space<vmem>>, vector<1x8x8x128xbf16>
    %73 = vector.shape_cast %72 : vector<1x8x8x128xbf16> to vector<8x8x128xbf16>
    %74 = vector.shape_cast %73 : vector<8x8x128xbf16> to vector<64x128xbf16>
    %c0_59 = arith.constant 0 : index
    %c0_60 = arith.constant 0 : index
    %75 = vector.load %arg11[%c0_59, %c0_60] : memref<64x1152xbf16, #tpu.memory_space<vmem>>, vector<64x128xbf16>
    tpu.vector_store %arg11[%c0_59, %c0_60], %74 {strides = array<i32>} : memref<64x1152xbf16, #tpu.memory_space<vmem>>, vector<64x128xbf16>,
    %c1_61 = arith.constant 1 : index
    %c0_62 = arith.constant 0 : index
    %c0_63 = arith.constant 0 : index
    %c0_64 = arith.constant 0 : index
    %76 = vector.load %arg10[%c1_61, %c0_62, %c0_63, %c0_64] : memref<4x9x9x128xbf16, #tpu.memory_space<vmem>>, vector<1x8x8x128xbf16>
    %77 = vector.shape_cast %76 : vector<1x8x8x128xbf16> to vector<8x8x128xbf16>
    %78 = vector.shape_cast %77 : vector<8x8x128xbf16> to vector<64x128xbf16>
    %c0_65 = arith.constant 0 : index
    %c128_66 = arith.constant 128 : index
    %79 = vector.load %arg11[%c0_65, %c128_66] : memref<64x1152xbf16, #tpu.memory_space<vmem>>, vector<64x128xbf16>
    tpu.vector_store %arg11[%c0_65, %c128_66], %78 {strides = array<i32>} : memref<64x1152xbf16, #tpu.memory_space<vmem>>, vector<64x128xbf16>,
    %c0_67 = arith.constant 0 : index
    %c0_68 = arith.constant 0 : index
    %c1_69 = arith.constant 1 : index
    %c0_70 = arith.constant 0 : index
    %80 = vector.load %arg10[%c0_67, %c0_68, %c1_69, %c0_70] : memref<4x9x9x128xbf16, #tpu.memory_space<vmem>>, vector<1x8x8x128xbf16>
    %81 = vector.shape_cast %80 : vector<1x8x8x128xbf16> to vector<8x8x128xbf16>
    %82 = vector.shape_cast %81 : vector<8x8x128xbf16> to vector<64x128xbf16>
    %c0_71 = arith.constant 0 : index
    %c256 = arith.constant 256 : index
    %83 = vector.load %arg11[%c0_71, %c256] : memref<64x1152xbf16, #tpu.memory_space<vmem>>, vector<64x128xbf16>
    tpu.vector_store %arg11[%c0_71, %c256], %82 {strides = array<i32>} : memref<64x1152xbf16, #tpu.memory_space<vmem>>, vector<64x128xbf16>,
    %c2_72 = arith.constant 2 : index
    %c0_73 = arith.constant 0 : index
    %c0_74 = arith.constant 0 : index
    %c0_75 = arith.constant 0 : index
    %84 = vector.load %arg10[%c2_72, %c0_73, %c0_74, %c0_75] : memref<4x9x9x128xbf16, #tpu.memory_space<vmem>>, vector<1x8x8x128xbf16>
    %85 = vector.shape_cast %84 : vector<1x8x8x128xbf16> to vector<8x8x128xbf16>
    %86 = vector.shape_cast %85 : vector<8x8x128xbf16> to vector<64x128xbf16>
    %c0_76 = arith.constant 0 : index
    %c384 = arith.constant 384 : index
    %87 = vector.load %arg11[%c0_76, %c384] : memref<64x1152xbf16, #tpu.memory_space<vmem>>, vector<64x128xbf16>
    tpu.vector_store %arg11[%c0_76, %c384], %86 {strides = array<i32>} : memref<64x1152xbf16, #tpu.memory_space<vmem>>, vector<64x128xbf16>,
    %c3_77 = arith.constant 3 : index
    %c0_78 = arith.constant 0 : index
    %c0_79 = arith.constant 0 : index
    %c0_80 = arith.constant 0 : index
    %88 = vector.load %arg10[%c3_77, %c0_78, %c0_79, %c0_80] : memref<4x9x9x128xbf16, #tpu.memory_space<vmem>>, vector<1x8x8x128xbf16>
    %89 = vector.shape_cast %88 : vector<1x8x8x128xbf16> to vector<8x8x128xbf16>
    %90 = vector.shape_cast %89 : vector<8x8x128xbf16> to vector<64x128xbf16>
    %c0_81 = arith.constant 0 : index
    %c512 = arith.constant 512 : index
    %91 = vector.load %arg11[%c0_81, %c512] : memref<64x1152xbf16, #tpu.memory_space<vmem>>, vector<64x128xbf16>
    tpu.vector_store %arg11[%c0_81, %c512], %90 {strides = array<i32>} : memref<64x1152xbf16, #tpu.memory_space<vmem>>, vector<64x128xbf16>,
    %c2_82 = arith.constant 2 : index
    %c0_83 = arith.constant 0 : index
    %c1_84 = arith.constant 1 : index
    %c0_85 = arith.constant 0 : index
    %92 = vector.load %arg10[%c2_82, %c0_83, %c1_84, %c0_85] : memref<4x9x9x128xbf16, #tpu.memory_space<vmem>>, vector<1x8x8x128xbf16>
    %93 = vector.shape_cast %92 : vector<1x8x8x128xbf16> to vector<8x8x128xbf16>
    %94 = vector.shape_cast %93 : vector<8x8x128xbf16> to vector<64x128xbf16>
    %c0_86 = arith.constant 0 : index
    %c640 = arith.constant 640 : index
    %95 = vector.load %arg11[%c0_86, %c640] : memref<64x1152xbf16, #tpu.memory_space<vmem>>, vector<64x128xbf16>
    tpu.vector_store %arg11[%c0_86, %c640], %94 {strides = array<i32>} : memref<64x1152xbf16, #tpu.memory_space<vmem>>, vector<64x128xbf16>,
    %c0_87 = arith.constant 0 : index
    %c1_88 = arith.constant 1 : index
    %c0_89 = arith.constant 0 : index
    %c0_90 = arith.constant 0 : index
    %96 = vector.load %arg10[%c0_87, %c1_88, %c0_89, %c0_90] : memref<4x9x9x128xbf16, #tpu.memory_space<vmem>>, vector<1x8x8x128xbf16>
    %97 = vector.shape_cast %96 : vector<1x8x8x128xbf16> to vector<8x8x128xbf16>
    %98 = vector.shape_cast %97 : vector<8x8x128xbf16> to vector<64x128xbf16>
    %c0_91 = arith.constant 0 : index
    %c768 = arith.constant 768 : index
    %99 = vector.load %arg11[%c0_91, %c768] : memref<64x1152xbf16, #tpu.memory_space<vmem>>, vector<64x128xbf16>
    tpu.vector_store %arg11[%c0_91, %c768], %98 {strides = array<i32>} : memref<64x1152xbf16, #tpu.memory_space<vmem>>, vector<64x128xbf16>,
    %c1_92 = arith.constant 1 : index
    %c1_93 = arith.constant 1 : index
    %c0_94 = arith.constant 0 : index
    %c0_95 = arith.constant 0 : index
    %100 = vector.load %arg10[%c1_92, %c1_93, %c0_94, %c0_95] : memref<4x9x9x128xbf16, #tpu.memory_space<vmem>>, vector<1x8x8x128xbf16>
    %101 = vector.shape_cast %100 : vector<1x8x8x128xbf16> to vector<8x8x128xbf16>
    %102 = vector.shape_cast %101 : vector<8x8x128xbf16> to vector<64x128xbf16>
    %c0_96 = arith.constant 0 : index
    %c896 = arith.constant 896 : index
    %103 = vector.load %arg11[%c0_96, %c896] : memref<64x1152xbf16, #tpu.memory_space<vmem>>, vector<64x128xbf16>
    tpu.vector_store %arg11[%c0_96, %c896], %102 {strides = array<i32>} : memref<64x1152xbf16, #tpu.memory_space<vmem>>, vector<64x128xbf16>,
    %c0_97 = arith.constant 0 : index
    %c1_98 = arith.constant 1 : index
    %c1_99 = arith.constant 1 : index
    %c0_100 = arith.constant 0 : index
    %104 = vector.load %arg10[%c0_97, %c1_98, %c1_99, %c0_100] : memref<4x9x9x128xbf16, #tpu.memory_space<vmem>>, vector<1x8x8x128xbf16>
    %105 = vector.shape_cast %104 : vector<1x8x8x128xbf16> to vector<8x8x128xbf16>
    %106 = vector.shape_cast %105 : vector<8x8x128xbf16> to vector<64x128xbf16>
    %c0_101 = arith.constant 0 : index
    %c1024 = arith.constant 1024 : index
    %107 = vector.load %arg11[%c0_101, %c1024] : memref<64x1152xbf16, #tpu.memory_space<vmem>>, vector<64x128xbf16>
    tpu.vector_store %arg11[%c0_101, %c1024], %106 {strides = array<i32>} : memref<64x1152xbf16, #tpu.memory_space<vmem>>, vector<64x128xbf16>,
    %c0_102 = arith.constant 0 : index
    %c0_103 = arith.constant 0 : index
    %108 = vector.load %arg11[%c0_102, %c0_103] : memref<64x1152xbf16, #tpu.memory_space<vmem>>, vector<64x1152xbf16>
    %c0_104 = arith.constant 0 : index
    %c0_105 = arith.constant 0 : index
    %109 = vector.load %arg2[%c0_104, %c0_105] : memref<1152x128xbf16, #tpu.memory_space<vmem>>, vector<1152x128xbf16>
    %cst_106 = arith.constant dense<0.000000e+00> : vector<64x128xf32>
    %110 = tpu.matmul %108, %109, %cst_106 {dimension_numbers = #tpu.dot_dimension_numbers<[1], [0], [0], [1], [0, 0, 1, 1], [], []>} : vector<64x1152xbf16>, vector<1152x128xbf16>, vector<64x128xf32> -> vector<64x128xf32>
    %c0_107 = arith.constant 0 : index
    %c0_108 = arith.constant 0 : index
    %111 = vector.load %arg6[%c0_107, %c0_108] : memref<1x128xf32, #tpu.memory_space<vmem>>, vector<1x128xf32>
    %112 = vector.broadcast %111 : vector<1x128xf32> to vector<64x128xf32>
    %113 = arith.mulf %110, %112 : vector<64x128xf32>
    %c0_109 = arith.constant 0 : index
    %c0_110 = arith.constant 0 : index
    %114 = vector.load %arg7[%c0_109, %c0_110] : memref<1x128xf32, #tpu.memory_space<vmem>>, vector<1x128xf32>
    %115 = vector.broadcast %114 : vector<1x128xf32> to vector<64x128xf32>
    %116 = arith.addf %113, %115 : vector<64x128xf32>
    %cst_111 = arith.constant 0.000000e+00 : f32
    %117 = vector.broadcast %cst_111 : f32 to vector<64x128xf32>
    %118 = arith.maximumf %116, %117 : vector<64x128xf32>
    %119 = vector.shape_cast %118 : vector<64x128xf32> to vector<8x8x128xf32>
    %120 = arith.truncf %119 : vector<8x8x128xf32> to vector<8x8x128xbf16>
    %c1_112 = arith.constant 1 : index
    %c1_113 = arith.constant 1 : index
    %c0_114 = arith.constant 0 : index
    %121 = vector.load %arg12[%c1_112, %c1_113, %c0_114] : memref<10x10x128xbf16, #tpu.memory_space<vmem>>, vector<8x8x128xbf16>
    tpu.vector_store %arg12[%c1_112, %c1_113, %c0_114], %120 {strides = array<i32>} : memref<10x10x128xbf16, #tpu.memory_space<vmem>>, vector<8x8x128xbf16>,
    %c0_115 = arith.constant 0 : index
    %c0_116 = arith.constant 0 : index
    %c0_117 = arith.constant 0 : index
    %122 = vector.load %arg12[%c0_115, %c0_116, %c0_117] : memref<10x10x128xbf16, #tpu.memory_space<vmem>>, vector<8x8x128xbf16>
    %123 = vector.shape_cast %122 : vector<8x8x128xbf16> to vector<64x128xbf16>
    %c0_118 = arith.constant 0 : index
    %c0_119 = arith.constant 0 : index
    %124 = vector.load %arg13[%c0_118, %c0_119] : memref<64x1152xbf16, #tpu.memory_space<vmem>>, vector<64x128xbf16>
    tpu.vector_store %arg13[%c0_118, %c0_119], %123 {strides = array<i32>} : memref<64x1152xbf16, #tpu.memory_space<vmem>>, vector<64x128xbf16>,
    %c0_120 = arith.constant 0 : index
    %c1_121 = arith.constant 1 : index
    %c0_122 = arith.constant 0 : index
    %125 = vector.load %arg12[%c0_120, %c1_121, %c0_122] : memref<10x10x128xbf16, #tpu.memory_space<vmem>>, vector<8x8x128xbf16>
    %126 = vector.shape_cast %125 : vector<8x8x128xbf16> to vector<64x128xbf16>
    %c0_123 = arith.constant 0 : index
    %c128_124 = arith.constant 128 : index
    %127 = vector.load %arg13[%c0_123, %c128_124] : memref<64x1152xbf16, #tpu.memory_space<vmem>>, vector<64x128xbf16>
    tpu.vector_store %arg13[%c0_123, %c128_124], %126 {strides = array<i32>} : memref<64x1152xbf16, #tpu.memory_space<vmem>>, vector<64x128xbf16>,
    %c0_125 = arith.constant 0 : index
    %c2_126 = arith.constant 2 : index
    %c0_127 = arith.constant 0 : index
    %128 = vector.load %arg12[%c0_125, %c2_126, %c0_127] : memref<10x10x128xbf16, #tpu.memory_space<vmem>>, vector<8x8x128xbf16>
    %129 = vector.shape_cast %128 : vector<8x8x128xbf16> to vector<64x128xbf16>
    %c0_128 = arith.constant 0 : index
    %c256_129 = arith.constant 256 : index
    %130 = vector.load %arg13[%c0_128, %c256_129] : memref<64x1152xbf16, #tpu.memory_space<vmem>>, vector<64x128xbf16>
    tpu.vector_store %arg13[%c0_128, %c256_129], %129 {strides = array<i32>} : memref<64x1152xbf16, #tpu.memory_space<vmem>>, vector<64x128xbf16>,
    %c1_130 = arith.constant 1 : index
    %c0_131 = arith.constant 0 : index
    %c0_132 = arith.constant 0 : index
    %131 = vector.load %arg12[%c1_130, %c0_131, %c0_132] : memref<10x10x128xbf16, #tpu.memory_space<vmem>>, vector<8x8x128xbf16>
    %132 = vector.shape_cast %131 : vector<8x8x128xbf16> to vector<64x128xbf16>
    %c0_133 = arith.constant 0 : index
    %c384_134 = arith.constant 384 : index
    %133 = vector.load %arg13[%c0_133, %c384_134] : memref<64x1152xbf16, #tpu.memory_space<vmem>>, vector<64x128xbf16>
    tpu.vector_store %arg13[%c0_133, %c384_134], %132 {strides = array<i32>} : memref<64x1152xbf16, #tpu.memory_space<vmem>>, vector<64x128xbf16>,
    %c1_135 = arith.constant 1 : index
    %c1_136 = arith.constant 1 : index
    %c0_137 = arith.constant 0 : index
    %134 = vector.load %arg12[%c1_135, %c1_136, %c0_137] : memref<10x10x128xbf16, #tpu.memory_space<vmem>>, vector<8x8x128xbf16>
    %135 = vector.shape_cast %134 : vector<8x8x128xbf16> to vector<64x128xbf16>
    %c0_138 = arith.constant 0 : index
    %c512_139 = arith.constant 512 : index
    %136 = vector.load %arg13[%c0_138, %c512_139] : memref<64x1152xbf16, #tpu.memory_space<vmem>>, vector<64x128xbf16>
    tpu.vector_store %arg13[%c0_138, %c512_139], %135 {strides = array<i32>} : memref<64x1152xbf16, #tpu.memory_space<vmem>>, vector<64x128xbf16>,
    %c1_140 = arith.constant 1 : index
    %c2_141 = arith.constant 2 : index
    %c0_142 = arith.constant 0 : index
    %137 = vector.load %arg12[%c1_140, %c2_141, %c0_142] : memref<10x10x128xbf16, #tpu.memory_space<vmem>>, vector<8x8x128xbf16>
    %138 = vector.shape_cast %137 : vector<8x8x128xbf16> to vector<64x128xbf16>
    %c0_143 = arith.constant 0 : index
    %c640_144 = arith.constant 640 : index
    %139 = vector.load %arg13[%c0_143, %c640_144] : memref<64x1152xbf16, #tpu.memory_space<vmem>>, vector<64x128xbf16>
    tpu.vector_store %arg13[%c0_143, %c640_144], %138 {strides = array<i32>} : memref<64x1152xbf16, #tpu.memory_space<vmem>>, vector<64x128xbf16>,
    %c2_145 = arith.constant 2 : index
    %c0_146 = arith.constant 0 : index
    %c0_147 = arith.constant 0 : index
    %140 = vector.load %arg12[%c2_145, %c0_146, %c0_147] : memref<10x10x128xbf16, #tpu.memory_space<vmem>>, vector<8x8x128xbf16>
    %141 = vector.shape_cast %140 : vector<8x8x128xbf16> to vector<64x128xbf16>
    %c0_148 = arith.constant 0 : index
    %c768_149 = arith.constant 768 : index
    %142 = vector.load %arg13[%c0_148, %c768_149] : memref<64x1152xbf16, #tpu.memory_space<vmem>>, vector<64x128xbf16>
    tpu.vector_store %arg13[%c0_148, %c768_149], %141 {strides = array<i32>} : memref<64x1152xbf16, #tpu.memory_space<vmem>>, vector<64x128xbf16>,
    %c2_150 = arith.constant 2 : index
    %c1_151 = arith.constant 1 : index
    %c0_152 = arith.constant 0 : index
    %143 = vector.load %arg12[%c2_150, %c1_151, %c0_152] : memref<10x10x128xbf16, #tpu.memory_space<vmem>>, vector<8x8x128xbf16>
    %144 = vector.shape_cast %143 : vector<8x8x128xbf16> to vector<64x128xbf16>
    %c0_153 = arith.constant 0 : index
    %c896_154 = arith.constant 896 : index
    %145 = vector.load %arg13[%c0_153, %c896_154] : memref<64x1152xbf16, #tpu.memory_space<vmem>>, vector<64x128xbf16>
    tpu.vector_store %arg13[%c0_153, %c896_154], %144 {strides = array<i32>} : memref<64x1152xbf16, #tpu.memory_space<vmem>>, vector<64x128xbf16>,
    %c2_155 = arith.constant 2 : index
    %c2_156 = arith.constant 2 : index
    %c0_157 = arith.constant 0 : index
    %146 = vector.load %arg12[%c2_155, %c2_156, %c0_157] : memref<10x10x128xbf16, #tpu.memory_space<vmem>>, vector<8x8x128xbf16>
    %147 = vector.shape_cast %146 : vector<8x8x128xbf16> to vector<64x128xbf16>
    %c0_158 = arith.constant 0 : index
    %c1024_159 = arith.constant 1024 : index
    %148 = vector.load %arg13[%c0_158, %c1024_159] : memref<64x1152xbf16, #tpu.memory_space<vmem>>, vector<64x128xbf16>
    tpu.vector_store %arg13[%c0_158, %c1024_159], %147 {strides = array<i32>} : memref<64x1152xbf16, #tpu.memory_space<vmem>>, vector<64x128xbf16>,
    %c3_160 = arith.constant 3 : index
    %c0_161 = arith.constant 0 : index
    %c0_162 = arith.constant 0 : index
    %c0_163 = arith.constant 0 : index
    %149 = vector.load %arg10[%c3_160, %c0_161, %c0_162, %c0_163] : memref<4x9x9x128xbf16, #tpu.memory_space<vmem>>, vector<1x8x8x128xbf16>
    %150 = vector.shape_cast %149 : vector<1x8x8x128xbf16> to vector<8x8x128xbf16>
    %151 = vector.shape_cast %150 : vector<8x8x128xbf16> to vector<64x128xbf16>
    %c0_164 = arith.constant 0 : index
    %c0_165 = arith.constant 0 : index
    %152 = vector.load %arg8[%c0_164, %c0_165] : memref<128x128xbf16, #tpu.memory_space<vmem>>, vector<128x128xbf16>
    %cst_166 = arith.constant dense<0.000000e+00> : vector<64x128xf32>
    %153 = tpu.matmul %151, %152, %cst_166 {dimension_numbers = #tpu.dot_dimension_numbers<[1], [0], [0], [1], [0, 0, 1, 1], [], []>} : vector<64x128xbf16>, vector<128x128xbf16>, vector<64x128xf32> -> vector<64x128xf32>
    %c0_167 = arith.constant 0 : index
    %c0_168 = arith.constant 0 : index
    %154 = vector.load %arg13[%c0_167, %c0_168] : memref<64x1152xbf16, #tpu.memory_space<vmem>>, vector<64x1152xbf16>
    %c0_169 = arith.constant 0 : index
    %c0_170 = arith.constant 0 : index
    %155 = vector.load %arg3[%c0_169, %c0_170] : memref<1152x128xbf16, #tpu.memory_space<vmem>>, vector<1152x128xbf16>
    %cst_171 = arith.constant dense<0.000000e+00> : vector<64x128xf32>
    %156 = tpu.matmul %154, %155, %cst_171 {dimension_numbers = #tpu.dot_dimension_numbers<[1], [0], [0], [1], [0, 0, 1, 1], [], []>} : vector<64x1152xbf16>, vector<1152x128xbf16>, vector<64x128xf32> -> vector<64x128xf32>
    %157 = arith.addf %156, %153 : vector<64x128xf32>
    %158 = vector.shape_cast %157 : vector<64x128xf32> to vector<1x8x8x128xf32>
    %159 = arith.truncf %158 : vector<1x8x8x128xf32> to vector<1x8x8x128xbf16>
    %c0_172 = arith.constant 0 : index
    %c0_173 = arith.constant 0 : index
    %c0_174 = arith.constant 0 : index
    %c0_175 = arith.constant 0 : index
    %160 = vector.load %arg9[%c0_172, %c0_173, %c0_174, %c0_175] : memref<1x8x8x128xbf16, #tpu.memory_space<vmem>>, vector<1x8x8x128xbf16>
    tpu.vector_store %arg9[%c0_172, %c0_173, %c0_174, %c0_175], %159 {strides = array<i32>} : memref<1x8x8x128xbf16, #tpu.memory_space<vmem>>, vector<1x8x8x128xbf16>,
    return
  }
  func.func @transform_0(%arg0: i32) -> (i32, i32, i32, i32) {
    %c0_i32 = arith.constant 0 : i32
    %c0_i32_0 = arith.constant 0 : i32
    %c0_i32_1 = arith.constant 0 : i32
    %c0_i32_2 = arith.constant 0 : i32
    return %arg0, %c0_i32, %c0_i32_0, %c0_i32_1 : i32, i32, i32, i32
  }
  func.func @transform_1(%arg0: i32) -> (i32, i32) {
    %c0_i32 = arith.constant 0 : i32
    %c0_i32_0 = arith.constant 0 : i32
    %c0_i32_1 = arith.constant 0 : i32
    return %c0_i32, %c0_i32_0 : i32, i32
  }
  func.func @transform_2(%arg0: i32) -> (i32, i32) {
    %c0_i32 = arith.constant 0 : i32
    %c0_i32_0 = arith.constant 0 : i32
    %c0_i32_1 = arith.constant 0 : i32
    return %c0_i32, %c0_i32_0 : i32, i32
  }
  func.func @transform_3(%arg0: i32) -> (i32, i32) {
    %c0_i32 = arith.constant 0 : i32
    %c0_i32_0 = arith.constant 0 : i32
    %c0_i32_1 = arith.constant 0 : i32
    return %c0_i32, %c0_i32_0 : i32, i32
  }
  func.func @transform_4(%arg0: i32) -> (i32, i32) {
    %c0_i32 = arith.constant 0 : i32
    %c0_i32_0 = arith.constant 0 : i32
    %c0_i32_1 = arith.constant 0 : i32
    return %c0_i32, %c0_i32_0 : i32, i32
  }
  func.func @transform_5(%arg0: i32) -> (i32, i32) {
    %c0_i32 = arith.constant 0 : i32
    %c0_i32_0 = arith.constant 0 : i32
    %c0_i32_1 = arith.constant 0 : i32
    return %c0_i32, %c0_i32_0 : i32, i32
  }
  func.func @transform_6(%arg0: i32) -> (i32, i32) {
    %c0_i32 = arith.constant 0 : i32
    %c0_i32_0 = arith.constant 0 : i32
    %c0_i32_1 = arith.constant 0 : i32
    return %c0_i32, %c0_i32_0 : i32, i32
  }
  func.func @transform_7(%arg0: i32) -> (i32, i32) {
    %c0_i32 = arith.constant 0 : i32
    %c0_i32_0 = arith.constant 0 : i32
    %c0_i32_1 = arith.constant 0 : i32
    return %c0_i32, %c0_i32_0 : i32, i32
  }
  func.func @transform_8(%arg0: i32) -> (i32, i32, i32, i32) {
    %c0_i32 = arith.constant 0 : i32
    %c0_i32_0 = arith.constant 0 : i32
    %c0_i32_1 = arith.constant 0 : i32
    %c0_i32_2 = arith.constant 0 : i32
    return %arg0, %c0_i32, %c0_i32_0, %c0_i32_1 : i32, i32, i32, i32
  }
}

</mosaic_0001>

<llo_original>
// kernel: _lambda_.3
$region0: #{_lambda_.3}
  #allocation0 [shape = 'u32[]', space=smem, size = 0x4, offset = 0x4, fixed_abs, tag = 'smem constant byte address 0x4 - core index']
  #allocation1 [shape = 'u32[72,128]{1,0:T(1,128)}', space=vmem, size = 0x9000, scoped, tag = 'internal scratch']
  #allocation2 [shape = 'bf16[1,10,10,128]{3,2,1,0:T(8,128)(2,1)}', space=vmem, size = 0xa000, scoped, tag = 'scratch operand']
  #allocation3 [shape = 'bf16[64,1152]{1,0:T(8,128)(2,1)}', space=vmem, size = 0x24000, scoped, tag = 'scratch operand']
  #allocation4 [shape = 'bf16[10,10,128]{2,1,0:T(8,128)(2,1)}', space=vmem, size = 0xa000, scoped, tag = 'scratch operand']
  #allocation5 [shape = 'bf16[64,1152]{1,0:T(8,128)(2,1)}', space=vmem, size = 0x24000, scoped, tag = 'scratch operand']
  %s0 = inlined_call_operand.vmem [shape: bf16[16,1,8,128], index: 0, kind: input, shape index: {}]
  %s1 = inlined_call_operand.vmem [shape: bf16[1152,128], index: 1, kind: input, shape index: {}]
  %s2 = inlined_call_operand.vmem [shape: bf16[1152,128], index: 2, kind: input, shape index: {}]
  %s3 = inlined_call_operand.vmem [shape: f32[1,128], index: 3, kind: input, shape index: {}]
  %s4 = inlined_call_operand.vmem [shape: f32[1,128], index: 4, kind: input, shape index: {}]
  %s5 = inlined_call_operand.vmem [shape: f32[1,128], index: 5, kind: input, shape index: {}]
  %s6 = inlined_call_operand.vmem [shape: f32[1,128], index: 6, kind: input, shape index: {}]
  %s7 = inlined_call_operand.vmem [shape: bf16[2,8,8,128], index: 7, kind: output, shape index: {}]
  %s8 = sld [smem:[#allocation0]]
  $region61: #{_lambda_.3} parent=0
    _
  %s10 = ssub.s32 1, %s8
  %s11 = scalar_select 0, %s10, %s8
  loop: start=0, step=1, limit=4
  $region2: #{_lambda_.3} parent=0 // loop_pre_header
    _
  $region3: #{_lambda_.3} parent=0 // loop_header
    %s13 = sphi 0, %s17
    %p14 = scmp.ge.s32.totalorder %s13, 4
    %s23 = sphi 0, %s25
    %s26 = sphi 0, %s23
    %s27 = sphi 0, %s26
    %s43 = sphi 0, %s27
    %s47 = sphi 0, %s47
    %s49 = sphi 0, %s47
    %s50 = sphi 0, %s49
    %s64 = sphi 0, %s50
    %s68 = sphi 0, %s68
    %s70 = sphi 0, %s68
    %s71 = sphi 0, %s70
    %s85 = sphi 0, %s71
    %s89 = sphi 0, %s89
    %s91 = sphi 0, %s89
    %s92 = sphi 0, %s91
    %s106 = sphi 0, %s92
    %s110 = sphi 0, %s110
    %s112 = sphi 0, %s110
    %s113 = sphi 0, %s112
    %s127 = sphi 0, %s113
    %s131 = sphi 0, %s131
    %s133 = sphi 0, %s131
    %s134 = sphi 0, %s133
    %s148 = sphi 0, %s134
    %s152 = sphi 0, %s152
    %s154 = sphi 0, %s152
    %s155 = sphi 0, %s154
    %s169 = sphi 0, %s155
    %s175 = sphi 0, %s177
    %s178 = sphi 0, %s175
    %s179 = sphi 0, %s178
    %s195 = sphi 0, %s179
  $region4: #{_lambda_.3} parent=0 // loop_header_branch
    %16 = sbr.rel (%p14) target = $region8
  $region5: #{_lambda_.3} parent=0 // loop_body
    %s18 = ssub.s32 %s13, 1
    %s19 = ssub.s32 %s13, 2
    %s20 = sadd.s32 %s13, 1
    %s21 = ssub.s32 %s13, %s20
    %p22 = scmp.eq.s32.totalorder %s21, 0
    %s24 = sadd.s32 %s23, 1
    %s25 = scalar_select %p22, %s23, %s24
    %p28 = pneg %p22
    %p29 = scmp.eq.s32.totalorder %s13, 1
    %p30 = por %p28, %p29
    %p31 = scmp.ne.s32.totalorder %s23, %s26
    %p32 = scmp.eq.s32.totalorder %s13, 0
    %p33 = por %p31, %p32
    %p34 = scmp.ne.s32.totalorder %s23, %s26
    %p35 = scmp.eq.s32.totalorder %s18, 1
    %p36 = por %p34, %p35
    %p37 = scmp.ne.s32.totalorder %s26, %s27
    %p38 = scmp.eq.s32.totalorder %s18, 0
    %p39 = por %p37, %p38
    %p40 = scmp.ne.s32.totalorder %s26, %s27
    %p41 = scmp.eq.s32.totalorder %s19, 1
    %p42 = por %p40, %p41
    %p44 = scmp.ne.s32.totalorder %s27, %s43
    %p45 = scmp.eq.s32.totalorder %s19, 0
    %p46 = por %p44, %p45
    %s48 = sadd.s32 %s47, 1
    %p51 = scmp.eq.s32.totalorder %s13, 1
    %p52 = scmp.ne.s32.totalorder %s47, %s49
    %p53 = scmp.eq.s32.totalorder %s13, 0
    %p54 = por %p52, %p53
    %p55 = scmp.ne.s32.totalorder %s47, %s49
    %p56 = scmp.eq.s32.totalorder %s18, 1
    %p57 = por %p55, %p56
    %p58 = scmp.ne.s32.totalorder %s49, %s50
    %p59 = scmp.eq.s32.totalorder %s18, 0
    %p60 = por %p58, %p59
    %p61 = scmp.ne.s32.totalorder %s49, %s50
    %p62 = scmp.eq.s32.totalorder %s19, 1
    %p63 = por %p61, %p62
    %p65 = scmp.ne.s32.totalorder %s50, %s64
    %p66 = scmp.eq.s32.totalorder %s19, 0
    %p67 = por %p65, %p66
    %s69 = sadd.s32 %s68, 1
    %p72 = scmp.eq.s32.totalorder %s13, 1
    %p73 = scmp.ne.s32.totalorder %s68, %s70
    %p74 = scmp.eq.s32.totalorder %s13, 0
    %p75 = por %p73, %p74
    %p76 = scmp.ne.s32.totalorder %s68, %s70
    %p77 = scmp.eq.s32.totalorder %s18, 1
    %p78 = por %p76, %p77
    %p79 = scmp.ne.s32.totalorder %s70, %s71
    %p80 = scmp.eq.s32.totalorder %s18, 0
    %p81 = por %p79, %p80
    %p82 = scmp.ne.s32.totalorder %s70, %s71
    %p83 = scmp.eq.s32.totalorder %s19, 1
    %p84 = por %p82, %p83
    %p86 = scmp.ne.s32.totalorder %s71, %s85
    %p87 = scmp.eq.s32.totalorder %s19, 0
    %p88 = por %p86, %p87
    %s90 = sadd.s32 %s89, 1
    %p93 = scmp.eq.s32.totalorder %s13, 1
    %p94 = scmp.ne.s32.totalorder %s89, %s91
    %p95 = scmp.eq.s32.totalorder %s13, 0
    %p96 = por %p94, %p95
    %p97 = scmp.ne.s32.totalorder %s89, %s91
    %p98 = scmp.eq.s32.totalorder %s18, 1
    %p99 = por %p97, %p98
    %p100 = scmp.ne.s32.totalorder %s91, %s92
    %p101 = scmp.eq.s32.totalorder %s18, 0
    %p102 = por %p100, %p101
    %p103 = scmp.ne.s32.totalorder %s91, %s92
    %p104 = scmp.eq.s32.totalorder %s19, 1
    %p105 = por %p103, %p104
    %p107 = scmp.ne.s32.totalorder %s92, %s106
    %p108 = scmp.eq.s32.totalorder %s19, 0
    %p109 = por %p107, %p108
    %s111 = sadd.s32 %s110, 1
    %p114 = scmp.eq.s32.totalorder %s13, 1
    %p115 = scmp.ne.s32.totalorder %s110, %s112
    %p116 = scmp.eq.s32.totalorder %s13, 0
    %p117 = por %p115, %p116
    %p118 = scmp.ne.s32.totalorder %s110, %s112
    %p119 = scmp.eq.s32.totalorder %s18, 1
    %p120 = por %p118, %p119
    %p121 = scmp.ne.s32.totalorder %s112, %s113
    %p122 = scmp.eq.s32.totalorder %s18, 0
    %p123 = por %p121, %p122
    %p124 = scmp.ne.s32.totalorder %s112, %s113
    %p125 = scmp.eq.s32.totalorder %s19, 1
    %p126 = por %p124, %p125
    %p128 = scmp.ne.s32.totalorder %s113, %s127
    %p129 = scmp.eq.s32.totalorder %s19, 0
    %p130 = por %p128, %p129
    %s132 = sadd.s32 %s131, 1
    %p135 = scmp.eq.s32.totalorder %s13, 1
    %p136 = scmp.ne.s32.totalorder %s131, %s133
    %p137 = scmp.eq.s32.totalorder %s13, 0
    %p138 = por %p136, %p137
    %p139 = scmp.ne.s32.totalorder %s131, %s133
    %p140 = scmp.eq.s32.totalorder %s18, 1
    %p141 = por %p139, %p140
    %p142 = scmp.ne.s32.totalorder %s133, %s134
    %p143 = scmp.eq.s32.totalorder %s18, 0
    %p144 = por %p142, %p143
    %p145 = scmp.ne.s32.totalorder %s133, %s134
    %p146 = scmp.eq.s32.totalorder %s19, 1
    %p147 = por %p145, %p146
    %p149 = scmp.ne.s32.totalorder %s134, %s148
    %p150 = scmp.eq.s32.totalorder %s19, 0
    %p151 = por %p149, %p150
    %s153 = sadd.s32 %s152, 1
    %p156 = scmp.eq.s32.totalorder %s13, 1
    %p157 = scmp.ne.s32.totalorder %s152, %s154
    %p158 = scmp.eq.s32.totalorder %s13, 0
    %p159 = por %p157, %p158
    %p160 = scmp.ne.s32.totalorder %s152, %s154
    %p161 = scmp.eq.s32.totalorder %s18, 1
    %p162 = por %p160, %p161
    %p163 = scmp.ne.s32.totalorder %s154, %s155
    %p164 = scmp.eq.s32.totalorder %s18, 0
    %p165 = por %p163, %p164
    %p166 = scmp.ne.s32.totalorder %s154, %s155
    %p167 = scmp.eq.s32.totalorder %s19, 1
    %p168 = por %p166, %p167
    %p170 = scmp.ne.s32.totalorder %s155, %s169
    %p171 = scmp.eq.s32.totalorder %s19, 0
    %p172 = por %p170, %p171
    %s173 = ssub.s32 %s13, %s20
    %p174 = scmp.eq.s32.totalorder %s173, 0
    %s176 = sadd.s32 %s175, 1
    %s177 = scalar_select %p174, %s175, %s176
    %p180 = pneg %p174
    %p181 = scmp.eq.s32.totalorder %s13, 1
    %p182 = por %p180, %p181
    %p183 = scmp.ne.s32.totalorder %s175, %s178
    %p184 = scmp.eq.s32.totalorder %s13, 0
    %p185 = por %p183, %p184
    %p186 = scmp.ne.s32.totalorder %s175, %s178
    %p187 = scmp.eq.s32.totalorder %s18, 1
    %p188 = por %p186, %p187
    %p189 = scmp.ne.s32.totalorder %s178, %s179
    %p190 = scmp.eq.s32.totalorder %s18, 0
    %p191 = por %p189, %p190
    %p192 = scmp.ne.s32.totalorder %s178, %s179
    %p193 = scmp.eq.s32.totalorder %s19, 1
    %p194 = por %p192, %p193
    %p196 = scmp.ne.s32.totalorder %s179, %s195
    %p197 = scmp.eq.s32.totalorder %s19, 0
    %p198 = por %p196, %p197
    %p199 = scmp.le.s32.totalorder 1, %s13
    %p200 = scmp.lt.s32.totalorder %s13, 3
    %p201 = pnand %p199, %p200
    %p202 = pneg %p201
    // Predicated region
    $region9: #{_lambda_.3} parent=5 // pred_check
      _
    $region10: #{_lambda_.3} parent=5 // pred_check_branch
      %204 = sbr.rel (%p201) target = $region12
    $region11: #{_lambda_.3} parent=5 // pred_region
      %s205 = ssub.s32 %s13, 1
      // Predicated region
      $region13: #{_lambda_.3} parent=11 // pred_check
        %p206 = pneg %p60
      $region14: #{_lambda_.3} parent=11 // pred_check_branch
        %208 = sbr.rel (%p206) target = $region16
      $region15: #{_lambda_.3} parent=11 // pred_region
        _
      $region16: #{_lambda_.3} parent=11 // pred_fallthru
        _
      // Predicated region
      $region17: #{_lambda_.3} parent=11 // pred_check
        %p209 = pneg %p81
      $region18: #{_lambda_.3} parent=11 // pred_check_branch
        %211 = sbr.rel (%p209) target = $region20
      $region19: #{_lambda_.3} parent=11 // pred_region
        _
      $region20: #{_lambda_.3} parent=11 // pred_fallthru
        _
      // Predicated region
      $region21: #{_lambda_.3} parent=11 // pred_check
        %p212 = pneg %p102
      $region22: #{_lambda_.3} parent=11 // pred_check_branch
        %214 = sbr.rel (%p212) target = $region24
      $region23: #{_lambda_.3} parent=11 // pred_region
        _
      $region24: #{_lambda_.3} parent=11 // pred_fallthru
        _
      // Predicated region
      $region25: #{_lambda_.3} parent=11 // pred_check
        %p215 = pneg %p123
      $region26: #{_lambda_.3} parent=11 // pred_check_branch
        %217 = sbr.rel (%p215) target = $region28
      $region27: #{_lambda_.3} parent=11 // pred_region
        _
      $region28: #{_lambda_.3} parent=11 // pred_fallthru
        _
      // Predicated region
      $region29: #{_lambda_.3} parent=11 // pred_check
        %p218 = pneg %p144
      $region30: #{_lambda_.3} parent=11 // pred_check_branch
        %220 = sbr.rel (%p218) target = $region32
      $region31: #{_lambda_.3} parent=11 // pred_region
        _
      $region32: #{_lambda_.3} parent=11 // pred_fallthru
        _
      // Predicated region
      $region33: #{_lambda_.3} parent=11 // pred_check
        %p221 = pneg %p165
      $region34: #{_lambda_.3} parent=11 // pred_check_branch
        %223 = sbr.rel (%p221) target = $region36
      $region35: #{_lambda_.3} parent=11 // pred_region
        _
      $region36: #{_lambda_.3} parent=11 // pred_fallthru
        _
    $region12: #{_lambda_.3} parent=5 // pred_fallthru
      _
    %p224 = scmp.lt.s32.totalorder %s13, 2
    // Predicated region
    $region37: #{_lambda_.3} parent=5 // pred_check
      %p225 = pneg %p224
    $region38: #{_lambda_.3} parent=5 // pred_check_branch
      %227 = sbr.rel (%p225) target = $region40
    $region39: #{_lambda_.3} parent=5 // pred_region
      // Predicated region
      $region41: #{_lambda_.3} parent=39 // pred_check
        %p228 = pneg %p33
      $region42: #{_lambda_.3} parent=39 // pred_check_branch
        %230 = sbr.rel (%p228) target = $region44
      $region43: #{_lambda_.3} parent=39 // pred_region
        %s231 = smul.u32 8, %s13
        %p232 = scmp.lt.s32.totalorder %s231, 15
        %s233 = scalar_select %p232, %s231, 15
        %s234 = smul.addr %s233, 4
        %s235 = scalar_lea.vmem %s0, %s234
        %s236 = smul.u32 8, %s13
      $region44: #{_lambda_.3} parent=39 // pred_fallthru
        _
    $region40: #{_lambda_.3} parent=5 // pred_fallthru
      _
    %p237 = scmp.le.s32.totalorder 1, %s13
    %p238 = scmp.lt.s32.totalorder %s13, 3
    %p239 = pnand %p237, %p238
    %p240 = pneg %p239
    // Predicated region
    $region45: #{_lambda_.3} parent=5 // pred_check
      _
    $region46: #{_lambda_.3} parent=5 // pred_check_branch
      %242 = sbr.rel (%p239) target = $region48
    $region47: #{_lambda_.3} parent=5 // pred_region
      %s243 = ssub.s32 %s13, 1
      %s244 = smul.u32 8, %s18
      %p245 = scmp.lt.s32.totalorder %s244, 15
      %s246 = scalar_select %p245, %s244, 15
      %s247 = smul.addr %s246, 4
      %s248 = scalar_lea.vmem %s0, %s247
      %p249 = pneg %p39
      %p250 = pneg %p36
      %p251 = pneg %p60
      %p252 = pneg %p57
      %p253 = pneg %p81
      %p254 = pneg %p78
      %p255 = pneg %p102
      %p256 = pneg %p99
      %p257 = pneg %p123
      %p258 = pneg %p120
      %p259 = pneg %p144
      %p260 = pneg %p141
      %p261 = pneg %p165
      %p262 = pneg %p162
      %p263 = pneg %p191
      %p264 = pneg %p188
      %p265 = scmp.lt.s32.totalorder %s18, 1
      %s266 = scalar_select %p265, %s18, 1
      %s267 = smul.addr %s266, 8
      %s268 = smul.addr %s267, 4
      %s269 = scalar_lea.vmem %s7, %s268
      %s270 = smul.u32 8, %s18
      %p271 = scmp.lt.s32.totalorder %s270, 15
      %s272 = scalar_select %p271, %s270, 15
      %s273 = smul.addr %s272, 4
      %s274 = scalar_lea.vmem %s0, %s273
      %s275 = smul.u32 8, %s18
      %p276 = scmp.lt.s32.totalorder %s18, 1
      %s277 = scalar_select %p276, %s18, 1
      %s278 = smul.addr %s277, 8
      %s279 = smul.addr %s278, 4
      %s280 = scalar_lea.vmem %s7, %s279
      %282 = vst [vmem:[#allocation2] sm:$0xf] 0
      %283 = vst [vmem:[#allocation2 + $0x4] sm:$0x1] 0
      %284 = vst [vmem:[#allocation2 + $0x8] sm:$0xf] 0
      %285 = vst [vmem:[#allocation2 + $0xc] sm:$0x1] 0
      %286 = vst [vmem:[#allocation2 + $0x10] sm:$0xf] 0
      %287 = vst [vmem:[#allocation2 + $0x14] sm:$0x1] 0
      %288 = vst [vmem:[#allocation2 + $0x18] sm:$0xf] 0
      %289 = vst [vmem:[#allocation2 + $0x1c] sm:$0x1] 0
      %290 = vst [vmem:[#allocation2 + $0x20] sm:$0xf] 0
      %291 = vst [vmem:[#allocation2 + $0x24] sm:$0x1] 0
      %292 = vst [vmem:[#allocation2 + $0x28] sm:$0xf] 0
      %293 = vst [vmem:[#allocation2 + $0x2c] sm:$0x1] 0
      %294 = vst [vmem:[#allocation2 + $0x30] sm:$0xf] 0
      %295 = vst [vmem:[#allocation2 + $0x34] sm:$0x1] 0
      %296 = vst [vmem:[#allocation2 + $0x38] sm:$0xf] 0
      %297 = vst [vmem:[#allocation2 + $0x3c] sm:$0x1] 0
      %298 = vst [vmem:[#allocation2 + $0x40] sm:$0xf] 0
      %299 = vst [vmem:[#allocation2 + $0x44] sm:$0x1] 0
      %300 = vst [vmem:[#allocation2 + $0x48] sm:$0xf] 0
      %301 = vst [vmem:[#allocation2 + $0x4c] sm:$0x1] 0
      %302 = vst [vmem:[#allocation4] sm:$0xf] 0
      %303 = vst [vmem:[#allocation4 + $0x4] sm:$0x1] 0
      %304 = vst [vmem:[#allocation4 + $0x8] sm:$0xf] 0
      %305 = vst [vmem:[#allocation4 + $0xc] sm:$0x1] 0
      %306 = vst [vmem:[#allocation4 + $0x10] sm:$0xf] 0
      %307 = vst [vmem:[#allocation4 + $0x14] sm:$0x1] 0
      %308 = vst [vmem:[#allocation4 + $0x18] sm:$0xf] 0
      %309 = vst [vmem:[#allocation4 + $0x1c] sm:$0x1] 0
      %310 = vst [vmem:[#allocation4 + $0x20] sm:$0xf] 0
      %311 = vst [vmem:[#allocation4 + $0x24] sm:$0x1] 0
      %312 = vst [vmem:[#allocation4 + $0x28] sm:$0xf] 0
      %313 = vst [vmem:[#allocation4 + $0x2c] sm:$0x1] 0
      %314 = vst [vmem:[#allocation4 + $0x30] sm:$0xf] 0
      %315 = vst [vmem:[#allocation4 + $0x34] sm:$0x1] 0
      %316 = vst [vmem:[#allocation4 + $0x38] sm:$0xf] 0
      %317 = vst [vmem:[#allocation4 + $0x3c] sm:$0x1] 0
      %318 = vst [vmem:[#allocation4 + $0x40] sm:$0xf] 0
      %319 = vst [vmem:[#allocation4 + $0x44] sm:$0x1] 0
      %320 = vst [vmem:[#allocation4 + $0x48] sm:$0xf] 0
      %321 = vst [vmem:[#allocation4 + $0x4c] sm:$0x1] 0
      %v322 = vld [vmem:[%s274] sm:$0xf]
      %v323 = vld [vmem:[%s274 + $0x4] sm:$0xf]
      %v324 = vld [vmem:[%s274 + $0x8] sm:$0xf]
      %v325 = vld [vmem:[%s274 + $0xc] sm:$0xf]
      %v326 = vld [vmem:[%s274 + $0x10] sm:$0xf]
      %v327 = vld [vmem:[%s274 + $0x14] sm:$0xf]
      %v328 = vld [vmem:[%s274 + $0x18] sm:$0xf]
      %v329 = vld [vmem:[%s274 + $0x1c] sm:$0xf]
      %v330 = vunpack.c.l.bf16 %v322
      %v331 = vunpack.c.l.bf16 %v323
      %v332 = vunpack.c.l.bf16 %v324
      %v333 = vunpack.c.l.bf16 %v325
      %v334 = vunpack.c.l.bf16 %v326
      %v335 = vunpack.c.l.bf16 %v327
      %v336 = vunpack.c.l.bf16 %v328
      %v337 = vunpack.c.l.bf16 %v329
      %v338 = vld [vmem:[%s3] sm:$0x1]
      %v340 = vperm.slane %v338, 0
      %v342 = vmul.f32 %v330, %v340
      %v343 = vmul.f32 %v331, %v340
      %v344 = vmul.f32 %v332, %v340
      %v345 = vmul.f32 %v333, %v340
      %v346 = vmul.f32 %v334, %v340
      %v347 = vmul.f32 %v335, %v340
      %v348 = vmul.f32 %v336, %v340
      %v349 = vmul.f32 %v337, %v340
      %v350 = vld [vmem:[%s4] sm:$0x1]
      %v352 = vperm.slane %v350, 0
      %v354 = vadd.f32 %v342, %v352
      %v355 = vadd.f32 %v343, %v352
      %v356 = vadd.f32 %v344, %v352
      %v357 = vadd.f32 %v345, %v352
      %v358 = vadd.f32 %v346, %v352
      %v359 = vadd.f32 %v347, %v352
      %v360 = vadd.f32 %v348, %v352
      %v361 = vadd.f32 %v349, %v352
      %v362 = vmax.f32 %v354, 0.0
      %v363 = vmax.f32 %v355, 0.0
      %v364 = vmax.f32 %v356, 0.0
      %v365 = vmax.f32 %v357, 0.0
      %v366 = vmax.f32 %v358, 0.0
      %v367 = vmax.f32 %v359, 0.0
      %v368 = vmax.f32 %v360, 0.0
      %v369 = vmax.f32 %v361, 0.0
      %v370 = vpack.c.bf16 %v362, %v362
      %v371 = vpack.c.bf16 %v363, %v363
      %v372 = vpack.c.bf16 %v364, %v364
      %v373 = vpack.c.bf16 %v365, %v365
      %v374 = vpack.c.bf16 %v366, %v366
      %v375 = vpack.c.bf16 %v367, %v367
      %v376 = vpack.c.bf16 %v368, %v368
      %v377 = vpack.c.bf16 %v369, %v369
      %v379 = vshrl.u32 %v370, 16
      %v381 = vrot.slane %v379, 7
      %v382 = vshll.u32 %v370, 16
      %v384 = vor.u32 %v381, %v382
      %v385 = vrot.slane %v381, 4
      %v387 = vshrl.u32 %v371, 16
      %v389 = vrot.slane %v387, 7
      %v390 = vshll.u32 %v371, 16
      %v392 = vor.u32 %v389, %v390
      %v393 = vrot.slane %v389, 4
      %v395 = vshrl.u32 %v372, 16
      %v397 = vrot.slane %v395, 7
      %v398 = vshll.u32 %v372, 16
      %v400 = vor.u32 %v397, %v398
      %v401 = vrot.slane %v397, 4
      %v403 = vshrl.u32 %v373, 16
      %v405 = vrot.slane %v403, 7
      %v406 = vshll.u32 %v373, 16
      %v408 = vor.u32 %v405, %v406
      %v409 = vrot.slane %v405, 4
      %v411 = vshrl.u32 %v374, 16
      %v413 = vrot.slane %v411, 7
      %v414 = vshll.u32 %v374, 16
      %v416 = vor.u32 %v413, %v414
      %v417 = vrot.slane %v413, 4
      %v419 = vshrl.u32 %v375, 16
      %v421 = vrot.slane %v419, 7
      %v422 = vshll.u32 %v375, 16
      %v424 = vor.u32 %v421, %v422
      %v425 = vrot.slane %v421, 4
      %v427 = vshrl.u32 %v376, 16
      %v429 = vrot.slane %v427, 7
      %v430 = vshll.u32 %v376, 16
      %v432 = vor.u32 %v429, %v430
      %v433 = vrot.slane %v429, 4
      %v435 = vshrl.u32 %v377, 16
      %v437 = vrot.slane %v435, 7
      %v438 = vshll.u32 %v377, 16
      %v440 = vor.u32 %v437, %v438
      %v441 = vrot.slane %v437, 4
      %s458 = scalar_lea.vmem [#allocation2], 8
      %vm459 = vcmask 1043456
      %vm460 = vsmask.f32 7938
      %vm461 = vmand %vm459, %vm460
      %v462 = vld [vmem:[%s458] sm:$0xf]
      %v463 = vsel %vm461, %v384, %v462
      %464 = vst [vmem:[%s458] sm:$0xf] %v463
      %vm465 = vcmask 1040384
      %vm466 = vsmask.f32 256
      %vm467 = vmand %vm465, %vm466
      %v468 = vld [vmem:[%s458 + $0x4] sm:$0x1]
      %v469 = vsel %vm467, %v385, %v468
      %470 = vst [vmem:[%s458 + $0x4] sm:$0x1] %v469
      %v471 = vld [vmem:[%s458 + $0x8] sm:$0xf]
      %v472 = vsel %vm461, %v392, %v471
      %473 = vst [vmem:[%s458 + $0x8] sm:$0xf] %v472
      %v474 = vld [vmem:[%s458 + $0xc] sm:$0x1]
      %v475 = vsel %vm467, %v393, %v474
      %476 = vst [vmem:[%s458 + $0xc] sm:$0x1] %v475
      %v477 = vld [vmem:[%s458 + $0x10] sm:$0xf]
      %v478 = vsel %vm461, %v400, %v477
      %479 = vst [vmem:[%s458 + $0x10] sm:$0xf] %v478
      %v480 = vld [vmem:[%s458 + $0x14] sm:$0x1]
      %v481 = vsel %vm467, %v401, %v480
      %482 = vst [vmem:[%s458 + $0x14] sm:$0x1] %v481
      %v483 = vld [vmem:[%s458 + $0x18] sm:$0xf]
      %v484 = vsel %vm461, %v408, %v483
      %485 = vst [vmem:[%s458 + $0x18] sm:$0xf] %v484
      %v486 = vld [vmem:[%s458 + $0x1c] sm:$0x1]
      %v487 = vsel %vm467, %v409, %v486
      %488 = vst [vmem:[%s458 + $0x1c] sm:$0x1] %v487
      %v489 = vld [vmem:[%s458 + $0x20] sm:$0xf]
      %v490 = vsel %vm461, %v416, %v489
      %491 = vst [vmem:[%s458 + $0x20] sm:$0xf] %v490
      %v492 = vld [vmem:[%s458 + $0x24] sm:$0x1]
      %v493 = vsel %vm467, %v417, %v492
      %494 = vst [vmem:[%s458 + $0x24] sm:$0x1] %v493
      %v495 = vld [vmem:[%s458 + $0x28] sm:$0xf]
      %v496 = vsel %vm461, %v424, %v495
      %497 = vst [vmem:[%s458 + $0x28] sm:$0xf] %v496
      %v498 = vld [vmem:[%s458 + $0x2c] sm:$0x1]
      %v499 = vsel %vm467, %v425, %v498
      %500 = vst [vmem:[%s458 + $0x2c] sm:$0x1] %v499
      %v501 = vld [vmem:[%s458 + $0x30] sm:$0xf]
      %v502 = vsel %vm461, %v432, %v501
      %503 = vst [vmem:[%s458 + $0x30] sm:$0xf] %v502
      %v504 = vld [vmem:[%s458 + $0x34] sm:$0x1]
      %v505 = vsel %vm467, %v433, %v504
      %506 = vst [vmem:[%s458 + $0x34] sm:$0x1] %v505
      %v507 = vld [vmem:[%s458 + $0x38] sm:$0xf]
      %v508 = vsel %vm461, %v440, %v507
      %509 = vst [vmem:[%s458 + $0x38] sm:$0xf] %v508
      %v510 = vld [vmem:[%s458 + $0x3c] sm:$0x1]
      %v511 = vsel %vm467, %v441, %v510
      %512 = vst [vmem:[%s458 + $0x3c] sm:$0x1] %v511
      %v513 = vld [vmem:[#allocation2] sm:$0xf]
      %v514 = vld [vmem:[#allocation2 + $0x8] sm:$0xf]
      %v515 = vld [vmem:[#allocation2 + $0x10] sm:$0xf]
      %v516 = vld [vmem:[#allocation2 + $0x18] sm:$0xf]
      %v517 = vld [vmem:[#allocation2 + $0x20] sm:$0xf]
      %v518 = vld [vmem:[#allocation2 + $0x28] sm:$0xf]
      %v519 = vld [vmem:[#allocation2 + $0x30] sm:$0xf]
      %v520 = vld [vmem:[#allocation2 + $0x38] sm:$0xf]
      %521 = vst [vmem:[#allocation3] sm:$0xf] %v513
      %522 = vst [vmem:[#allocation3 + $0x24] sm:$0xf] %v514
      %523 = vst [vmem:[#allocation3 + $0x48] sm:$0xf] %v515
      %524 = vst [vmem:[#allocation3 + $0x6c] sm:$0xf] %v516
      %525 = vst [vmem:[#allocation3 + $0x90] sm:$0xf] %v517
      %526 = vst [vmem:[#allocation3 + $0xb4] sm:$0xf] %v518
      %527 = vst [vmem:[#allocation3 + $0xd8] sm:$0xf] %v519
      %528 = vst [vmem:[#allocation3 + $0xfc] sm:$0xf] %v520
      %v529 = vld [vmem:[#allocation2] sm:$0xf]
      %v530 = vld [vmem:[#allocation2 + $0x4] sm:$0x1]
      %v531 = vld [vmem:[#allocation2 + $0x8] sm:$0xf]
      %v532 = vld [vmem:[#allocation2 + $0xc] sm:$0x1]
      %v533 = vld [vmem:[#allocation2 + $0x10] sm:$0xf]
      %v534 = vld [vmem:[#allocation2 + $0x14] sm:$0x1]
      %v535 = vld [vmem:[#allocation2 + $0x18] sm:$0xf]
      %v536 = vld [vmem:[#allocation2 + $0x1c] sm:$0x1]
      %v537 = vld [vmem:[#allocation2 + $0x20] sm:$0xf]
      %v538 = vld [vmem:[#allocation2 + $0x24] sm:$0x1]
      %v539 = vld [vmem:[#allocation2 + $0x28] sm:$0xf]
      %v540 = vld [vmem:[#allocation2 + $0x2c] sm:$0x1]
      %v541 = vld [vmem:[#allocation2 + $0x30] sm:$0xf]
      %v542 = vld [vmem:[#allocation2 + $0x34] sm:$0x1]
      %v543 = vld [vmem:[#allocation2 + $0x38] sm:$0xf]
      %v544 = vld [vmem:[#allocation2 + $0x3c] sm:$0x1]
      %vm545 = vsmask.f32 3328
      %vm546 = vsmask.f32 7440
      %vm547 = vmor %vm545, %vm546
      %v549 = vshrl.u32 %v529, 16
      %v551 = vrot.slane %v549, 4
      %v552 = vshll.u32 %v529, 16
      %v554 = vrot.slane %v552, 5
      %v555 = vor.u32 %v551, %v554
      %v556 = vrot.slane %v555, 4
      %v558 = vshll.u32 %v530, 16
      %v560 = vrot.slane %v558, 5
      %v561 = vsel %vm547, %v556, %v560
      %v563 = vshrl.u32 %v531, 16
      %v565 = vrot.slane %v563, 4
      %v566 = vshll.u32 %v531, 16
      %v568 = vrot.slane %v566, 5
      %v569 = vor.u32 %v565, %v568
      %v570 = vrot.slane %v569, 4
      %v572 = vshll.u32 %v532, 16
      %v574 = vrot.slane %v572, 5
      %v575 = vsel %vm547, %v570, %v574
      %v577 = vshrl.u32 %v533, 16
      %v579 = vrot.slane %v577, 4
      %v580 = vshll.u32 %v533, 16
      %v582 = vrot.slane %v580, 5
      %v583 = vor.u32 %v579, %v582
      %v584 = vrot.slane %v583, 4
      %v586 = vshll.u32 %v534, 16
      %v588 = vrot.slane %v586, 5
      %v589 = vsel %vm547, %v584, %v588
      %v591 = vshrl.u32 %v535, 16
      %v593 = vrot.slane %v591, 4
      %v594 = vshll.u32 %v535, 16
      %v596 = vrot.slane %v594, 5
      %v597 = vor.u32 %v593, %v596
      %v598 = vrot.slane %v597, 4
      %v600 = vshll.u32 %v536, 16
      %v602 = vrot.slane %v600, 5
      %v603 = vsel %vm547, %v598, %v602
      %v605 = vshrl.u32 %v537, 16
      %v607 = vrot.slane %v605, 4
      %v608 = vshll.u32 %v537, 16
      %v610 = vrot.slane %v608, 5
      %v611 = vor.u32 %v607, %v610
      %v612 = vrot.slane %v611, 4
      %v614 = vshll.u32 %v538, 16
      %v616 = vrot.slane %v614, 5
      %v617 = vsel %vm547, %v612, %v616
      %v619 = vshrl.u32 %v539, 16
      %v621 = vrot.slane %v619, 4
      %v622 = vshll.u32 %v539, 16
      %v624 = vrot.slane %v622, 5
      %v625 = vor.u32 %v621, %v624
      %v626 = vrot.slane %v625, 4
      %v628 = vshll.u32 %v540, 16
      %v630 = vrot.slane %v628, 5
      %v631 = vsel %vm547, %v626, %v630
      %v633 = vshrl.u32 %v541, 16
      %v635 = vrot.slane %v633, 4
      %v636 = vshll.u32 %v541, 16
      %v638 = vrot.slane %v636, 5
      %v639 = vor.u32 %v635, %v638
      %v640 = vrot.slane %v639, 4
      %v642 = vshll.u32 %v542, 16
      %v644 = vrot.slane %v642, 5
      %v645 = vsel %vm547, %v640, %v644
      %v647 = vshrl.u32 %v543, 16
      %v649 = vrot.slane %v647, 4
      %v650 = vshll.u32 %v543, 16
      %v652 = vrot.slane %v650, 5
      %v653 = vor.u32 %v649, %v652
      %v654 = vrot.slane %v653, 4
      %v656 = vshll.u32 %v544, 16
      %v658 = vrot.slane %v656, 5
      %v659 = vsel %vm547, %v654, %v658
      %668 = vst [vmem:[#allocation3 + $0x4] sm:$0xf] %v561
      %669 = vst [vmem:[#allocation3 + $0x28] sm:$0xf] %v575
      %670 = vst [vmem:[#allocation3 + $0x4c] sm:$0xf] %v589
      %671 = vst [vmem:[#allocation3 + $0x70] sm:$0xf] %v603
      %672 = vst [vmem:[#allocation3 + $0x94] sm:$0xf] %v617
      %673 = vst [vmem:[#allocation3 + $0xb8] sm:$0xf] %v631
      %674 = vst [vmem:[#allocation3 + $0xdc] sm:$0xf] %v645
      %675 = vst [vmem:[#allocation3 + $0x100] sm:$0xf] %v659
      %v676 = vld [vmem:[#allocation2] sm:$0xe]
      %v677 = vld [vmem:[#allocation2 + $0x4] sm:$0x1]
      %v678 = vld [vmem:[#allocation2 + $0x8] sm:$0xe]
      %v679 = vld [vmem:[#allocation2 + $0xc] sm:$0x1]
      %v680 = vld [vmem:[#allocation2 + $0x10] sm:$0xe]
      %v681 = vld [vmem:[#allocation2 + $0x14] sm:$0x1]
      %v682 = vld [vmem:[#allocation2 + $0x18] sm:$0xe]
      %v683 = vld [vmem:[#allocation2 + $0x1c] sm:$0x1]
      %v684 = vld [vmem:[#allocation2 + $0x20] sm:$0xe]
      %v685 = vld [vmem:[#allocation2 + $0x24] sm:$0x1]
      %v686 = vld [vmem:[#allocation2 + $0x28] sm:$0xe]
      %v687 = vld [vmem:[#allocation2 + $0x2c] sm:$0x1]
      %v688 = vld [vmem:[#allocation2 + $0x30] sm:$0xe]
      %v689 = vld [vmem:[#allocation2 + $0x34] sm:$0x1]
      %v690 = vld [vmem:[#allocation2 + $0x38] sm:$0xe]
      %v691 = vld [vmem:[#allocation2 + $0x3c] sm:$0x1]
      %vm708 = vcmask 1042432
      %vm709 = vcmask 1046532
      %vm710 = vmor %vm708, %vm709
      %v711 = vrot.slane %v676, 5
      %v712 = vrot.slane %v711, 4
      %v713 = vrot.slane %v677, 5
      %v714 = vsel %vm710, %v712, %v713
      %v715 = vrot.slane %v678, 5
      %v716 = vrot.slane %v715, 4
      %v717 = vrot.slane %v679, 5
      %v718 = vsel %vm710, %v716, %v717
      %v719 = vrot.slane %v680, 5
      %v720 = vrot.slane %v719, 4
      %v721 = vrot.slane %v681, 5
      %v722 = vsel %vm710, %v720, %v721
      %v723 = vrot.slane %v682, 5
      %v724 = vrot.slane %v723, 4
      %v725 = vrot.slane %v683, 5
      %v726 = vsel %vm710, %v724, %v725
      %v727 = vrot.slane %v684, 5
      %v728 = vrot.slane %v727, 4
      %v729 = vrot.slane %v685, 5
      %v730 = vsel %vm710, %v728, %v729
      %v731 = vrot.slane %v686, 5
      %v732 = vrot.slane %v731, 4
      %v733 = vrot.slane %v687, 5
      %v734 = vsel %vm710, %v732, %v733
      %v735 = vrot.slane %v688, 5
      %v736 = vrot.slane %v735, 4
      %v737 = vrot.slane %v689, 5
      %v738 = vsel %vm710, %v736, %v737
      %v739 = vrot.slane %v690, 5
      %v740 = vrot.slane %v739, 4
      %v741 = vrot.slane %v691, 5
      %v742 = vsel %vm710, %v740, %v741
      %751 = vst [vmem:[#allocation3 + $0x8] sm:$0xf] %v714
      %752 = vst [vmem:[#allocation3 + $0x2c] sm:$0xf] %v718
      %753 = vst [vmem:[#allocation3 + $0x50] sm:$0xf] %v722
      %754 = vst [vmem:[#allocation3 + $0x74] sm:$0xf] %v726
      %755 = vst [vmem:[#allocation3 + $0x98] sm:$0xf] %v730
      %756 = vst [vmem:[#allocation3 + $0xbc] sm:$0xf] %v734
      %757 = vst [vmem:[#allocation3 + $0xe0] sm:$0xf] %v738
      %758 = vst [vmem:[#allocation3 + $0x104] sm:$0xf] %v742
      %v759 = vld [vmem:[%s458] sm:$0xf]
      %v760 = vld [vmem:[%s458 + $0x8] sm:$0xf]
      %v761 = vld [vmem:[%s458 + $0x10] sm:$0xf]
      %v762 = vld [vmem:[%s458 + $0x18] sm:$0xf]
      %v763 = vld [vmem:[%s458 + $0x20] sm:$0xf]
      %v764 = vld [vmem:[%s458 + $0x28] sm:$0xf]
      %v765 = vld [vmem:[%s458 + $0x30] sm:$0xf]
      %v766 = vld [vmem:[%s458 + $0x38] sm:$0xf]
      %767 = vst [vmem:[#allocation3 + $0xc] sm:$0xf] %v759
      %768 = vst [vmem:[#allocation3 + $0x30] sm:$0xf] %v760
      %769 = vst [vmem:[#allocation3 + $0x54] sm:$0xf] %v761
      %770 = vst [vmem:[#allocation3 + $0x78] sm:$0xf] %v762
      %771 = vst [vmem:[#allocation3 + $0x9c] sm:$0xf] %v763
      %772 = vst [vmem:[#allocation3 + $0xc0] sm:$0xf] %v764
      %773 = vst [vmem:[#allocation3 + $0xe4] sm:$0xf] %v765
      %774 = vst [vmem:[#allocation3 + $0x108] sm:$0xf] %v766
      %v775 = vld [vmem:[%s458] sm:$0xf]
      %v776 = vld [vmem:[%s458 + $0x4] sm:$0x1]
      %v777 = vld [vmem:[%s458 + $0x8] sm:$0xf]
      %v778 = vld [vmem:[%s458 + $0xc] sm:$0x1]
      %v779 = vld [vmem:[%s458 + $0x10] sm:$0xf]
      %v780 = vld [vmem:[%s458 + $0x14] sm:$0x1]
      %v781 = vld [vmem:[%s458 + $0x18] sm:$0xf]
      %v782 = vld [vmem:[%s458 + $0x1c] sm:$0x1]
      %v783 = vld [vmem:[%s458 + $0x20] sm:$0xf]
      %v784 = vld [vmem:[%s458 + $0x24] sm:$0x1]
      %v785 = vld [vmem:[%s458 + $0x28] sm:$0xf]
      %v786 = vld [vmem:[%s458 + $0x2c] sm:$0x1]
      %v787 = vld [vmem:[%s458 + $0x30] sm:$0xf]
      %v788 = vld [vmem:[%s458 + $0x34] sm:$0x1]
      %v789 = vld [vmem:[%s458 + $0x38] sm:$0xf]
      %v790 = vld [vmem:[%s458 + $0x3c] sm:$0x1]
      %v792 = vshrl.u32 %v775, 16
      %v794 = vrot.slane %v792, 4
      %v795 = vshll.u32 %v775, 16
      %v797 = vrot.slane %v795, 5
      %v798 = vor.u32 %v794, %v797
      %v799 = vrot.slane %v798, 4
      %v801 = vshll.u32 %v776, 16
      %v803 = vrot.slane %v801, 5
      %v804 = vsel %vm547, %v799, %v803
      %v806 = vshrl.u32 %v777, 16
      %v808 = vrot.slane %v806, 4
      %v809 = vshll.u32 %v777, 16
      %v811 = vrot.slane %v809, 5
      %v812 = vor.u32 %v808, %v811
      %v813 = vrot.slane %v812, 4
      %v815 = vshll.u32 %v778, 16
      %v817 = vrot.slane %v815, 5
      %v818 = vsel %vm547, %v813, %v817
      %v820 = vshrl.u32 %v779, 16
      %v822 = vrot.slane %v820, 4
      %v823 = vshll.u32 %v779, 16
      %v825 = vrot.slane %v823, 5
      %v826 = vor.u32 %v822, %v825
      %v827 = vrot.slane %v826, 4
      %v829 = vshll.u32 %v780, 16
      %v831 = vrot.slane %v829, 5
      %v832 = vsel %vm547, %v827, %v831
      %v834 = vshrl.u32 %v781, 16
      %v836 = vrot.slane %v834, 4
      %v837 = vshll.u32 %v781, 16
      %v839 = vrot.slane %v837, 5
      %v840 = vor.u32 %v836, %v839
      %v841 = vrot.slane %v840, 4
      %v843 = vshll.u32 %v782, 16
      %v845 = vrot.slane %v843, 5
      %v846 = vsel %vm547, %v841, %v845
      %v848 = vshrl.u32 %v783, 16
      %v850 = vrot.slane %v848, 4
      %v851 = vshll.u32 %v783, 16
      %v853 = vrot.slane %v851, 5
      %v854 = vor.u32 %v850, %v853
      %v855 = vrot.slane %v854, 4
      %v857 = vshll.u32 %v784, 16
      %v859 = vrot.slane %v857, 5
      %v860 = vsel %vm547, %v855, %v859
      %v862 = vshrl.u32 %v785, 16
      %v864 = vrot.slane %v862, 4
      %v865 = vshll.u32 %v785, 16
      %v867 = vrot.slane %v865, 5
      %v868 = vor.u32 %v864, %v867
      %v869 = vrot.slane %v868, 4
      %v871 = vshll.u32 %v786, 16
      %v873 = vrot.slane %v871, 5
      %v874 = vsel %vm547, %v869, %v873
      %v876 = vshrl.u32 %v787, 16
      %v878 = vrot.slane %v876, 4
      %v879 = vshll.u32 %v787, 16
      %v881 = vrot.slane %v879, 5
      %v882 = vor.u32 %v878, %v881
      %v883 = vrot.slane %v882, 4
      %v885 = vshll.u32 %v788, 16
      %v887 = vrot.slane %v885, 5
      %v888 = vsel %vm547, %v883, %v887
      %v890 = vshrl.u32 %v789, 16
      %v892 = vrot.slane %v890, 4
      %v893 = vshll.u32 %v789, 16
      %v895 = vrot.slane %v893, 5
      %v896 = vor.u32 %v892, %v895
      %v897 = vrot.slane %v896, 4
      %v899 = vshll.u32 %v790, 16
      %v901 = vrot.slane %v899, 5
      %v902 = vsel %vm547, %v897, %v901
      %911 = vst [vmem:[#allocation3 + $0x10] sm:$0xf] %v804
      %912 = vst [vmem:[#allocation3 + $0x34] sm:$0xf] %v818
      %913 = vst [vmem:[#allocation3 + $0x58] sm:$0xf] %v832
      %914 = vst [vmem:[#allocation3 + $0x7c] sm:$0xf] %v846
      %915 = vst [vmem:[#allocation3 + $0xa0] sm:$0xf] %v860
      %916 = vst [vmem:[#allocation3 + $0xc4] sm:$0xf] %v874
      %917 = vst [vmem:[#allocation3 + $0xe8] sm:$0xf] %v888
      %918 = vst [vmem:[#allocation3 + $0x10c] sm:$0xf] %v902
      %v919 = vld [vmem:[%s458] sm:$0xe]
      %v920 = vld [vmem:[%s458 + $0x4] sm:$0x1]
      %v921 = vld [vmem:[%s458 + $0x8] sm:$0xe]
      %v922 = vld [vmem:[%s458 + $0xc] sm:$0x1]
      %v923 = vld [vmem:[%s458 + $0x10] sm:$0xe]
      %v924 = vld [vmem:[%s458 + $0x14] sm:$0x1]
      %v925 = vld [vmem:[%s458 + $0x18] sm:$0xe]
      %v926 = vld [vmem:[%s458 + $0x1c] sm:$0x1]
      %v927 = vld [vmem:[%s458 + $0x20] sm:$0xe]
      %v928 = vld [vmem:[%s458 + $0x24] sm:$0x1]
      %v929 = vld [vmem:[%s458 + $0x28] sm:$0xe]
      %v930 = vld [vmem:[%s458 + $0x2c] sm:$0x1]
      %v931 = vld [vmem:[%s458 + $0x30] sm:$0xe]
      %v932 = vld [vmem:[%s458 + $0x34] sm:$0x1]
      %v933 = vld [vmem:[%s458 + $0x38] sm:$0xe]
      %v934 = vld [vmem:[%s458 + $0x3c] sm:$0x1]
      %v951 = vrot.slane %v919, 5
      %v952 = vrot.slane %v951, 4
      %v953 = vrot.slane %v920, 5
      %v954 = vsel %vm710, %v952, %v953
      %v955 = vrot.slane %v921, 5
      %v956 = vrot.slane %v955, 4
      %v957 = vrot.slane %v922, 5
      %v958 = vsel %vm710, %v956, %v957
      %v959 = vrot.slane %v923, 5
      %v960 = vrot.slane %v959, 4
      %v961 = vrot.slane %v924, 5
      %v962 = vsel %vm710, %v960, %v961
      %v963 = vrot.slane %v925, 5
      %v964 = vrot.slane %v963, 4
      %v965 = vrot.slane %v926, 5
      %v966 = vsel %vm710, %v964, %v965
      %v967 = vrot.slane %v927, 5
      %v968 = vrot.slane %v967, 4
      %v969 = vrot.slane %v928, 5
      %v970 = vsel %vm710, %v968, %v969
      %v971 = vrot.slane %v929, 5
      %v972 = vrot.slane %v971, 4
      %v973 = vrot.slane %v930, 5
      %v974 = vsel %vm710, %v972, %v973
      %v975 = vrot.slane %v931, 5
      %v976 = vrot.slane %v975, 4
      %v977 = vrot.slane %v932, 5
      %v978 = vsel %vm710, %v976, %v977
      %v979 = vrot.slane %v933, 5
      %v980 = vrot.slane %v979, 4
      %v981 = vrot.slane %v934, 5
      %v982 = vsel %vm710, %v980, %v981
      %991 = vst [vmem:[#allocation3 + $0x14] sm:$0xf] %v954
      %992 = vst [vmem:[#allocation3 + $0x38] sm:$0xf] %v958
      %993 = vst [vmem:[#allocation3 + $0x5c] sm:$0xf] %v962
      %994 = vst [vmem:[#allocation3 + $0x80] sm:$0xf] %v966
      %995 = vst [vmem:[#allocation3 + $0xa4] sm:$0xf] %v970
      %996 = vst [vmem:[#allocation3 + $0xc8] sm:$0xf] %v974
      %997 = vst [vmem:[#allocation3 + $0xec] sm:$0xf] %v978
      %998 = vst [vmem:[#allocation3 + $0x110] sm:$0xf] %v982
      %s999 = scalar_lea.vmem [#allocation2], 16
      %v1000 = vld [vmem:[%s999] sm:$0xf]
      %v1001 = vld [vmem:[%s999 + $0x8] sm:$0xf]
      %v1002 = vld [vmem:[%s999 + $0x10] sm:$0xf]
      %v1003 = vld [vmem:[%s999 + $0x18] sm:$0xf]
      %v1004 = vld [vmem:[%s999 + $0x20] sm:$0xf]
      %v1005 = vld [vmem:[%s999 + $0x28] sm:$0xf]
      %v1006 = vld [vmem:[%s999 + $0x30] sm:$0xf]
      %v1007 = vld [vmem:[%s999 + $0x38] sm:$0xf]
      %1008 = vst [vmem:[#allocation3 + $0x18] sm:$0xf] %v1000
      %1009 = vst [vmem:[#allocation3 + $0x3c] sm:$0xf] %v1001
      %1010 = vst [vmem:[#allocation3 + $0x60] sm:$0xf] %v1002
      %1011 = vst [vmem:[#allocation3 + $0x84] sm:$0xf] %v1003
      %1012 = vst [vmem:[#allocation3 + $0xa8] sm:$0xf] %v1004
      %1013 = vst [vmem:[#allocation3 + $0xcc] sm:$0xf] %v1005
      %1014 = vst [vmem:[#allocation3 + $0xf0] sm:$0xf] %v1006
      %1015 = vst [vmem:[#allocation3 + $0x114] sm:$0xf] %v1007
      %v1016 = vld [vmem:[%s999] sm:$0xf]
      %v1017 = vld [vmem:[%s999 + $0x4] sm:$0x1]
      %v1018 = vld [vmem:[%s999 + $0x8] sm:$0xf]
      %v1019 = vld [vmem:[%s999 + $0xc] sm:$0x1]
      %v1020 = vld [vmem:[%s999 + $0x10] sm:$0xf]
      %v1021 = vld [vmem:[%s999 + $0x14] sm:$0x1]
      %v1022 = vld [vmem:[%s999 + $0x18] sm:$0xf]
      %v1023 = vld [vmem:[%s999 + $0x1c] sm:$0x1]
      %v1024 = vld [vmem:[%s999 + $0x20] sm:$0xf]
      %v1025 = vld [vmem:[%s999 + $0x24] sm:$0x1]
      %v1026 = vld [vmem:[%s999 + $0x28] sm:$0xf]
      %v1027 = vld [vmem:[%s999 + $0x2c] sm:$0x1]
      %v1028 = vld [vmem:[%s999 + $0x30] sm:$0xf]
      %v1029 = vld [vmem:[%s999 + $0x34] sm:$0x1]
      %v1030 = vld [vmem:[%s999 + $0x38] sm:$0xf]
      %v1031 = vld [vmem:[%s999 + $0x3c] sm:$0x1]
      %v1033 = vshrl.u32 %v1016, 16
      %v1035 = vrot.slane %v1033, 4
      %v1036 = vshll.u32 %v1016, 16
      %v1038 = vrot.slane %v1036, 5
      %v1039 = vor.u32 %v1035, %v1038
      %v1040 = vrot.slane %v1039, 4
      %v1042 = vshll.u32 %v1017, 16
      %v1044 = vrot.slane %v1042, 5
      %v1045 = vsel %vm547, %v1040, %v1044
      %v1047 = vshrl.u32 %v1018, 16
      %v1049 = vrot.slane %v1047, 4
      %v1050 = vshll.u32 %v1018, 16
      %v1052 = vrot.slane %v1050, 5
      %v1053 = vor.u32 %v1049, %v1052
      %v1054 = vrot.slane %v1053, 4
      %v1056 = vshll.u32 %v1019, 16
      %v1058 = vrot.slane %v1056, 5
      %v1059 = vsel %vm547, %v1054, %v1058
      %v1061 = vshrl.u32 %v1020, 16
      %v1063 = vrot.slane %v1061, 4
      %v1064 = vshll.u32 %v1020, 16
      %v1066 = vrot.slane %v1064, 5
      %v1067 = vor.u32 %v1063, %v1066
      %v1068 = vrot.slane %v1067, 4
      %v1070 = vshll.u32 %v1021, 16
      %v1072 = vrot.slane %v1070, 5
      %v1073 = vsel %vm547, %v1068, %v1072
      %v1075 = vshrl.u32 %v1022, 16
      %v1077 = vrot.slane %v1075, 4
      %v1078 = vshll.u32 %v1022, 16
      %v1080 = vrot.slane %v1078, 5
      %v1081 = vor.u32 %v1077, %v1080
      %v1082 = vrot.slane %v1081, 4
      %v1084 = vshll.u32 %v1023, 16
      %v1086 = vrot.slane %v1084, 5
      %v1087 = vsel %vm547, %v1082, %v1086
      %v1089 = vshrl.u32 %v1024, 16
      %v1091 = vrot.slane %v1089, 4
      %v1092 = vshll.u32 %v1024, 16
      %v1094 = vrot.slane %v1092, 5
      %v1095 = vor.u32 %v1091, %v1094
      %v1096 = vrot.slane %v1095, 4
      %v1098 = vshll.u32 %v1025, 16
      %v1100 = vrot.slane %v1098, 5
      %v1101 = vsel %vm547, %v1096, %v1100
      %v1103 = vshrl.u32 %v1026, 16
      %v1105 = vrot.slane %v1103, 4
      %v1106 = vshll.u32 %v1026, 16
      %v1108 = vrot.slane %v1106, 5
      %v1109 = vor.u32 %v1105, %v1108
      %v1110 = vrot.slane %v1109, 4
      %v1112 = vshll.u32 %v1027, 16
      %v1114 = vrot.slane %v1112, 5
      %v1115 = vsel %vm547, %v1110, %v1114
      %v1117 = vshrl.u32 %v1028, 16
      %v1119 = vrot.slane %v1117, 4
      %v1120 = vshll.u32 %v1028, 16
      %v1122 = vrot.slane %v1120, 5
      %v1123 = vor.u32 %v1119, %v1122
      %v1124 = vrot.slane %v1123, 4
      %v1126 = vshll.u32 %v1029, 16
      %v1128 = vrot.slane %v1126, 5
      %v1129 = vsel %vm547, %v1124, %v1128
      %v1131 = vshrl.u32 %v1030, 16
      %v1133 = vrot.slane %v1131, 4
      %v1134 = vshll.u32 %v1030, 16
      %v1136 = vrot.slane %v1134, 5
      %v1137 = vor.u32 %v1133, %v1136
      %v1138 = vrot.slane %v1137, 4
      %v1140 = vshll.u32 %v1031, 16
      %v1142 = vrot.slane %v1140, 5
      %v1143 = vsel %vm547, %v1138, %v1142
      %1152 = vst [vmem:[#allocation3 + $0x1c] sm:$0xf] %v1045
      %1153 = vst [vmem:[#allocation3 + $0x40] sm:$0xf] %v1059
      %1154 = vst [vmem:[#allocation3 + $0x64] sm:$0xf] %v1073
      %1155 = vst [vmem:[#allocation3 + $0x88] sm:$0xf] %v1087
      %1156 = vst [vmem:[#allocation3 + $0xac] sm:$0xf] %v1101
      %1157 = vst [vmem:[#allocation3 + $0xd0] sm:$0xf] %v1115
      %1158 = vst [vmem:[#allocation3 + $0xf4] sm:$0xf] %v1129
      %1159 = vst [vmem:[#allocation3 + $0x118] sm:$0xf] %v1143
      %v1160 = vld [vmem:[%s999] sm:$0xe]
      %v1161 = vld [vmem:[%s999 + $0x4] sm:$0x1]
      %v1162 = vld [vmem:[%s999 + $0x8] sm:$0xe]
      %v1163 = vld [vmem:[%s999 + $0xc] sm:$0x1]
      %v1164 = vld [vmem:[%s999 + $0x10] sm:$0xe]
      %v1165 = vld [vmem:[%s999 + $0x14] sm:$0x1]
      %v1166 = vld [vmem:[%s999 + $0x18] sm:$0xe]
      %v1167 = vld [vmem:[%s999 + $0x1c] sm:$0x1]
      %v1168 = vld [vmem:[%s999 + $0x20] sm:$0xe]
      %v1169 = vld [vmem:[%s999 + $0x24] sm:$0x1]
      %v1170 = vld [vmem:[%s999 + $0x28] sm:$0xe]
      %v1171 = vld [vmem:[%s999 + $0x2c] sm:$0x1]
      %v1172 = vld [vmem:[%s999 + $0x30] sm:$0xe]
      %v1173 = vld [vmem:[%s999 + $0x34] sm:$0x1]
      %v1174 = vld [vmem:[%s999 + $0x38] sm:$0xe]
      %v1175 = vld [vmem:[%s999 + $0x3c] sm:$0x1]
      %v1192 = vrot.slane %v1160, 5
      %v1193 = vrot.slane %v1192, 4
      %v1194 = vrot.slane %v1161, 5
      %v1195 = vsel %vm710, %v1193, %v1194
      %v1196 = vrot.slane %v1162, 5
      %v1197 = vrot.slane %v1196, 4
      %v1198 = vrot.slane %v1163, 5
      %v1199 = vsel %vm710, %v1197, %v1198
      %v1200 = vrot.slane %v1164, 5
      %v1201 = vrot.slane %v1200, 4
      %v1202 = vrot.slane %v1165, 5
      %v1203 = vsel %vm710, %v1201, %v1202
      %v1204 = vrot.slane %v1166, 5
      %v1205 = vrot.slane %v1204, 4
      %v1206 = vrot.slane %v1167, 5
      %v1207 = vsel %vm710, %v1205, %v1206
      %v1208 = vrot.slane %v1168, 5
      %v1209 = vrot.slane %v1208, 4
      %v1210 = vrot.slane %v1169, 5
      %v1211 = vsel %vm710, %v1209, %v1210
      %v1212 = vrot.slane %v1170, 5
      %v1213 = vrot.slane %v1212, 4
      %v1214 = vrot.slane %v1171, 5
      %v1215 = vsel %vm710, %v1213, %v1214
      %v1216 = vrot.slane %v1172, 5
      %v1217 = vrot.slane %v1216, 4
      %v1218 = vrot.slane %v1173, 5
      %v1219 = vsel %vm710, %v1217, %v1218
      %v1220 = vrot.slane %v1174, 5
      %v1221 = vrot.slane %v1220, 4
      %v1222 = vrot.slane %v1175, 5
      %v1223 = vsel %vm710, %v1221, %v1222
      %1232 = vst [vmem:[#allocation3 + $0x20] sm:$0xf] %v1195
      %1233 = vst [vmem:[#allocation3 + $0x44] sm:$0xf] %v1199
      %1234 = vst [vmem:[#allocation3 + $0x68] sm:$0xf] %v1203
      %1235 = vst [vmem:[#allocation3 + $0x8c] sm:$0xf] %v1207
      %1236 = vst [vmem:[#allocation3 + $0xb0] sm:$0xf] %v1211
      %1237 = vst [vmem:[#allocation3 + $0xd4] sm:$0xf] %v1215
      %1238 = vst [vmem:[#allocation3 + $0xf8] sm:$0xf] %v1219
      %1239 = vst [vmem:[#allocation3 + $0x11c] sm:$0xf] %v1223
      %v1240 = vld [vmem:[#allocation3] sm:$0xff]
      %v1241 = vld [vmem:[#allocation3 + $0x8] sm:$0xff]
      %v1242 = vld [vmem:[#allocation3 + $0x10] sm:$0xff]
      %v1243 = vld [vmem:[#allocation3 + $0x18] sm:$0xff]
      %v1244 = vld [vmem:[#allocation3 + $0x20] sm:$0xf]
      %v1245 = vld [vmem:[#allocation3 + $0x24] sm:$0xff]
      %v1246 = vld [vmem:[#allocation3 + $0x2c] sm:$0xff]
      %v1247 = vld [vmem:[#allocation3 + $0x34] sm:$0xff]
      %v1248 = vld [vmem:[#allocation3 + $0x3c] sm:$0xff]
      %v1249 = vld [vmem:[#allocation3 + $0x44] sm:$0xf]
      %v1250 = vld [vmem:[#allocation3 + $0x48] sm:$0xff]
      %v1251 = vld [vmem:[#allocation3 + $0x50] sm:$0xff]
      %v1252 = vld [vmem:[#allocation3 + $0x58] sm:$0xff]
      %v1253 = vld [vmem:[#allocation3 + $0x60] sm:$0xff]
      %v1254 = vld [vmem:[#allocation3 + $0x68] sm:$0xf]
      %v1255 = vld [vmem:[#allocation3 + $0x6c] sm:$0xff]
      %v1256 = vld [vmem:[#allocation3 + $0x74] sm:$0xff]
      %v1257 = vld [vmem:[#allocation3 + $0x7c] sm:$0xff]
      %v1258 = vld [vmem:[#allocation3 + $0x84] sm:$0xff]
      %v1259 = vld [vmem:[#allocation3 + $0x8c] sm:$0xf]
      %v1260 = vld [vmem:[#allocation3 + $0x90] sm:$0xff]
      %v1261 = vld [vmem:[#allocation3 + $0x98] sm:$0xff]
      %v1262 = vld [vmem:[#allocation3 + $0xa0] sm:$0xff]
      %v1263 = vld [vmem:[#allocation3 + $0xa8] sm:$0xff]
      %v1264 = vld [vmem:[#allocation3 + $0xb0] sm:$0xf]
      %v1265 = vld [vmem:[#allocation3 + $0xb4] sm:$0xff]
      %v1266 = vld [vmem:[#allocation3 + $0xbc] sm:$0xff]
      %v1267 = vld [vmem:[#allocation3 + $0xc4] sm:$0xff]
      %v1268 = vld [vmem:[#allocation3 + $0xcc] sm:$0xff]
      %v1269 = vld [vmem:[#allocation3 + $0xd4] sm:$0xf]
      %v1270 = vld [vmem:[#allocation3 + $0xd8] sm:$0xff]
      %v1271 = vld [vmem:[#allocation3 + $0xe0] sm:$0xff]
      %v1272 = vld [vmem:[#allocation3 + $0xe8] sm:$0xff]
      %v1273 = vld [vmem:[#allocation3 + $0xf0] sm:$0xff]
      %v1274 = vld [vmem:[#allocation3 + $0xf8] sm:$0xf]
      %v1275 = vld [vmem:[#allocation3 + $0xfc] sm:$0xff]
      %v1276 = vld [vmem:[#allocation3 + $0x104] sm:$0xff]
      %v1277 = vld [vmem:[#allocation3 + $0x10c] sm:$0xff]
      %v1278 = vld [vmem:[#allocation3 + $0x114] sm:$0xff]
      %v1279 = vld [vmem:[#allocation3 + $0x11c] sm:$0xf]
      %v1280 = vld [vmem:[%s1] sm:$0xf]
      %v1281 = vld [vmem:[%s1 + $0x4] sm:$0xf]
      %v1282 = vld [vmem:[%s1 + $0x8] sm:$0xf]
      %v1283 = vld [vmem:[%s1 + $0xc] sm:$0xf]
      %v1284 = vld [vmem:[%s1 + $0x10] sm:$0xf]
      %v1285 = vld [vmem:[%s1 + $0x14] sm:$0xf]
      %v1286 = vld [vmem:[%s1 + $0x18] sm:$0xf]
      %v1287 = vld [vmem:[%s1 + $0x1c] sm:$0xf]
      %v1288 = vld [vmem:[%s1 + $0x20] sm:$0xf]
      %v1289 = vld [vmem:[%s1 + $0x24] sm:$0xf]
      %v1290 = vld [vmem:[%s1 + $0x28] sm:$0xf]
      %v1291 = vld [vmem:[%s1 + $0x2c] sm:$0xf]
      %v1292 = vld [vmem:[%s1 + $0x30] sm:$0xf]
      %v1293 = vld [vmem:[%s1 + $0x34] sm:$0xf]
      %v1294 = vld [vmem:[%s1 + $0x38] sm:$0xf]
      %v1295 = vld [vmem:[%s1 + $0x3c] sm:$0xf]
      %v1296 = vld [vmem:[%s1 + $0x40] sm:$0xf]
      %v1297 = vld [vmem:[%s1 + $0x44] sm:$0xf]
      %v1298 = vld [vmem:[%s1 + $0x48] sm:$0xf]
      %v1299 = vld [vmem:[%s1 + $0x4c] sm:$0xf]
      %v1300 = vld [vmem:[%s1 + $0x50] sm:$0xf]
      %v1301 = vld [vmem:[%s1 + $0x54] sm:$0xf]
      %v1302 = vld [vmem:[%s1 + $0x58] sm:$0xf]
      %v1303 = vld [vmem:[%s1 + $0x5c] sm:$0xf]
      %v1304 = vld [vmem:[%s1 + $0x60] sm:$0xf]
      %v1305 = vld [vmem:[%s1 + $0x64] sm:$0xf]
      %v1306 = vld [vmem:[%s1 + $0x68] sm:$0xf]
      %v1307 = vld [vmem:[%s1 + $0x6c] sm:$0xf]
      %v1308 = vld [vmem:[%s1 + $0x70] sm:$0xf]
      %v1309 = vld [vmem:[%s1 + $0x74] sm:$0xf]
      %v1310 = vld [vmem:[%s1 + $0x78] sm:$0xf]
      %v1311 = vld [vmem:[%s1 + $0x7c] sm:$0xf]
      %v1312 = vld [vmem:[%s1 + $0x80] sm:$0xf]
      %v1313 = vld [vmem:[%s1 + $0x84] sm:$0xf]
      %v1314 = vld [vmem:[%s1 + $0x88] sm:$0xf]
      %v1315 = vld [vmem:[%s1 + $0x8c] sm:$0xf]
      %v1316 = vld [vmem:[%s1 + $0x90] sm:$0xf]
      %v1317 = vld [vmem:[%s1 + $0x94] sm:$0xf]
      %v1318 = vld [vmem:[%s1 + $0x98] sm:$0xf]
      %v1319 = vld [vmem:[%s1 + $0x9c] sm:$0xf]
      %v1320 = vld [vmem:[%s1 + $0xa0] sm:$0xf]
      %v1321 = vld [vmem:[%s1 + $0xa4] sm:$0xf]
      %v1322 = vld [vmem:[%s1 + $0xa8] sm:$0xf]
      %v1323 = vld [vmem:[%s1 + $0xac] sm:$0xf]
      %v1324 = vld [vmem:[%s1 + $0xb0] sm:$0xf]
      %v1325 = vld [vmem:[%s1 + $0xb4] sm:$0xf]
      %v1326 = vld [vmem:[%s1 + $0xb8] sm:$0xf]
      %v1327 = vld [vmem:[%s1 + $0xbc] sm:$0xf]
      %v1328 = vld [vmem:[%s1 + $0xc0] sm:$0xf]
      %v1329 = vld [vmem:[%s1 + $0xc4] sm:$0xf]
      %v1330 = vld [vmem:[%s1 + $0xc8] sm:$0xf]
      %v1331 = vld [vmem:[%s1 + $0xcc] sm:$0xf]
      %v1332 = vld [vmem:[%s1 + $0xd0] sm:$0xf]
      %v1333 = vld [vmem:[%s1 + $0xd4] sm:$0xf]
      %v1334 = vld [vmem:[%s1 + $0xd8] sm:$0xf]
      %v1335 = vld [vmem:[%s1 + $0xdc] sm:$0xf]
      %v1336 = vld [vmem:[%s1 + $0xe0] sm:$0xf]
      %v1337 = vld [vmem:[%s1 + $0xe4] sm:$0xf]
      %v1338 = vld [vmem:[%s1 + $0xe8] sm:$0xf]
      %v1339 = vld [vmem:[%s1 + $0xec] sm:$0xf]
      %v1340 = vld [vmem:[%s1 + $0xf0] sm:$0xf]
      %v1341 = vld [vmem:[%s1 + $0xf4] sm:$0xf]
      %v1342 = vld [vmem:[%s1 + $0xf8] sm:$0xf]
      %v1343 = vld [vmem:[%s1 + $0xfc] sm:$0xf]
      %v1344 = vld [vmem:[%s1 + $0x100] sm:$0xf]
      %v1345 = vld [vmem:[%s1 + $0x104] sm:$0xf]
      %v1346 = vld [vmem:[%s1 + $0x108] sm:$0xf]
      %v1347 = vld [vmem:[%s1 + $0x10c] sm:$0xf]
      %v1348 = vld [vmem:[%s1 + $0x110] sm:$0xf]
      %v1349 = vld [vmem:[%s1 + $0x114] sm:$0xf]
      %v1350 = vld [vmem:[%s1 + $0x118] sm:$0xf]
      %v1351 = vld [vmem:[%s1 + $0x11c] sm:$0xf]
      %v1352 = vld [vmem:[%s1 + $0x120] sm:$0xf]
      %v1353 = vld [vmem:[%s1 + $0x124] sm:$0xf]
      %v1354 = vld [vmem:[%s1 + $0x128] sm:$0xf]
      %v1355 = vld [vmem:[%s1 + $0x12c] sm:$0xf]
      %v1356 = vld [vmem:[%s1 + $0x130] sm:$0xf]
      %v1357 = vld [vmem:[%s1 + $0x134] sm:$0xf]
      %v1358 = vld [vmem:[%s1 + $0x138] sm:$0xf]
      %v1359 = vld [vmem:[%s1 + $0x13c] sm:$0xf]
      %v1360 = vld [vmem:[%s1 + $0x140] sm:$0xf]
      %v1361 = vld [vmem:[%s1 + $0x144] sm:$0xf]
      %v1362 = vld [vmem:[%s1 + $0x148] sm:$0xf]
      %v1363 = vld [vmem:[%s1 + $0x14c] sm:$0xf]
      %v1364 = vld [vmem:[%s1 + $0x150] sm:$0xf]
      %v1365 = vld [vmem:[%s1 + $0x154] sm:$0xf]
      %v1366 = vld [vmem:[%s1 + $0x158] sm:$0xf]
      %v1367 = vld [vmem:[%s1 + $0x15c] sm:$0xf]
      %v1368 = vld [vmem:[%s1 + $0x160] sm:$0xf]
      %v1369 = vld [vmem:[%s1 + $0x164] sm:$0xf]
      %v1370 = vld [vmem:[%s1 + $0x168] sm:$0xf]
      %v1371 = vld [vmem:[%s1 + $0x16c] sm:$0xf]
      %v1372 = vld [vmem:[%s1 + $0x170] sm:$0xf]
      %v1373 = vld [vmem:[%s1 + $0x174] sm:$0xf]
      %v1374 = vld [vmem:[%s1 + $0x178] sm:$0xf]
      %v1375 = vld [vmem:[%s1 + $0x17c] sm:$0xf]
      %v1376 = vld [vmem:[%s1 + $0x180] sm:$0xf]
      %v1377 = vld [vmem:[%s1 + $0x184] sm:$0xf]
      %v1378 = vld [vmem:[%s1 + $0x188] sm:$0xf]
      %v1379 = vld [vmem:[%s1 + $0x18c] sm:$0xf]
      %v1380 = vld [vmem:[%s1 + $0x190] sm:$0xf]
      %v1381 = vld [vmem:[%s1 + $0x194] sm:$0xf]
      %v1382 = vld [vmem:[%s1 + $0x198] sm:$0xf]
      %v1383 = vld [vmem:[%s1 + $0x19c] sm:$0xf]
      %v1384 = vld [vmem:[%s1 + $0x1a0] sm:$0xf]
      %v1385 = vld [vmem:[%s1 + $0x1a4] sm:$0xf]
      %v1386 = vld [vmem:[%s1 + $0x1a8] sm:$0xf]
      %v1387 = vld [vmem:[%s1 + $0x1ac] sm:$0xf]
      %v1388 = vld [vmem:[%s1 + $0x1b0] sm:$0xf]
      %v1389 = vld [vmem:[%s1 + $0x1b4] sm:$0xf]
      %v1390 = vld [vmem:[%s1 + $0x1b8] sm:$0xf]
      %v1391 = vld [vmem:[%s1 + $0x1bc] sm:$0xf]
      %v1392 = vld [vmem:[%s1 + $0x1c0] sm:$0xf]
      %v1393 = vld [vmem:[%s1 + $0x1c4] sm:$0xf]
      %v1394 = vld [vmem:[%s1 + $0x1c8] sm:$0xf]
      %v1395 = vld [vmem:[%s1 + $0x1cc] sm:$0xf]
      %v1396 = vld [vmem:[%s1 + $0x1d0] sm:$0xf]
      %v1397 = vld [vmem:[%s1 + $0x1d4] sm:$0xf]
      %v1398 = vld [vmem:[%s1 + $0x1d8] sm:$0xf]
      %v1399 = vld [vmem:[%s1 + $0x1dc] sm:$0xf]
      %v1400 = vld [vmem:[%s1 + $0x1e0] sm:$0xf]
      %v1401 = vld [vmem:[%s1 + $0x1e4] sm:$0xf]
      %v1402 = vld [vmem:[%s1 + $0x1e8] sm:$0xf]
      %v1403 = vld [vmem:[%s1 + $0x1ec] sm:$0xf]
      %v1404 = vld [vmem:[%s1 + $0x1f0] sm:$0xf]
      %v1405 = vld [vmem:[%s1 + $0x1f4] sm:$0xf]
      %v1406 = vld [vmem:[%s1 + $0x1f8] sm:$0xf]
      %v1407 = vld [vmem:[%s1 + $0x1fc] sm:$0xf]
      %v1408 = vld [vmem:[%s1 + $0x200] sm:$0xf]
      %v1409 = vld [vmem:[%s1 + $0x204] sm:$0xf]
      %v1410 = vld [vmem:[%s1 + $0x208] sm:$0xf]
      %v1411 = vld [vmem:[%s1 + $0x20c] sm:$0xf]
      %v1412 = vld [vmem:[%s1 + $0x210] sm:$0xf]
      %v1413 = vld [vmem:[%s1 + $0x214] sm:$0xf]
      %v1414 = vld [vmem:[%s1 + $0x218] sm:$0xf]
      %v1415 = vld [vmem:[%s1 + $0x21c] sm:$0xf]
      %v1416 = vld [vmem:[%s1 + $0x220] sm:$0xf]
      %v1417 = vld [vmem:[%s1 + $0x224] sm:$0xf]
      %v1418 = vld [vmem:[%s1 + $0x228] sm:$0xf]
      %v1419 = vld [vmem:[%s1 + $0x22c] sm:$0xf]
      %v1420 = vld [vmem:[%s1 + $0x230] sm:$0xf]
      %v1421 = vld [vmem:[%s1 + $0x234] sm:$0xf]
      %v1422 = vld [vmem:[%s1 + $0x238] sm:$0xf]
      %v1423 = vld [vmem:[%s1 + $0x23c] sm:$0xf]
      %v1464 = vunpack.c.l.b16 %v1240
      %v1465 = vunpack.c.h.b16 %v1240
      %v1466 = vunpack.c.l.b16 %v1241
      %v1467 = vunpack.c.h.b16 %v1241
      %v1468 = vunpack.c.l.b16 %v1242
      %v1469 = vunpack.c.h.b16 %v1242
      %v1470 = vunpack.c.l.b16 %v1243
      %v1471 = vunpack.c.h.b16 %v1243
      %v1472 = vunpack.c.l.b16 %v1244
      %v1473 = vunpack.c.l.b16 %v1245
      %v1474 = vunpack.c.h.b16 %v1245
      %v1475 = vunpack.c.l.b16 %v1246
      %v1476 = vunpack.c.h.b16 %v1246
      %v1477 = vunpack.c.l.b16 %v1247
      %v1478 = vunpack.c.h.b16 %v1247
      %v1479 = vunpack.c.l.b16 %v1248
      %v1480 = vunpack.c.h.b16 %v1248
      %v1481 = vunpack.c.l.b16 %v1249
      %v1482 = vunpack.c.l.b16 %v1250
      %v1483 = vunpack.c.h.b16 %v1250
      %v1484 = vunpack.c.l.b16 %v1251
      %v1485 = vunpack.c.h.b16 %v1251
      %v1486 = vunpack.c.l.b16 %v1252
      %v1487 = vunpack.c.h.b16 %v1252
      %v1488 = vunpack.c.l.b16 %v1253
      %v1489 = vunpack.c.h.b16 %v1253
      %v1490 = vunpack.c.l.b16 %v1254
      %v1491 = vunpack.c.l.b16 %v1255
      %v1492 = vunpack.c.h.b16 %v1255
      %v1493 = vunpack.c.l.b16 %v1256
      %v1494 = vunpack.c.h.b16 %v1256
      %v1495 = vunpack.c.l.b16 %v1257
      %v1496 = vunpack.c.h.b16 %v1257
      %v1497 = vunpack.c.l.b16 %v1258
      %v1498 = vunpack.c.h.b16 %v1258
      %v1499 = vunpack.c.l.b16 %v1259
      %v1500 = vunpack.c.l.b16 %v1260
      %v1501 = vunpack.c.h.b16 %v1260
      %v1502 = vunpack.c.l.b16 %v1261
      %v1503 = vunpack.c.h.b16 %v1261
      %v1504 = vunpack.c.l.b16 %v1262
      %v1505 = vunpack.c.h.b16 %v1262
      %v1506 = vunpack.c.l.b16 %v1263
      %v1507 = vunpack.c.h.b16 %v1263
      %v1508 = vunpack.c.l.b16 %v1264
      %v1509 = vunpack.c.l.b16 %v1265
      %v1510 = vunpack.c.h.b16 %v1265
      %v1511 = vunpack.c.l.b16 %v1266
      %v1512 = vunpack.c.h.b16 %v1266
      %v1513 = vunpack.c.l.b16 %v1267
      %v1514 = vunpack.c.h.b16 %v1267
      %v1515 = vunpack.c.l.b16 %v1268
      %v1516 = vunpack.c.h.b16 %v1268
      %v1517 = vunpack.c.l.b16 %v1269
      %v1518 = vunpack.c.l.b16 %v1270
      %v1519 = vunpack.c.h.b16 %v1270
      %v1520 = vunpack.c.l.b16 %v1271
      %v1521 = vunpack.c.h.b16 %v1271
      %v1522 = vunpack.c.l.b16 %v1272
      %v1523 = vunpack.c.h.b16 %v1272
      %v1524 = vunpack.c.l.b16 %v1273
      %v1525 = vunpack.c.h.b16 %v1273
      %v1526 = vunpack.c.l.b16 %v1274
      %v1527 = vunpack.c.l.b16 %v1275
      %v1528 = vunpack.c.h.b16 %v1275
      %v1529 = vunpack.c.l.b16 %v1276
      %v1530 = vunpack.c.h.b16 %v1276
      %v1531 = vunpack.c.l.b16 %v1277
      %v1532 = vunpack.c.h.b16 %v1277
      %v1533 = vunpack.c.l.b16 %v1278
      %v1534 = vunpack.c.h.b16 %v1278
      %v1535 = vunpack.c.l.b16 %v1279
      %v1536 = vpack.c.b16 %v1473, %v1464
      %v1537 = vpack.c.b16 %v1474, %v1465
      %v1538 = vpack.c.b16 %v1475, %v1466
      %v1539 = vpack.c.b16 %v1476, %v1467
      %v1540 = vpack.c.b16 %v1477, %v1468
      %v1541 = vpack.c.b16 %v1478, %v1469
      %v1542 = vpack.c.b16 %v1479, %v1470
      %v1543 = vpack.c.b16 %v1480, %v1471
      %v1544 = vpack.c.b16 %v1481, %v1472
      %v1545 = vpack.c.b16 %v1491, %v1482
      %v1546 = vpack.c.b16 %v1492, %v1483
      %v1547 = vpack.c.b16 %v1493, %v1484
      %v1548 = vpack.c.b16 %v1494, %v1485
      %v1549 = vpack.c.b16 %v1495, %v1486
      %v1550 = vpack.c.b16 %v1496, %v1487
      %v1551 = vpack.c.b16 %v1497, %v1488
      %v1552 = vpack.c.b16 %v1498, %v1489
      %v1553 = vpack.c.b16 %v1499, %v1490
      %v1554 = vpack.c.b16 %v1509, %v1500
      %v1555 = vpack.c.b16 %v1510, %v1501
      %v1556 = vpack.c.b16 %v1511, %v1502
      %v1557 = vpack.c.b16 %v1512, %v1503
      %v1558 = vpack.c.b16 %v1513, %v1504
      %v1559 = vpack.c.b16 %v1514, %v1505
      %v1560 = vpack.c.b16 %v1515, %v1506
      %v1561 = vpack.c.b16 %v1516, %v1507
      %v1562 = vpack.c.b16 %v1517, %v1508
      %v1563 = vpack.c.b16 %v1527, %v1518
      %v1564 = vpack.c.b16 %v1528, %v1519
      %v1565 = vpack.c.b16 %v1529, %v1520
      %v1566 = vpack.c.b16 %v1530, %v1521
      %v1567 = vpack.c.b16 %v1531, %v1522
      %v1568 = vpack.c.b16 %v1532, %v1523
      %v1569 = vpack.c.b16 %v1533, %v1524
      %v1570 = vpack.c.b16 %v1534, %v1525
      %v1571 = vpack.c.b16 %v1535, %v1526
      %v1752 = vunpack.c.l.b16 %v1280
      %v1753 = vunpack.c.l.b16 %v1281
      %v1754 = vunpack.c.l.b16 %v1282
      %v1755 = vunpack.c.l.b16 %v1283
      %v1756 = vunpack.c.l.b16 %v1284
      %v1757 = vunpack.c.l.b16 %v1285
      %v1758 = vunpack.c.l.b16 %v1286
      %v1759 = vunpack.c.l.b16 %v1287
      %v1760 = vunpack.c.l.b16 %v1288
      %v1761 = vunpack.c.l.b16 %v1289
      %v1762 = vunpack.c.l.b16 %v1290
      %v1763 = vunpack.c.l.b16 %v1291
      %v1764 = vunpack.c.l.b16 %v1292
      %v1765 = vunpack.c.l.b16 %v1293
      %v1766 = vunpack.c.l.b16 %v1294
      %v1767 = vunpack.c.l.b16 %v1295
      %v1768 = vunpack.c.l.b16 %v1296
      %v1769 = vunpack.c.l.b16 %v1297
      %v1770 = vunpack.c.l.b16 %v1298
      %v1771 = vunpack.c.l.b16 %v1299
      %v1772 = vunpack.c.l.b16 %v1300
      %v1773 = vunpack.c.l.b16 %v1301
      %v1774 = vunpack.c.l.b16 %v1302
      %v1775 = vunpack.c.l.b16 %v1303
      %v1776 = vunpack.c.l.b16 %v1304
      %v1777 = vunpack.c.l.b16 %v1305
      %v1778 = vunpack.c.l.b16 %v1306
      %v1779 = vunpack.c.l.b16 %v1307
      %v1780 = vunpack.c.l.b16 %v1308
      %v1781 = vunpack.c.l.b16 %v1309
      %v1782 = vunpack.c.l.b16 %v1310
      %v1783 = vunpack.c.l.b16 %v1311
      %v1784 = vunpack.c.l.b16 %v1312
      %v1785 = vunpack.c.l.b16 %v1313
      %v1786 = vunpack.c.l.b16 %v1314
      %v1787 = vunpack.c.l.b16 %v1315
      %v1788 = vunpack.c.l.b16 %v1316
      %v1789 = vunpack.c.l.b16 %v1317
      %v1790 = vunpack.c.l.b16 %v1318
      %v1791 = vunpack.c.l.b16 %v1319
      %v1792 = vunpack.c.l.b16 %v1320
      %v1793 = vunpack.c.l.b16 %v1321
      %v1794 = vunpack.c.l.b16 %v1322
      %v1795 = vunpack.c.l.b16 %v1323
      %v1796 = vunpack.c.l.b16 %v1324
      %v1797 = vunpack.c.l.b16 %v1325
      %v1798 = vunpack.c.l.b16 %v1326
      %v1799 = vunpack.c.l.b16 %v1327
      %v1800 = vunpack.c.l.b16 %v1328
      %v1801 = vunpack.c.l.b16 %v1329
      %v1802 = vunpack.c.l.b16 %v1330
      %v1803 = vunpack.c.l.b16 %v1331
      %v1804 = vunpack.c.l.b16 %v1332
      %v1805 = vunpack.c.l.b16 %v1333
      %v1806 = vunpack.c.l.b16 %v1334
      %v1807 = vunpack.c.l.b16 %v1335
      %v1808 = vunpack.c.l.b16 %v1336
      %v1809 = vunpack.c.l.b16 %v1337
      %v1810 = vunpack.c.l.b16 %v1338
      %v1811 = vunpack.c.l.b16 %v1339
      %v1812 = vunpack.c.l.b16 %v1340
      %v1813 = vunpack.c.l.b16 %v1341
      %v1814 = vunpack.c.l.b16 %v1342
      %v1815 = vunpack.c.l.b16 %v1343
      %v1816 = vunpack.c.l.b16 %v1344
      %v1817 = vunpack.c.l.b16 %v1345
      %v1818 = vunpack.c.l.b16 %v1346
      %v1819 = vunpack.c.l.b16 %v1347
      %v1820 = vunpack.c.l.b16 %v1348
      %v1821 = vunpack.c.l.b16 %v1349
      %v1822 = vunpack.c.l.b16 %v1350
      %v1823 = vunpack.c.l.b16 %v1351
      %v1824 = vunpack.c.l.b16 %v1352
      %v1825 = vunpack.c.l.b16 %v1353
      %v1826 = vunpack.c.l.b16 %v1354
      %v1827 = vunpack.c.l.b16 %v1355
      %v1828 = vunpack.c.l.b16 %v1356
      %v1829 = vunpack.c.l.b16 %v1357
      %v1830 = vunpack.c.l.b16 %v1358
      %v1831 = vunpack.c.l.b16 %v1359
      %v1832 = vunpack.c.l.b16 %v1360
      %v1833 = vunpack.c.l.b16 %v1361
      %v1834 = vunpack.c.l.b16 %v1362
      %v1835 = vunpack.c.l.b16 %v1363
      %v1836 = vunpack.c.l.b16 %v1364
      %v1837 = vunpack.c.l.b16 %v1365
      %v1838 = vunpack.c.l.b16 %v1366
      %v1839 = vunpack.c.l.b16 %v1367
      %v1840 = vunpack.c.l.b16 %v1368
      %v1841 = vunpack.c.l.b16 %v1369
      %v1842 = vunpack.c.l.b16 %v1370
      %v1843 = vunpack.c.l.b16 %v1371
      %v1844 = vunpack.c.l.b16 %v1372
      %v1845 = vunpack.c.l.b16 %v1373
      %v1846 = vunpack.c.l.b16 %v1374
      %v1847 = vunpack.c.l.b16 %v1375
      %v1848 = vunpack.c.l.b16 %v1376
      %v1849 = vunpack.c.l.b16 %v1377
      %v1850 = vunpack.c.l.b16 %v1378
      %v1851 = vunpack.c.l.b16 %v1379
      %v1852 = vunpack.c.l.b16 %v1380
      %v1853 = vunpack.c.l.b16 %v1381
      %v1854 = vunpack.c.l.b16 %v1382
      %v1855 = vunpack.c.l.b16 %v1383
      %v1856 = vunpack.c.l.b16 %v1384
      %v1857 = vunpack.c.l.b16 %v1385
      %v1858 = vunpack.c.l.b16 %v1386
      %v1859 = vunpack.c.l.b16 %v1387
      %v1860 = vunpack.c.l.b16 %v1388
      %v1861 = vunpack.c.l.b16 %v1389
      %v1862 = vunpack.c.l.b16 %v1390
      %v1863 = vunpack.c.l.b16 %v1391
      %v1864 = vunpack.c.l.b16 %v1392
      %v1865 = vunpack.c.l.b16 %v1393
      %v1866 = vunpack.c.l.b16 %v1394
      %v1867 = vunpack.c.l.b16 %v1395
      %v1868 = vunpack.c.l.b16 %v1396
      %v1869 = vunpack.c.l.b16 %v1397
      %v1870 = vunpack.c.l.b16 %v1398
      %v1871 = vunpack.c.l.b16 %v1399
      %v1872 = vunpack.c.l.b16 %v1400
      %v1873 = vunpack.c.l.b16 %v1401
      %v1874 = vunpack.c.l.b16 %v1402
      %v1875 = vunpack.c.l.b16 %v1403
      %v1876 = vunpack.c.l.b16 %v1404
      %v1877 = vunpack.c.l.b16 %v1405
      %v1878 = vunpack.c.l.b16 %v1406
      %v1879 = vunpack.c.l.b16 %v1407
      %v1880 = vunpack.c.l.b16 %v1408
      %v1881 = vunpack.c.l.b16 %v1409
      %v1882 = vunpack.c.l.b16 %v1410
      %v1883 = vunpack.c.l.b16 %v1411
      %v1884 = vunpack.c.l.b16 %v1412
      %v1885 = vunpack.c.l.b16 %v1413
      %v1886 = vunpack.c.l.b16 %v1414
      %v1887 = vunpack.c.l.b16 %v1415
      %v1888 = vunpack.c.l.b16 %v1416
      %v1889 = vunpack.c.l.b16 %v1417
      %v1890 = vunpack.c.l.b16 %v1418
      %v1891 = vunpack.c.l.b16 %v1419
      %v1892 = vunpack.c.l.b16 %v1420
      %v1893 = vunpack.c.l.b16 %v1421
      %v1894 = vunpack.c.l.b16 %v1422
      %v1895 = vunpack.c.l.b16 %v1423
      %v1896 = vpack.c.b16 %v1753, %v1752
      %v1897 = vpack.c.b16 %v1755, %v1754
      %v1898 = vpack.c.b16 %v1757, %v1756
      %v1899 = vpack.c.b16 %v1759, %v1758
      %v1900 = vpack.c.b16 %v1761, %v1760
      %v1901 = vpack.c.b16 %v1763, %v1762
      %v1902 = vpack.c.b16 %v1765, %v1764
      %v1903 = vpack.c.b16 %v1767, %v1766
      %v1904 = vpack.c.b16 %v1769, %v1768
      %v1905 = vpack.c.b16 %v1771, %v1770
      %v1906 = vpack.c.b16 %v1773, %v1772
      %v1907 = vpack.c.b16 %v1775, %v1774
      %v1908 = vpack.c.b16 %v1777, %v1776
      %v1909 = vpack.c.b16 %v1779, %v1778
      %v1910 = vpack.c.b16 %v1781, %v1780
      %v1911 = vpack.c.b16 %v1783, %v1782
      %v1912 = vpack.c.b16 %v1785, %v1784
      %v1913 = vpack.c.b16 %v1787, %v1786
      %v1914 = vpack.c.b16 %v1789, %v1788
      %v1915 = vpack.c.b16 %v1791, %v1790
      %v1916 = vpack.c.b16 %v1793, %v1792
      %v1917 = vpack.c.b16 %v1795, %v1794
      %v1918 = vpack.c.b16 %v1797, %v1796
      %v1919 = vpack.c.b16 %v1799, %v1798
      %v1920 = vpack.c.b16 %v1801, %v1800
      %v1921 = vpack.c.b16 %v1803, %v1802
      %v1922 = vpack.c.b16 %v1805, %v1804
      %v1923 = vpack.c.b16 %v1807, %v1806
      %v1924 = vpack.c.b16 %v1809, %v1808
      %v1925 = vpack.c.b16 %v1811, %v1810
      %v1926 = vpack.c.b16 %v1813, %v1812
      %v1927 = vpack.c.b16 %v1815, %v1814
      %v1928 = vpack.c.b16 %v1817, %v1816
      %v1929 = vpack.c.b16 %v1819, %v1818
      %v1930 = vpack.c.b16 %v1821, %v1820
      %v1931 = vpack.c.b16 %v1823, %v1822
      %v1932 = vpack.c.b16 %v1825, %v1824
      %v1933 = vpack.c.b16 %v1827, %v1826
      %v1934 = vpack.c.b16 %v1829, %v1828
      %v1935 = vpack.c.b16 %v1831, %v1830
      %v1936 = vpack.c.b16 %v1833, %v1832
      %v1937 = vpack.c.b16 %v1835, %v1834
      %v1938 = vpack.c.b16 %v1837, %v1836
      %v1939 = vpack.c.b16 %v1839, %v1838
      %v1940 = vpack.c.b16 %v1841, %v1840
      %v1941 = vpack.c.b16 %v1843, %v1842
      %v1942 = vpack.c.b16 %v1845, %v1844
      %v1943 = vpack.c.b16 %v1847, %v1846
      %v1944 = vpack.c.b16 %v1849, %v1848
      %v1945 = vpack.c.b16 %v1851, %v1850
      %v1946 = vpack.c.b16 %v1853, %v1852
      %v1947 = vpack.c.b16 %v1855, %v1854
      %v1948 = vpack.c.b16 %v1857, %v1856
      %v1949 = vpack.c.b16 %v1859, %v1858
      %v1950 = vpack.c.b16 %v1861, %v1860
      %v1951 = vpack.c.b16 %v1863, %v1862
      %v1952 = vpack.c.b16 %v1865, %v1864
      %v1953 = vpack.c.b16 %v1867, %v1866
      %v1954 = vpack.c.b16 %v1869, %v1868
      %v1955 = vpack.c.b16 %v1871, %v1870
      %v1956 = vpack.c.b16 %v1873, %v1872
      %v1957 = vpack.c.b16 %v1875, %v1874
      %v1958 = vpack.c.b16 %v1877, %v1876
      %v1959 = vpack.c.b16 %v1879, %v1878
      %v1960 = vpack.c.b16 %v1881, %v1880
      %v1961 = vpack.c.b16 %v1883, %v1882
      %v1962 = vpack.c.b16 %v1885, %v1884
      %v1963 = vpack.c.b16 %v1887, %v1886
      %v1964 = vpack.c.b16 %v1889, %v1888
      %v1965 = vpack.c.b16 %v1891, %v1890
      %v1966 = vpack.c.b16 %v1893, %v1892
      %v1967 = vpack.c.b16 %v1895, %v1894
      %2040 = vmatpush.bf16.msra.mxu0 %v1903
      %2041 = vmatpush.bf16.msra.mxu0 %v1902
      %2042 = vmatpush.bf16.msra.mxu0 %v1901
      %2043 = vmatpush.bf16.msra.mxu0 %v1900
      %2044 = vmatpush.bf16.msra.mxu0 %v1899
      %2045 = vmatpush.bf16.msra.mxu0 %v1898
      %2046 = vmatpush.bf16.msra.mxu0 %v1897
      %2047 = vmatpush.bf16.msra.mxu0 %v1896
      %2048 = vmatmul.bf16.gmra.mxu0 %v1536
      %v2049 = vpop.f32.mrf.mxu0
      %v2050 = vadd.f32 0.0, %v2049
      %v2051 = vpop.f32.mrf.mxu0
      %v2052 = vadd.f32 0.0, %v2051
      %2053 = vmatmul.bf16.gmra.mxu0 %v1545
      %v2054 = vpop.f32.mrf.mxu0
      %v2055 = vadd.f32 0.0, %v2054
      %v2056 = vpop.f32.mrf.mxu0
      %v2057 = vadd.f32 0.0, %v2056
      %2058 = vmatmul.bf16.gmra.mxu0 %v1554
      %v2059 = vpop.f32.mrf.mxu0
      %v2060 = vadd.f32 0.0, %v2059
      %v2061 = vpop.f32.mrf.mxu0
      %v2062 = vadd.f32 0.0, %v2061
      %2063 = vmatmul.bf16.gmra.mxu0 %v1563
      %v2064 = vpop.f32.mrf.mxu0
      %v2065 = vadd.f32 0.0, %v2064
      %v2066 = vpop.f32.mrf.mxu0
      %v2067 = vadd.f32 0.0, %v2066
      %2068 = vdwg.mxu0
      %2069 = vmatpush.bf16.msra.mxu0 %v1911
      %2070 = vmatpush.bf16.msra.mxu0 %v1910
      %2071 = vmatpush.bf16.msra.mxu0 %v1909
      %2072 = vmatpush.bf16.msra.mxu0 %v1908
      %2073 = vmatpush.bf16.msra.mxu0 %v1907
      %2074 = vmatpush.bf16.msra.mxu0 %v1906
      %2075 = vmatpush.bf16.msra.mxu0 %v1905
      %2076 = vmatpush.bf16.msra.mxu0 %v1904
      %2077 = vmatmul.bf16.gmra.mxu0 %v1537
      %v2078 = vpop.f32.mrf.mxu0
      %v2079 = vadd.f32 %v2050, %v2078
      %v2080 = vpop.f32.mrf.mxu0
      %v2081 = vadd.f32 %v2052, %v2080
      %2082 = vmatmul.bf16.gmra.mxu0 %v1546
      %v2083 = vpop.f32.mrf.mxu0
      %v2084 = vadd.f32 %v2055, %v2083
      %v2085 = vpop.f32.mrf.mxu0
      %v2086 = vadd.f32 %v2057, %v2085
      %2087 = vmatmul.bf16.gmra.mxu0 %v1555
      %v2088 = vpop.f32.mrf.mxu0
      %v2089 = vadd.f32 %v2060, %v2088
      %v2090 = vpop.f32.mrf.mxu0
      %v2091 = vadd.f32 %v2062, %v2090
      %2092 = vmatmul.bf16.gmra.mxu0 %v1564
      %v2093 = vpop.f32.mrf.mxu0
      %v2094 = vadd.f32 %v2065, %v2093
      %v2095 = vpop.f32.mrf.mxu0
      %v2096 = vadd.f32 %v2067, %v2095
      %2097 = vdwg.mxu0
      %2098 = vmatpush.bf16.msra.mxu0 %v1919
      %2099 = vmatpush.bf16.msra.mxu0 %v1918
      %2100 = vmatpush.bf16.msra.mxu0 %v1917
      %2101 = vmatpush.bf16.msra.mxu0 %v1916
      %2102 = vmatpush.bf16.msra.mxu0 %v1915
      %2103 = vmatpush.bf16.msra.mxu0 %v1914
      %2104 = vmatpush.bf16.msra.mxu0 %v1913
      %2105 = vmatpush.bf16.msra.mxu0 %v1912
      %2106 = vmatmul.bf16.gmra.mxu0 %v1538
      %v2107 = vpop.f32.mrf.mxu0
      %v2108 = vadd.f32 %v2079, %v2107
      %v2109 = vpop.f32.mrf.mxu0
      %v2110 = vadd.f32 %v2081, %v2109
      %2111 = vmatmul.bf16.gmra.mxu0 %v1547
      %v2112 = vpop.f32.mrf.mxu0
      %v2113 = vadd.f32 %v2084, %v2112
      %v2114 = vpop.f32.mrf.mxu0
      %v2115 = vadd.f32 %v2086, %v2114
      %2116 = vmatmul.bf16.gmra.mxu0 %v1556
      %v2117 = vpop.f32.mrf.mxu0
      %v2118 = vadd.f32 %v2089, %v2117
      %v2119 = vpop.f32.mrf.mxu0
      %v2120 = vadd.f32 %v2091, %v2119
      %2121 = vmatmul.bf16.gmra.mxu0 %v1565
      %v2122 = vpop.f32.mrf.mxu0
      %v2123 = vadd.f32 %v2094, %v2122
      %v2124 = vpop.f32.mrf.mxu0
      %v2125 = vadd.f32 %v2096, %v2124
      %2126 = vdwg.mxu0
      %2127 = vmatpush.bf16.msra.mxu0 %v1927
      %2128 = vmatpush.bf16.msra.mxu0 %v1926
      %2129 = vmatpush.bf16.msra.mxu0 %v1925
      %2130 = vmatpush.bf16.msra.mxu0 %v1924
      %2131 = vmatpush.bf16.msra.mxu0 %v1923
      %2132 = vmatpush.bf16.msra.mxu0 %v1922
      %2133 = vmatpush.bf16.msra.mxu0 %v1921
      %2134 = vmatpush.bf16.msra.mxu0 %v1920
      %2135 = vmatmul.bf16.gmra.mxu0 %v1539
      %v2136 = vpop.f32.mrf.mxu0
      %v2137 = vadd.f32 %v2108, %v2136
      %v2138 = vpop.f32.mrf.mxu0
      %v2139 = vadd.f32 %v2110, %v2138
      %2140 = vmatmul.bf16.gmra.mxu0 %v1548
      %v2141 = vpop.f32.mrf.mxu0
      %v2142 = vadd.f32 %v2113, %v2141
      %v2143 = vpop.f32.mrf.mxu0
      %v2144 = vadd.f32 %v2115, %v2143
      %2145 = vmatmul.bf16.gmra.mxu0 %v1557
      %v2146 = vpop.f32.mrf.mxu0
      %v2147 = vadd.f32 %v2118, %v2146
      %v2148 = vpop.f32.mrf.mxu0
      %v2149 = vadd.f32 %v2120, %v2148
      %2150 = vmatmul.bf16.gmra.mxu0 %v1566
      %v2151 = vpop.f32.mrf.mxu0
      %v2152 = vadd.f32 %v2123, %v2151
      %v2153 = vpop.f32.mrf.mxu0
      %v2154 = vadd.f32 %v2125, %v2153
      %2155 = vdwg.mxu0
      %2156 = vmatpush.bf16.msra.mxu0 %v1935
      %2157 = vmatpush.bf16.msra.mxu0 %v1934
      %2158 = vmatpush.bf16.msra.mxu0 %v1933
      %2159 = vmatpush.bf16.msra.mxu0 %v1932
      %2160 = vmatpush.bf16.msra.mxu0 %v1931
      %2161 = vmatpush.bf16.msra.mxu0 %v1930
      %2162 = vmatpush.bf16.msra.mxu0 %v1929
      %2163 = vmatpush.bf16.msra.mxu0 %v1928
      %2164 = vmatmul.bf16.gmra.mxu0 %v1540
      %v2165 = vpop.f32.mrf.mxu0
      %v2166 = vadd.f32 %v2137, %v2165
      %v2167 = vpop.f32.mrf.mxu0
      %v2168 = vadd.f32 %v2139, %v2167
      %2169 = vmatmul.bf16.gmra.mxu0 %v1549
      %v2170 = vpop.f32.mrf.mxu0
      %v2171 = vadd.f32 %v2142, %v2170
      %v2172 = vpop.f32.mrf.mxu0
      %v2173 = vadd.f32 %v2144, %v2172
      %2174 = vmatmul.bf16.gmra.mxu0 %v1558
      %v2175 = vpop.f32.mrf.mxu0
      %v2176 = vadd.f32 %v2147, %v2175
      %v2177 = vpop.f32.mrf.mxu0
      %v2178 = vadd.f32 %v2149, %v2177
      %2179 = vmatmul.bf16.gmra.mxu0 %v1567
      %v2180 = vpop.f32.mrf.mxu0
      %v2181 = vadd.f32 %v2152, %v2180
      %v2182 = vpop.f32.mrf.mxu0
      %v2183 = vadd.f32 %v2154, %v2182
      %2184 = vdwg.mxu0
      %2185 = vmatpush.bf16.msra.mxu0 %v1943
      %2186 = vmatpush.bf16.msra.mxu0 %v1942
      %2187 = vmatpush.bf16.msra.mxu0 %v1941
      %2188 = vmatpush.bf16.msra.mxu0 %v1940
      %2189 = vmatpush.bf16.msra.mxu0 %v1939
      %2190 = vmatpush.bf16.msra.mxu0 %v1938
      %2191 = vmatpush.bf16.msra.mxu0 %v1937
      %2192 = vmatpush.bf16.msra.mxu0 %v1936
      %2193 = vmatmul.bf16.gmra.mxu0 %v1541
      %v2194 = vpop.f32.mrf.mxu0
      %v2195 = vadd.f32 %v2166, %v2194
      %v2196 = vpop.f32.mrf.mxu0
      %v2197 = vadd.f32 %v2168, %v2196
      %2198 = vmatmul.bf16.gmra.mxu0 %v1550
      %v2199 = vpop.f32.mrf.mxu0
      %v2200 = vadd.f32 %v2171, %v2199
      %v2201 = vpop.f32.mrf.mxu0
      %v2202 = vadd.f32 %v2173, %v2201
      %2203 = vmatmul.bf16.gmra.mxu0 %v1559
      %v2204 = vpop.f32.mrf.mxu0
      %v2205 = vadd.f32 %v2176, %v2204
      %v2206 = vpop.f32.mrf.mxu0
      %v2207 = vadd.f32 %v2178, %v2206
      %2208 = vmatmul.bf16.gmra.mxu0 %v1568
      %v2209 = vpop.f32.mrf.mxu0
      %v2210 = vadd.f32 %v2181, %v2209
      %v2211 = vpop.f32.mrf.mxu0
      %v2212 = vadd.f32 %v2183, %v2211
      %2213 = vdwg.mxu0
      %2214 = vmatpush.bf16.msra.mxu0 %v1951
      %2215 = vmatpush.bf16.msra.mxu0 %v1950
      %2216 = vmatpush.bf16.msra.mxu0 %v1949
      %2217 = vmatpush.bf16.msra.mxu0 %v1948
      %2218 = vmatpush.bf16.msra.mxu0 %v1947
      %2219 = vmatpush.bf16.msra.mxu0 %v1946
      %2220 = vmatpush.bf16.msra.mxu0 %v1945
      %2221 = vmatpush.bf16.msra.mxu0 %v1944
      %2222 = vmatmul.bf16.gmra.mxu0 %v1542
      %v2223 = vpop.f32.mrf.mxu0
      %v2224 = vadd.f32 %v2195, %v2223
      %v2225 = vpop.f32.mrf.mxu0
      %v2226 = vadd.f32 %v2197, %v2225
      %2227 = vmatmul.bf16.gmra.mxu0 %v1551
      %v2228 = vpop.f32.mrf.mxu0
      %v2229 = vadd.f32 %v2200, %v2228
      %v2230 = vpop.f32.mrf.mxu0
      %v2231 = vadd.f32 %v2202, %v2230
      %2232 = vmatmul.bf16.gmra.mxu0 %v1560
      %v2233 = vpop.f32.mrf.mxu0
      %v2234 = vadd.f32 %v2205, %v2233
      %v2235 = vpop.f32.mrf.mxu0
      %v2236 = vadd.f32 %v2207, %v2235
      %2237 = vmatmul.bf16.gmra.mxu0 %v1569
      %v2238 = vpop.f32.mrf.mxu0
      %v2239 = vadd.f32 %v2210, %v2238
      %v2240 = vpop.f32.mrf.mxu0
      %v2241 = vadd.f32 %v2212, %v2240
      %2242 = vdwg.mxu0
      %2243 = vmatpush.bf16.msra.mxu0 %v1959
      %2244 = vmatpush.bf16.msra.mxu0 %v1958
      %2245 = vmatpush.bf16.msra.mxu0 %v1957
      %2246 = vmatpush.bf16.msra.mxu0 %v1956
      %2247 = vmatpush.bf16.msra.mxu0 %v1955
      %2248 = vmatpush.bf16.msra.mxu0 %v1954
      %2249 = vmatpush.bf16.msra.mxu0 %v1953
      %2250 = vmatpush.bf16.msra.mxu0 %v1952
      %2251 = vmatmul.bf16.gmra.mxu0 %v1543
      %v2252 = vpop.f32.mrf.mxu0
      %v2253 = vadd.f32 %v2224, %v2252
      %v2254 = vpop.f32.mrf.mxu0
      %v2255 = vadd.f32 %v2226, %v2254
      %2256 = vmatmul.bf16.gmra.mxu0 %v1552
      %v2257 = vpop.f32.mrf.mxu0
      %v2258 = vadd.f32 %v2229, %v2257
      %v2259 = vpop.f32.mrf.mxu0
      %v2260 = vadd.f32 %v2231, %v2259
      %2261 = vmatmul.bf16.gmra.mxu0 %v1561
      %v2262 = vpop.f32.mrf.mxu0
      %v2263 = vadd.f32 %v2234, %v2262
      %v2264 = vpop.f32.mrf.mxu0
      %v2265 = vadd.f32 %v2236, %v2264
      %2266 = vmatmul.bf16.gmra.mxu0 %v1570
      %v2267 = vpop.f32.mrf.mxu0
      %v2268 = vadd.f32 %v2239, %v2267
      %v2269 = vpop.f32.mrf.mxu0
      %v2270 = vadd.f32 %v2241, %v2269
      %2271 = vdwg.mxu0
      %2272 = vmatpush.bf16.msra.mxu0 %v1967
      %2273 = vmatpush.bf16.msra.mxu0 %v1966
      %2274 = vmatpush.bf16.msra.mxu0 %v1965
      %2275 = vmatpush.bf16.msra.mxu0 %v1964
      %2276 = vmatpush.bf16.msra.mxu0 %v1963
      %2277 = vmatpush.bf16.msra.mxu0 %v1962
      %2278 = vmatpush.bf16.msra.mxu0 %v1961
      %2279 = vmatpush.bf16.msra.mxu0 %v1960
      %2280 = vmatmul.bf16.gmra.mxu0 %v1544
      %v2281 = vpop.f32.mrf.mxu0
      %v2282 = vadd.f32 %v2253, %v2281
      %v2283 = vpop.f32.mrf.mxu0
      %v2284 = vadd.f32 %v2255, %v2283
      %2285 = vmatmul.bf16.gmra.mxu0 %v1553
      %v2286 = vpop.f32.mrf.mxu0
      %v2287 = vadd.f32 %v2258, %v2286
      %v2288 = vpop.f32.mrf.mxu0
      %v2289 = vadd.f32 %v2260, %v2288
      %2290 = vmatmul.bf16.gmra.mxu0 %v1562
      %v2291 = vpop.f32.mrf.mxu0
      %v2292 = vadd.f32 %v2263, %v2291
      %v2293 = vpop.f32.mrf.mxu0
      %v2294 = vadd.f32 %v2265, %v2293
      %2295 = vmatmul.bf16.gmra.mxu0 %v1571
      %v2296 = vpop.f32.mrf.mxu0
      %v2297 = vadd.f32 %v2268, %v2296
      %v2298 = vpop.f32.mrf.mxu0
      %v2299 = vadd.f32 %v2270, %v2298
      %2300 = vdwg.mxu0
      %v2301 = vld [vmem:[%s5] sm:$0x1]
      %v2303 = vperm.slane %v2301, 0
      %v2305 = vmul.f32 %v2282, %v2303
      %v2306 = vmul.f32 %v2284, %v2303
      %v2307 = vmul.f32 %v2287, %v2303
      %v2308 = vmul.f32 %v2289, %v2303
      %v2309 = vmul.f32 %v2292, %v2303
      %v2310 = vmul.f32 %v2294, %v2303
      %v2311 = vmul.f32 %v2297, %v2303
      %v2312 = vmul.f32 %v2299, %v2303
      %v2313 = vld [vmem:[%s6] sm:$0x1]
      %v2315 = vperm.slane %v2313, 0
      %v2317 = vadd.f32 %v2305, %v2315
      %v2318 = vadd.f32 %v2306, %v2315
      %v2319 = vadd.f32 %v2307, %v2315
      %v2320 = vadd.f32 %v2308, %v2315
      %v2321 = vadd.f32 %v2309, %v2315
      %v2322 = vadd.f32 %v2310, %v2315
      %v2323 = vadd.f32 %v2311, %v2315
      %v2324 = vadd.f32 %v2312, %v2315
      %v2325 = vmax.f32 %v2317, 0.0
      %v2326 = vmax.f32 %v2318, 0.0
      %v2327 = vmax.f32 %v2319, 0.0
      %v2328 = vmax.f32 %v2320, 0.0
      %v2329 = vmax.f32 %v2321, 0.0
      %v2330 = vmax.f32 %v2322, 0.0
      %v2331 = vmax.f32 %v2323, 0.0
      %v2332 = vmax.f32 %v2324, 0.0
      %v2333 = vpack.c.bf16 %v2325, %v2325
      %v2334 = vpack.c.bf16 %v2326, %v2326
      %v2335 = vpack.c.bf16 %v2327, %v2327
      %v2336 = vpack.c.bf16 %v2328, %v2328
      %v2337 = vpack.c.bf16 %v2329, %v2329
      %v2338 = vpack.c.bf16 %v2330, %v2330
      %v2339 = vpack.c.bf16 %v2331, %v2331
      %v2340 = vpack.c.bf16 %v2332, %v2332
      %v2342 = vshrl.u32 %v2333, 16
      %v2344 = vrot.slane %v2342, 7
      %v2345 = vshll.u32 %v2333, 16
      %v2347 = vor.u32 %v2344, %v2345
      %v2348 = vrot.slane %v2344, 4
      %v2350 = vshrl.u32 %v2334, 16
      %v2352 = vrot.slane %v2350, 7
      %v2353 = vshll.u32 %v2334, 16
      %v2355 = vor.u32 %v2352, %v2353
      %v2356 = vrot.slane %v2352, 4
      %v2358 = vshrl.u32 %v2335, 16
      %v2360 = vrot.slane %v2358, 7
      %v2361 = vshll.u32 %v2335, 16
      %v2363 = vor.u32 %v2360, %v2361
      %v2364 = vrot.slane %v2360, 4
      %v2366 = vshrl.u32 %v2336, 16
      %v2368 = vrot.slane %v2366, 7
      %v2369 = vshll.u32 %v2336, 16
      %v2371 = vor.u32 %v2368, %v2369
      %v2372 = vrot.slane %v2368, 4
      %v2374 = vshrl.u32 %v2337, 16
      %v2376 = vrot.slane %v2374, 7
      %v2377 = vshll.u32 %v2337, 16
      %v2379 = vor.u32 %v2376, %v2377
      %v2380 = vrot.slane %v2376, 4
      %v2382 = vshrl.u32 %v2338, 16
      %v2384 = vrot.slane %v2382, 7
      %v2385 = vshll.u32 %v2338, 16
      %v2387 = vor.u32 %v2384, %v2385
      %v2388 = vrot.slane %v2384, 4
      %v2390 = vshrl.u32 %v2339, 16
      %v2392 = vrot.slane %v2390, 7
      %v2393 = vshll.u32 %v2339, 16
      %v2395 = vor.u32 %v2392, %v2393
      %v2396 = vrot.slane %v2392, 4
      %v2398 = vshrl.u32 %v2340, 16
      %v2400 = vrot.slane %v2398, 7
      %v2401 = vshll.u32 %v2340, 16
      %v2403 = vor.u32 %v2400, %v2401
      %v2404 = vrot.slane %v2400, 4
      %s2421 = scalar_lea.vmem [#allocation4], 8
      %v2422 = vld [vmem:[%s2421] sm:$0xf]
      %v2423 = vsel %vm461, %v2347, %v2422
      %2424 = vst [vmem:[%s2421] sm:$0xf] %v2423
      %v2425 = vld [vmem:[%s2421 + $0x4] sm:$0x1]
      %v2426 = vsel %vm467, %v2348, %v2425
      %2427 = vst [vmem:[%s2421 + $0x4] sm:$0x1] %v2426
      %v2428 = vld [vmem:[%s2421 + $0x8] sm:$0xf]
      %v2429 = vsel %vm461, %v2355, %v2428
      %2430 = vst [vmem:[%s2421 + $0x8] sm:$0xf] %v2429
      %v2431 = vld [vmem:[%s2421 + $0xc] sm:$0x1]
      %v2432 = vsel %vm467, %v2356, %v2431
      %2433 = vst [vmem:[%s2421 + $0xc] sm:$0x1] %v2432
      %v2434 = vld [vmem:[%s2421 + $0x10] sm:$0xf]
      %v2435 = vsel %vm461, %v2363, %v2434
      %2436 = vst [vmem:[%s2421 + $0x10] sm:$0xf] %v2435
      %v2437 = vld [vmem:[%s2421 + $0x14] sm:$0x1]
      %v2438 = vsel %vm467, %v2364, %v2437
      %2439 = vst [vmem:[%s2421 + $0x14] sm:$0x1] %v2438
      %v2440 = vld [vmem:[%s2421 + $0x18] sm:$0xf]
      %v2441 = vsel %vm461, %v2371, %v2440
      %2442 = vst [vmem:[%s2421 + $0x18] sm:$0xf] %v2441
      %v2443 = vld [vmem:[%s2421 + $0x1c] sm:$0x1]
      %v2444 = vsel %vm467, %v2372, %v2443
      %2445 = vst [vmem:[%s2421 + $0x1c] sm:$0x1] %v2444
      %v2446 = vld [vmem:[%s2421 + $0x20] sm:$0xf]
      %v2447 = vsel %vm461, %v2379, %v2446
      %2448 = vst [vmem:[%s2421 + $0x20] sm:$0xf] %v2447
      %v2449 = vld [vmem:[%s2421 + $0x24] sm:$0x1]
      %v2450 = vsel %vm467, %v2380, %v2449
      %2451 = vst [vmem:[%s2421 + $0x24] sm:$0x1] %v2450
      %v2452 = vld [vmem:[%s2421 + $0x28] sm:$0xf]
      %v2453 = vsel %vm461, %v2387, %v2452
      %2454 = vst [vmem:[%s2421 + $0x28] sm:$0xf] %v2453
      %v2455 = vld [vmem:[%s2421 + $0x2c] sm:$0x1]
      %v2456 = vsel %vm467, %v2388, %v2455
      %2457 = vst [vmem:[%s2421 + $0x2c] sm:$0x1] %v2456
      %v2458 = vld [vmem:[%s2421 + $0x30] sm:$0xf]
      %v2459 = vsel %vm461, %v2395, %v2458
      %2460 = vst [vmem:[%s2421 + $0x30] sm:$0xf] %v2459
      %v2461 = vld [vmem:[%s2421 + $0x34] sm:$0x1]
      %v2462 = vsel %vm467, %v2396, %v2461
      %2463 = vst [vmem:[%s2421 + $0x34] sm:$0x1] %v2462
      %v2464 = vld [vmem:[%s2421 + $0x38] sm:$0xf]
      %v2465 = vsel %vm461, %v2403, %v2464
      %2466 = vst [vmem:[%s2421 + $0x38] sm:$0xf] %v2465
      %v2467 = vld [vmem:[%s2421 + $0x3c] sm:$0x1]
      %v2468 = vsel %vm467, %v2404, %v2467
      %2469 = vst [vmem:[%s2421 + $0x3c] sm:$0x1] %v2468
      %v2470 = vld [vmem:[#allocation4] sm:$0xf]
      %v2471 = vld [vmem:[#allocation4 + $0x8] sm:$0xf]
      %v2472 = vld [vmem:[#allocation4 + $0x10] sm:$0xf]
      %v2473 = vld [vmem:[#allocation4 + $0x18] sm:$0xf]
      %v2474 = vld [vmem:[#allocation4 + $0x20] sm:$0xf]
      %v2475 = vld [vmem:[#allocation4 + $0x28] sm:$0xf]
      %v2476 = vld [vmem:[#allocation4 + $0x30] sm:$0xf]
      %v2477 = vld [vmem:[#allocation4 + $0x38] sm:$0xf]
      %2478 = vst [vmem:[#allocation5] sm:$0xf] %v2470
      %2479 = vst [vmem:[#allocation5 + $0x24] sm:$0xf] %v2471
      %2480 = vst [vmem:[#allocation5 + $0x48] sm:$0xf] %v2472
      %2481 = vst [vmem:[#allocation5 + $0x6c] sm:$0xf] %v2473
      %2482 = vst [vmem:[#allocation5 + $0x90] sm:$0xf] %v2474
      %2483 = vst [vmem:[#allocation5 + $0xb4] sm:$0xf] %v2475
      %2484 = vst [vmem:[#allocation5 + $0xd8] sm:$0xf] %v2476
      %2485 = vst [vmem:[#allocation5 + $0xfc] sm:$0xf] %v2477
      %v2486 = vld [vmem:[#allocation4] sm:$0xf]
      %v2487 = vld [vmem:[#allocation4 + $0x4] sm:$0x1]
      %v2488 = vld [vmem:[#allocation4 + $0x8] sm:$0xf]
      %v2489 = vld [vmem:[#allocation4 + $0xc] sm:$0x1]
      %v2490 = vld [vmem:[#allocation4 + $0x10] sm:$0xf]
      %v2491 = vld [vmem:[#allocation4 + $0x14] sm:$0x1]
      %v2492 = vld [vmem:[#allocation4 + $0x18] sm:$0xf]
      %v2493 = vld [vmem:[#allocation4 + $0x1c] sm:$0x1]
      %v2494 = vld [vmem:[#allocation4 + $0x20] sm:$0xf]
      %v2495 = vld [vmem:[#allocation4 + $0x24] sm:$0x1]
      %v2496 = vld [vmem:[#allocation4 + $0x28] sm:$0xf]
      %v2497 = vld [vmem:[#allocation4 + $0x2c] sm:$0x1]
      %v2498 = vld [vmem:[#allocation4 + $0x30] sm:$0xf]
      %v2499 = vld [vmem:[#allocation4 + $0x34] sm:$0x1]
      %v2500 = vld [vmem:[#allocation4 + $0x38] sm:$0xf]
      %v2501 = vld [vmem:[#allocation4 + $0x3c] sm:$0x1]
      %v2503 = vshrl.u32 %v2486, 16
      %v2505 = vrot.slane %v2503, 4
      %v2506 = vshll.u32 %v2486, 16
      %v2508 = vrot.slane %v2506, 5
      %v2509 = vor.u32 %v2505, %v2508
      %v2510 = vrot.slane %v2509, 4
      %v2512 = vshll.u32 %v2487, 16
      %v2514 = vrot.slane %v2512, 5
      %v2515 = vsel %vm547, %v2510, %v2514
      %v2517 = vshrl.u32 %v2488, 16
      %v2519 = vrot.slane %v2517, 4
      %v2520 = vshll.u32 %v2488, 16
      %v2522 = vrot.slane %v2520, 5
      %v2523 = vor.u32 %v2519, %v2522
      %v2524 = vrot.slane %v2523, 4
      %v2526 = vshll.u32 %v2489, 16
      %v2528 = vrot.slane %v2526, 5
      %v2529 = vsel %vm547, %v2524, %v2528
      %v2531 = vshrl.u32 %v2490, 16
      %v2533 = vrot.slane %v2531, 4
      %v2534 = vshll.u32 %v2490, 16
      %v2536 = vrot.slane %v2534, 5
      %v2537 = vor.u32 %v2533, %v2536
      %v2538 = vrot.slane %v2537, 4
      %v2540 = vshll.u32 %v2491, 16
      %v2542 = vrot.slane %v2540, 5
      %v2543 = vsel %vm547, %v2538, %v2542
      %v2545 = vshrl.u32 %v2492, 16
      %v2547 = vrot.slane %v2545, 4
      %v2548 = vshll.u32 %v2492, 16
      %v2550 = vrot.slane %v2548, 5
      %v2551 = vor.u32 %v2547, %v2550
      %v2552 = vrot.slane %v2551, 4
      %v2554 = vshll.u32 %v2493, 16
      %v2556 = vrot.slane %v2554, 5
      %v2557 = vsel %vm547, %v2552, %v2556
      %v2559 = vshrl.u32 %v2494, 16
      %v2561 = vrot.slane %v2559, 4
      %v2562 = vshll.u32 %v2494, 16
      %v2564 = vrot.slane %v2562, 5
      %v2565 = vor.u32 %v2561, %v2564
      %v2566 = vrot.slane %v2565, 4
      %v2568 = vshll.u32 %v2495, 16
      %v2570 = vrot.slane %v2568, 5
      %v2571 = vsel %vm547, %v2566, %v2570
      %v2573 = vshrl.u32 %v2496, 16
      %v2575 = vrot.slane %v2573, 4
      %v2576 = vshll.u32 %v2496, 16
      %v2578 = vrot.slane %v2576, 5
      %v2579 = vor.u32 %v2575, %v2578
      %v2580 = vrot.slane %v2579, 4
      %v2582 = vshll.u32 %v2497, 16
      %v2584 = vrot.slane %v2582, 5
      %v2585 = vsel %vm547, %v2580, %v2584
      %v2587 = vshrl.u32 %v2498, 16
      %v2589 = vrot.slane %v2587, 4
      %v2590 = vshll.u32 %v2498, 16
      %v2592 = vrot.slane %v2590, 5
      %v2593 = vor.u32 %v2589, %v2592
      %v2594 = vrot.slane %v2593, 4
      %v2596 = vshll.u32 %v2499, 16
      %v2598 = vrot.slane %v2596, 5
      %v2599 = vsel %vm547, %v2594, %v2598
      %v2601 = vshrl.u32 %v2500, 16
      %v2603 = vrot.slane %v2601, 4
      %v2604 = vshll.u32 %v2500, 16
      %v2606 = vrot.slane %v2604, 5
      %v2607 = vor.u32 %v2603, %v2606
      %v2608 = vrot.slane %v2607, 4
      %v2610 = vshll.u32 %v2501, 16
      %v2612 = vrot.slane %v2610, 5
      %v2613 = vsel %vm547, %v2608, %v2612
      %2622 = vst [vmem:[#allocation5 + $0x4] sm:$0xf] %v2515
      %2623 = vst [vmem:[#allocation5 + $0x28] sm:$0xf] %v2529
      %2624 = vst [vmem:[#allocation5 + $0x4c] sm:$0xf] %v2543
      %2625 = vst [vmem:[#allocation5 + $0x70] sm:$0xf] %v2557
      %2626 = vst [vmem:[#allocation5 + $0x94] sm:$0xf] %v2571
      %2627 = vst [vmem:[#allocation5 + $0xb8] sm:$0xf] %v2585
      %2628 = vst [vmem:[#allocation5 + $0xdc] sm:$0xf] %v2599
      %2629 = vst [vmem:[#allocation5 + $0x100] sm:$0xf] %v2613
      %v2630 = vld [vmem:[#allocation4] sm:$0xe]
      %v2631 = vld [vmem:[#allocation4 + $0x4] sm:$0x1]
      %v2632 = vld [vmem:[#allocation4 + $0x8] sm:$0xe]
      %v2633 = vld [vmem:[#allocation4 + $0xc] sm:$0x1]
      %v2634 = vld [vmem:[#allocation4 + $0x10] sm:$0xe]
      %v2635 = vld [vmem:[#allocation4 + $0x14] sm:$0x1]
      %v2636 = vld [vmem:[#allocation4 + $0x18] sm:$0xe]
      %v2637 = vld [vmem:[#allocation4 + $0x1c] sm:$0x1]
      %v2638 = vld [vmem:[#allocation4 + $0x20] sm:$0xe]
      %v2639 = vld [vmem:[#allocation4 + $0x24] sm:$0x1]
      %v2640 = vld [vmem:[#allocation4 + $0x28] sm:$0xe]
      %v2641 = vld [vmem:[#allocation4 + $0x2c] sm:$0x1]
      %v2642 = vld [vmem:[#allocation4 + $0x30] sm:$0xe]
      %v2643 = vld [vmem:[#allocation4 + $0x34] sm:$0x1]
      %v2644 = vld [vmem:[#allocation4 + $0x38] sm:$0xe]
      %v2645 = vld [vmem:[#allocation4 + $0x3c] sm:$0x1]
      %v2662 = vrot.slane %v2630, 5
      %v2663 = vrot.slane %v2662, 4
      %v2664 = vrot.slane %v2631, 5
      %v2665 = vsel %vm710, %v2663, %v2664
      %v2666 = vrot.slane %v2632, 5
      %v2667 = vrot.slane %v2666, 4
      %v2668 = vrot.slane %v2633, 5
      %v2669 = vsel %vm710, %v2667, %v2668
      %v2670 = vrot.slane %v2634, 5
      %v2671 = vrot.slane %v2670, 4
      %v2672 = vrot.slane %v2635, 5
      %v2673 = vsel %vm710, %v2671, %v2672
      %v2674 = vrot.slane %v2636, 5
      %v2675 = vrot.slane %v2674, 4
      %v2676 = vrot.slane %v2637, 5
      %v2677 = vsel %vm710, %v2675, %v2676
      %v2678 = vrot.slane %v2638, 5
      %v2679 = vrot.slane %v2678, 4
      %v2680 = vrot.slane %v2639, 5
      %v2681 = vsel %vm710, %v2679, %v2680
      %v2682 = vrot.slane %v2640, 5
      %v2683 = vrot.slane %v2682, 4
      %v2684 = vrot.slane %v2641, 5
      %v2685 = vsel %vm710, %v2683, %v2684
      %v2686 = vrot.slane %v2642, 5
      %v2687 = vrot.slane %v2686, 4
      %v2688 = vrot.slane %v2643, 5
      %v2689 = vsel %vm710, %v2687, %v2688
      %v2690 = vrot.slane %v2644, 5
      %v2691 = vrot.slane %v2690, 4
      %v2692 = vrot.slane %v2645, 5
      %v2693 = vsel %vm710, %v2691, %v2692
      %2702 = vst [vmem:[#allocation5 + $0x8] sm:$0xf] %v2665
      %2703 = vst [vmem:[#allocation5 + $0x2c] sm:$0xf] %v2669
      %2704 = vst [vmem:[#allocation5 + $0x50] sm:$0xf] %v2673
      %2705 = vst [vmem:[#allocation5 + $0x74] sm:$0xf] %v2677
      %2706 = vst [vmem:[#allocation5 + $0x98] sm:$0xf] %v2681
      %2707 = vst [vmem:[#allocation5 + $0xbc] sm:$0xf] %v2685
      %2708 = vst [vmem:[#allocation5 + $0xe0] sm:$0xf] %v2689
      %2709 = vst [vmem:[#allocation5 + $0x104] sm:$0xf] %v2693
      %v2710 = vld [vmem:[%s2421] sm:$0xf]
      %v2711 = vld [vmem:[%s2421 + $0x8] sm:$0xf]
      %v2712 = vld [vmem:[%s2421 + $0x10] sm:$0xf]
      %v2713 = vld [vmem:[%s2421 + $0x18] sm:$0xf]
      %v2714 = vld [vmem:[%s2421 + $0x20] sm:$0xf]
      %v2715 = vld [vmem:[%s2421 + $0x28] sm:$0xf]
      %v2716 = vld [vmem:[%s2421 + $0x30] sm:$0xf]
      %v2717 = vld [vmem:[%s2421 + $0x38] sm:$0xf]
      %2718 = vst [vmem:[#allocation5 + $0xc] sm:$0xf] %v2710
      %2719 = vst [vmem:[#allocation5 + $0x30] sm:$0xf] %v2711
      %2720 = vst [vmem:[#allocation5 + $0x54] sm:$0xf] %v2712
      %2721 = vst [vmem:[#allocation5 + $0x78] sm:$0xf] %v2713
      %2722 = vst [vmem:[#allocation5 + $0x9c] sm:$0xf] %v2714
      %2723 = vst [vmem:[#allocation5 + $0xc0] sm:$0xf] %v2715
      %2724 = vst [vmem:[#allocation5 + $0xe4] sm:$0xf] %v2716
      %2725 = vst [vmem:[#allocation5 + $0x108] sm:$0xf] %v2717
      %v2726 = vld [vmem:[%s2421] sm:$0xf]
      %v2727 = vld [vmem:[%s2421 + $0x4] sm:$0x1]
      %v2728 = vld [vmem:[%s2421 + $0x8] sm:$0xf]
      %v2729 = vld [vmem:[%s2421 + $0xc] sm:$0x1]
      %v2730 = vld [vmem:[%s2421 + $0x10] sm:$0xf]
      %v2731 = vld [vmem:[%s2421 + $0x14] sm:$0x1]
      %v2732 = vld [vmem:[%s2421 + $0x18] sm:$0xf]
      %v2733 = vld [vmem:[%s2421 + $0x1c] sm:$0x1]
      %v2734 = vld [vmem:[%s2421 + $0x20] sm:$0xf]
      %v2735 = vld [vmem:[%s2421 + $0x24] sm:$0x1]
      %v2736 = vld [vmem:[%s2421 + $0x28] sm:$0xf]
      %v2737 = vld [vmem:[%s2421 + $0x2c] sm:$0x1]
      %v2738 = vld [vmem:[%s2421 + $0x30] sm:$0xf]
      %v2739 = vld [vmem:[%s2421 + $0x34] sm:$0x1]
      %v2740 = vld [vmem:[%s2421 + $0x38] sm:$0xf]
      %v2741 = vld [vmem:[%s2421 + $0x3c] sm:$0x1]
      %v2743 = vshrl.u32 %v2726, 16
      %v2745 = vrot.slane %v2743, 4
      %v2746 = vshll.u32 %v2726, 16
      %v2748 = vrot.slane %v2746, 5
      %v2749 = vor.u32 %v2745, %v2748
      %v2750 = vrot.slane %v2749, 4
      %v2752 = vshll.u32 %v2727, 16
      %v2754 = vrot.slane %v2752, 5
      %v2755 = vsel %vm547, %v2750, %v2754
      %v2757 = vshrl.u32 %v2728, 16
      %v2759 = vrot.slane %v2757, 4
      %v2760 = vshll.u32 %v2728, 16
      %v2762 = vrot.slane %v2760, 5
      %v2763 = vor.u32 %v2759, %v2762
      %v2764 = vrot.slane %v2763, 4
      %v2766 = vshll.u32 %v2729, 16
      %v2768 = vrot.slane %v2766, 5
      %v2769 = vsel %vm547, %v2764, %v2768
      %v2771 = vshrl.u32 %v2730, 16
      %v2773 = vrot.slane %v2771, 4
      %v2774 = vshll.u32 %v2730, 16
      %v2776 = vrot.slane %v2774, 5
      %v2777 = vor.u32 %v2773, %v2776
      %v2778 = vrot.slane %v2777, 4
      %v2780 = vshll.u32 %v2731, 16
      %v2782 = vrot.slane %v2780, 5
      %v2783 = vsel %vm547, %v2778, %v2782
      %v2785 = vshrl.u32 %v2732, 16
      %v2787 = vrot.slane %v2785, 4
      %v2788 = vshll.u32 %v2732, 16
      %v2790 = vrot.slane %v2788, 5
      %v2791 = vor.u32 %v2787, %v2790
      %v2792 = vrot.slane %v2791, 4
      %v2794 = vshll.u32 %v2733, 16
      %v2796 = vrot.slane %v2794, 5
      %v2797 = vsel %vm547, %v2792, %v2796
      %v2799 = vshrl.u32 %v2734, 16
      %v2801 = vrot.slane %v2799, 4
      %v2802 = vshll.u32 %v2734, 16
      %v2804 = vrot.slane %v2802, 5
      %v2805 = vor.u32 %v2801, %v2804
      %v2806 = vrot.slane %v2805, 4
      %v2808 = vshll.u32 %v2735, 16
      %v2810 = vrot.slane %v2808, 5
      %v2811 = vsel %vm547, %v2806, %v2810
      %v2813 = vshrl.u32 %v2736, 16
      %v2815 = vrot.slane %v2813, 4
      %v2816 = vshll.u32 %v2736, 16
      %v2818 = vrot.slane %v2816, 5
      %v2819 = vor.u32 %v2815, %v2818
      %v2820 = vrot.slane %v2819, 4
      %v2822 = vshll.u32 %v2737, 16
      %v2824 = vrot.slane %v2822, 5
      %v2825 = vsel %vm547, %v2820, %v2824
      %v2827 = vshrl.u32 %v2738, 16
      %v2829 = vrot.slane %v2827, 4
      %v2830 = vshll.u32 %v2738, 16
      %v2832 = vrot.slane %v2830, 5
      %v2833 = vor.u32 %v2829, %v2832
      %v2834 = vrot.slane %v2833, 4
      %v2836 = vshll.u32 %v2739, 16
      %v2838 = vrot.slane %v2836, 5
      %v2839 = vsel %vm547, %v2834, %v2838
      %v2841 = vshrl.u32 %v2740, 16
      %v2843 = vrot.slane %v2841, 4
      %v2844 = vshll.u32 %v2740, 16
      %v2846 = vrot.slane %v2844, 5
      %v2847 = vor.u32 %v2843, %v2846
      %v2848 = vrot.slane %v2847, 4
      %v2850 = vshll.u32 %v2741, 16
      %v2852 = vrot.slane %v2850, 5
      %v2853 = vsel %vm547, %v2848, %v2852
      %2862 = vst [vmem:[#allocation5 + $0x10] sm:$0xf] %v2755
      %2863 = vst [vmem:[#allocation5 + $0x34] sm:$0xf] %v2769
      %2864 = vst [vmem:[#allocation5 + $0x58] sm:$0xf] %v2783
      %2865 = vst [vmem:[#allocation5 + $0x7c] sm:$0xf] %v2797
      %2866 = vst [vmem:[#allocation5 + $0xa0] sm:$0xf] %v2811
      %2867 = vst [vmem:[#allocation5 + $0xc4] sm:$0xf] %v2825
      %2868 = vst [vmem:[#allocation5 + $0xe8] sm:$0xf] %v2839
      %2869 = vst [vmem:[#allocation5 + $0x10c] sm:$0xf] %v2853
      %v2870 = vld [vmem:[%s2421] sm:$0xe]
      %v2871 = vld [vmem:[%s2421 + $0x4] sm:$0x1]
      %v2872 = vld [vmem:[%s2421 + $0x8] sm:$0xe]
      %v2873 = vld [vmem:[%s2421 + $0xc] sm:$0x1]
      %v2874 = vld [vmem:[%s2421 + $0x10] sm:$0xe]
      %v2875 = vld [vmem:[%s2421 + $0x14] sm:$0x1]
      %v2876 = vld [vmem:[%s2421 + $0x18] sm:$0xe]
      %v2877 = vld [vmem:[%s2421 + $0x1c] sm:$0x1]
      %v2878 = vld [vmem:[%s2421 + $0x20] sm:$0xe]
      %v2879 = vld [vmem:[%s2421 + $0x24] sm:$0x1]
      %v2880 = vld [vmem:[%s2421 + $0x28] sm:$0xe]
      %v2881 = vld [vmem:[%s2421 + $0x2c] sm:$0x1]
      %v2882 = vld [vmem:[%s2421 + $0x30] sm:$0xe]
      %v2883 = vld [vmem:[%s2421 + $0x34] sm:$0x1]
      %v2884 = vld [vmem:[%s2421 + $0x38] sm:$0xe]
      %v2885 = vld [vmem:[%s2421 + $0x3c] sm:$0x1]
      %v2902 = vrot.slane %v2870, 5
      %v2903 = vrot.slane %v2902, 4
      %v2904 = vrot.slane %v2871, 5
      %v2905 = vsel %vm710, %v2903, %v2904
      %v2906 = vrot.slane %v2872, 5
      %v2907 = vrot.slane %v2906, 4
      %v2908 = vrot.slane %v2873, 5
      %v2909 = vsel %vm710, %v2907, %v2908
      %v2910 = vrot.slane %v2874, 5
      %v2911 = vrot.slane %v2910, 4
      %v2912 = vrot.slane %v2875, 5
      %v2913 = vsel %vm710, %v2911, %v2912
      %v2914 = vrot.slane %v2876, 5
      %v2915 = vrot.slane %v2914, 4
      %v2916 = vrot.slane %v2877, 5
      %v2917 = vsel %vm710, %v2915, %v2916
      %v2918 = vrot.slane %v2878, 5
      %v2919 = vrot.slane %v2918, 4
      %v2920 = vrot.slane %v2879, 5
      %v2921 = vsel %vm710, %v2919, %v2920
      %v2922 = vrot.slane %v2880, 5
      %v2923 = vrot.slane %v2922, 4
      %v2924 = vrot.slane %v2881, 5
      %v2925 = vsel %vm710, %v2923, %v2924
      %v2926 = vrot.slane %v2882, 5
      %v2927 = vrot.slane %v2926, 4
      %v2928 = vrot.slane %v2883, 5
      %v2929 = vsel %vm710, %v2927, %v2928
      %v2930 = vrot.slane %v2884, 5
      %v2931 = vrot.slane %v2930, 4
      %v2932 = vrot.slane %v2885, 5
      %v2933 = vsel %vm710, %v2931, %v2932
      %2942 = vst [vmem:[#allocation5 + $0x14] sm:$0xf] %v2905
      %2943 = vst [vmem:[#allocation5 + $0x38] sm:$0xf] %v2909
      %2944 = vst [vmem:[#allocation5 + $0x5c] sm:$0xf] %v2913
      %2945 = vst [vmem:[#allocation5 + $0x80] sm:$0xf] %v2917
      %2946 = vst [vmem:[#allocation5 + $0xa4] sm:$0xf] %v2921
      %2947 = vst [vmem:[#allocation5 + $0xc8] sm:$0xf] %v2925
      %2948 = vst [vmem:[#allocation5 + $0xec] sm:$0xf] %v2929
      %2949 = vst [vmem:[#allocation5 + $0x110] sm:$0xf] %v2933
      %s2950 = scalar_lea.vmem [#allocation4], 16
      %v2951 = vld [vmem:[%s2950] sm:$0xf]
      %v2952 = vld [vmem:[%s2950 + $0x8] sm:$0xf]
      %v2953 = vld [vmem:[%s2950 + $0x10] sm:$0xf]
      %v2954 = vld [vmem:[%s2950 + $0x18] sm:$0xf]
      %v2955 = vld [vmem:[%s2950 + $0x20] sm:$0xf]
      %v2956 = vld [vmem:[%s2950 + $0x28] sm:$0xf]
      %v2957 = vld [vmem:[%s2950 + $0x30] sm:$0xf]
      %v2958 = vld [vmem:[%s2950 + $0x38] sm:$0xf]
      %2959 = vst [vmem:[#allocation5 + $0x18] sm:$0xf] %v2951
      %2960 = vst [vmem:[#allocation5 + $0x3c] sm:$0xf] %v2952
      %2961 = vst [vmem:[#allocation5 + $0x60] sm:$0xf] %v2953
      %2962 = vst [vmem:[#allocation5 + $0x84] sm:$0xf] %v2954
      %2963 = vst [vmem:[#allocation5 + $0xa8] sm:$0xf] %v2955
      %2964 = vst [vmem:[#allocation5 + $0xcc] sm:$0xf] %v2956
      %2965 = vst [vmem:[#allocation5 + $0xf0] sm:$0xf] %v2957
      %2966 = vst [vmem:[#allocation5 + $0x114] sm:$0xf] %v2958
      %v2967 = vld [vmem:[%s2950] sm:$0xf]
      %v2968 = vld [vmem:[%s2950 + $0x4] sm:$0x1]
      %v2969 = vld [vmem:[%s2950 + $0x8] sm:$0xf]
      %v2970 = vld [vmem:[%s2950 + $0xc] sm:$0x1]
      %v2971 = vld [vmem:[%s2950 + $0x10] sm:$0xf]
      %v2972 = vld [vmem:[%s2950 + $0x14] sm:$0x1]
      %v2973 = vld [vmem:[%s2950 + $0x18] sm:$0xf]
      %v2974 = vld [vmem:[%s2950 + $0x1c] sm:$0x1]
      %v2975 = vld [vmem:[%s2950 + $0x20] sm:$0xf]
      %v2976 = vld [vmem:[%s2950 + $0x24] sm:$0x1]
      %v2977 = vld [vmem:[%s2950 + $0x28] sm:$0xf]
      %v2978 = vld [vmem:[%s2950 + $0x2c] sm:$0x1]
      %v2979 = vld [vmem:[%s2950 + $0x30] sm:$0xf]
      %v2980 = vld [vmem:[%s2950 + $0x34] sm:$0x1]
      %v2981 = vld [vmem:[%s2950 + $0x38] sm:$0xf]
      %v2982 = vld [vmem:[%s2950 + $0x3c] sm:$0x1]
      %v2984 = vshrl.u32 %v2967, 16
      %v2986 = vrot.slane %v2984, 4
      %v2987 = vshll.u32 %v2967, 16
      %v2989 = vrot.slane %v2987, 5
      %v2990 = vor.u32 %v2986, %v2989
      %v2991 = vrot.slane %v2990, 4
      %v2993 = vshll.u32 %v2968, 16
      %v2995 = vrot.slane %v2993, 5
      %v2996 = vsel %vm547, %v2991, %v2995
      %v2998 = vshrl.u32 %v2969, 16
      %v3000 = vrot.slane %v2998, 4
      %v3001 = vshll.u32 %v2969, 16
      %v3003 = vrot.slane %v3001, 5
      %v3004 = vor.u32 %v3000, %v3003
      %v3005 = vrot.slane %v3004, 4
      %v3007 = vshll.u32 %v2970, 16
      %v3009 = vrot.slane %v3007, 5
      %v3010 = vsel %vm547, %v3005, %v3009
      %v3012 = vshrl.u32 %v2971, 16
      %v3014 = vrot.slane %v3012, 4
      %v3015 = vshll.u32 %v2971, 16
      %v3017 = vrot.slane %v3015, 5
      %v3018 = vor.u32 %v3014, %v3017
      %v3019 = vrot.slane %v3018, 4
      %v3021 = vshll.u32 %v2972, 16
      %v3023 = vrot.slane %v3021, 5
      %v3024 = vsel %vm547, %v3019, %v3023
      %v3026 = vshrl.u32 %v2973, 16
      %v3028 = vrot.slane %v3026, 4
      %v3029 = vshll.u32 %v2973, 16
      %v3031 = vrot.slane %v3029, 5
      %v3032 = vor.u32 %v3028, %v3031
      %v3033 = vrot.slane %v3032, 4
      %v3035 = vshll.u32 %v2974, 16
      %v3037 = vrot.slane %v3035, 5
      %v3038 = vsel %vm547, %v3033, %v3037
      %v3040 = vshrl.u32 %v2975, 16
      %v3042 = vrot.slane %v3040, 4
      %v3043 = vshll.u32 %v2975, 16
      %v3045 = vrot.slane %v3043, 5
      %v3046 = vor.u32 %v3042, %v3045
      %v3047 = vrot.slane %v3046, 4
      %v3049 = vshll.u32 %v2976, 16
      %v3051 = vrot.slane %v3049, 5
      %v3052 = vsel %vm547, %v3047, %v3051
      %v3054 = vshrl.u32 %v2977, 16
      %v3056 = vrot.slane %v3054, 4
      %v3057 = vshll.u32 %v2977, 16
      %v3059 = vrot.slane %v3057, 5
      %v3060 = vor.u32 %v3056, %v3059
      %v3061 = vrot.slane %v3060, 4
      %v3063 = vshll.u32 %v2978, 16
      %v3065 = vrot.slane %v3063, 5
      %v3066 = vsel %vm547, %v3061, %v3065
      %v3068 = vshrl.u32 %v2979, 16
      %v3070 = vrot.slane %v3068, 4
      %v3071 = vshll.u32 %v2979, 16
      %v3073 = vrot.slane %v3071, 5
      %v3074 = vor.u32 %v3070, %v3073
      %v3075 = vrot.slane %v3074, 4
      %v3077 = vshll.u32 %v2980, 16
      %v3079 = vrot.slane %v3077, 5
      %v3080 = vsel %vm547, %v3075, %v3079
      %v3082 = vshrl.u32 %v2981, 16
      %v3084 = vrot.slane %v3082, 4
      %v3085 = vshll.u32 %v2981, 16
      %v3087 = vrot.slane %v3085, 5
      %v3088 = vor.u32 %v3084, %v3087
      %v3089 = vrot.slane %v3088, 4
      %v3091 = vshll.u32 %v2982, 16
      %v3093 = vrot.slane %v3091, 5
      %v3094 = vsel %vm547, %v3089, %v3093
      %3103 = vst [vmem:[#allocation5 + $0x1c] sm:$0xf] %v2996
      %3104 = vst [vmem:[#allocation5 + $0x40] sm:$0xf] %v3010
      %3105 = vst [vmem:[#allocation5 + $0x64] sm:$0xf] %v3024
      %3106 = vst [vmem:[#allocation5 + $0x88] sm:$0xf] %v3038
      %3107 = vst [vmem:[#allocation5 + $0xac] sm:$0xf] %v3052
      %3108 = vst [vmem:[#allocation5 + $0xd0] sm:$0xf] %v3066
      %3109 = vst [vmem:[#allocation5 + $0xf4] sm:$0xf] %v3080
      %3110 = vst [vmem:[#allocation5 + $0x118] sm:$0xf] %v3094
      %v3111 = vld [vmem:[%s2950] sm:$0xe]
      %v3112 = vld [vmem:[%s2950 + $0x4] sm:$0x1]
      %v3113 = vld [vmem:[%s2950 + $0x8] sm:$0xe]
      %v3114 = vld [vmem:[%s2950 + $0xc] sm:$0x1]
      %v3115 = vld [vmem:[%s2950 + $0x10] sm:$0xe]
      %v3116 = vld [vmem:[%s2950 + $0x14] sm:$0x1]
      %v3117 = vld [vmem:[%s2950 + $0x18] sm:$0xe]
      %v3118 = vld [vmem:[%s2950 + $0x1c] sm:$0x1]
      %v3119 = vld [vmem:[%s2950 + $0x20] sm:$0xe]
      %v3120 = vld [vmem:[%s2950 + $0x24] sm:$0x1]
      %v3121 = vld [vmem:[%s2950 + $0x28] sm:$0xe]
      %v3122 = vld [vmem:[%s2950 + $0x2c] sm:$0x1]
      %v3123 = vld [vmem:[%s2950 + $0x30] sm:$0xe]
      %v3124 = vld [vmem:[%s2950 + $0x34] sm:$0x1]
      %v3125 = vld [vmem:[%s2950 + $0x38] sm:$0xe]
      %v3126 = vld [vmem:[%s2950 + $0x3c] sm:$0x1]
      %v3143 = vrot.slane %v3111, 5
      %v3144 = vrot.slane %v3143, 4
      %v3145 = vrot.slane %v3112, 5
      %v3146 = vsel %vm710, %v3144, %v3145
      %v3147 = vrot.slane %v3113, 5
      %v3148 = vrot.slane %v3147, 4
      %v3149 = vrot.slane %v3114, 5
      %v3150 = vsel %vm710, %v3148, %v3149
      %v3151 = vrot.slane %v3115, 5
      %v3152 = vrot.slane %v3151, 4
      %v3153 = vrot.slane %v3116, 5
      %v3154 = vsel %vm710, %v3152, %v3153
      %v3155 = vrot.slane %v3117, 5
      %v3156 = vrot.slane %v3155, 4
      %v3157 = vrot.slane %v3118, 5
      %v3158 = vsel %vm710, %v3156, %v3157
      %v3159 = vrot.slane %v3119, 5
      %v3160 = vrot.slane %v3159, 4
      %v3161 = vrot.slane %v3120, 5
      %v3162 = vsel %vm710, %v3160, %v3161
      %v3163 = vrot.slane %v3121, 5
      %v3164 = vrot.slane %v3163, 4
      %v3165 = vrot.slane %v3122, 5
      %v3166 = vsel %vm710, %v3164, %v3165
      %v3167 = vrot.slane %v3123, 5
      %v3168 = vrot.slane %v3167, 4
      %v3169 = vrot.slane %v3124, 5
      %v3170 = vsel %vm710, %v3168, %v3169
      %v3171 = vrot.slane %v3125, 5
      %v3172 = vrot.slane %v3171, 4
      %v3173 = vrot.slane %v3126, 5
      %v3174 = vsel %vm710, %v3172, %v3173
      %3183 = vst [vmem:[#allocation5 + $0x20] sm:$0xf] %v3146
      %3184 = vst [vmem:[#allocation5 + $0x44] sm:$0xf] %v3150
      %3185 = vst [vmem:[#allocation5 + $0x68] sm:$0xf] %v3154
      %3186 = vst [vmem:[#allocation5 + $0x8c] sm:$0xf] %v3158
      %3187 = vst [vmem:[#allocation5 + $0xb0] sm:$0xf] %v3162
      %3188 = vst [vmem:[#allocation5 + $0xd4] sm:$0xf] %v3166
      %3189 = vst [vmem:[#allocation5 + $0xf8] sm:$0xf] %v3170
      %3190 = vst [vmem:[#allocation5 + $0x11c] sm:$0xf] %v3174
      %v3191 = vld [vmem:[%s274] sm:$0xf]
      %v3192 = vld [vmem:[%s274 + $0x4] sm:$0xf]
      %v3193 = vld [vmem:[%s274 + $0x8] sm:$0xf]
      %v3194 = vld [vmem:[%s274 + $0xc] sm:$0xf]
      %v3195 = vld [vmem:[%s274 + $0x10] sm:$0xf]
      %v3196 = vld [vmem:[%s274 + $0x14] sm:$0xf]
      %v3197 = vld [vmem:[%s274 + $0x18] sm:$0xf]
      %v3198 = vld [vmem:[%s274 + $0x1c] sm:$0xf]
      %v3199 = vunpack.c.l.bf16 %v3191
      %v3200 = vunpack.c.l.bf16 %v3192
      %v3201 = vunpack.c.l.bf16 %v3193
      %v3202 = vunpack.c.l.bf16 %v3194
      %v3203 = vunpack.c.l.bf16 %v3195
      %v3204 = vunpack.c.l.bf16 %v3196
      %v3205 = vunpack.c.l.bf16 %v3197
      %v3206 = vunpack.c.l.bf16 %v3198
      %v3207 = vld [vmem:[#allocation5] sm:$0xff]
      %v3208 = vld [vmem:[#allocation5 + $0x8] sm:$0xff]
      %v3209 = vld [vmem:[#allocation5 + $0x10] sm:$0xff]
      %v3210 = vld [vmem:[#allocation5 + $0x18] sm:$0xff]
      %v3211 = vld [vmem:[#allocation5 + $0x20] sm:$0xf]
      %v3212 = vld [vmem:[#allocation5 + $0x24] sm:$0xff]
      %v3213 = vld [vmem:[#allocation5 + $0x2c] sm:$0xff]
      %v3214 = vld [vmem:[#allocation5 + $0x34] sm:$0xff]
      %v3215 = vld [vmem:[#allocation5 + $0x3c] sm:$0xff]
      %v3216 = vld [vmem:[#allocation5 + $0x44] sm:$0xf]
      %v3217 = vld [vmem:[#allocation5 + $0x48] sm:$0xff]
      %v3218 = vld [vmem:[#allocation5 + $0x50] sm:$0xff]
      %v3219 = vld [vmem:[#allocation5 + $0x58] sm:$0xff]
      %v3220 = vld [vmem:[#allocation5 + $0x60] sm:$0xff]
      %v3221 = vld [vmem:[#allocation5 + $0x68] sm:$0xf]
      %v3222 = vld [vmem:[#allocation5 + $0x6c] sm:$0xff]
      %v3223 = vld [vmem:[#allocation5 + $0x74] sm:$0xff]
      %v3224 = vld [vmem:[#allocation5 + $0x7c] sm:$0xff]
      %v3225 = vld [vmem:[#allocation5 + $0x84] sm:$0xff]
      %v3226 = vld [vmem:[#allocation5 + $0x8c] sm:$0xf]
      %v3227 = vld [vmem:[#allocation5 + $0x90] sm:$0xff]
      %v3228 = vld [vmem:[#allocation5 + $0x98] sm:$0xff]
      %v3229 = vld [vmem:[#allocation5 + $0xa0] sm:$0xff]
      %v3230 = vld [vmem:[#allocation5 + $0xa8] sm:$0xff]
      %v3231 = vld [vmem:[#allocation5 + $0xb0] sm:$0xf]
      %v3232 = vld [vmem:[#allocation5 + $0xb4] sm:$0xff]
      %v3233 = vld [vmem:[#allocation5 + $0xbc] sm:$0xff]
      %v3234 = vld [vmem:[#allocation5 + $0xc4] sm:$0xff]
      %v3235 = vld [vmem:[#allocation5 + $0xcc] sm:$0xff]
      %v3236 = vld [vmem:[#allocation5 + $0xd4] sm:$0xf]
      %v3237 = vld [vmem:[#allocation5 + $0xd8] sm:$0xff]
      %v3238 = vld [vmem:[#allocation5 + $0xe0] sm:$0xff]
      %v3239 = vld [vmem:[#allocation5 + $0xe8] sm:$0xff]
      %v3240 = vld [vmem:[#allocation5 + $0xf0] sm:$0xff]
      %v3241 = vld [vmem:[#allocation5 + $0xf8] sm:$0xf]
      %v3242 = vld [vmem:[#allocation5 + $0xfc] sm:$0xff]
      %v3243 = vld [vmem:[#allocation5 + $0x104] sm:$0xff]
      %v3244 = vld [vmem:[#allocation5 + $0x10c] sm:$0xff]
      %v3245 = vld [vmem:[#allocation5 + $0x114] sm:$0xff]
      %v3246 = vld [vmem:[#allocation5 + $0x11c] sm:$0xf]
      %v3247 = vld [vmem:[%s2] sm:$0xf]
      %v3248 = vld [vmem:[%s2 + $0x4] sm:$0xf]
      %v3249 = vld [vmem:[%s2 + $0x8] sm:$0xf]
      %v3250 = vld [vmem:[%s2 + $0xc] sm:$0xf]
      %v3251 = vld [vmem:[%s2 + $0x10] sm:$0xf]
      %v3252 = vld [vmem:[%s2 + $0x14] sm:$0xf]
      %v3253 = vld [vmem:[%s2 + $0x18] sm:$0xf]
      %v3254 = vld [vmem:[%s2 + $0x1c] sm:$0xf]
      %v3255 = vld [vmem:[%s2 + $0x20] sm:$0xf]
      %v3256 = vld [vmem:[%s2 + $0x24] sm:$0xf]
      %v3257 = vld [vmem:[%s2 + $0x28] sm:$0xf]
      %v3258 = vld [vmem:[%s2 + $0x2c] sm:$0xf]
      %v3259 = vld [vmem:[%s2 + $0x30] sm:$0xf]
      %v3260 = vld [vmem:[%s2 + $0x34] sm:$0xf]
      %v3261 = vld [vmem:[%s2 + $0x38] sm:$0xf]
      %v3262 = vld [vmem:[%s2 + $0x3c] sm:$0xf]
      %v3263 = vld [vmem:[%s2 + $0x40] sm:$0xf]
      %v3264 = vld [vmem:[%s2 + $0x44] sm:$0xf]
      %v3265 = vld [vmem:[%s2 + $0x48] sm:$0xf]
      %v3266 = vld [vmem:[%s2 + $0x4c] sm:$0xf]
      %v3267 = vld [vmem:[%s2 + $0x50] sm:$0xf]
      %v3268 = vld [vmem:[%s2 + $0x54] sm:$0xf]
      %v3269 = vld [vmem:[%s2 + $0x58] sm:$0xf]
      %v3270 = vld [vmem:[%s2 + $0x5c] sm:$0xf]
      %v3271 = vld [vmem:[%s2 + $0x60] sm:$0xf]
      %v3272 = vld [vmem:[%s2 + $0x64] sm:$0xf]
      %v3273 = vld [vmem:[%s2 + $0x68] sm:$0xf]
      %v3274 = vld [vmem:[%s2 + $0x6c] sm:$0xf]
      %v3275 = vld [vmem:[%s2 + $0x70] sm:$0xf]
      %v3276 = vld [vmem:[%s2 + $0x74] sm:$0xf]
      %v3277 = vld [vmem:[%s2 + $0x78] sm:$0xf]
      %v3278 = vld [vmem:[%s2 + $0x7c] sm:$0xf]
      %v3279 = vld [vmem:[%s2 + $0x80] sm:$0xf]
      %v3280 = vld [vmem:[%s2 + $0x84] sm:$0xf]
      %v3281 = vld [vmem:[%s2 + $0x88] sm:$0xf]
      %v3282 = vld [vmem:[%s2 + $0x8c] sm:$0xf]
      %v3283 = vld [vmem:[%s2 + $0x90] sm:$0xf]
      %v3284 = vld [vmem:[%s2 + $0x94] sm:$0xf]
      %v3285 = vld [vmem:[%s2 + $0x98] sm:$0xf]
      %v3286 = vld [vmem:[%s2 + $0x9c] sm:$0xf]
      %v3287 = vld [vmem:[%s2 + $0xa0] sm:$0xf]
      %v3288 = vld [vmem:[%s2 + $0xa4] sm:$0xf]
      %v3289 = vld [vmem:[%s2 + $0xa8] sm:$0xf]
      %v3290 = vld [vmem:[%s2 + $0xac] sm:$0xf]
      %v3291 = vld [vmem:[%s2 + $0xb0] sm:$0xf]
      %v3292 = vld [vmem:[%s2 + $0xb4] sm:$0xf]
      %v3293 = vld [vmem:[%s2 + $0xb8] sm:$0xf]
      %v3294 = vld [vmem:[%s2 + $0xbc] sm:$0xf]
      %v3295 = vld [vmem:[%s2 + $0xc0] sm:$0xf]
      %v3296 = vld [vmem:[%s2 + $0xc4] sm:$0xf]
      %v3297 = vld [vmem:[%s2 + $0xc8] sm:$0xf]
      %v3298 = vld [vmem:[%s2 + $0xcc] sm:$0xf]
      %v3299 = vld [vmem:[%s2 + $0xd0] sm:$0xf]
      %v3300 = vld [vmem:[%s2 + $0xd4] sm:$0xf]
      %v3301 = vld [vmem:[%s2 + $0xd8] sm:$0xf]
      %v3302 = vld [vmem:[%s2 + $0xdc] sm:$0xf]
      %v3303 = vld [vmem:[%s2 + $0xe0] sm:$0xf]
      %v3304 = vld [vmem:[%s2 + $0xe4] sm:$0xf]
      %v3305 = vld [vmem:[%s2 + $0xe8] sm:$0xf]
      %v3306 = vld [vmem:[%s2 + $0xec] sm:$0xf]
      %v3307 = vld [vmem:[%s2 + $0xf0] sm:$0xf]
      %v3308 = vld [vmem:[%s2 + $0xf4] sm:$0xf]
      %v3309 = vld [vmem:[%s2 + $0xf8] sm:$0xf]
      %v3310 = vld [vmem:[%s2 + $0xfc] sm:$0xf]
      %v3311 = vld [vmem:[%s2 + $0x100] sm:$0xf]
      %v3312 = vld [vmem:[%s2 + $0x104] sm:$0xf]
      %v3313 = vld [vmem:[%s2 + $0x108] sm:$0xf]
      %v3314 = vld [vmem:[%s2 + $0x10c] sm:$0xf]
      %v3315 = vld [vmem:[%s2 + $0x110] sm:$0xf]
      %v3316 = vld [vmem:[%s2 + $0x114] sm:$0xf]
      %v3317 = vld [vmem:[%s2 + $0x118] sm:$0xf]
      %v3318 = vld [vmem:[%s2 + $0x11c] sm:$0xf]
      %v3319 = vld [vmem:[%s2 + $0x120] sm:$0xf]
      %v3320 = vld [vmem:[%s2 + $0x124] sm:$0xf]
      %v3321 = vld [vmem:[%s2 + $0x128] sm:$0xf]
      %v3322 = vld [vmem:[%s2 + $0x12c] sm:$0xf]
      %v3323 = vld [vmem:[%s2 + $0x130] sm:$0xf]
      %v3324 = vld [vmem:[%s2 + $0x134] sm:$0xf]
      %v3325 = vld [vmem:[%s2 + $0x138] sm:$0xf]
      %v3326 = vld [vmem:[%s2 + $0x13c] sm:$0xf]
      %v3327 = vld [vmem:[%s2 + $0x140] sm:$0xf]
      %v3328 = vld [vmem:[%s2 + $0x144] sm:$0xf]
      %v3329 = vld [vmem:[%s2 + $0x148] sm:$0xf]
      %v3330 = vld [vmem:[%s2 + $0x14c] sm:$0xf]
      %v3331 = vld [vmem:[%s2 + $0x150] sm:$0xf]
      %v3332 = vld [vmem:[%s2 + $0x154] sm:$0xf]
      %v3333 = vld [vmem:[%s2 + $0x158] sm:$0xf]
      %v3334 = vld [vmem:[%s2 + $0x15c] sm:$0xf]
      %v3335 = vld [vmem:[%s2 + $0x160] sm:$0xf]
      %v3336 = vld [vmem:[%s2 + $0x164] sm:$0xf]
      %v3337 = vld [vmem:[%s2 + $0x168] sm:$0xf]
      %v3338 = vld [vmem:[%s2 + $0x16c] sm:$0xf]
      %v3339 = vld [vmem:[%s2 + $0x170] sm:$0xf]
      %v3340 = vld [vmem:[%s2 + $0x174] sm:$0xf]
      %v3341 = vld [vmem:[%s2 + $0x178] sm:$0xf]
      %v3342 = vld [vmem:[%s2 + $0x17c] sm:$0xf]
      %v3343 = vld [vmem:[%s2 + $0x180] sm:$0xf]
      %v3344 = vld [vmem:[%s2 + $0x184] sm:$0xf]
      %v3345 = vld [vmem:[%s2 + $0x188] sm:$0xf]
      %v3346 = vld [vmem:[%s2 + $0x18c] sm:$0xf]
      %v3347 = vld [vmem:[%s2 + $0x190] sm:$0xf]
      %v3348 = vld [vmem:[%s2 + $0x194] sm:$0xf]
      %v3349 = vld [vmem:[%s2 + $0x198] sm:$0xf]
      %v3350 = vld [vmem:[%s2 + $0x19c] sm:$0xf]
      %v3351 = vld [vmem:[%s2 + $0x1a0] sm:$0xf]
      %v3352 = vld [vmem:[%s2 + $0x1a4] sm:$0xf]
      %v3353 = vld [vmem:[%s2 + $0x1a8] sm:$0xf]
      %v3354 = vld [vmem:[%s2 + $0x1ac] sm:$0xf]
      %v3355 = vld [vmem:[%s2 + $0x1b0] sm:$0xf]
      %v3356 = vld [vmem:[%s2 + $0x1b4] sm:$0xf]
      %v3357 = vld [vmem:[%s2 + $0x1b8] sm:$0xf]
      %v3358 = vld [vmem:[%s2 + $0x1bc] sm:$0xf]
      %v3359 = vld [vmem:[%s2 + $0x1c0] sm:$0xf]
      %v3360 = vld [vmem:[%s2 + $0x1c4] sm:$0xf]
      %v3361 = vld [vmem:[%s2 + $0x1c8] sm:$0xf]
      %v3362 = vld [vmem:[%s2 + $0x1cc] sm:$0xf]
      %v3363 = vld [vmem:[%s2 + $0x1d0] sm:$0xf]
      %v3364 = vld [vmem:[%s2 + $0x1d4] sm:$0xf]
      %v3365 = vld [vmem:[%s2 + $0x1d8] sm:$0xf]
      %v3366 = vld [vmem:[%s2 + $0x1dc] sm:$0xf]
      %v3367 = vld [vmem:[%s2 + $0x1e0] sm:$0xf]
      %v3368 = vld [vmem:[%s2 + $0x1e4] sm:$0xf]
      %v3369 = vld [vmem:[%s2 + $0x1e8] sm:$0xf]
      %v3370 = vld [vmem:[%s2 + $0x1ec] sm:$0xf]
      %v3371 = vld [vmem:[%s2 + $0x1f0] sm:$0xf]
      %v3372 = vld [vmem:[%s2 + $0x1f4] sm:$0xf]
      %v3373 = vld [vmem:[%s2 + $0x1f8] sm:$0xf]
      %v3374 = vld [vmem:[%s2 + $0x1fc] sm:$0xf]
      %v3375 = vld [vmem:[%s2 + $0x200] sm:$0xf]
      %v3376 = vld [vmem:[%s2 + $0x204] sm:$0xf]
      %v3377 = vld [vmem:[%s2 + $0x208] sm:$0xf]
      %v3378 = vld [vmem:[%s2 + $0x20c] sm:$0xf]
      %v3379 = vld [vmem:[%s2 + $0x210] sm:$0xf]
      %v3380 = vld [vmem:[%s2 + $0x214] sm:$0xf]
      %v3381 = vld [vmem:[%s2 + $0x218] sm:$0xf]
      %v3382 = vld [vmem:[%s2 + $0x21c] sm:$0xf]
      %v3383 = vld [vmem:[%s2 + $0x220] sm:$0xf]
      %v3384 = vld [vmem:[%s2 + $0x224] sm:$0xf]
      %v3385 = vld [vmem:[%s2 + $0x228] sm:$0xf]
      %v3386 = vld [vmem:[%s2 + $0x22c] sm:$0xf]
      %v3387 = vld [vmem:[%s2 + $0x230] sm:$0xf]
      %v3388 = vld [vmem:[%s2 + $0x234] sm:$0xf]
      %v3389 = vld [vmem:[%s2 + $0x238] sm:$0xf]
      %v3390 = vld [vmem:[%s2 + $0x23c] sm:$0xf]
      %v3431 = vunpack.c.l.b16 %v3207
      %v3432 = vunpack.c.h.b16 %v3207
      %v3433 = vunpack.c.l.b16 %v3208
      %v3434 = vunpack.c.h.b16 %v3208
      %v3435 = vunpack.c.l.b16 %v3209
      %v3436 = vunpack.c.h.b16 %v3209
      %v3437 = vunpack.c.l.b16 %v3210
      %v3438 = vunpack.c.h.b16 %v3210
      %v3439 = vunpack.c.l.b16 %v3211
      %v3440 = vunpack.c.l.b16 %v3212
      %v3441 = vunpack.c.h.b16 %v3212
      %v3442 = vunpack.c.l.b16 %v3213
      %v3443 = vunpack.c.h.b16 %v3213
      %v3444 = vunpack.c.l.b16 %v3214
      %v3445 = vunpack.c.h.b16 %v3214
      %v3446 = vunpack.c.l.b16 %v3215
      %v3447 = vunpack.c.h.b16 %v3215
      %v3448 = vunpack.c.l.b16 %v3216
      %v3449 = vunpack.c.l.b16 %v3217
      %v3450 = vunpack.c.h.b16 %v3217
      %v3451 = vunpack.c.l.b16 %v3218
      %v3452 = vunpack.c.h.b16 %v3218
      %v3453 = vunpack.c.l.b16 %v3219
      %v3454 = vunpack.c.h.b16 %v3219
      %v3455 = vunpack.c.l.b16 %v3220
      %v3456 = vunpack.c.h.b16 %v3220
      %v3457 = vunpack.c.l.b16 %v3221
      %v3458 = vunpack.c.l.b16 %v3222
      %v3459 = vunpack.c.h.b16 %v3222
      %v3460 = vunpack.c.l.b16 %v3223
      %v3461 = vunpack.c.h.b16 %v3223
      %v3462 = vunpack.c.l.b16 %v3224
      %v3463 = vunpack.c.h.b16 %v3224
      %v3464 = vunpack.c.l.b16 %v3225
      %v3465 = vunpack.c.h.b16 %v3225
      %v3466 = vunpack.c.l.b16 %v3226
      %v3467 = vunpack.c.l.b16 %v3227
      %v3468 = vunpack.c.h.b16 %v3227
      %v3469 = vunpack.c.l.b16 %v3228
      %v3470 = vunpack.c.h.b16 %v3228
      %v3471 = vunpack.c.l.b16 %v3229
      %v3472 = vunpack.c.h.b16 %v3229
      %v3473 = vunpack.c.l.b16 %v3230
      %v3474 = vunpack.c.h.b16 %v3230
      %v3475 = vunpack.c.l.b16 %v3231
      %v3476 = vunpack.c.l.b16 %v3232
      %v3477 = vunpack.c.h.b16 %v3232
      %v3478 = vunpack.c.l.b16 %v3233
      %v3479 = vunpack.c.h.b16 %v3233
      %v3480 = vunpack.c.l.b16 %v3234
      %v3481 = vunpack.c.h.b16 %v3234
      %v3482 = vunpack.c.l.b16 %v3235
      %v3483 = vunpack.c.h.b16 %v3235
      %v3484 = vunpack.c.l.b16 %v3236
      %v3485 = vunpack.c.l.b16 %v3237
      %v3486 = vunpack.c.h.b16 %v3237
      %v3487 = vunpack.c.l.b16 %v3238
      %v3488 = vunpack.c.h.b16 %v3238
      %v3489 = vunpack.c.l.b16 %v3239
      %v3490 = vunpack.c.h.b16 %v3239
      %v3491 = vunpack.c.l.b16 %v3240
      %v3492 = vunpack.c.h.b16 %v3240
      %v3493 = vunpack.c.l.b16 %v3241
      %v3494 = vunpack.c.l.b16 %v3242
      %v3495 = vunpack.c.h.b16 %v3242
      %v3496 = vunpack.c.l.b16 %v3243
      %v3497 = vunpack.c.h.b16 %v3243
      %v3498 = vunpack.c.l.b16 %v3244
      %v3499 = vunpack.c.h.b16 %v3244
      %v3500 = vunpack.c.l.b16 %v3245
      %v3501 = vunpack.c.h.b16 %v3245
      %v3502 = vunpack.c.l.b16 %v3246
      %v3503 = vpack.c.b16 %v3440, %v3431
      %v3504 = vpack.c.b16 %v3441, %v3432
      %v3505 = vpack.c.b16 %v3442, %v3433
      %v3506 = vpack.c.b16 %v3443, %v3434
      %v3507 = vpack.c.b16 %v3444, %v3435
      %v3508 = vpack.c.b16 %v3445, %v3436
      %v3509 = vpack.c.b16 %v3446, %v3437
      %v3510 = vpack.c.b16 %v3447, %v3438
      %v3511 = vpack.c.b16 %v3448, %v3439
      %v3512 = vpack.c.b16 %v3458, %v3449
      %v3513 = vpack.c.b16 %v3459, %v3450
      %v3514 = vpack.c.b16 %v3460, %v3451
      %v3515 = vpack.c.b16 %v3461, %v3452
      %v3516 = vpack.c.b16 %v3462, %v3453
      %v3517 = vpack.c.b16 %v3463, %v3454
      %v3518 = vpack.c.b16 %v3464, %v3455
      %v3519 = vpack.c.b16 %v3465, %v3456
      %v3520 = vpack.c.b16 %v3466, %v3457
      %v3521 = vpack.c.b16 %v3476, %v3467
      %v3522 = vpack.c.b16 %v3477, %v3468
      %v3523 = vpack.c.b16 %v3478, %v3469
      %v3524 = vpack.c.b16 %v3479, %v3470
      %v3525 = vpack.c.b16 %v3480, %v3471
      %v3526 = vpack.c.b16 %v3481, %v3472
      %v3527 = vpack.c.b16 %v3482, %v3473
      %v3528 = vpack.c.b16 %v3483, %v3474
      %v3529 = vpack.c.b16 %v3484, %v3475
      %v3530 = vpack.c.b16 %v3494, %v3485
      %v3531 = vpack.c.b16 %v3495, %v3486
      %v3532 = vpack.c.b16 %v3496, %v3487
      %v3533 = vpack.c.b16 %v3497, %v3488
      %v3534 = vpack.c.b16 %v3498, %v3489
      %v3535 = vpack.c.b16 %v3499, %v3490
      %v3536 = vpack.c.b16 %v3500, %v3491
      %v3537 = vpack.c.b16 %v3501, %v3492
      %v3538 = vpack.c.b16 %v3502, %v3493
      %v3719 = vunpack.c.l.b16 %v3247
      %v3720 = vunpack.c.l.b16 %v3248
      %v3721 = vunpack.c.l.b16 %v3249
      %v3722 = vunpack.c.l.b16 %v3250
      %v3723 = vunpack.c.l.b16 %v3251
      %v3724 = vunpack.c.l.b16 %v3252
      %v3725 = vunpack.c.l.b16 %v3253
      %v3726 = vunpack.c.l.b16 %v3254
      %v3727 = vunpack.c.l.b16 %v3255
      %v3728 = vunpack.c.l.b16 %v3256
      %v3729 = vunpack.c.l.b16 %v3257
      %v3730 = vunpack.c.l.b16 %v3258
      %v3731 = vunpack.c.l.b16 %v3259
      %v3732 = vunpack.c.l.b16 %v3260
      %v3733 = vunpack.c.l.b16 %v3261
      %v3734 = vunpack.c.l.b16 %v3262
      %v3735 = vunpack.c.l.b16 %v3263
      %v3736 = vunpack.c.l.b16 %v3264
      %v3737 = vunpack.c.l.b16 %v3265
      %v3738 = vunpack.c.l.b16 %v3266
      %v3739 = vunpack.c.l.b16 %v3267
      %v3740 = vunpack.c.l.b16 %v3268
      %v3741 = vunpack.c.l.b16 %v3269
      %v3742 = vunpack.c.l.b16 %v3270
      %v3743 = vunpack.c.l.b16 %v3271
      %v3744 = vunpack.c.l.b16 %v3272
      %v3745 = vunpack.c.l.b16 %v3273
      %v3746 = vunpack.c.l.b16 %v3274
      %v3747 = vunpack.c.l.b16 %v3275
      %v3748 = vunpack.c.l.b16 %v3276
      %v3749 = vunpack.c.l.b16 %v3277
      %v3750 = vunpack.c.l.b16 %v3278
      %v3751 = vunpack.c.l.b16 %v3279
      %v3752 = vunpack.c.l.b16 %v3280
      %v3753 = vunpack.c.l.b16 %v3281
      %v3754 = vunpack.c.l.b16 %v3282
      %v3755 = vunpack.c.l.b16 %v3283
      %v3756 = vunpack.c.l.b16 %v3284
      %v3757 = vunpack.c.l.b16 %v3285
      %v3758 = vunpack.c.l.b16 %v3286
      %v3759 = vunpack.c.l.b16 %v3287
      %v3760 = vunpack.c.l.b16 %v3288
      %v3761 = vunpack.c.l.b16 %v3289
      %v3762 = vunpack.c.l.b16 %v3290
      %v3763 = vunpack.c.l.b16 %v3291
      %v3764 = vunpack.c.l.b16 %v3292
      %v3765 = vunpack.c.l.b16 %v3293
      %v3766 = vunpack.c.l.b16 %v3294
      %v3767 = vunpack.c.l.b16 %v3295
      %v3768 = vunpack.c.l.b16 %v3296
      %v3769 = vunpack.c.l.b16 %v3297
      %v3770 = vunpack.c.l.b16 %v3298
      %v3771 = vunpack.c.l.b16 %v3299
      %v3772 = vunpack.c.l.b16 %v3300
      %v3773 = vunpack.c.l.b16 %v3301
      %v3774 = vunpack.c.l.b16 %v3302
      %v3775 = vunpack.c.l.b16 %v3303
      %v3776 = vunpack.c.l.b16 %v3304
      %v3777 = vunpack.c.l.b16 %v3305
      %v3778 = vunpack.c.l.b16 %v3306
      %v3779 = vunpack.c.l.b16 %v3307
      %v3780 = vunpack.c.l.b16 %v3308
      %v3781 = vunpack.c.l.b16 %v3309
      %v3782 = vunpack.c.l.b16 %v3310
      %v3783 = vunpack.c.l.b16 %v3311
      %v3784 = vunpack.c.l.b16 %v3312
      %v3785 = vunpack.c.l.b16 %v3313
      %v3786 = vunpack.c.l.b16 %v3314
      %v3787 = vunpack.c.l.b16 %v3315
      %v3788 = vunpack.c.l.b16 %v3316
      %v3789 = vunpack.c.l.b16 %v3317
      %v3790 = vunpack.c.l.b16 %v3318
      %v3791 = vunpack.c.l.b16 %v3319
      %v3792 = vunpack.c.l.b16 %v3320
      %v3793 = vunpack.c.l.b16 %v3321
      %v3794 = vunpack.c.l.b16 %v3322
      %v3795 = vunpack.c.l.b16 %v3323
      %v3796 = vunpack.c.l.b16 %v3324
      %v3797 = vunpack.c.l.b16 %v3325
      %v3798 = vunpack.c.l.b16 %v3326
      %v3799 = vunpack.c.l.b16 %v3327
      %v3800 = vunpack.c.l.b16 %v3328
      %v3801 = vunpack.c.l.b16 %v3329
      %v3802 = vunpack.c.l.b16 %v3330
      %v3803 = vunpack.c.l.b16 %v3331
      %v3804 = vunpack.c.l.b16 %v3332
      %v3805 = vunpack.c.l.b16 %v3333
      %v3806 = vunpack.c.l.b16 %v3334
      %v3807 = vunpack.c.l.b16 %v3335
      %v3808 = vunpack.c.l.b16 %v3336
      %v3809 = vunpack.c.l.b16 %v3337
      %v3810 = vunpack.c.l.b16 %v3338
      %v3811 = vunpack.c.l.b16 %v3339
      %v3812 = vunpack.c.l.b16 %v3340
      %v3813 = vunpack.c.l.b16 %v3341
      %v3814 = vunpack.c.l.b16 %v3342
      %v3815 = vunpack.c.l.b16 %v3343
      %v3816 = vunpack.c.l.b16 %v3344
      %v3817 = vunpack.c.l.b16 %v3345
      %v3818 = vunpack.c.l.b16 %v3346
      %v3819 = vunpack.c.l.b16 %v3347
      %v3820 = vunpack.c.l.b16 %v3348
      %v3821 = vunpack.c.l.b16 %v3349
      %v3822 = vunpack.c.l.b16 %v3350
      %v3823 = vunpack.c.l.b16 %v3351
      %v3824 = vunpack.c.l.b16 %v3352
      %v3825 = vunpack.c.l.b16 %v3353
      %v3826 = vunpack.c.l.b16 %v3354
      %v3827 = vunpack.c.l.b16 %v3355
      %v3828 = vunpack.c.l.b16 %v3356
      %v3829 = vunpack.c.l.b16 %v3357
      %v3830 = vunpack.c.l.b16 %v3358
      %v3831 = vunpack.c.l.b16 %v3359
      %v3832 = vunpack.c.l.b16 %v3360
      %v3833 = vunpack.c.l.b16 %v3361
      %v3834 = vunpack.c.l.b16 %v3362
      %v3835 = vunpack.c.l.b16 %v3363
      %v3836 = vunpack.c.l.b16 %v3364
      %v3837 = vunpack.c.l.b16 %v3365
      %v3838 = vunpack.c.l.b16 %v3366
      %v3839 = vunpack.c.l.b16 %v3367
      %v3840 = vunpack.c.l.b16 %v3368
      %v3841 = vunpack.c.l.b16 %v3369
      %v3842 = vunpack.c.l.b16 %v3370
      %v3843 = vunpack.c.l.b16 %v3371
      %v3844 = vunpack.c.l.b16 %v3372
      %v3845 = vunpack.c.l.b16 %v3373
      %v3846 = vunpack.c.l.b16 %v3374
      %v3847 = vunpack.c.l.b16 %v3375
      %v3848 = vunpack.c.l.b16 %v3376
      %v3849 = vunpack.c.l.b16 %v3377
      %v3850 = vunpack.c.l.b16 %v3378
      %v3851 = vunpack.c.l.b16 %v3379
      %v3852 = vunpack.c.l.b16 %v3380
      %v3853 = vunpack.c.l.b16 %v3381
      %v3854 = vunpack.c.l.b16 %v3382
      %v3855 = vunpack.c.l.b16 %v3383
      %v3856 = vunpack.c.l.b16 %v3384
      %v3857 = vunpack.c.l.b16 %v3385
      %v3858 = vunpack.c.l.b16 %v3386
      %v3859 = vunpack.c.l.b16 %v3387
      %v3860 = vunpack.c.l.b16 %v3388
      %v3861 = vunpack.c.l.b16 %v3389
      %v3862 = vunpack.c.l.b16 %v3390
      %v3863 = vpack.c.b16 %v3720, %v3719
      %v3864 = vpack.c.b16 %v3722, %v3721
      %v3865 = vpack.c.b16 %v3724, %v3723
      %v3866 = vpack.c.b16 %v3726, %v3725
      %v3867 = vpack.c.b16 %v3728, %v3727
      %v3868 = vpack.c.b16 %v3730, %v3729
      %v3869 = vpack.c.b16 %v3732, %v3731
      %v3870 = vpack.c.b16 %v3734, %v3733
      %v3871 = vpack.c.b16 %v3736, %v3735
      %v3872 = vpack.c.b16 %v3738, %v3737
      %v3873 = vpack.c.b16 %v3740, %v3739
      %v3874 = vpack.c.b16 %v3742, %v3741
      %v3875 = vpack.c.b16 %v3744, %v3743
      %v3876 = vpack.c.b16 %v3746, %v3745
      %v3877 = vpack.c.b16 %v3748, %v3747
      %v3878 = vpack.c.b16 %v3750, %v3749
      %v3879 = vpack.c.b16 %v3752, %v3751
      %v3880 = vpack.c.b16 %v3754, %v3753
      %v3881 = vpack.c.b16 %v3756, %v3755
      %v3882 = vpack.c.b16 %v3758, %v3757
      %v3883 = vpack.c.b16 %v3760, %v3759
      %v3884 = vpack.c.b16 %v3762, %v3761
      %v3885 = vpack.c.b16 %v3764, %v3763
      %v3886 = vpack.c.b16 %v3766, %v3765
      %v3887 = vpack.c.b16 %v3768, %v3767
      %v3888 = vpack.c.b16 %v3770, %v3769
      %v3889 = vpack.c.b16 %v3772, %v3771
      %v3890 = vpack.c.b16 %v3774, %v3773
      %v3891 = vpack.c.b16 %v3776, %v3775
      %v3892 = vpack.c.b16 %v3778, %v3777
      %v3893 = vpack.c.b16 %v3780, %v3779
      %v3894 = vpack.c.b16 %v3782, %v3781
      %v3895 = vpack.c.b16 %v3784, %v3783
      %v3896 = vpack.c.b16 %v3786, %v3785
      %v3897 = vpack.c.b16 %v3788, %v3787
      %v3898 = vpack.c.b16 %v3790, %v3789
      %v3899 = vpack.c.b16 %v3792, %v3791
      %v3900 = vpack.c.b16 %v3794, %v3793
      %v3901 = vpack.c.b16 %v3796, %v3795
      %v3902 = vpack.c.b16 %v3798, %v3797
      %v3903 = vpack.c.b16 %v3800, %v3799
      %v3904 = vpack.c.b16 %v3802, %v3801
      %v3905 = vpack.c.b16 %v3804, %v3803
      %v3906 = vpack.c.b16 %v3806, %v3805
      %v3907 = vpack.c.b16 %v3808, %v3807
      %v3908 = vpack.c.b16 %v3810, %v3809
      %v3909 = vpack.c.b16 %v3812, %v3811
      %v3910 = vpack.c.b16 %v3814, %v3813
      %v3911 = vpack.c.b16 %v3816, %v3815
      %v3912 = vpack.c.b16 %v3818, %v3817
      %v3913 = vpack.c.b16 %v3820, %v3819
      %v3914 = vpack.c.b16 %v3822, %v3821
      %v3915 = vpack.c.b16 %v3824, %v3823
      %v3916 = vpack.c.b16 %v3826, %v3825
      %v3917 = vpack.c.b16 %v3828, %v3827
      %v3918 = vpack.c.b16 %v3830, %v3829
      %v3919 = vpack.c.b16 %v3832, %v3831
      %v3920 = vpack.c.b16 %v3834, %v3833
      %v3921 = vpack.c.b16 %v3836, %v3835
      %v3922 = vpack.c.b16 %v3838, %v3837
      %v3923 = vpack.c.b16 %v3840, %v3839
      %v3924 = vpack.c.b16 %v3842, %v3841
      %v3925 = vpack.c.b16 %v3844, %v3843
      %v3926 = vpack.c.b16 %v3846, %v3845
      %v3927 = vpack.c.b16 %v3848, %v3847
      %v3928 = vpack.c.b16 %v3850, %v3849
      %v3929 = vpack.c.b16 %v3852, %v3851
      %v3930 = vpack.c.b16 %v3854, %v3853
      %v3931 = vpack.c.b16 %v3856, %v3855
      %v3932 = vpack.c.b16 %v3858, %v3857
      %v3933 = vpack.c.b16 %v3860, %v3859
      %v3934 = vpack.c.b16 %v3862, %v3861
      %4007 = vmatpush.bf16.msra.mxu0 %v3870
      %4008 = vmatpush.bf16.msra.mxu0 %v3869
      %4009 = vmatpush.bf16.msra.mxu0 %v3868
      %4010 = vmatpush.bf16.msra.mxu0 %v3867
      %4011 = vmatpush.bf16.msra.mxu0 %v3866
      %4012 = vmatpush.bf16.msra.mxu0 %v3865
      %4013 = vmatpush.bf16.msra.mxu0 %v3864
      %4014 = vmatpush.bf16.msra.mxu0 %v3863
      %4015 = vmatmul.bf16.gmra.mxu0 %v3503
      %v4016 = vpop.f32.mrf.mxu0
      %v4017 = vadd.f32 %v3199, %v4016
      %v4018 = vpop.f32.mrf.mxu0
      %v4019 = vadd.f32 %v3200, %v4018
      %4020 = vmatmul.bf16.gmra.mxu0 %v3512
      %v4021 = vpop.f32.mrf.mxu0
      %v4022 = vadd.f32 %v3201, %v4021
      %v4023 = vpop.f32.mrf.mxu0
      %v4024 = vadd.f32 %v3202, %v4023
      %4025 = vmatmul.bf16.gmra.mxu0 %v3521
      %v4026 = vpop.f32.mrf.mxu0
      %v4027 = vadd.f32 %v3203, %v4026
      %v4028 = vpop.f32.mrf.mxu0
      %v4029 = vadd.f32 %v3204, %v4028
      %4030 = vmatmul.bf16.gmra.mxu0 %v3530
      %v4031 = vpop.f32.mrf.mxu0
      %v4032 = vadd.f32 %v3205, %v4031
      %v4033 = vpop.f32.mrf.mxu0
      %v4034 = vadd.f32 %v3206, %v4033
      %4035 = vdwg.mxu0
      %4036 = vmatpush.bf16.msra.mxu0 %v3878
      %4037 = vmatpush.bf16.msra.mxu0 %v3877
      %4038 = vmatpush.bf16.msra.mxu0 %v3876
      %4039 = vmatpush.bf16.msra.mxu0 %v3875
      %4040 = vmatpush.bf16.msra.mxu0 %v3874
      %4041 = vmatpush.bf16.msra.mxu0 %v3873
      %4042 = vmatpush.bf16.msra.mxu0 %v3872
      %4043 = vmatpush.bf16.msra.mxu0 %v3871
      %4044 = vmatmul.bf16.gmra.mxu0 %v3504
      %v4045 = vpop.f32.mrf.mxu0
      %v4046 = vadd.f32 %v4017, %v4045
      %v4047 = vpop.f32.mrf.mxu0
      %v4048 = vadd.f32 %v4019, %v4047
      %4049 = vmatmul.bf16.gmra.mxu0 %v3513
      %v4050 = vpop.f32.mrf.mxu0
      %v4051 = vadd.f32 %v4022, %v4050
      %v4052 = vpop.f32.mrf.mxu0
      %v4053 = vadd.f32 %v4024, %v4052
      %4054 = vmatmul.bf16.gmra.mxu0 %v3522
      %v4055 = vpop.f32.mrf.mxu0
      %v4056 = vadd.f32 %v4027, %v4055
      %v4057 = vpop.f32.mrf.mxu0
      %v4058 = vadd.f32 %v4029, %v4057
      %4059 = vmatmul.bf16.gmra.mxu0 %v3531
      %v4060 = vpop.f32.mrf.mxu0
      %v4061 = vadd.f32 %v4032, %v4060
      %v4062 = vpop.f32.mrf.mxu0
      %v4063 = vadd.f32 %v4034, %v4062
      %4064 = vdwg.mxu0
      %4065 = vmatpush.bf16.msra.mxu0 %v3886
      %4066 = vmatpush.bf16.msra.mxu0 %v3885
      %4067 = vmatpush.bf16.msra.mxu0 %v3884
      %4068 = vmatpush.bf16.msra.mxu0 %v3883
      %4069 = vmatpush.bf16.msra.mxu0 %v3882
      %4070 = vmatpush.bf16.msra.mxu0 %v3881
      %4071 = vmatpush.bf16.msra.mxu0 %v3880
      %4072 = vmatpush.bf16.msra.mxu0 %v3879
      %4073 = vmatmul.bf16.gmra.mxu0 %v3505
      %v4074 = vpop.f32.mrf.mxu0
      %v4075 = vadd.f32 %v4046, %v4074
      %v4076 = vpop.f32.mrf.mxu0
      %v4077 = vadd.f32 %v4048, %v4076
      %4078 = vmatmul.bf16.gmra.mxu0 %v3514
      %v4079 = vpop.f32.mrf.mxu0
      %v4080 = vadd.f32 %v4051, %v4079
      %v4081 = vpop.f32.mrf.mxu0
      %v4082 = vadd.f32 %v4053, %v4081
      %4083 = vmatmul.bf16.gmra.mxu0 %v3523
      %v4084 = vpop.f32.mrf.mxu0
      %v4085 = vadd.f32 %v4056, %v4084
      %v4086 = vpop.f32.mrf.mxu0
      %v4087 = vadd.f32 %v4058, %v4086
      %4088 = vmatmul.bf16.gmra.mxu0 %v3532
      %v4089 = vpop.f32.mrf.mxu0
      %v4090 = vadd.f32 %v4061, %v4089
      %v4091 = vpop.f32.mrf.mxu0
      %v4092 = vadd.f32 %v4063, %v4091
      %4093 = vdwg.mxu0
      %4094 = vmatpush.bf16.msra.mxu0 %v3894
      %4095 = vmatpush.bf16.msra.mxu0 %v3893
      %4096 = vmatpush.bf16.msra.mxu0 %v3892
      %4097 = vmatpush.bf16.msra.mxu0 %v3891
      %4098 = vmatpush.bf16.msra.mxu0 %v3890
      %4099 = vmatpush.bf16.msra.mxu0 %v3889
      %4100 = vmatpush.bf16.msra.mxu0 %v3888
      %4101 = vmatpush.bf16.msra.mxu0 %v3887
      %4102 = vmatmul.bf16.gmra.mxu0 %v3506
      %v4103 = vpop.f32.mrf.mxu0
      %v4104 = vadd.f32 %v4075, %v4103
      %v4105 = vpop.f32.mrf.mxu0
      %v4106 = vadd.f32 %v4077, %v4105
      %4107 = vmatmul.bf16.gmra.mxu0 %v3515
      %v4108 = vpop.f32.mrf.mxu0
      %v4109 = vadd.f32 %v4080, %v4108
      %v4110 = vpop.f32.mrf.mxu0
      %v4111 = vadd.f32 %v4082, %v4110
      %4112 = vmatmul.bf16.gmra.mxu0 %v3524
      %v4113 = vpop.f32.mrf.mxu0
      %v4114 = vadd.f32 %v4085, %v4113
      %v4115 = vpop.f32.mrf.mxu0
      %v4116 = vadd.f32 %v4087, %v4115
      %4117 = vmatmul.bf16.gmra.mxu0 %v3533
      %v4118 = vpop.f32.mrf.mxu0
      %v4119 = vadd.f32 %v4090, %v4118
      %v4120 = vpop.f32.mrf.mxu0
      %v4121 = vadd.f32 %v4092, %v4120
      %4122 = vdwg.mxu0
      %4123 = vmatpush.bf16.msra.mxu0 %v3902
      %4124 = vmatpush.bf16.msra.mxu0 %v3901
      %4125 = vmatpush.bf16.msra.mxu0 %v3900
      %4126 = vmatpush.bf16.msra.mxu0 %v3899
      %4127 = vmatpush.bf16.msra.mxu0 %v3898
      %4128 = vmatpush.bf16.msra.mxu0 %v3897
      %4129 = vmatpush.bf16.msra.mxu0 %v3896
      %4130 = vmatpush.bf16.msra.mxu0 %v3895
      %4131 = vmatmul.bf16.gmra.mxu0 %v3507
      %v4132 = vpop.f32.mrf.mxu0
      %v4133 = vadd.f32 %v4104, %v4132
      %v4134 = vpop.f32.mrf.mxu0
      %v4135 = vadd.f32 %v4106, %v4134
      %4136 = vmatmul.bf16.gmra.mxu0 %v3516
      %v4137 = vpop.f32.mrf.mxu0
      %v4138 = vadd.f32 %v4109, %v4137
      %v4139 = vpop.f32.mrf.mxu0
      %v4140 = vadd.f32 %v4111, %v4139
      %4141 = vmatmul.bf16.gmra.mxu0 %v3525
      %v4142 = vpop.f32.mrf.mxu0
      %v4143 = vadd.f32 %v4114, %v4142
      %v4144 = vpop.f32.mrf.mxu0
      %v4145 = vadd.f32 %v4116, %v4144
      %4146 = vmatmul.bf16.gmra.mxu0 %v3534
      %v4147 = vpop.f32.mrf.mxu0
      %v4148 = vadd.f32 %v4119, %v4147
      %v4149 = vpop.f32.mrf.mxu0
      %v4150 = vadd.f32 %v4121, %v4149
      %4151 = vdwg.mxu0
      %4152 = vmatpush.bf16.msra.mxu0 %v3910
      %4153 = vmatpush.bf16.msra.mxu0 %v3909
      %4154 = vmatpush.bf16.msra.mxu0 %v3908
      %4155 = vmatpush.bf16.msra.mxu0 %v3907
      %4156 = vmatpush.bf16.msra.mxu0 %v3906
      %4157 = vmatpush.bf16.msra.mxu0 %v3905
      %4158 = vmatpush.bf16.msra.mxu0 %v3904
      %4159 = vmatpush.bf16.msra.mxu0 %v3903
      %4160 = vmatmul.bf16.gmra.mxu0 %v3508
      %v4161 = vpop.f32.mrf.mxu0
      %v4162 = vadd.f32 %v4133, %v4161
      %v4163 = vpop.f32.mrf.mxu0
      %v4164 = vadd.f32 %v4135, %v4163
      %4165 = vmatmul.bf16.gmra.mxu0 %v3517
      %v4166 = vpop.f32.mrf.mxu0
      %v4167 = vadd.f32 %v4138, %v4166
      %v4168 = vpop.f32.mrf.mxu0
      %v4169 = vadd.f32 %v4140, %v4168
      %4170 = vmatmul.bf16.gmra.mxu0 %v3526
      %v4171 = vpop.f32.mrf.mxu0
      %v4172 = vadd.f32 %v4143, %v4171
      %v4173 = vpop.f32.mrf.mxu0
      %v4174 = vadd.f32 %v4145, %v4173
      %4175 = vmatmul.bf16.gmra.mxu0 %v3535
      %v4176 = vpop.f32.mrf.mxu0
      %v4177 = vadd.f32 %v4148, %v4176
      %v4178 = vpop.f32.mrf.mxu0
      %v4179 = vadd.f32 %v4150, %v4178
      %4180 = vdwg.mxu0
      %4181 = vmatpush.bf16.msra.mxu0 %v3918
      %4182 = vmatpush.bf16.msra.mxu0 %v3917
      %4183 = vmatpush.bf16.msra.mxu0 %v3916
      %4184 = vmatpush.bf16.msra.mxu0 %v3915
      %4185 = vmatpush.bf16.msra.mxu0 %v3914
      %4186 = vmatpush.bf16.msra.mxu0 %v3913
      %4187 = vmatpush.bf16.msra.mxu0 %v3912
      %4188 = vmatpush.bf16.msra.mxu0 %v3911
      %4189 = vmatmul.bf16.gmra.mxu0 %v3509
      %v4190 = vpop.f32.mrf.mxu0
      %v4191 = vadd.f32 %v4162, %v4190
      %v4192 = vpop.f32.mrf.mxu0
      %v4193 = vadd.f32 %v4164, %v4192
      %4194 = vmatmul.bf16.gmra.mxu0 %v3518
      %v4195 = vpop.f32.mrf.mxu0
      %v4196 = vadd.f32 %v4167, %v4195
      %v4197 = vpop.f32.mrf.mxu0
      %v4198 = vadd.f32 %v4169, %v4197
      %4199 = vmatmul.bf16.gmra.mxu0 %v3527
      %v4200 = vpop.f32.mrf.mxu0
      %v4201 = vadd.f32 %v4172, %v4200
      %v4202 = vpop.f32.mrf.mxu0
      %v4203 = vadd.f32 %v4174, %v4202
      %4204 = vmatmul.bf16.gmra.mxu0 %v3536
      %v4205 = vpop.f32.mrf.mxu0
      %v4206 = vadd.f32 %v4177, %v4205
      %v4207 = vpop.f32.mrf.mxu0
      %v4208 = vadd.f32 %v4179, %v4207
      %4209 = vdwg.mxu0
      %4210 = vmatpush.bf16.msra.mxu0 %v3926
      %4211 = vmatpush.bf16.msra.mxu0 %v3925
      %4212 = vmatpush.bf16.msra.mxu0 %v3924
      %4213 = vmatpush.bf16.msra.mxu0 %v3923
      %4214 = vmatpush.bf16.msra.mxu0 %v3922
      %4215 = vmatpush.bf16.msra.mxu0 %v3921
      %4216 = vmatpush.bf16.msra.mxu0 %v3920
      %4217 = vmatpush.bf16.msra.mxu0 %v3919
      %4218 = vmatmul.bf16.gmra.mxu0 %v3510
      %v4219 = vpop.f32.mrf.mxu0
      %v4220 = vadd.f32 %v4191, %v4219
      %v4221 = vpop.f32.mrf.mxu0
      %v4222 = vadd.f32 %v4193, %v4221
      %4223 = vmatmul.bf16.gmra.mxu0 %v3519
      %v4224 = vpop.f32.mrf.mxu0
      %v4225 = vadd.f32 %v4196, %v4224
      %v4226 = vpop.f32.mrf.mxu0
      %v4227 = vadd.f32 %v4198, %v4226
      %4228 = vmatmul.bf16.gmra.mxu0 %v3528
      %v4229 = vpop.f32.mrf.mxu0
      %v4230 = vadd.f32 %v4201, %v4229
      %v4231 = vpop.f32.mrf.mxu0
      %v4232 = vadd.f32 %v4203, %v4231
      %4233 = vmatmul.bf16.gmra.mxu0 %v3537
      %v4234 = vpop.f32.mrf.mxu0
      %v4235 = vadd.f32 %v4206, %v4234
      %v4236 = vpop.f32.mrf.mxu0
      %v4237 = vadd.f32 %v4208, %v4236
      %4238 = vdwg.mxu0
      %4239 = vmatpush.bf16.msra.mxu0 %v3934
      %4240 = vmatpush.bf16.msra.mxu0 %v3933
      %4241 = vmatpush.bf16.msra.mxu0 %v3932
      %4242 = vmatpush.bf16.msra.mxu0 %v3931
      %4243 = vmatpush.bf16.msra.mxu0 %v3930
      %4244 = vmatpush.bf16.msra.mxu0 %v3929
      %4245 = vmatpush.bf16.msra.mxu0 %v3928
      %4246 = vmatpush.bf16.msra.mxu0 %v3927
      %4247 = vmatmul.bf16.gmra.mxu0 %v3511
      %v4248 = vpop.f32.mrf.mxu0
      %v4249 = vadd.f32 %v4220, %v4248
      %v4250 = vpop.f32.mrf.mxu0
      %v4251 = vadd.f32 %v4222, %v4250
      %4252 = vmatmul.bf16.gmra.mxu0 %v3520
      %v4253 = vpop.f32.mrf.mxu0
      %v4254 = vadd.f32 %v4225, %v4253
      %v4255 = vpop.f32.mrf.mxu0
      %v4256 = vadd.f32 %v4227, %v4255
      %4257 = vmatmul.bf16.gmra.mxu0 %v3529
      %v4258 = vpop.f32.mrf.mxu0
      %v4259 = vadd.f32 %v4230, %v4258
      %v4260 = vpop.f32.mrf.mxu0
      %v4261 = vadd.f32 %v4232, %v4260
      %4262 = vmatmul.bf16.gmra.mxu0 %v3538
      %v4263 = vpop.f32.mrf.mxu0
      %v4264 = vadd.f32 %v4235, %v4263
      %v4265 = vpop.f32.mrf.mxu0
      %v4266 = vadd.f32 %v4237, %v4265
      %4267 = vdwg.mxu0
      %v4268 = vpack.c.bf16 %v4249, %v4249
      %v4269 = vpack.c.bf16 %v4251, %v4251
      %v4270 = vpack.c.bf16 %v4254, %v4254
      %v4271 = vpack.c.bf16 %v4256, %v4256
      %v4272 = vpack.c.bf16 %v4259, %v4259
      %v4273 = vpack.c.bf16 %v4261, %v4261
      %v4274 = vpack.c.bf16 %v4264, %v4264
      %v4275 = vpack.c.bf16 %v4266, %v4266
      %4276 = vst [vmem:[%s280] sm:$0xf] %v4268
      %4277 = vst [vmem:[%s280 + $0x4] sm:$0xf] %v4269
      %4278 = vst [vmem:[%s280 + $0x8] sm:$0xf] %v4270
      %4279 = vst [vmem:[%s280 + $0xc] sm:$0xf] %v4271
      %4280 = vst [vmem:[%s280 + $0x10] sm:$0xf] %v4272
      %4281 = vst [vmem:[%s280 + $0x14] sm:$0xf] %v4273
      %4282 = vst [vmem:[%s280 + $0x18] sm:$0xf] %v4274
      %4283 = vst [vmem:[%s280 + $0x1c] sm:$0xf] %v4275
      %p4284 = scmp.lt.s32.totalorder %s18, 1
      %s4285 = scalar_select %p4284, %s18, 1
      %s4286 = smul.addr %s4285, 8
      %s4287 = smul.addr %s4286, 4
      %s4288 = scalar_lea.vmem %s7, %s4287
      // Predicated region
      $region49: #{_lambda_.3} parent=47 // pred_check
        %p4289 = pneg %p188
      $region50: #{_lambda_.3} parent=47 // pred_check_branch
        %4291 = sbr.rel (%p4289) target = $region52
      $region51: #{_lambda_.3} parent=47 // pred_region
        _
      $region52: #{_lambda_.3} parent=47 // pred_fallthru
        _
    $region48: #{_lambda_.3} parent=5 // pred_fallthru
      _
    %p4292 = scmp.le.s32.totalorder 2, %s13
    // Predicated region
    $region53: #{_lambda_.3} parent=5 // pred_check
      %p4293 = pneg %p4292
    $region54: #{_lambda_.3} parent=5 // pred_check_branch
      %4295 = sbr.rel (%p4293) target = $region56
    $region55: #{_lambda_.3} parent=5 // pred_region
      %s4296 = ssub.s32 %s13, 2
      // Predicated region
      $region57: #{_lambda_.3} parent=55 // pred_check
        %p4297 = pneg %p194
      $region58: #{_lambda_.3} parent=55 // pred_check_branch
        %4299 = sbr.rel (%p4297) target = $region60
      $region59: #{_lambda_.3} parent=55 // pred_region
        %p4300 = scmp.lt.s32.totalorder %s19, 1
        %s4301 = scalar_select %p4300, %s19, 1
        %s4302 = smul.addr %s4301, 8
        %s4303 = smul.addr %s4302, 4
        %s4304 = scalar_lea.vmem %s7, %s4303
      $region60: #{_lambda_.3} parent=55 // pred_fallthru
        _
    $region56: #{_lambda_.3} parent=5 // pred_fallthru
      _
  $region6: #{_lambda_.3} parent=0 // loop_footer
    %s17 = sadd.s32 1, %s13
  $region7: #{_lambda_.3} parent=0 // loop_footer_branch
    %12 = sbr.rel target = $region3
  $region8: #{_lambda_.3} parent=0 // loop_exit
    _

// kernel: _lambda_.2
$region0: #{_lambda_.2}
  #allocation0 [shape = 'u32[]', space=smem, size = 0x4, offset = 0x4, fixed_abs, tag = 'smem constant byte address 0x4 - core index']
  #allocation1 [shape = 'u32[72,128]{1,0:T(1,128)}', space=vmem, size = 0x9000, scoped, tag = 'internal scratch']
  #allocation2 [shape = 'bf16[4,9,9,128]{3,2,1,0:T(8,128)(2,1)}', space=vmem, size = 0x24000, scoped, tag = 'scratch operand']
  #allocation3 [shape = 'bf16[64,1152]{1,0:T(8,128)(2,1)}', space=vmem, size = 0x24000, scoped, tag = 'scratch operand']
  #allocation4 [shape = 'bf16[10,10,128]{2,1,0:T(8,128)(2,1)}', space=vmem, size = 0xa000, scoped, tag = 'scratch operand']
  #allocation5 [shape = 'bf16[64,1152]{1,0:T(8,128)(2,1)}', space=vmem, size = 0x24000, scoped, tag = 'scratch operand']
  %s0 = inlined_call_operand.vmem [shape: bf16[16,2,8,256], index: 0, kind: input, shape index: {}]
  %s1 = inlined_call_operand.vmem [shape: bf16[1152,128], index: 1, kind: input, shape index: {}]
  %s2 = inlined_call_operand.vmem [shape: bf16[1152,128], index: 2, kind: input, shape index: {}]
  %s3 = inlined_call_operand.vmem [shape: f32[1,128], index: 3, kind: input, shape index: {}]
  %s4 = inlined_call_operand.vmem [shape: f32[1,128], index: 4, kind: input, shape index: {}]
  %s5 = inlined_call_operand.vmem [shape: f32[1,128], index: 5, kind: input, shape index: {}]
  %s6 = inlined_call_operand.vmem [shape: f32[1,128], index: 6, kind: input, shape index: {}]
  %s7 = inlined_call_operand.vmem [shape: bf16[128,128], index: 7, kind: input, shape index: {}]
  %s8 = inlined_call_operand.vmem [shape: bf16[2,8,8,128], index: 8, kind: output, shape index: {}]
  %s9 = sld [smem:[#allocation0]]
  $region65: #{_lambda_.2} parent=0
    _
  %s11 = ssub.s32 1, %s9
  %s12 = scalar_select 0, %s11, %s9
  loop: start=0, step=1, limit=4
  $region2: #{_lambda_.2} parent=0 // loop_pre_header
    _
  $region3: #{_lambda_.2} parent=0 // loop_header
    %s14 = sphi 0, %s18
    %p15 = scmp.ge.s32.totalorder %s14, 4
    %s24 = sphi 0, %s26
    %s27 = sphi 0, %s24
    %s28 = sphi 0, %s27
    %s44 = sphi 0, %s28
    %s48 = sphi 0, %s48
    %s50 = sphi 0, %s48
    %s51 = sphi 0, %s50
    %s65 = sphi 0, %s51
    %s69 = sphi 0, %s69
    %s71 = sphi 0, %s69
    %s72 = sphi 0, %s71
    %s86 = sphi 0, %s72
    %s90 = sphi 0, %s90
    %s92 = sphi 0, %s90
    %s93 = sphi 0, %s92
    %s107 = sphi 0, %s93
    %s111 = sphi 0, %s111
    %s113 = sphi 0, %s111
    %s114 = sphi 0, %s113
    %s128 = sphi 0, %s114
    %s132 = sphi 0, %s132
    %s134 = sphi 0, %s132
    %s135 = sphi 0, %s134
    %s149 = sphi 0, %s135
    %s153 = sphi 0, %s153
    %s155 = sphi 0, %s153
    %s156 = sphi 0, %s155
    %s170 = sphi 0, %s156
    %s174 = sphi 0, %s174
    %s176 = sphi 0, %s174
    %s177 = sphi 0, %s176
    %s191 = sphi 0, %s177
    %s197 = sphi 0, %s199
    %s200 = sphi 0, %s197
    %s201 = sphi 0, %s200
    %s217 = sphi 0, %s201
  $region4: #{_lambda_.2} parent=0 // loop_header_branch
    %17 = sbr.rel (%p15) target = $region8
  $region5: #{_lambda_.2} parent=0 // loop_body
    %s19 = ssub.s32 %s14, 1
    %s20 = ssub.s32 %s14, 2
    %s21 = sadd.s32 %s14, 1
    %s22 = ssub.s32 %s14, %s21
    %p23 = scmp.eq.s32.totalorder %s22, 0
    %s25 = sadd.s32 %s24, 1
    %s26 = scalar_select %p23, %s24, %s25
    %p29 = pneg %p23
    %p30 = scmp.eq.s32.totalorder %s14, 1
    %p31 = por %p29, %p30
    %p32 = scmp.ne.s32.totalorder %s24, %s27
    %p33 = scmp.eq.s32.totalorder %s14, 0
    %p34 = por %p32, %p33
    %p35 = scmp.ne.s32.totalorder %s24, %s27
    %p36 = scmp.eq.s32.totalorder %s19, 1
    %p37 = por %p35, %p36
    %p38 = scmp.ne.s32.totalorder %s27, %s28
    %p39 = scmp.eq.s32.totalorder %s19, 0
    %p40 = por %p38, %p39
    %p41 = scmp.ne.s32.totalorder %s27, %s28
    %p42 = scmp.eq.s32.totalorder %s20, 1
    %p43 = por %p41, %p42
    %p45 = scmp.ne.s32.totalorder %s28, %s44
    %p46 = scmp.eq.s32.totalorder %s20, 0
    %p47 = por %p45, %p46
    %s49 = sadd.s32 %s48, 1
    %p52 = scmp.eq.s32.totalorder %s14, 1
    %p53 = scmp.ne.s32.totalorder %s48, %s50
    %p54 = scmp.eq.s32.totalorder %s14, 0
    %p55 = por %p53, %p54
    %p56 = scmp.ne.s32.totalorder %s48, %s50
    %p57 = scmp.eq.s32.totalorder %s19, 1
    %p58 = por %p56, %p57
    %p59 = scmp.ne.s32.totalorder %s50, %s51
    %p60 = scmp.eq.s32.totalorder %s19, 0
    %p61 = por %p59, %p60
    %p62 = scmp.ne.s32.totalorder %s50, %s51
    %p63 = scmp.eq.s32.totalorder %s20, 1
    %p64 = por %p62, %p63
    %p66 = scmp.ne.s32.totalorder %s51, %s65
    %p67 = scmp.eq.s32.totalorder %s20, 0
    %p68 = por %p66, %p67
    %s70 = sadd.s32 %s69, 1
    %p73 = scmp.eq.s32.totalorder %s14, 1
    %p74 = scmp.ne.s32.totalorder %s69, %s71
    %p75 = scmp.eq.s32.totalorder %s14, 0
    %p76 = por %p74, %p75
    %p77 = scmp.ne.s32.totalorder %s69, %s71
    %p78 = scmp.eq.s32.totalorder %s19, 1
    %p79 = por %p77, %p78
    %p80 = scmp.ne.s32.totalorder %s71, %s72
    %p81 = scmp.eq.s32.totalorder %s19, 0
    %p82 = por %p80, %p81
    %p83 = scmp.ne.s32.totalorder %s71, %s72
    %p84 = scmp.eq.s32.totalorder %s20, 1
    %p85 = por %p83, %p84
    %p87 = scmp.ne.s32.totalorder %s72, %s86
    %p88 = scmp.eq.s32.totalorder %s20, 0
    %p89 = por %p87, %p88
    %s91 = sadd.s32 %s90, 1
    %p94 = scmp.eq.s32.totalorder %s14, 1
    %p95 = scmp.ne.s32.totalorder %s90, %s92
    %p96 = scmp.eq.s32.totalorder %s14, 0
    %p97 = por %p95, %p96
    %p98 = scmp.ne.s32.totalorder %s90, %s92
    %p99 = scmp.eq.s32.totalorder %s19, 1
    %p100 = por %p98, %p99
    %p101 = scmp.ne.s32.totalorder %s92, %s93
    %p102 = scmp.eq.s32.totalorder %s19, 0
    %p103 = por %p101, %p102
    %p104 = scmp.ne.s32.totalorder %s92, %s93
    %p105 = scmp.eq.s32.totalorder %s20, 1
    %p106 = por %p104, %p105
    %p108 = scmp.ne.s32.totalorder %s93, %s107
    %p109 = scmp.eq.s32.totalorder %s20, 0
    %p110 = por %p108, %p109
    %s112 = sadd.s32 %s111, 1
    %p115 = scmp.eq.s32.totalorder %s14, 1
    %p116 = scmp.ne.s32.totalorder %s111, %s113
    %p117 = scmp.eq.s32.totalorder %s14, 0
    %p118 = por %p116, %p117
    %p119 = scmp.ne.s32.totalorder %s111, %s113
    %p120 = scmp.eq.s32.totalorder %s19, 1
    %p121 = por %p119, %p120
    %p122 = scmp.ne.s32.totalorder %s113, %s114
    %p123 = scmp.eq.s32.totalorder %s19, 0
    %p124 = por %p122, %p123
    %p125 = scmp.ne.s32.totalorder %s113, %s114
    %p126 = scmp.eq.s32.totalorder %s20, 1
    %p127 = por %p125, %p126
    %p129 = scmp.ne.s32.totalorder %s114, %s128
    %p130 = scmp.eq.s32.totalorder %s20, 0
    %p131 = por %p129, %p130
    %s133 = sadd.s32 %s132, 1
    %p136 = scmp.eq.s32.totalorder %s14, 1
    %p137 = scmp.ne.s32.totalorder %s132, %s134
    %p138 = scmp.eq.s32.totalorder %s14, 0
    %p139 = por %p137, %p138
    %p140 = scmp.ne.s32.totalorder %s132, %s134
    %p141 = scmp.eq.s32.totalorder %s19, 1
    %p142 = por %p140, %p141
    %p143 = scmp.ne.s32.totalorder %s134, %s135
    %p144 = scmp.eq.s32.totalorder %s19, 0
    %p145 = por %p143, %p144
    %p146 = scmp.ne.s32.totalorder %s134, %s135
    %p147 = scmp.eq.s32.totalorder %s20, 1
    %p148 = por %p146, %p147
    %p150 = scmp.ne.s32.totalorder %s135, %s149
    %p151 = scmp.eq.s32.totalorder %s20, 0
    %p152 = por %p150, %p151
    %s154 = sadd.s32 %s153, 1
    %p157 = scmp.eq.s32.totalorder %s14, 1
    %p158 = scmp.ne.s32.totalorder %s153, %s155
    %p159 = scmp.eq.s32.totalorder %s14, 0
    %p160 = por %p158, %p159
    %p161 = scmp.ne.s32.totalorder %s153, %s155
    %p162 = scmp.eq.s32.totalorder %s19, 1
    %p163 = por %p161, %p162
    %p164 = scmp.ne.s32.totalorder %s155, %s156
    %p165 = scmp.eq.s32.totalorder %s19, 0
    %p166 = por %p164, %p165
    %p167 = scmp.ne.s32.totalorder %s155, %s156
    %p168 = scmp.eq.s32.totalorder %s20, 1
    %p169 = por %p167, %p168
    %p171 = scmp.ne.s32.totalorder %s156, %s170
    %p172 = scmp.eq.s32.totalorder %s20, 0
    %p173 = por %p171, %p172
    %s175 = sadd.s32 %s174, 1
    %p178 = scmp.eq.s32.totalorder %s14, 1
    %p179 = scmp.ne.s32.totalorder %s174, %s176
    %p180 = scmp.eq.s32.totalorder %s14, 0
    %p181 = por %p179, %p180
    %p182 = scmp.ne.s32.totalorder %s174, %s176
    %p183 = scmp.eq.s32.totalorder %s19, 1
    %p184 = por %p182, %p183
    %p185 = scmp.ne.s32.totalorder %s176, %s177
    %p186 = scmp.eq.s32.totalorder %s19, 0
    %p187 = por %p185, %p186
    %p188 = scmp.ne.s32.totalorder %s176, %s177
    %p189 = scmp.eq.s32.totalorder %s20, 1
    %p190 = por %p188, %p189
    %p192 = scmp.ne.s32.totalorder %s177, %s191
    %p193 = scmp.eq.s32.totalorder %s20, 0
    %p194 = por %p192, %p193
    %s195 = ssub.s32 %s14, %s21
    %p196 = scmp.eq.s32.totalorder %s195, 0
    %s198 = sadd.s32 %s197, 1
    %s199 = scalar_select %p196, %s197, %s198
    %p202 = pneg %p196
    %p203 = scmp.eq.s32.totalorder %s14, 1
    %p204 = por %p202, %p203
    %p205 = scmp.ne.s32.totalorder %s197, %s200
    %p206 = scmp.eq.s32.totalorder %s14, 0
    %p207 = por %p205, %p206
    %p208 = scmp.ne.s32.totalorder %s197, %s200
    %p209 = scmp.eq.s32.totalorder %s19, 1
    %p210 = por %p208, %p209
    %p211 = scmp.ne.s32.totalorder %s200, %s201
    %p212 = scmp.eq.s32.totalorder %s19, 0
    %p213 = por %p211, %p212
    %p214 = scmp.ne.s32.totalorder %s200, %s201
    %p215 = scmp.eq.s32.totalorder %s20, 1
    %p216 = por %p214, %p215
    %p218 = scmp.ne.s32.totalorder %s201, %s217
    %p219 = scmp.eq.s32.totalorder %s20, 0
    %p220 = por %p218, %p219
    %p221 = scmp.le.s32.totalorder 1, %s14
    %p222 = scmp.lt.s32.totalorder %s14, 3
    %p223 = pnand %p221, %p222
    %p224 = pneg %p223
    // Predicated region
    $region9: #{_lambda_.2} parent=5 // pred_check
      _
    $region10: #{_lambda_.2} parent=5 // pred_check_branch
      %226 = sbr.rel (%p223) target = $region12
    $region11: #{_lambda_.2} parent=5 // pred_region
      %s227 = ssub.s32 %s14, 1
      // Predicated region
      $region13: #{_lambda_.2} parent=11 // pred_check
        %p228 = pneg %p61
      $region14: #{_lambda_.2} parent=11 // pred_check_branch
        %230 = sbr.rel (%p228) target = $region16
      $region15: #{_lambda_.2} parent=11 // pred_region
        _
      $region16: #{_lambda_.2} parent=11 // pred_fallthru
        _
      // Predicated region
      $region17: #{_lambda_.2} parent=11 // pred_check
        %p231 = pneg %p82
      $region18: #{_lambda_.2} parent=11 // pred_check_branch
        %233 = sbr.rel (%p231) target = $region20
      $region19: #{_lambda_.2} parent=11 // pred_region
        _
      $region20: #{_lambda_.2} parent=11 // pred_fallthru
        _
      // Predicated region
      $region21: #{_lambda_.2} parent=11 // pred_check
        %p234 = pneg %p103
      $region22: #{_lambda_.2} parent=11 // pred_check_branch
        %236 = sbr.rel (%p234) target = $region24
      $region23: #{_lambda_.2} parent=11 // pred_region
        _
      $region24: #{_lambda_.2} parent=11 // pred_fallthru
        _
      // Predicated region
      $region25: #{_lambda_.2} parent=11 // pred_check
        %p237 = pneg %p124
      $region26: #{_lambda_.2} parent=11 // pred_check_branch
        %239 = sbr.rel (%p237) target = $region28
      $region27: #{_lambda_.2} parent=11 // pred_region
        _
      $region28: #{_lambda_.2} parent=11 // pred_fallthru
        _
      // Predicated region
      $region29: #{_lambda_.2} parent=11 // pred_check
        %p240 = pneg %p145
      $region30: #{_lambda_.2} parent=11 // pred_check_branch
        %242 = sbr.rel (%p240) target = $region32
      $region31: #{_lambda_.2} parent=11 // pred_region
        _
      $region32: #{_lambda_.2} parent=11 // pred_fallthru
        _
      // Predicated region
      $region33: #{_lambda_.2} parent=11 // pred_check
        %p243 = pneg %p166
      $region34: #{_lambda_.2} parent=11 // pred_check_branch
        %245 = sbr.rel (%p243) target = $region36
      $region35: #{_lambda_.2} parent=11 // pred_region
        _
      $region36: #{_lambda_.2} parent=11 // pred_fallthru
        _
      // Predicated region
      $region37: #{_lambda_.2} parent=11 // pred_check
        %p246 = pneg %p187
      $region38: #{_lambda_.2} parent=11 // pred_check_branch
        %248 = sbr.rel (%p246) target = $region40
      $region39: #{_lambda_.2} parent=11 // pred_region
        _
      $region40: #{_lambda_.2} parent=11 // pred_fallthru
        _
    $region12: #{_lambda_.2} parent=5 // pred_fallthru
      _
    %p249 = scmp.lt.s32.totalorder %s14, 2
    // Predicated region
    $region41: #{_lambda_.2} parent=5 // pred_check
      %p250 = pneg %p249
    $region42: #{_lambda_.2} parent=5 // pred_check_branch
      %252 = sbr.rel (%p250) target = $region44
    $region43: #{_lambda_.2} parent=5 // pred_region
      // Predicated region
      $region45: #{_lambda_.2} parent=43 // pred_check
        %p253 = pneg %p34
      $region46: #{_lambda_.2} parent=43 // pred_check_branch
        %255 = sbr.rel (%p253) target = $region48
      $region47: #{_lambda_.2} parent=43 // pred_region
        %s256 = smul.u32 8, %s14
        %p257 = scmp.lt.s32.totalorder %s256, 15
        %s258 = scalar_select %p257, %s256, 15
        %s259 = smul.addr %s258, 4
        %s260 = smul.addr %s259, 4
        %s261 = scalar_lea.vmem %s0, %s260
        %s262 = smul.u32 8, %s14
      $region48: #{_lambda_.2} parent=43 // pred_fallthru
        _
    $region44: #{_lambda_.2} parent=5 // pred_fallthru
      _
    %p263 = scmp.le.s32.totalorder 1, %s14
    %p264 = scmp.lt.s32.totalorder %s14, 3
    %p265 = pnand %p263, %p264
    %p266 = pneg %p265
    // Predicated region
    $region49: #{_lambda_.2} parent=5 // pred_check
      _
    $region50: #{_lambda_.2} parent=5 // pred_check_branch
      %268 = sbr.rel (%p265) target = $region52
    $region51: #{_lambda_.2} parent=5 // pred_region
      %s269 = ssub.s32 %s14, 1
      %s270 = smul.u32 8, %s19
      %p271 = scmp.lt.s32.totalorder %s270, 15
      %s272 = scalar_select %p271, %s270, 15
      %s273 = smul.addr %s272, 4
      %s274 = smul.addr %s273, 4
      %s275 = scalar_lea.vmem %s0, %s274
      %p276 = pneg %p40
      %p277 = pneg %p37
      %p278 = pneg %p61
      %p279 = pneg %p58
      %p280 = pneg %p82
      %p281 = pneg %p79
      %p282 = pneg %p103
      %p283 = pneg %p100
      %p284 = pneg %p124
      %p285 = pneg %p121
      %p286 = pneg %p145
      %p287 = pneg %p142
      %p288 = pneg %p166
      %p289 = pneg %p163
      %p290 = pneg %p187
      %p291 = pneg %p184
      %p292 = pneg %p213
      %p293 = pneg %p210
      %p294 = scmp.lt.s32.totalorder %s19, 1
      %s295 = scalar_select %p294, %s19, 1
      %s296 = smul.addr %s295, 8
      %s297 = smul.addr %s296, 4
      %s298 = scalar_lea.vmem %s8, %s297
      %s299 = smul.u32 8, %s19
      %p300 = scmp.lt.s32.totalorder %s299, 15
      %s301 = scalar_select %p300, %s299, 15
      %s302 = smul.addr %s301, 4
      %s303 = smul.addr %s302, 4
      %s304 = scalar_lea.vmem %s0, %s303
      %s305 = smul.u32 8, %s19
      %p306 = scmp.lt.s32.totalorder %s19, 1
      %s307 = scalar_select %p306, %s19, 1
      %s308 = smul.addr %s307, 8
      %s309 = smul.addr %s308, 4
      %s310 = scalar_lea.vmem %s8, %s309
      %312 = vst [vmem:[#allocation2] sm:$0xf] 0
      %vm313 = vcmask 1040384
      %vm314 = vsmask.f32 256
      %vm315 = vmand %vm313, %vm314
      %v316 = vld [vmem:[#allocation2 + $0x4] sm:$0x1]
      %v317 = vsel %vm315, 0, %v316
      %318 = vst [vmem:[#allocation2 + $0x4] sm:$0x1] %v317
      %319 = vst [vmem:[#allocation2 + $0x8] sm:$0xf] 0
      %v320 = vld [vmem:[#allocation2 + $0xc] sm:$0x1]
      %v321 = vsel %vm315, 0, %v320
      %322 = vst [vmem:[#allocation2 + $0xc] sm:$0x1] %v321
      %323 = vst [vmem:[#allocation2 + $0x10] sm:$0xf] 0
      %v324 = vld [vmem:[#allocation2 + $0x14] sm:$0x1]
      %v325 = vsel %vm315, 0, %v324
      %326 = vst [vmem:[#allocation2 + $0x14] sm:$0x1] %v325
      %327 = vst [vmem:[#allocation2 + $0x18] sm:$0xf] 0
      %v328 = vld [vmem:[#allocation2 + $0x1c] sm:$0x1]
      %v329 = vsel %vm315, 0, %v328
      %330 = vst [vmem:[#allocation2 + $0x1c] sm:$0x1] %v329
      %331 = vst [vmem:[#allocation2 + $0x20] sm:$0xf] 0
      %v332 = vld [vmem:[#allocation2 + $0x24] sm:$0x1]
      %v333 = vsel %vm315, 0, %v332
      %334 = vst [vmem:[#allocation2 + $0x24] sm:$0x1] %v333
      %335 = vst [vmem:[#allocation2 + $0x28] sm:$0xf] 0
      %v336 = vld [vmem:[#allocation2 + $0x2c] sm:$0x1]
      %v337 = vsel %vm315, 0, %v336
      %338 = vst [vmem:[#allocation2 + $0x2c] sm:$0x1] %v337
      %339 = vst [vmem:[#allocation2 + $0x30] sm:$0xf] 0
      %v340 = vld [vmem:[#allocation2 + $0x34] sm:$0x1]
      %v341 = vsel %vm315, 0, %v340
      %342 = vst [vmem:[#allocation2 + $0x34] sm:$0x1] %v341
      %343 = vst [vmem:[#allocation2 + $0x38] sm:$0xf] 0
      %v344 = vld [vmem:[#allocation2 + $0x3c] sm:$0x1]
      %v345 = vsel %vm315, 0, %v344
      %346 = vst [vmem:[#allocation2 + $0x3c] sm:$0x1] %v345
      %347 = vst [vmem:[#allocation2 + $0x40] sm:$0xf] 0
      %v348 = vld [vmem:[#allocation2 + $0x44] sm:$0x1]
      %v349 = vsel %vm315, 0, %v348
      %350 = vst [vmem:[#allocation2 + $0x44] sm:$0x1] %v349
      %351 = vst [vmem:[#allocation2 + $0x48] sm:$0xf] 0
      %v352 = vld [vmem:[#allocation2 + $0x4c] sm:$0x1]
      %v353 = vsel %vm315, 0, %v352
      %354 = vst [vmem:[#allocation2 + $0x4c] sm:$0x1] %v353
      %355 = vst [vmem:[#allocation2 + $0x50] sm:$0xf] 0
      %v356 = vld [vmem:[#allocation2 + $0x54] sm:$0x1]
      %v357 = vsel %vm315, 0, %v356
      %358 = vst [vmem:[#allocation2 + $0x54] sm:$0x1] %v357
      %359 = vst [vmem:[#allocation2 + $0x58] sm:$0xf] 0
      %v360 = vld [vmem:[#allocation2 + $0x5c] sm:$0x1]
      %v361 = vsel %vm315, 0, %v360
      %362 = vst [vmem:[#allocation2 + $0x5c] sm:$0x1] %v361
      %363 = vst [vmem:[#allocation2 + $0x60] sm:$0xf] 0
      %v364 = vld [vmem:[#allocation2 + $0x64] sm:$0x1]
      %v365 = vsel %vm315, 0, %v364
      %366 = vst [vmem:[#allocation2 + $0x64] sm:$0x1] %v365
      %367 = vst [vmem:[#allocation2 + $0x68] sm:$0xf] 0
      %v368 = vld [vmem:[#allocation2 + $0x6c] sm:$0x1]
      %v369 = vsel %vm315, 0, %v368
      %370 = vst [vmem:[#allocation2 + $0x6c] sm:$0x1] %v369
      %371 = vst [vmem:[#allocation2 + $0x70] sm:$0xf] 0
      %v372 = vld [vmem:[#allocation2 + $0x74] sm:$0x1]
      %v373 = vsel %vm315, 0, %v372
      %374 = vst [vmem:[#allocation2 + $0x74] sm:$0x1] %v373
      %375 = vst [vmem:[#allocation2 + $0x78] sm:$0xf] 0
      %v376 = vld [vmem:[#allocation2 + $0x7c] sm:$0x1]
      %v377 = vsel %vm315, 0, %v376
      %378 = vst [vmem:[#allocation2 + $0x7c] sm:$0x1] %v377
      %379 = vst [vmem:[#allocation2 + $0x80] sm:$0xf] 0
      %v380 = vld [vmem:[#allocation2 + $0x84] sm:$0x1]
      %v381 = vsel %vm315, 0, %v380
      %382 = vst [vmem:[#allocation2 + $0x84] sm:$0x1] %v381
      %383 = vst [vmem:[#allocation2 + $0x88] sm:$0xf] 0
      %v384 = vld [vmem:[#allocation2 + $0x8c] sm:$0x1]
      %v385 = vsel %vm315, 0, %v384
      %386 = vst [vmem:[#allocation2 + $0x8c] sm:$0x1] %v385
      %387 = vst [vmem:[#allocation2 + $0x90] sm:$0xf] 0
      %v388 = vld [vmem:[#allocation2 + $0x94] sm:$0x1]
      %v389 = vsel %vm315, 0, %v388
      %390 = vst [vmem:[#allocation2 + $0x94] sm:$0x1] %v389
      %391 = vst [vmem:[#allocation2 + $0x98] sm:$0xf] 0
      %v392 = vld [vmem:[#allocation2 + $0x9c] sm:$0x1]
      %v393 = vsel %vm315, 0, %v392
      %394 = vst [vmem:[#allocation2 + $0x9c] sm:$0x1] %v393
      %395 = vst [vmem:[#allocation2 + $0xa0] sm:$0xf] 0
      %v396 = vld [vmem:[#allocation2 + $0xa4] sm:$0x1]
      %v397 = vsel %vm315, 0, %v396
      %398 = vst [vmem:[#allocation2 + $0xa4] sm:$0x1] %v397
      %399 = vst [vmem:[#allocation2 + $0xa8] sm:$0xf] 0
      %v400 = vld [vmem:[#allocation2 + $0xac] sm:$0x1]
      %v401 = vsel %vm315, 0, %v400
      %402 = vst [vmem:[#allocation2 + $0xac] sm:$0x1] %v401
      %403 = vst [vmem:[#allocation2 + $0xb0] sm:$0xf] 0
      %v404 = vld [vmem:[#allocation2 + $0xb4] sm:$0x1]
      %v405 = vsel %vm315, 0, %v404
      %406 = vst [vmem:[#allocation2 + $0xb4] sm:$0x1] %v405
      %407 = vst [vmem:[#allocation2 + $0xb8] sm:$0xf] 0
      %v408 = vld [vmem:[#allocation2 + $0xbc] sm:$0x1]
      %v409 = vsel %vm315, 0, %v408
      %410 = vst [vmem:[#allocation2 + $0xbc] sm:$0x1] %v409
      %411 = vst [vmem:[#allocation2 + $0xc0] sm:$0xf] 0
      %v412 = vld [vmem:[#allocation2 + $0xc4] sm:$0x1]
      %v413 = vsel %vm315, 0, %v412
      %414 = vst [vmem:[#allocation2 + $0xc4] sm:$0x1] %v413
      %415 = vst [vmem:[#allocation2 + $0xc8] sm:$0xf] 0
      %v416 = vld [vmem:[#allocation2 + $0xcc] sm:$0x1]
      %v417 = vsel %vm315, 0, %v416
      %418 = vst [vmem:[#allocation2 + $0xcc] sm:$0x1] %v417
      %419 = vst [vmem:[#allocation2 + $0xd0] sm:$0xf] 0
      %v420 = vld [vmem:[#allocation2 + $0xd4] sm:$0x1]
      %v421 = vsel %vm315, 0, %v420
      %422 = vst [vmem:[#allocation2 + $0xd4] sm:$0x1] %v421
      %423 = vst [vmem:[#allocation2 + $0xd8] sm:$0xf] 0
      %v424 = vld [vmem:[#allocation2 + $0xdc] sm:$0x1]
      %v425 = vsel %vm315, 0, %v424
      %426 = vst [vmem:[#allocation2 + $0xdc] sm:$0x1] %v425
      %427 = vst [vmem:[#allocation2 + $0xe0] sm:$0xf] 0
      %v428 = vld [vmem:[#allocation2 + $0xe4] sm:$0x1]
      %v429 = vsel %vm315, 0, %v428
      %430 = vst [vmem:[#allocation2 + $0xe4] sm:$0x1] %v429
      %431 = vst [vmem:[#allocation2 + $0xe8] sm:$0xf] 0
      %v432 = vld [vmem:[#allocation2 + $0xec] sm:$0x1]
      %v433 = vsel %vm315, 0, %v432
      %434 = vst [vmem:[#allocation2 + $0xec] sm:$0x1] %v433
      %435 = vst [vmem:[#allocation2 + $0xf0] sm:$0xf] 0
      %v436 = vld [vmem:[#allocation2 + $0xf4] sm:$0x1]
      %v437 = vsel %vm315, 0, %v436
      %438 = vst [vmem:[#allocation2 + $0xf4] sm:$0x1] %v437
      %439 = vst [vmem:[#allocation2 + $0xf8] sm:$0xf] 0
      %v440 = vld [vmem:[#allocation2 + $0xfc] sm:$0x1]
      %v441 = vsel %vm315, 0, %v440
      %442 = vst [vmem:[#allocation2 + $0xfc] sm:$0x1] %v441
      %443 = vst [vmem:[#allocation2 + $0x100] sm:$0xf] 0
      %v444 = vld [vmem:[#allocation2 + $0x104] sm:$0x1]
      %v445 = vsel %vm315, 0, %v444
      %446 = vst [vmem:[#allocation2 + $0x104] sm:$0x1] %v445
      %447 = vst [vmem:[#allocation2 + $0x108] sm:$0xf] 0
      %v448 = vld [vmem:[#allocation2 + $0x10c] sm:$0x1]
      %v449 = vsel %vm315, 0, %v448
      %450 = vst [vmem:[#allocation2 + $0x10c] sm:$0x1] %v449
      %451 = vst [vmem:[#allocation2 + $0x110] sm:$0xf] 0
      %v452 = vld [vmem:[#allocation2 + $0x114] sm:$0x1]
      %v453 = vsel %vm315, 0, %v452
      %454 = vst [vmem:[#allocation2 + $0x114] sm:$0x1] %v453
      %455 = vst [vmem:[#allocation2 + $0x118] sm:$0xf] 0
      %v456 = vld [vmem:[#allocation2 + $0x11c] sm:$0x1]
      %v457 = vsel %vm315, 0, %v456
      %458 = vst [vmem:[#allocation2 + $0x11c] sm:$0x1] %v457
      %459 = vst [vmem:[#allocation4] sm:$0xf] 0
      %460 = vst [vmem:[#allocation4 + $0x4] sm:$0x1] 0
      %461 = vst [vmem:[#allocation4 + $0x8] sm:$0xf] 0
      %462 = vst [vmem:[#allocation4 + $0xc] sm:$0x1] 0
      %463 = vst [vmem:[#allocation4 + $0x10] sm:$0xf] 0
      %464 = vst [vmem:[#allocation4 + $0x14] sm:$0x1] 0
      %465 = vst [vmem:[#allocation4 + $0x18] sm:$0xf] 0
      %466 = vst [vmem:[#allocation4 + $0x1c] sm:$0x1] 0
      %467 = vst [vmem:[#allocation4 + $0x20] sm:$0xf] 0
      %468 = vst [vmem:[#allocation4 + $0x24] sm:$0x1] 0
      %469 = vst [vmem:[#allocation4 + $0x28] sm:$0xf] 0
      %470 = vst [vmem:[#allocation4 + $0x2c] sm:$0x1] 0
      %471 = vst [vmem:[#allocation4 + $0x30] sm:$0xf] 0
      %472 = vst [vmem:[#allocation4 + $0x34] sm:$0x1] 0
      %473 = vst [vmem:[#allocation4 + $0x38] sm:$0xf] 0
      %474 = vst [vmem:[#allocation4 + $0x3c] sm:$0x1] 0
      %475 = vst [vmem:[#allocation4 + $0x40] sm:$0xf] 0
      %476 = vst [vmem:[#allocation4 + $0x44] sm:$0x1] 0
      %477 = vst [vmem:[#allocation4 + $0x48] sm:$0xf] 0
      %478 = vst [vmem:[#allocation4 + $0x4c] sm:$0x1] 0
      %v479 = vld [vmem:[%s304] sm:$0xf]
      %v480 = vld [vmem:[%s304 + $0x10] sm:$0xf]
      %v481 = vld [vmem:[%s304 + $0x20] sm:$0xf]
      %v482 = vld [vmem:[%s304 + $0x30] sm:$0xf]
      %v483 = vld [vmem:[%s304 + $0x40] sm:$0xf]
      %v484 = vld [vmem:[%s304 + $0x50] sm:$0xf]
      %v485 = vld [vmem:[%s304 + $0x60] sm:$0xf]
      %v486 = vld [vmem:[%s304 + $0x70] sm:$0xf]
      %v487 = vunpack.c.l.bf16 %v479
      %v488 = vunpack.c.l.bf16 %v480
      %v489 = vunpack.c.l.bf16 %v481
      %v490 = vunpack.c.l.bf16 %v482
      %v491 = vunpack.c.l.bf16 %v483
      %v492 = vunpack.c.l.bf16 %v484
      %v493 = vunpack.c.l.bf16 %v485
      %v494 = vunpack.c.l.bf16 %v486
      %v495 = vld [vmem:[%s3] sm:$0x1]
      %v497 = vperm.slane %v495, 0
      %v499 = vmul.f32 %v487, %v497
      %v500 = vmul.f32 %v488, %v497
      %v501 = vmul.f32 %v489, %v497
      %v502 = vmul.f32 %v490, %v497
      %v503 = vmul.f32 %v491, %v497
      %v504 = vmul.f32 %v492, %v497
      %v505 = vmul.f32 %v493, %v497
      %v506 = vmul.f32 %v494, %v497
      %v507 = vld [vmem:[%s4] sm:$0x1]
      %v509 = vperm.slane %v507, 0
      %v511 = vadd.f32 %v499, %v509
      %v512 = vadd.f32 %v500, %v509
      %v513 = vadd.f32 %v501, %v509
      %v514 = vadd.f32 %v502, %v509
      %v515 = vadd.f32 %v503, %v509
      %v516 = vadd.f32 %v504, %v509
      %v517 = vadd.f32 %v505, %v509
      %v518 = vadd.f32 %v506, %v509
      %v519 = vmax.f32 %v511, 0.0
      %v520 = vmax.f32 %v512, 0.0
      %v521 = vmax.f32 %v513, 0.0
      %v522 = vmax.f32 %v514, 0.0
      %v523 = vmax.f32 %v515, 0.0
      %v524 = vmax.f32 %v516, 0.0
      %v525 = vmax.f32 %v517, 0.0
      %v526 = vmax.f32 %v518, 0.0
      %v527 = vpack.c.bf16 %v519, %v519
      %v528 = vpack.c.bf16 %v520, %v520
      %v529 = vpack.c.bf16 %v521, %v521
      %v530 = vpack.c.bf16 %v522, %v522
      %v531 = vpack.c.bf16 %v523, %v523
      %v532 = vpack.c.bf16 %v524, %v524
      %v533 = vpack.c.bf16 %v525, %v525
      %v534 = vpack.c.bf16 %v526, %v526
      %s535 = scalar_lea.vmem [#allocation2], 216
      %536 = vst [vmem:[%s535] sm:$0xf] %v527
      %537 = vst [vmem:[%s535 + $0x8] sm:$0xf] %v528
      %538 = vst [vmem:[%s535 + $0x10] sm:$0xf] %v529
      %539 = vst [vmem:[%s535 + $0x18] sm:$0xf] %v530
      %540 = vst [vmem:[%s535 + $0x20] sm:$0xf] %v531
      %541 = vst [vmem:[%s535 + $0x28] sm:$0xf] %v532
      %542 = vst [vmem:[%s535 + $0x30] sm:$0xf] %v533
      %543 = vst [vmem:[%s535 + $0x38] sm:$0xf] %v534
      %v544 = vld [vmem:[%s304 + $0x4] sm:$0xf]
      %v545 = vld [vmem:[%s304 + $0x14] sm:$0xf]
      %v546 = vld [vmem:[%s304 + $0x24] sm:$0xf]
      %v547 = vld [vmem:[%s304 + $0x34] sm:$0xf]
      %v548 = vld [vmem:[%s304 + $0x44] sm:$0xf]
      %v549 = vld [vmem:[%s304 + $0x54] sm:$0xf]
      %v550 = vld [vmem:[%s304 + $0x64] sm:$0xf]
      %v551 = vld [vmem:[%s304 + $0x74] sm:$0xf]
      %v552 = vunpack.c.l.bf16 %v544
      %v553 = vunpack.c.l.bf16 %v545
      %v554 = vunpack.c.l.bf16 %v546
      %v555 = vunpack.c.l.bf16 %v547
      %v556 = vunpack.c.l.bf16 %v548
      %v557 = vunpack.c.l.bf16 %v549
      %v558 = vunpack.c.l.bf16 %v550
      %v559 = vunpack.c.l.bf16 %v551
      %v560 = vld [vmem:[%s3] sm:$0x1]
      %v562 = vperm.slane %v560, 0
      %v564 = vmul.f32 %v552, %v562
      %v565 = vmul.f32 %v553, %v562
      %v566 = vmul.f32 %v554, %v562
      %v567 = vmul.f32 %v555, %v562
      %v568 = vmul.f32 %v556, %v562
      %v569 = vmul.f32 %v557, %v562
      %v570 = vmul.f32 %v558, %v562
      %v571 = vmul.f32 %v559, %v562
      %v572 = vld [vmem:[%s4] sm:$0x1]
      %v574 = vperm.slane %v572, 0
      %v576 = vadd.f32 %v564, %v574
      %v577 = vadd.f32 %v565, %v574
      %v578 = vadd.f32 %v566, %v574
      %v579 = vadd.f32 %v567, %v574
      %v580 = vadd.f32 %v568, %v574
      %v581 = vadd.f32 %v569, %v574
      %v582 = vadd.f32 %v570, %v574
      %v583 = vadd.f32 %v571, %v574
      %v584 = vmax.f32 %v576, 0.0
      %v585 = vmax.f32 %v577, 0.0
      %v586 = vmax.f32 %v578, 0.0
      %v587 = vmax.f32 %v579, 0.0
      %v588 = vmax.f32 %v580, 0.0
      %v589 = vmax.f32 %v581, 0.0
      %v590 = vmax.f32 %v582, 0.0
      %v591 = vmax.f32 %v583, 0.0
      %v592 = vpack.c.bf16 %v584, %v584
      %v593 = vpack.c.bf16 %v585, %v585
      %v594 = vpack.c.bf16 %v586, %v586
      %v595 = vpack.c.bf16 %v587, %v587
      %v596 = vpack.c.bf16 %v588, %v588
      %v597 = vpack.c.bf16 %v589, %v589
      %v598 = vpack.c.bf16 %v590, %v590
      %v599 = vpack.c.bf16 %v591, %v591
      %v601 = vshrl.u32 %v592, 16
      %v603 = vrot.slane %v601, 7
      %v604 = vshll.u32 %v592, 16
      %v606 = vor.u32 %v603, %v604
      %v607 = vrot.slane %v603, 4
      %v609 = vshrl.u32 %v593, 16
      %v611 = vrot.slane %v609, 7
      %v612 = vshll.u32 %v593, 16
      %v614 = vor.u32 %v611, %v612
      %v615 = vrot.slane %v611, 4
      %v617 = vshrl.u32 %v594, 16
      %v619 = vrot.slane %v617, 7
      %v620 = vshll.u32 %v594, 16
      %v622 = vor.u32 %v619, %v620
      %v623 = vrot.slane %v619, 4
      %v625 = vshrl.u32 %v595, 16
      %v627 = vrot.slane %v625, 7
      %v628 = vshll.u32 %v595, 16
      %v630 = vor.u32 %v627, %v628
      %v631 = vrot.slane %v627, 4
      %v633 = vshrl.u32 %v596, 16
      %v635 = vrot.slane %v633, 7
      %v636 = vshll.u32 %v596, 16
      %v638 = vor.u32 %v635, %v636
      %v639 = vrot.slane %v635, 4
      %v641 = vshrl.u32 %v597, 16
      %v643 = vrot.slane %v641, 7
      %v644 = vshll.u32 %v597, 16
      %v646 = vor.u32 %v643, %v644
      %v647 = vrot.slane %v643, 4
      %v649 = vshrl.u32 %v598, 16
      %v651 = vrot.slane %v649, 7
      %v652 = vshll.u32 %v598, 16
      %v654 = vor.u32 %v651, %v652
      %v655 = vrot.slane %v651, 4
      %v657 = vshrl.u32 %v599, 16
      %v659 = vrot.slane %v657, 7
      %v660 = vshll.u32 %v599, 16
      %v662 = vor.u32 %v659, %v660
      %v663 = vrot.slane %v659, 4
      %s680 = scalar_lea.vmem [#allocation2], 144
      %vm681 = vcmask 1043456
      %vm682 = vsmask.f32 7938
      %vm683 = vmand %vm681, %vm682
      %v684 = vld [vmem:[%s680] sm:$0xf]
      %v685 = vsel %vm683, %v606, %v684
      %686 = vst [vmem:[%s680] sm:$0xf] %v685
      %v687 = vld [vmem:[%s680 + $0x4] sm:$0x1]
      %v688 = vsel %vm315, %v607, %v687
      %689 = vst [vmem:[%s680 + $0x4] sm:$0x1] %v688
      %v690 = vld [vmem:[%s680 + $0x8] sm:$0xf]
      %v691 = vsel %vm683, %v614, %v690
      %692 = vst [vmem:[%s680 + $0x8] sm:$0xf] %v691
      %v693 = vld [vmem:[%s680 + $0xc] sm:$0x1]
      %v694 = vsel %vm315, %v615, %v693
      %695 = vst [vmem:[%s680 + $0xc] sm:$0x1] %v694
      %v696 = vld [vmem:[%s680 + $0x10] sm:$0xf]
      %v697 = vsel %vm683, %v622, %v696
      %698 = vst [vmem:[%s680 + $0x10] sm:$0xf] %v697
      %v699 = vld [vmem:[%s680 + $0x14] sm:$0x1]
      %v700 = vsel %vm315, %v623, %v699
      %701 = vst [vmem:[%s680 + $0x14] sm:$0x1] %v700
      %v702 = vld [vmem:[%s680 + $0x18] sm:$0xf]
      %v703 = vsel %vm683, %v630, %v702
      %704 = vst [vmem:[%s680 + $0x18] sm:$0xf] %v703
      %v705 = vld [vmem:[%s680 + $0x1c] sm:$0x1]
      %v706 = vsel %vm315, %v631, %v705
      %707 = vst [vmem:[%s680 + $0x1c] sm:$0x1] %v706
      %v708 = vld [vmem:[%s680 + $0x20] sm:$0xf]
      %v709 = vsel %vm683, %v638, %v708
      %710 = vst [vmem:[%s680 + $0x20] sm:$0xf] %v709
      %v711 = vld [vmem:[%s680 + $0x24] sm:$0x1]
      %v712 = vsel %vm315, %v639, %v711
      %713 = vst [vmem:[%s680 + $0x24] sm:$0x1] %v712
      %v714 = vld [vmem:[%s680 + $0x28] sm:$0xf]
      %v715 = vsel %vm683, %v646, %v714
      %716 = vst [vmem:[%s680 + $0x28] sm:$0xf] %v715
      %v717 = vld [vmem:[%s680 + $0x2c] sm:$0x1]
      %v718 = vsel %vm315, %v647, %v717
      %719 = vst [vmem:[%s680 + $0x2c] sm:$0x1] %v718
      %v720 = vld [vmem:[%s680 + $0x30] sm:$0xf]
      %v721 = vsel %vm683, %v654, %v720
      %722 = vst [vmem:[%s680 + $0x30] sm:$0xf] %v721
      %v723 = vld [vmem:[%s680 + $0x34] sm:$0x1]
      %v724 = vsel %vm315, %v655, %v723
      %725 = vst [vmem:[%s680 + $0x34] sm:$0x1] %v724
      %v726 = vld [vmem:[%s680 + $0x38] sm:$0xf]
      %v727 = vsel %vm683, %v662, %v726
      %728 = vst [vmem:[%s680 + $0x38] sm:$0xf] %v727
      %v729 = vld [vmem:[%s680 + $0x3c] sm:$0x1]
      %v730 = vsel %vm315, %v663, %v729
      %731 = vst [vmem:[%s680 + $0x3c] sm:$0x1] %v730
      %s732 = scalar_lea.vmem %s304, 8
      %v733 = vld [vmem:[%s732] sm:$0xf]
      %v734 = vld [vmem:[%s732 + $0x10] sm:$0xf]
      %v735 = vld [vmem:[%s732 + $0x20] sm:$0xf]
      %v736 = vld [vmem:[%s732 + $0x30] sm:$0xf]
      %v737 = vld [vmem:[%s732 + $0x40] sm:$0xf]
      %v738 = vld [vmem:[%s732 + $0x50] sm:$0xf]
      %v739 = vld [vmem:[%s732 + $0x60] sm:$0xf]
      %v740 = vld [vmem:[%s732 + $0x70] sm:$0xf]
      %v741 = vunpack.c.l.bf16 %v733
      %v742 = vunpack.c.l.bf16 %v734
      %v743 = vunpack.c.l.bf16 %v735
      %v744 = vunpack.c.l.bf16 %v736
      %v745 = vunpack.c.l.bf16 %v737
      %v746 = vunpack.c.l.bf16 %v738
      %v747 = vunpack.c.l.bf16 %v739
      %v748 = vunpack.c.l.bf16 %v740
      %v749 = vld [vmem:[%s3] sm:$0x1]
      %v751 = vperm.slane %v749, 0
      %v753 = vmul.f32 %v741, %v751
      %v754 = vmul.f32 %v742, %v751
      %v755 = vmul.f32 %v743, %v751
      %v756 = vmul.f32 %v744, %v751
      %v757 = vmul.f32 %v745, %v751
      %v758 = vmul.f32 %v746, %v751
      %v759 = vmul.f32 %v747, %v751
      %v760 = vmul.f32 %v748, %v751
      %v761 = vld [vmem:[%s4] sm:$0x1]
      %v763 = vperm.slane %v761, 0
      %v765 = vadd.f32 %v753, %v763
      %v766 = vadd.f32 %v754, %v763
      %v767 = vadd.f32 %v755, %v763
      %v768 = vadd.f32 %v756, %v763
      %v769 = vadd.f32 %v757, %v763
      %v770 = vadd.f32 %v758, %v763
      %v771 = vadd.f32 %v759, %v763
      %v772 = vadd.f32 %v760, %v763
      %v773 = vmax.f32 %v765, 0.0
      %v774 = vmax.f32 %v766, 0.0
      %v775 = vmax.f32 %v767, 0.0
      %v776 = vmax.f32 %v768, 0.0
      %v777 = vmax.f32 %v769, 0.0
      %v778 = vmax.f32 %v770, 0.0
      %v779 = vmax.f32 %v771, 0.0
      %v780 = vmax.f32 %v772, 0.0
      %v781 = vpack.c.bf16 %v773, %v773
      %v782 = vpack.c.bf16 %v774, %v774
      %v783 = vpack.c.bf16 %v775, %v775
      %v784 = vpack.c.bf16 %v776, %v776
      %v785 = vpack.c.bf16 %v777, %v777
      %v786 = vpack.c.bf16 %v778, %v778
      %v787 = vpack.c.bf16 %v779, %v779
      %v788 = vpack.c.bf16 %v780, %v780
      %s789 = scalar_lea.vmem [#allocation2], 80
      %790 = vst [vmem:[%s789] sm:$0xf] %v781
      %791 = vst [vmem:[%s789 + $0x8] sm:$0xf] %v782
      %792 = vst [vmem:[%s789 + $0x10] sm:$0xf] %v783
      %793 = vst [vmem:[%s789 + $0x18] sm:$0xf] %v784
      %794 = vst [vmem:[%s789 + $0x20] sm:$0xf] %v785
      %795 = vst [vmem:[%s789 + $0x28] sm:$0xf] %v786
      %796 = vst [vmem:[%s789 + $0x30] sm:$0xf] %v787
      %797 = vst [vmem:[%s789 + $0x38] sm:$0xf] %v788
      %v798 = vld [vmem:[%s732 + $0x4] sm:$0xf]
      %v799 = vld [vmem:[%s732 + $0x14] sm:$0xf]
      %v800 = vld [vmem:[%s732 + $0x24] sm:$0xf]
      %v801 = vld [vmem:[%s732 + $0x34] sm:$0xf]
      %v802 = vld [vmem:[%s732 + $0x44] sm:$0xf]
      %v803 = vld [vmem:[%s732 + $0x54] sm:$0xf]
      %v804 = vld [vmem:[%s732 + $0x64] sm:$0xf]
      %v805 = vld [vmem:[%s732 + $0x74] sm:$0xf]
      %v806 = vunpack.c.l.bf16 %v798
      %v807 = vunpack.c.l.bf16 %v799
      %v808 = vunpack.c.l.bf16 %v800
      %v809 = vunpack.c.l.bf16 %v801
      %v810 = vunpack.c.l.bf16 %v802
      %v811 = vunpack.c.l.bf16 %v803
      %v812 = vunpack.c.l.bf16 %v804
      %v813 = vunpack.c.l.bf16 %v805
      %v814 = vld [vmem:[%s3] sm:$0x1]
      %v816 = vperm.slane %v814, 0
      %v818 = vmul.f32 %v806, %v816
      %v819 = vmul.f32 %v807, %v816
      %v820 = vmul.f32 %v808, %v816
      %v821 = vmul.f32 %v809, %v816
      %v822 = vmul.f32 %v810, %v816
      %v823 = vmul.f32 %v811, %v816
      %v824 = vmul.f32 %v812, %v816
      %v825 = vmul.f32 %v813, %v816
      %v826 = vld [vmem:[%s4] sm:$0x1]
      %v828 = vperm.slane %v826, 0
      %v830 = vadd.f32 %v818, %v828
      %v831 = vadd.f32 %v819, %v828
      %v832 = vadd.f32 %v820, %v828
      %v833 = vadd.f32 %v821, %v828
      %v834 = vadd.f32 %v822, %v828
      %v835 = vadd.f32 %v823, %v828
      %v836 = vadd.f32 %v824, %v828
      %v837 = vadd.f32 %v825, %v828
      %v838 = vmax.f32 %v830, 0.0
      %v839 = vmax.f32 %v831, 0.0
      %v840 = vmax.f32 %v832, 0.0
      %v841 = vmax.f32 %v833, 0.0
      %v842 = vmax.f32 %v834, 0.0
      %v843 = vmax.f32 %v835, 0.0
      %v844 = vmax.f32 %v836, 0.0
      %v845 = vmax.f32 %v837, 0.0
      %v846 = vpack.c.bf16 %v838, %v838
      %v847 = vpack.c.bf16 %v839, %v839
      %v848 = vpack.c.bf16 %v840, %v840
      %v849 = vpack.c.bf16 %v841, %v841
      %v850 = vpack.c.bf16 %v842, %v842
      %v851 = vpack.c.bf16 %v843, %v843
      %v852 = vpack.c.bf16 %v844, %v844
      %v853 = vpack.c.bf16 %v845, %v845
      %v855 = vshrl.u32 %v846, 16
      %v857 = vrot.slane %v855, 7
      %v858 = vshll.u32 %v846, 16
      %v860 = vor.u32 %v857, %v858
      %v861 = vrot.slane %v857, 4
      %v863 = vshrl.u32 %v847, 16
      %v865 = vrot.slane %v863, 7
      %v866 = vshll.u32 %v847, 16
      %v868 = vor.u32 %v865, %v866
      %v869 = vrot.slane %v865, 4
      %v871 = vshrl.u32 %v848, 16
      %v873 = vrot.slane %v871, 7
      %v874 = vshll.u32 %v848, 16
      %v876 = vor.u32 %v873, %v874
      %v877 = vrot.slane %v873, 4
      %v879 = vshrl.u32 %v849, 16
      %v881 = vrot.slane %v879, 7
      %v882 = vshll.u32 %v849, 16
      %v884 = vor.u32 %v881, %v882
      %v885 = vrot.slane %v881, 4
      %v887 = vshrl.u32 %v850, 16
      %v889 = vrot.slane %v887, 7
      %v890 = vshll.u32 %v850, 16
      %v892 = vor.u32 %v889, %v890
      %v893 = vrot.slane %v889, 4
      %v895 = vshrl.u32 %v851, 16
      %v897 = vrot.slane %v895, 7
      %v898 = vshll.u32 %v851, 16
      %v900 = vor.u32 %v897, %v898
      %v901 = vrot.slane %v897, 4
      %v903 = vshrl.u32 %v852, 16
      %v905 = vrot.slane %v903, 7
      %v906 = vshll.u32 %v852, 16
      %v908 = vor.u32 %v905, %v906
      %v909 = vrot.slane %v905, 4
      %v911 = vshrl.u32 %v853, 16
      %v913 = vrot.slane %v911, 7
      %v914 = vshll.u32 %v853, 16
      %v916 = vor.u32 %v913, %v914
      %v917 = vrot.slane %v913, 4
      %s934 = scalar_lea.vmem [#allocation2], 8
      %v935 = vld [vmem:[%s934] sm:$0xf]
      %v936 = vsel %vm683, %v860, %v935
      %937 = vst [vmem:[%s934] sm:$0xf] %v936
      %v938 = vld [vmem:[%s934 + $0x4] sm:$0x1]
      %v939 = vsel %vm315, %v861, %v938
      %940 = vst [vmem:[%s934 + $0x4] sm:$0x1] %v939
      %v941 = vld [vmem:[%s934 + $0x8] sm:$0xf]
      %v942 = vsel %vm683, %v868, %v941
      %943 = vst [vmem:[%s934 + $0x8] sm:$0xf] %v942
      %v944 = vld [vmem:[%s934 + $0xc] sm:$0x1]
      %v945 = vsel %vm315, %v869, %v944
      %946 = vst [vmem:[%s934 + $0xc] sm:$0x1] %v945
      %v947 = vld [vmem:[%s934 + $0x10] sm:$0xf]
      %v948 = vsel %vm683, %v876, %v947
      %949 = vst [vmem:[%s934 + $0x10] sm:$0xf] %v948
      %v950 = vld [vmem:[%s934 + $0x14] sm:$0x1]
      %v951 = vsel %vm315, %v877, %v950
      %952 = vst [vmem:[%s934 + $0x14] sm:$0x1] %v951
      %v953 = vld [vmem:[%s934 + $0x18] sm:$0xf]
      %v954 = vsel %vm683, %v884, %v953
      %955 = vst [vmem:[%s934 + $0x18] sm:$0xf] %v954
      %v956 = vld [vmem:[%s934 + $0x1c] sm:$0x1]
      %v957 = vsel %vm315, %v885, %v956
      %958 = vst [vmem:[%s934 + $0x1c] sm:$0x1] %v957
      %v959 = vld [vmem:[%s934 + $0x20] sm:$0xf]
      %v960 = vsel %vm683, %v892, %v959
      %961 = vst [vmem:[%s934 + $0x20] sm:$0xf] %v960
      %v962 = vld [vmem:[%s934 + $0x24] sm:$0x1]
      %v963 = vsel %vm315, %v893, %v962
      %964 = vst [vmem:[%s934 + $0x24] sm:$0x1] %v963
      %v965 = vld [vmem:[%s934 + $0x28] sm:$0xf]
      %v966 = vsel %vm683, %v900, %v965
      %967 = vst [vmem:[%s934 + $0x28] sm:$0xf] %v966
      %v968 = vld [vmem:[%s934 + $0x2c] sm:$0x1]
      %v969 = vsel %vm315, %v901, %v968
      %970 = vst [vmem:[%s934 + $0x2c] sm:$0x1] %v969
      %v971 = vld [vmem:[%s934 + $0x30] sm:$0xf]
      %v972 = vsel %vm683, %v908, %v971
      %973 = vst [vmem:[%s934 + $0x30] sm:$0xf] %v972
      %v974 = vld [vmem:[%s934 + $0x34] sm:$0x1]
      %v975 = vsel %vm315, %v909, %v974
      %976 = vst [vmem:[%s934 + $0x34] sm:$0x1] %v975
      %v977 = vld [vmem:[%s934 + $0x38] sm:$0xf]
      %v978 = vsel %vm683, %v916, %v977
      %979 = vst [vmem:[%s934 + $0x38] sm:$0xf] %v978
      %v980 = vld [vmem:[%s934 + $0x3c] sm:$0x1]
      %v981 = vsel %vm315, %v917, %v980
      %982 = vst [vmem:[%s934 + $0x3c] sm:$0x1] %v981
      %v983 = vld [vmem:[#allocation2] sm:$0xf]
      %v984 = vld [vmem:[#allocation2 + $0x8] sm:$0xf]
      %v985 = vld [vmem:[#allocation2 + $0x10] sm:$0xf]
      %v986 = vld [vmem:[#allocation2 + $0x18] sm:$0xf]
      %v987 = vld [vmem:[#allocation2 + $0x20] sm:$0xf]
      %v988 = vld [vmem:[#allocation2 + $0x28] sm:$0xf]
      %v989 = vld [vmem:[#allocation2 + $0x30] sm:$0xf]
      %v990 = vld [vmem:[#allocation2 + $0x38] sm:$0xf]
      %991 = vst [vmem:[#allocation3] sm:$0xf] %v983
      %992 = vst [vmem:[#allocation3 + $0x24] sm:$0xf] %v984
      %993 = vst [vmem:[#allocation3 + $0x48] sm:$0xf] %v985
      %994 = vst [vmem:[#allocation3 + $0x6c] sm:$0xf] %v986
      %995 = vst [vmem:[#allocation3 + $0x90] sm:$0xf] %v987
      %996 = vst [vmem:[#allocation3 + $0xb4] sm:$0xf] %v988
      %997 = vst [vmem:[#allocation3 + $0xd8] sm:$0xf] %v989
      %998 = vst [vmem:[#allocation3 + $0xfc] sm:$0xf] %v990
      %s999 = scalar_lea.vmem [#allocation2], 72
      %v1000 = vld [vmem:[%s999] sm:$0xf]
      %v1001 = vld [vmem:[%s999 + $0x8] sm:$0xf]
      %v1002 = vld [vmem:[%s999 + $0x10] sm:$0xf]
      %v1003 = vld [vmem:[%s999 + $0x18] sm:$0xf]
      %v1004 = vld [vmem:[%s999 + $0x20] sm:$0xf]
      %v1005 = vld [vmem:[%s999 + $0x28] sm:$0xf]
      %v1006 = vld [vmem:[%s999 + $0x30] sm:$0xf]
      %v1007 = vld [vmem:[%s999 + $0x38] sm:$0xf]
      %1008 = vst [vmem:[#allocation3 + $0x4] sm:$0xf] %v1000
      %1009 = vst [vmem:[#allocation3 + $0x28] sm:$0xf] %v1001
      %1010 = vst [vmem:[#allocation3 + $0x4c] sm:$0xf] %v1002
      %1011 = vst [vmem:[#allocation3 + $0x70] sm:$0xf] %v1003
      %1012 = vst [vmem:[#allocation3 + $0x94] sm:$0xf] %v1004
      %1013 = vst [vmem:[#allocation3 + $0xb8] sm:$0xf] %v1005
      %1014 = vst [vmem:[#allocation3 + $0xdc] sm:$0xf] %v1006
      %1015 = vst [vmem:[#allocation3 + $0x100] sm:$0xf] %v1007
      %v1016 = vld [vmem:[#allocation2] sm:$0xf]
      %v1017 = vld [vmem:[#allocation2 + $0x4] sm:$0x1]
      %v1018 = vld [vmem:[#allocation2 + $0x8] sm:$0xf]
      %v1019 = vld [vmem:[#allocation2 + $0xc] sm:$0x1]
      %v1020 = vld [vmem:[#allocation2 + $0x10] sm:$0xf]
      %v1021 = vld [vmem:[#allocation2 + $0x14] sm:$0x1]
      %v1022 = vld [vmem:[#allocation2 + $0x18] sm:$0xf]
      %v1023 = vld [vmem:[#allocation2 + $0x1c] sm:$0x1]
      %v1024 = vld [vmem:[#allocation2 + $0x20] sm:$0xf]
      %v1025 = vld [vmem:[#allocation2 + $0x24] sm:$0x1]
      %v1026 = vld [vmem:[#allocation2 + $0x28] sm:$0xf]
      %v1027 = vld [vmem:[#allocation2 + $0x2c] sm:$0x1]
      %v1028 = vld [vmem:[#allocation2 + $0x30] sm:$0xf]
      %v1029 = vld [vmem:[#allocation2 + $0x34] sm:$0x1]
      %v1030 = vld [vmem:[#allocation2 + $0x38] sm:$0xf]
      %v1031 = vld [vmem:[#allocation2 + $0x3c] sm:$0x1]
      %vm1032 = vsmask.f32 3328
      %vm1033 = vsmask.f32 7440
      %vm1034 = vmor %vm1032, %vm1033
      %v1036 = vshrl.u32 %v1016, 16
      %v1038 = vrot.slane %v1036, 4
      %v1039 = vshll.u32 %v1016, 16
      %v1041 = vrot.slane %v1039, 5
      %v1042 = vor.u32 %v1038, %v1041
      %v1043 = vrot.slane %v1042, 4
      %v1045 = vshll.u32 %v1017, 16
      %v1047 = vrot.slane %v1045, 5
      %v1048 = vsel %vm1034, %v1043, %v1047
      %v1050 = vshrl.u32 %v1018, 16
      %v1052 = vrot.slane %v1050, 4
      %v1053 = vshll.u32 %v1018, 16
      %v1055 = vrot.slane %v1053, 5
      %v1056 = vor.u32 %v1052, %v1055
      %v1057 = vrot.slane %v1056, 4
      %v1059 = vshll.u32 %v1019, 16
      %v1061 = vrot.slane %v1059, 5
      %v1062 = vsel %vm1034, %v1057, %v1061
      %v1064 = vshrl.u32 %v1020, 16
      %v1066 = vrot.slane %v1064, 4
      %v1067 = vshll.u32 %v1020, 16
      %v1069 = vrot.slane %v1067, 5
      %v1070 = vor.u32 %v1066, %v1069
      %v1071 = vrot.slane %v1070, 4
      %v1073 = vshll.u32 %v1021, 16
      %v1075 = vrot.slane %v1073, 5
      %v1076 = vsel %vm1034, %v1071, %v1075
      %v1078 = vshrl.u32 %v1022, 16
      %v1080 = vrot.slane %v1078, 4
      %v1081 = vshll.u32 %v1022, 16
      %v1083 = vrot.slane %v1081, 5
      %v1084 = vor.u32 %v1080, %v1083
      %v1085 = vrot.slane %v1084, 4
      %v1087 = vshll.u32 %v1023, 16
      %v1089 = vrot.slane %v1087, 5
      %v1090 = vsel %vm1034, %v1085, %v1089
      %v1092 = vshrl.u32 %v1024, 16
      %v1094 = vrot.slane %v1092, 4
      %v1095 = vshll.u32 %v1024, 16
      %v1097 = vrot.slane %v1095, 5
      %v1098 = vor.u32 %v1094, %v1097
      %v1099 = vrot.slane %v1098, 4
      %v1101 = vshll.u32 %v1025, 16
      %v1103 = vrot.slane %v1101, 5
      %v1104 = vsel %vm1034, %v1099, %v1103
      %v1106 = vshrl.u32 %v1026, 16
      %v1108 = vrot.slane %v1106, 4
      %v1109 = vshll.u32 %v1026, 16
      %v1111 = vrot.slane %v1109, 5
      %v1112 = vor.u32 %v1108, %v1111
      %v1113 = vrot.slane %v1112, 4
      %v1115 = vshll.u32 %v1027, 16
      %v1117 = vrot.slane %v1115, 5
      %v1118 = vsel %vm1034, %v1113, %v1117
      %v1120 = vshrl.u32 %v1028, 16
      %v1122 = vrot.slane %v1120, 4
      %v1123 = vshll.u32 %v1028, 16
      %v1125 = vrot.slane %v1123, 5
      %v1126 = vor.u32 %v1122, %v1125
      %v1127 = vrot.slane %v1126, 4
      %v1129 = vshll.u32 %v1029, 16
      %v1131 = vrot.slane %v1129, 5
      %v1132 = vsel %vm1034, %v1127, %v1131
      %v1134 = vshrl.u32 %v1030, 16
      %v1136 = vrot.slane %v1134, 4
      %v1137 = vshll.u32 %v1030, 16
      %v1139 = vrot.slane %v1137, 5
      %v1140 = vor.u32 %v1136, %v1139
      %v1141 = vrot.slane %v1140, 4
      %v1143 = vshll.u32 %v1031, 16
      %v1145 = vrot.slane %v1143, 5
      %v1146 = vsel %vm1034, %v1141, %v1145
      %1155 = vst [vmem:[#allocation3 + $0x8] sm:$0xf] %v1048
      %1156 = vst [vmem:[#allocation3 + $0x2c] sm:$0xf] %v1062
      %1157 = vst [vmem:[#allocation3 + $0x50] sm:$0xf] %v1076
      %1158 = vst [vmem:[#allocation3 + $0x74] sm:$0xf] %v1090
      %1159 = vst [vmem:[#allocation3 + $0x98] sm:$0xf] %v1104
      %1160 = vst [vmem:[#allocation3 + $0xbc] sm:$0xf] %v1118
      %1161 = vst [vmem:[#allocation3 + $0xe0] sm:$0xf] %v1132
      %1162 = vst [vmem:[#allocation3 + $0x104] sm:$0xf] %v1146
      %v1163 = vld [vmem:[%s680] sm:$0xf]
      %v1164 = vld [vmem:[%s680 + $0x8] sm:$0xf]
      %v1165 = vld [vmem:[%s680 + $0x10] sm:$0xf]
      %v1166 = vld [vmem:[%s680 + $0x18] sm:$0xf]
      %v1167 = vld [vmem:[%s680 + $0x20] sm:$0xf]
      %v1168 = vld [vmem:[%s680 + $0x28] sm:$0xf]
      %v1169 = vld [vmem:[%s680 + $0x30] sm:$0xf]
      %v1170 = vld [vmem:[%s680 + $0x38] sm:$0xf]
      %1171 = vst [vmem:[#allocation3 + $0xc] sm:$0xf] %v1163
      %1172 = vst [vmem:[#allocation3 + $0x30] sm:$0xf] %v1164
      %1173 = vst [vmem:[#allocation3 + $0x54] sm:$0xf] %v1165
      %1174 = vst [vmem:[#allocation3 + $0x78] sm:$0xf] %v1166
      %1175 = vst [vmem:[#allocation3 + $0x9c] sm:$0xf] %v1167
      %1176 = vst [vmem:[#allocation3 + $0xc0] sm:$0xf] %v1168
      %1177 = vst [vmem:[#allocation3 + $0xe4] sm:$0xf] %v1169
      %1178 = vst [vmem:[#allocation3 + $0x108] sm:$0xf] %v1170
      %v1179 = vld [vmem:[%s535] sm:$0xf]
      %v1180 = vld [vmem:[%s535 + $0x8] sm:$0xf]
      %v1181 = vld [vmem:[%s535 + $0x10] sm:$0xf]
      %v1182 = vld [vmem:[%s535 + $0x18] sm:$0xf]
      %v1183 = vld [vmem:[%s535 + $0x20] sm:$0xf]
      %v1184 = vld [vmem:[%s535 + $0x28] sm:$0xf]
      %v1185 = vld [vmem:[%s535 + $0x30] sm:$0xf]
      %v1186 = vld [vmem:[%s535 + $0x38] sm:$0xf]
      %1187 = vst [vmem:[#allocation3 + $0x10] sm:$0xf] %v1179
      %1188 = vst [vmem:[#allocation3 + $0x34] sm:$0xf] %v1180
      %1189 = vst [vmem:[#allocation3 + $0x58] sm:$0xf] %v1181
      %1190 = vst [vmem:[#allocation3 + $0x7c] sm:$0xf] %v1182
      %1191 = vst [vmem:[#allocation3 + $0xa0] sm:$0xf] %v1183
      %1192 = vst [vmem:[#allocation3 + $0xc4] sm:$0xf] %v1184
      %1193 = vst [vmem:[#allocation3 + $0xe8] sm:$0xf] %v1185
      %1194 = vst [vmem:[#allocation3 + $0x10c] sm:$0xf] %v1186
      %v1195 = vld [vmem:[%s680] sm:$0xf]
      %v1196 = vld [vmem:[%s680 + $0x4] sm:$0x1]
      %v1197 = vld [vmem:[%s680 + $0x8] sm:$0xf]
      %v1198 = vld [vmem:[%s680 + $0xc] sm:$0x1]
      %v1199 = vld [vmem:[%s680 + $0x10] sm:$0xf]
      %v1200 = vld [vmem:[%s680 + $0x14] sm:$0x1]
      %v1201 = vld [vmem:[%s680 + $0x18] sm:$0xf]
      %v1202 = vld [vmem:[%s680 + $0x1c] sm:$0x1]
      %v1203 = vld [vmem:[%s680 + $0x20] sm:$0xf]
      %v1204 = vld [vmem:[%s680 + $0x24] sm:$0x1]
      %v1205 = vld [vmem:[%s680 + $0x28] sm:$0xf]
      %v1206 = vld [vmem:[%s680 + $0x2c] sm:$0x1]
      %v1207 = vld [vmem:[%s680 + $0x30] sm:$0xf]
      %v1208 = vld [vmem:[%s680 + $0x34] sm:$0x1]
      %v1209 = vld [vmem:[%s680 + $0x38] sm:$0xf]
      %v1210 = vld [vmem:[%s680 + $0x3c] sm:$0x1]
      %v1212 = vshrl.u32 %v1195, 16
      %v1214 = vrot.slane %v1212, 4
      %v1215 = vshll.u32 %v1195, 16
      %v1217 = vrot.slane %v1215, 5
      %v1218 = vor.u32 %v1214, %v1217
      %v1219 = vrot.slane %v1218, 4
      %v1221 = vshll.u32 %v1196, 16
      %v1223 = vrot.slane %v1221, 5
      %v1224 = vsel %vm1034, %v1219, %v1223
      %v1226 = vshrl.u32 %v1197, 16
      %v1228 = vrot.slane %v1226, 4
      %v1229 = vshll.u32 %v1197, 16
      %v1231 = vrot.slane %v1229, 5
      %v1232 = vor.u32 %v1228, %v1231
      %v1233 = vrot.slane %v1232, 4
      %v1235 = vshll.u32 %v1198, 16
      %v1237 = vrot.slane %v1235, 5
      %v1238 = vsel %vm1034, %v1233, %v1237
      %v1240 = vshrl.u32 %v1199, 16
      %v1242 = vrot.slane %v1240, 4
      %v1243 = vshll.u32 %v1199, 16
      %v1245 = vrot.slane %v1243, 5
      %v1246 = vor.u32 %v1242, %v1245
      %v1247 = vrot.slane %v1246, 4
      %v1249 = vshll.u32 %v1200, 16
      %v1251 = vrot.slane %v1249, 5
      %v1252 = vsel %vm1034, %v1247, %v1251
      %v1254 = vshrl.u32 %v1201, 16
      %v1256 = vrot.slane %v1254, 4
      %v1257 = vshll.u32 %v1201, 16
      %v1259 = vrot.slane %v1257, 5
      %v1260 = vor.u32 %v1256, %v1259
      %v1261 = vrot.slane %v1260, 4
      %v1263 = vshll.u32 %v1202, 16
      %v1265 = vrot.slane %v1263, 5
      %v1266 = vsel %vm1034, %v1261, %v1265
      %v1268 = vshrl.u32 %v1203, 16
      %v1270 = vrot.slane %v1268, 4
      %v1271 = vshll.u32 %v1203, 16
      %v1273 = vrot.slane %v1271, 5
      %v1274 = vor.u32 %v1270, %v1273
      %v1275 = vrot.slane %v1274, 4
      %v1277 = vshll.u32 %v1204, 16
      %v1279 = vrot.slane %v1277, 5
      %v1280 = vsel %vm1034, %v1275, %v1279
      %v1282 = vshrl.u32 %v1205, 16
      %v1284 = vrot.slane %v1282, 4
      %v1285 = vshll.u32 %v1205, 16
      %v1287 = vrot.slane %v1285, 5
      %v1288 = vor.u32 %v1284, %v1287
      %v1289 = vrot.slane %v1288, 4
      %v1291 = vshll.u32 %v1206, 16
      %v1293 = vrot.slane %v1291, 5
      %v1294 = vsel %vm1034, %v1289, %v1293
      %v1296 = vshrl.u32 %v1207, 16
      %v1298 = vrot.slane %v1296, 4
      %v1299 = vshll.u32 %v1207, 16
      %v1301 = vrot.slane %v1299, 5
      %v1302 = vor.u32 %v1298, %v1301
      %v1303 = vrot.slane %v1302, 4
      %v1305 = vshll.u32 %v1208, 16
      %v1307 = vrot.slane %v1305, 5
      %v1308 = vsel %vm1034, %v1303, %v1307
      %v1310 = vshrl.u32 %v1209, 16
      %v1312 = vrot.slane %v1310, 4
      %v1313 = vshll.u32 %v1209, 16
      %v1315 = vrot.slane %v1313, 5
      %v1316 = vor.u32 %v1312, %v1315
      %v1317 = vrot.slane %v1316, 4
      %v1319 = vshll.u32 %v1210, 16
      %v1321 = vrot.slane %v1319, 5
      %v1322 = vsel %vm1034, %v1317, %v1321
      %1331 = vst [vmem:[#allocation3 + $0x14] sm:$0xf] %v1224
      %1332 = vst [vmem:[#allocation3 + $0x38] sm:$0xf] %v1238
      %1333 = vst [vmem:[#allocation3 + $0x5c] sm:$0xf] %v1252
      %1334 = vst [vmem:[#allocation3 + $0x80] sm:$0xf] %v1266
      %1335 = vst [vmem:[#allocation3 + $0xa4] sm:$0xf] %v1280
      %1336 = vst [vmem:[#allocation3 + $0xc8] sm:$0xf] %v1294
      %1337 = vst [vmem:[#allocation3 + $0xec] sm:$0xf] %v1308
      %1338 = vst [vmem:[#allocation3 + $0x110] sm:$0xf] %v1322
      %v1339 = vld [vmem:[%s934] sm:$0xf]
      %v1340 = vld [vmem:[%s934 + $0x8] sm:$0xf]
      %v1341 = vld [vmem:[%s934 + $0x10] sm:$0xf]
      %v1342 = vld [vmem:[%s934 + $0x18] sm:$0xf]
      %v1343 = vld [vmem:[%s934 + $0x20] sm:$0xf]
      %v1344 = vld [vmem:[%s934 + $0x28] sm:$0xf]
      %v1345 = vld [vmem:[%s934 + $0x30] sm:$0xf]
      %v1346 = vld [vmem:[%s934 + $0x38] sm:$0xf]
      %1347 = vst [vmem:[#allocation3 + $0x18] sm:$0xf] %v1339
      %1348 = vst [vmem:[#allocation3 + $0x3c] sm:$0xf] %v1340
      %1349 = vst [vmem:[#allocation3 + $0x60] sm:$0xf] %v1341
      %1350 = vst [vmem:[#allocation3 + $0x84] sm:$0xf] %v1342
      %1351 = vst [vmem:[#allocation3 + $0xa8] sm:$0xf] %v1343
      %1352 = vst [vmem:[#allocation3 + $0xcc] sm:$0xf] %v1344
      %1353 = vst [vmem:[#allocation3 + $0xf0] sm:$0xf] %v1345
      %1354 = vst [vmem:[#allocation3 + $0x114] sm:$0xf] %v1346
      %v1355 = vld [vmem:[%s789] sm:$0xf]
      %v1356 = vld [vmem:[%s789 + $0x8] sm:$0xf]
      %v1357 = vld [vmem:[%s789 + $0x10] sm:$0xf]
      %v1358 = vld [vmem:[%s789 + $0x18] sm:$0xf]
      %v1359 = vld [vmem:[%s789 + $0x20] sm:$0xf]
      %v1360 = vld [vmem:[%s789 + $0x28] sm:$0xf]
      %v1361 = vld [vmem:[%s789 + $0x30] sm:$0xf]
      %v1362 = vld [vmem:[%s789 + $0x38] sm:$0xf]
      %1363 = vst [vmem:[#allocation3 + $0x1c] sm:$0xf] %v1355
      %1364 = vst [vmem:[#allocation3 + $0x40] sm:$0xf] %v1356
      %1365 = vst [vmem:[#allocation3 + $0x64] sm:$0xf] %v1357
      %1366 = vst [vmem:[#allocation3 + $0x88] sm:$0xf] %v1358
      %1367 = vst [vmem:[#allocation3 + $0xac] sm:$0xf] %v1359
      %1368 = vst [vmem:[#allocation3 + $0xd0] sm:$0xf] %v1360
      %1369 = vst [vmem:[#allocation3 + $0xf4] sm:$0xf] %v1361
      %1370 = vst [vmem:[#allocation3 + $0x118] sm:$0xf] %v1362
      %v1371 = vld [vmem:[%s934] sm:$0xf]
      %v1372 = vld [vmem:[%s934 + $0x4] sm:$0x1]
      %v1373 = vld [vmem:[%s934 + $0x8] sm:$0xf]
      %v1374 = vld [vmem:[%s934 + $0xc] sm:$0x1]
      %v1375 = vld [vmem:[%s934 + $0x10] sm:$0xf]
      %v1376 = vld [vmem:[%s934 + $0x14] sm:$0x1]
      %v1377 = vld [vmem:[%s934 + $0x18] sm:$0xf]
      %v1378 = vld [vmem:[%s934 + $0x1c] sm:$0x1]
      %v1379 = vld [vmem:[%s934 + $0x20] sm:$0xf]
      %v1380 = vld [vmem:[%s934 + $0x24] sm:$0x1]
      %v1381 = vld [vmem:[%s934 + $0x28] sm:$0xf]
      %v1382 = vld [vmem:[%s934 + $0x2c] sm:$0x1]
      %v1383 = vld [vmem:[%s934 + $0x30] sm:$0xf]
      %v1384 = vld [vmem:[%s934 + $0x34] sm:$0x1]
      %v1385 = vld [vmem:[%s934 + $0x38] sm:$0xf]
      %v1386 = vld [vmem:[%s934 + $0x3c] sm:$0x1]
      %v1388 = vshrl.u32 %v1371, 16
      %v1390 = vrot.slane %v1388, 4
      %v1391 = vshll.u32 %v1371, 16
      %v1393 = vrot.slane %v1391, 5
      %v1394 = vor.u32 %v1390, %v1393
      %v1395 = vrot.slane %v1394, 4
      %v1397 = vshll.u32 %v1372, 16
      %v1399 = vrot.slane %v1397, 5
      %v1400 = vsel %vm1034, %v1395, %v1399
      %v1402 = vshrl.u32 %v1373, 16
      %v1404 = vrot.slane %v1402, 4
      %v1405 = vshll.u32 %v1373, 16
      %v1407 = vrot.slane %v1405, 5
      %v1408 = vor.u32 %v1404, %v1407
      %v1409 = vrot.slane %v1408, 4
      %v1411 = vshll.u32 %v1374, 16
      %v1413 = vrot.slane %v1411, 5
      %v1414 = vsel %vm1034, %v1409, %v1413
      %v1416 = vshrl.u32 %v1375, 16
      %v1418 = vrot.slane %v1416, 4
      %v1419 = vshll.u32 %v1375, 16
      %v1421 = vrot.slane %v1419, 5
      %v1422 = vor.u32 %v1418, %v1421
      %v1423 = vrot.slane %v1422, 4
      %v1425 = vshll.u32 %v1376, 16
      %v1427 = vrot.slane %v1425, 5
      %v1428 = vsel %vm1034, %v1423, %v1427
      %v1430 = vshrl.u32 %v1377, 16
      %v1432 = vrot.slane %v1430, 4
      %v1433 = vshll.u32 %v1377, 16
      %v1435 = vrot.slane %v1433, 5
      %v1436 = vor.u32 %v1432, %v1435
      %v1437 = vrot.slane %v1436, 4
      %v1439 = vshll.u32 %v1378, 16
      %v1441 = vrot.slane %v1439, 5
      %v1442 = vsel %vm1034, %v1437, %v1441
      %v1444 = vshrl.u32 %v1379, 16
      %v1446 = vrot.slane %v1444, 4
      %v1447 = vshll.u32 %v1379, 16
      %v1449 = vrot.slane %v1447, 5
      %v1450 = vor.u32 %v1446, %v1449
      %v1451 = vrot.slane %v1450, 4
      %v1453 = vshll.u32 %v1380, 16
      %v1455 = vrot.slane %v1453, 5
      %v1456 = vsel %vm1034, %v1451, %v1455
      %v1458 = vshrl.u32 %v1381, 16
      %v1460 = vrot.slane %v1458, 4
      %v1461 = vshll.u32 %v1381, 16
      %v1463 = vrot.slane %v1461, 5
      %v1464 = vor.u32 %v1460, %v1463
      %v1465 = vrot.slane %v1464, 4
      %v1467 = vshll.u32 %v1382, 16
      %v1469 = vrot.slane %v1467, 5
      %v1470 = vsel %vm1034, %v1465, %v1469
      %v1472 = vshrl.u32 %v1383, 16
      %v1474 = vrot.slane %v1472, 4
      %v1475 = vshll.u32 %v1383, 16
      %v1477 = vrot.slane %v1475, 5
      %v1478 = vor.u32 %v1474, %v1477
      %v1479 = vrot.slane %v1478, 4
      %v1481 = vshll.u32 %v1384, 16
      %v1483 = vrot.slane %v1481, 5
      %v1484 = vsel %vm1034, %v1479, %v1483
      %v1486 = vshrl.u32 %v1385, 16
      %v1488 = vrot.slane %v1486, 4
      %v1489 = vshll.u32 %v1385, 16
      %v1491 = vrot.slane %v1489, 5
      %v1492 = vor.u32 %v1488, %v1491
      %v1493 = vrot.slane %v1492, 4
      %v1495 = vshll.u32 %v1386, 16
      %v1497 = vrot.slane %v1495, 5
      %v1498 = vsel %vm1034, %v1493, %v1497
      %1507 = vst [vmem:[#allocation3 + $0x20] sm:$0xf] %v1400
      %1508 = vst [vmem:[#allocation3 + $0x44] sm:$0xf] %v1414
      %1509 = vst [vmem:[#allocation3 + $0x68] sm:$0xf] %v1428
      %1510 = vst [vmem:[#allocation3 + $0x8c] sm:$0xf] %v1442
      %1511 = vst [vmem:[#allocation3 + $0xb0] sm:$0xf] %v1456
      %1512 = vst [vmem:[#allocation3 + $0xd4] sm:$0xf] %v1470
      %1513 = vst [vmem:[#allocation3 + $0xf8] sm:$0xf] %v1484
      %1514 = vst [vmem:[#allocation3 + $0x11c] sm:$0xf] %v1498
      %v1515 = vld [vmem:[#allocation3] sm:$0xff]
      %v1516 = vld [vmem:[#allocation3 + $0x8] sm:$0xff]
      %v1517 = vld [vmem:[#allocation3 + $0x10] sm:$0xff]
      %v1518 = vld [vmem:[#allocation3 + $0x18] sm:$0xff]
      %v1519 = vld [vmem:[#allocation3 + $0x20] sm:$0xf]
      %v1520 = vld [vmem:[#allocation3 + $0x24] sm:$0xff]
      %v1521 = vld [vmem:[#allocation3 + $0x2c] sm:$0xff]
      %v1522 = vld [vmem:[#allocation3 + $0x34] sm:$0xff]
      %v1523 = vld [vmem:[#allocation3 + $0x3c] sm:$0xff]
      %v1524 = vld [vmem:[#allocation3 + $0x44] sm:$0xf]
      %v1525 = vld [vmem:[#allocation3 + $0x48] sm:$0xff]
      %v1526 = vld [vmem:[#allocation3 + $0x50] sm:$0xff]
      %v1527 = vld [vmem:[#allocation3 + $0x58] sm:$0xff]
      %v1528 = vld [vmem:[#allocation3 + $0x60] sm:$0xff]
      %v1529 = vld [vmem:[#allocation3 + $0x68] sm:$0xf]
      %v1530 = vld [vmem:[#allocation3 + $0x6c] sm:$0xff]
      %v1531 = vld [vmem:[#allocation3 + $0x74] sm:$0xff]
      %v1532 = vld [vmem:[#allocation3 + $0x7c] sm:$0xff]
      %v1533 = vld [vmem:[#allocation3 + $0x84] sm:$0xff]
      %v1534 = vld [vmem:[#allocation3 + $0x8c] sm:$0xf]
      %v1535 = vld [vmem:[#allocation3 + $0x90] sm:$0xff]
      %v1536 = vld [vmem:[#allocation3 + $0x98] sm:$0xff]
      %v1537 = vld [vmem:[#allocation3 + $0xa0] sm:$0xff]
      %v1538 = vld [vmem:[#allocation3 + $0xa8] sm:$0xff]
      %v1539 = vld [vmem:[#allocation3 + $0xb0] sm:$0xf]
      %v1540 = vld [vmem:[#allocation3 + $0xb4] sm:$0xff]
      %v1541 = vld [vmem:[#allocation3 + $0xbc] sm:$0xff]
      %v1542 = vld [vmem:[#allocation3 + $0xc4] sm:$0xff]
      %v1543 = vld [vmem:[#allocation3 + $0xcc] sm:$0xff]
      %v1544 = vld [vmem:[#allocation3 + $0xd4] sm:$0xf]
      %v1545 = vld [vmem:[#allocation3 + $0xd8] sm:$0xff]
      %v1546 = vld [vmem:[#allocation3 + $0xe0] sm:$0xff]
      %v1547 = vld [vmem:[#allocation3 + $0xe8] sm:$0xff]
      %v1548 = vld [vmem:[#allocation3 + $0xf0] sm:$0xff]
      %v1549 = vld [vmem:[#allocation3 + $0xf8] sm:$0xf]
      %v1550 = vld [vmem:[#allocation3 + $0xfc] sm:$0xff]
      %v1551 = vld [vmem:[#allocation3 + $0x104] sm:$0xff]
      %v1552 = vld [vmem:[#allocation3 + $0x10c] sm:$0xff]
      %v1553 = vld [vmem:[#allocation3 + $0x114] sm:$0xff]
      %v1554 = vld [vmem:[#allocation3 + $0x11c] sm:$0xf]
      %v1555 = vld [vmem:[%s1] sm:$0xf]
      %v1556 = vld [vmem:[%s1 + $0x4] sm:$0xf]
      %v1557 = vld [vmem:[%s1 + $0x8] sm:$0xf]
      %v1558 = vld [vmem:[%s1 + $0xc] sm:$0xf]
      %v1559 = vld [vmem:[%s1 + $0x10] sm:$0xf]
      %v1560 = vld [vmem:[%s1 + $0x14] sm:$0xf]
      %v1561 = vld [vmem:[%s1 + $0x18] sm:$0xf]
      %v1562 = vld [vmem:[%s1 + $0x1c] sm:$0xf]
      %v1563 = vld [vmem:[%s1 + $0x20] sm:$0xf]
      %v1564 = vld [vmem:[%s1 + $0x24] sm:$0xf]
      %v1565 = vld [vmem:[%s1 + $0x28] sm:$0xf]
      %v1566 = vld [vmem:[%s1 + $0x2c] sm:$0xf]
      %v1567 = vld [vmem:[%s1 + $0x30] sm:$0xf]
      %v1568 = vld [vmem:[%s1 + $0x34] sm:$0xf]
      %v1569 = vld [vmem:[%s1 + $0x38] sm:$0xf]
      %v1570 = vld [vmem:[%s1 + $0x3c] sm:$0xf]
      %v1571 = vld [vmem:[%s1 + $0x40] sm:$0xf]
      %v1572 = vld [vmem:[%s1 + $0x44] sm:$0xf]
      %v1573 = vld [vmem:[%s1 + $0x48] sm:$0xf]
      %v1574 = vld [vmem:[%s1 + $0x4c] sm:$0xf]
      %v1575 = vld [vmem:[%s1 + $0x50] sm:$0xf]
      %v1576 = vld [vmem:[%s1 + $0x54] sm:$0xf]
      %v1577 = vld [vmem:[%s1 + $0x58] sm:$0xf]
      %v1578 = vld [vmem:[%s1 + $0x5c] sm:$0xf]
      %v1579 = vld [vmem:[%s1 + $0x60] sm:$0xf]
      %v1580 = vld [vmem:[%s1 + $0x64] sm:$0xf]
      %v1581 = vld [vmem:[%s1 + $0x68] sm:$0xf]
      %v1582 = vld [vmem:[%s1 + $0x6c] sm:$0xf]
      %v1583 = vld [vmem:[%s1 + $0x70] sm:$0xf]
      %v1584 = vld [vmem:[%s1 + $0x74] sm:$0xf]
      %v1585 = vld [vmem:[%s1 + $0x78] sm:$0xf]
      %v1586 = vld [vmem:[%s1 + $0x7c] sm:$0xf]
      %v1587 = vld [vmem:[%s1 + $0x80] sm:$0xf]
      %v1588 = vld [vmem:[%s1 + $0x84] sm:$0xf]
      %v1589 = vld [vmem:[%s1 + $0x88] sm:$0xf]
      %v1590 = vld [vmem:[%s1 + $0x8c] sm:$0xf]
      %v1591 = vld [vmem:[%s1 + $0x90] sm:$0xf]
      %v1592 = vld [vmem:[%s1 + $0x94] sm:$0xf]
      %v1593 = vld [vmem:[%s1 + $0x98] sm:$0xf]
      %v1594 = vld [vmem:[%s1 + $0x9c] sm:$0xf]
      %v1595 = vld [vmem:[%s1 + $0xa0] sm:$0xf]
      %v1596 = vld [vmem:[%s1 + $0xa4] sm:$0xf]
      %v1597 = vld [vmem:[%s1 + $0xa8] sm:$0xf]
      %v1598 = vld [vmem:[%s1 + $0xac] sm:$0xf]
      %v1599 = vld [vmem:[%s1 + $0xb0] sm:$0xf]
      %v1600 = vld [vmem:[%s1 + $0xb4] sm:$0xf]
      %v1601 = vld [vmem:[%s1 + $0xb8] sm:$0xf]
      %v1602 = vld [vmem:[%s1 + $0xbc] sm:$0xf]
      %v1603 = vld [vmem:[%s1 + $0xc0] sm:$0xf]
      %v1604 = vld [vmem:[%s1 + $0xc4] sm:$0xf]
      %v1605 = vld [vmem:[%s1 + $0xc8] sm:$0xf]
      %v1606 = vld [vmem:[%s1 + $0xcc] sm:$0xf]
      %v1607 = vld [vmem:[%s1 + $0xd0] sm:$0xf]
      %v1608 = vld [vmem:[%s1 + $0xd4] sm:$0xf]
      %v1609 = vld [vmem:[%s1 + $0xd8] sm:$0xf]
      %v1610 = vld [vmem:[%s1 + $0xdc] sm:$0xf]
      %v1611 = vld [vmem:[%s1 + $0xe0] sm:$0xf]
      %v1612 = vld [vmem:[%s1 + $0xe4] sm:$0xf]
      %v1613 = vld [vmem:[%s1 + $0xe8] sm:$0xf]
      %v1614 = vld [vmem:[%s1 + $0xec] sm:$0xf]
      %v1615 = vld [vmem:[%s1 + $0xf0] sm:$0xf]
      %v1616 = vld [vmem:[%s1 + $0xf4] sm:$0xf]
      %v1617 = vld [vmem:[%s1 + $0xf8] sm:$0xf]
      %v1618 = vld [vmem:[%s1 + $0xfc] sm:$0xf]
      %v1619 = vld [vmem:[%s1 + $0x100] sm:$0xf]
      %v1620 = vld [vmem:[%s1 + $0x104] sm:$0xf]
      %v1621 = vld [vmem:[%s1 + $0x108] sm:$0xf]
      %v1622 = vld [vmem:[%s1 + $0x10c] sm:$0xf]
      %v1623 = vld [vmem:[%s1 + $0x110] sm:$0xf]
      %v1624 = vld [vmem:[%s1 + $0x114] sm:$0xf]
      %v1625 = vld [vmem:[%s1 + $0x118] sm:$0xf]
      %v1626 = vld [vmem:[%s1 + $0x11c] sm:$0xf]
      %v1627 = vld [vmem:[%s1 + $0x120] sm:$0xf]
      %v1628 = vld [vmem:[%s1 + $0x124] sm:$0xf]
      %v1629 = vld [vmem:[%s1 + $0x128] sm:$0xf]
      %v1630 = vld [vmem:[%s1 + $0x12c] sm:$0xf]
      %v1631 = vld [vmem:[%s1 + $0x130] sm:$0xf]
      %v1632 = vld [vmem:[%s1 + $0x134] sm:$0xf]
      %v1633 = vld [vmem:[%s1 + $0x138] sm:$0xf]
      %v1634 = vld [vmem:[%s1 + $0x13c] sm:$0xf]
      %v1635 = vld [vmem:[%s1 + $0x140] sm:$0xf]
      %v1636 = vld [vmem:[%s1 + $0x144] sm:$0xf]
      %v1637 = vld [vmem:[%s1 + $0x148] sm:$0xf]
      %v1638 = vld [vmem:[%s1 + $0x14c] sm:$0xf]
      %v1639 = vld [vmem:[%s1 + $0x150] sm:$0xf]
      %v1640 = vld [vmem:[%s1 + $0x154] sm:$0xf]
      %v1641 = vld [vmem:[%s1 + $0x158] sm:$0xf]
      %v1642 = vld [vmem:[%s1 + $0x15c] sm:$0xf]
      %v1643 = vld [vmem:[%s1 + $0x160] sm:$0xf]
      %v1644 = vld [vmem:[%s1 + $0x164] sm:$0xf]
      %v1645 = vld [vmem:[%s1 + $0x168] sm:$0xf]
      %v1646 = vld [vmem:[%s1 + $0x16c] sm:$0xf]
      %v1647 = vld [vmem:[%s1 + $0x170] sm:$0xf]
      %v1648 = vld [vmem:[%s1 + $0x174] sm:$0xf]
      %v1649 = vld [vmem:[%s1 + $0x178] sm:$0xf]
      %v1650 = vld [vmem:[%s1 + $0x17c] sm:$0xf]
      %v1651 = vld [vmem:[%s1 + $0x180] sm:$0xf]
      %v1652 = vld [vmem:[%s1 + $0x184] sm:$0xf]
      %v1653 = vld [vmem:[%s1 + $0x188] sm:$0xf]
      %v1654 = vld [vmem:[%s1 + $0x18c] sm:$0xf]
      %v1655 = vld [vmem:[%s1 + $0x190] sm:$0xf]
      %v1656 = vld [vmem:[%s1 + $0x194] sm:$0xf]
      %v1657 = vld [vmem:[%s1 + $0x198] sm:$0xf]
      %v1658 = vld [vmem:[%s1 + $0x19c] sm:$0xf]
      %v1659 = vld [vmem:[%s1 + $0x1a0] sm:$0xf]
      %v1660 = vld [vmem:[%s1 + $0x1a4] sm:$0xf]
      %v1661 = vld [vmem:[%s1 + $0x1a8] sm:$0xf]
      %v1662 = vld [vmem:[%s1 + $0x1ac] sm:$0xf]
      %v1663 = vld [vmem:[%s1 + $0x1b0] sm:$0xf]
      %v1664 = vld [vmem:[%s1 + $0x1b4] sm:$0xf]
      %v1665 = vld [vmem:[%s1 + $0x1b8] sm:$0xf]
      %v1666 = vld [vmem:[%s1 + $0x1bc] sm:$0xf]
      %v1667 = vld [vmem:[%s1 + $0x1c0] sm:$0xf]
      %v1668 = vld [vmem:[%s1 + $0x1c4] sm:$0xf]
      %v1669 = vld [vmem:[%s1 + $0x1c8] sm:$0xf]
      %v1670 = vld [vmem:[%s1 + $0x1cc] sm:$0xf]
      %v1671 = vld [vmem:[%s1 + $0x1d0] sm:$0xf]
      %v1672 = vld [vmem:[%s1 + $0x1d4] sm:$0xf]
      %v1673 = vld [vmem:[%s1 + $0x1d8] sm:$0xf]
      %v1674 = vld [vmem:[%s1 + $0x1dc] sm:$0xf]
      %v1675 = vld [vmem:[%s1 + $0x1e0] sm:$0xf]
      %v1676 = vld [vmem:[%s1 + $0x1e4] sm:$0xf]
      %v1677 = vld [vmem:[%s1 + $0x1e8] sm:$0xf]
      %v1678 = vld [vmem:[%s1 + $0x1ec] sm:$0xf]
      %v1679 = vld [vmem:[%s1 + $0x1f0] sm:$0xf]
      %v1680 = vld [vmem:[%s1 + $0x1f4] sm:$0xf]
      %v1681 = vld [vmem:[%s1 + $0x1f8] sm:$0xf]
      %v1682 = vld [vmem:[%s1 + $0x1fc] sm:$0xf]
      %v1683 = vld [vmem:[%s1 + $0x200] sm:$0xf]
      %v1684 = vld [vmem:[%s1 + $0x204] sm:$0xf]
      %v1685 = vld [vmem:[%s1 + $0x208] sm:$0xf]
      %v1686 = vld [vmem:[%s1 + $0x20c] sm:$0xf]
      %v1687 = vld [vmem:[%s1 + $0x210] sm:$0xf]
      %v1688 = vld [vmem:[%s1 + $0x214] sm:$0xf]
      %v1689 = vld [vmem:[%s1 + $0x218] sm:$0xf]
      %v1690 = vld [vmem:[%s1 + $0x21c] sm:$0xf]
      %v1691 = vld [vmem:[%s1 + $0x220] sm:$0xf]
      %v1692 = vld [vmem:[%s1 + $0x224] sm:$0xf]
      %v1693 = vld [vmem:[%s1 + $0x228] sm:$0xf]
      %v1694 = vld [vmem:[%s1 + $0x22c] sm:$0xf]
      %v1695 = vld [vmem:[%s1 + $0x230] sm:$0xf]
      %v1696 = vld [vmem:[%s1 + $0x234] sm:$0xf]
      %v1697 = vld [vmem:[%s1 + $0x238] sm:$0xf]
      %v1698 = vld [vmem:[%s1 + $0x23c] sm:$0xf]
      %v1739 = vunpack.c.l.b16 %v1515
      %v1740 = vunpack.c.h.b16 %v1515
      %v1741 = vunpack.c.l.b16 %v1516
      %v1742 = vunpack.c.h.b16 %v1516
      %v1743 = vunpack.c.l.b16 %v1517
      %v1744 = vunpack.c.h.b16 %v1517
      %v1745 = vunpack.c.l.b16 %v1518
      %v1746 = vunpack.c.h.b16 %v1518
      %v1747 = vunpack.c.l.b16 %v1519
      %v1748 = vunpack.c.l.b16 %v1520
      %v1749 = vunpack.c.h.b16 %v1520
      %v1750 = vunpack.c.l.b16 %v1521
      %v1751 = vunpack.c.h.b16 %v1521
      %v1752 = vunpack.c.l.b16 %v1522
      %v1753 = vunpack.c.h.b16 %v1522
      %v1754 = vunpack.c.l.b16 %v1523
      %v1755 = vunpack.c.h.b16 %v1523
      %v1756 = vunpack.c.l.b16 %v1524
      %v1757 = vunpack.c.l.b16 %v1525
      %v1758 = vunpack.c.h.b16 %v1525
      %v1759 = vunpack.c.l.b16 %v1526
      %v1760 = vunpack.c.h.b16 %v1526
      %v1761 = vunpack.c.l.b16 %v1527
      %v1762 = vunpack.c.h.b16 %v1527
      %v1763 = vunpack.c.l.b16 %v1528
      %v1764 = vunpack.c.h.b16 %v1528
      %v1765 = vunpack.c.l.b16 %v1529
      %v1766 = vunpack.c.l.b16 %v1530
      %v1767 = vunpack.c.h.b16 %v1530
      %v1768 = vunpack.c.l.b16 %v1531
      %v1769 = vunpack.c.h.b16 %v1531
      %v1770 = vunpack.c.l.b16 %v1532
      %v1771 = vunpack.c.h.b16 %v1532
      %v1772 = vunpack.c.l.b16 %v1533
      %v1773 = vunpack.c.h.b16 %v1533
      %v1774 = vunpack.c.l.b16 %v1534
      %v1775 = vunpack.c.l.b16 %v1535
      %v1776 = vunpack.c.h.b16 %v1535
      %v1777 = vunpack.c.l.b16 %v1536
      %v1778 = vunpack.c.h.b16 %v1536
      %v1779 = vunpack.c.l.b16 %v1537
      %v1780 = vunpack.c.h.b16 %v1537
      %v1781 = vunpack.c.l.b16 %v1538
      %v1782 = vunpack.c.h.b16 %v1538
      %v1783 = vunpack.c.l.b16 %v1539
      %v1784 = vunpack.c.l.b16 %v1540
      %v1785 = vunpack.c.h.b16 %v1540
      %v1786 = vunpack.c.l.b16 %v1541
      %v1787 = vunpack.c.h.b16 %v1541
      %v1788 = vunpack.c.l.b16 %v1542
      %v1789 = vunpack.c.h.b16 %v1542
      %v1790 = vunpack.c.l.b16 %v1543
      %v1791 = vunpack.c.h.b16 %v1543
      %v1792 = vunpack.c.l.b16 %v1544
      %v1793 = vunpack.c.l.b16 %v1545
      %v1794 = vunpack.c.h.b16 %v1545
      %v1795 = vunpack.c.l.b16 %v1546
      %v1796 = vunpack.c.h.b16 %v1546
      %v1797 = vunpack.c.l.b16 %v1547
      %v1798 = vunpack.c.h.b16 %v1547
      %v1799 = vunpack.c.l.b16 %v1548
      %v1800 = vunpack.c.h.b16 %v1548
      %v1801 = vunpack.c.l.b16 %v1549
      %v1802 = vunpack.c.l.b16 %v1550
      %v1803 = vunpack.c.h.b16 %v1550
      %v1804 = vunpack.c.l.b16 %v1551
      %v1805 = vunpack.c.h.b16 %v1551
      %v1806 = vunpack.c.l.b16 %v1552
      %v1807 = vunpack.c.h.b16 %v1552
      %v1808 = vunpack.c.l.b16 %v1553
      %v1809 = vunpack.c.h.b16 %v1553
      %v1810 = vunpack.c.l.b16 %v1554
      %v1811 = vpack.c.b16 %v1748, %v1739
      %v1812 = vpack.c.b16 %v1749, %v1740
      %v1813 = vpack.c.b16 %v1750, %v1741
      %v1814 = vpack.c.b16 %v1751, %v1742
      %v1815 = vpack.c.b16 %v1752, %v1743
      %v1816 = vpack.c.b16 %v1753, %v1744
      %v1817 = vpack.c.b16 %v1754, %v1745
      %v1818 = vpack.c.b16 %v1755, %v1746
      %v1819 = vpack.c.b16 %v1756, %v1747
      %v1820 = vpack.c.b16 %v1766, %v1757
      %v1821 = vpack.c.b16 %v1767, %v1758
      %v1822 = vpack.c.b16 %v1768, %v1759
      %v1823 = vpack.c.b16 %v1769, %v1760
      %v1824 = vpack.c.b16 %v1770, %v1761
      %v1825 = vpack.c.b16 %v1771, %v1762
      %v1826 = vpack.c.b16 %v1772, %v1763
      %v1827 = vpack.c.b16 %v1773, %v1764
      %v1828 = vpack.c.b16 %v1774, %v1765
      %v1829 = vpack.c.b16 %v1784, %v1775
      %v1830 = vpack.c.b16 %v1785, %v1776
      %v1831 = vpack.c.b16 %v1786, %v1777
      %v1832 = vpack.c.b16 %v1787, %v1778
      %v1833 = vpack.c.b16 %v1788, %v1779
      %v1834 = vpack.c.b16 %v1789, %v1780
      %v1835 = vpack.c.b16 %v1790, %v1781
      %v1836 = vpack.c.b16 %v1791, %v1782
      %v1837 = vpack.c.b16 %v1792, %v1783
      %v1838 = vpack.c.b16 %v1802, %v1793
      %v1839 = vpack.c.b16 %v1803, %v1794
      %v1840 = vpack.c.b16 %v1804, %v1795
      %v1841 = vpack.c.b16 %v1805, %v1796
      %v1842 = vpack.c.b16 %v1806, %v1797
      %v1843 = vpack.c.b16 %v1807, %v1798
      %v1844 = vpack.c.b16 %v1808, %v1799
      %v1845 = vpack.c.b16 %v1809, %v1800
      %v1846 = vpack.c.b16 %v1810, %v1801
      %v2027 = vunpack.c.l.b16 %v1555
      %v2028 = vunpack.c.l.b16 %v1556
      %v2029 = vunpack.c.l.b16 %v1557
      %v2030 = vunpack.c.l.b16 %v1558
      %v2031 = vunpack.c.l.b16 %v1559
      %v2032 = vunpack.c.l.b16 %v1560
      %v2033 = vunpack.c.l.b16 %v1561
      %v2034 = vunpack.c.l.b16 %v1562
      %v2035 = vunpack.c.l.b16 %v1563
      %v2036 = vunpack.c.l.b16 %v1564
      %v2037 = vunpack.c.l.b16 %v1565
      %v2038 = vunpack.c.l.b16 %v1566
      %v2039 = vunpack.c.l.b16 %v1567
      %v2040 = vunpack.c.l.b16 %v1568
      %v2041 = vunpack.c.l.b16 %v1569
      %v2042 = vunpack.c.l.b16 %v1570
      %v2043 = vunpack.c.l.b16 %v1571
      %v2044 = vunpack.c.l.b16 %v1572
      %v2045 = vunpack.c.l.b16 %v1573
      %v2046 = vunpack.c.l.b16 %v1574
      %v2047 = vunpack.c.l.b16 %v1575
      %v2048 = vunpack.c.l.b16 %v1576
      %v2049 = vunpack.c.l.b16 %v1577
      %v2050 = vunpack.c.l.b16 %v1578
      %v2051 = vunpack.c.l.b16 %v1579
      %v2052 = vunpack.c.l.b16 %v1580
      %v2053 = vunpack.c.l.b16 %v1581
      %v2054 = vunpack.c.l.b16 %v1582
      %v2055 = vunpack.c.l.b16 %v1583
      %v2056 = vunpack.c.l.b16 %v1584
      %v2057 = vunpack.c.l.b16 %v1585
      %v2058 = vunpack.c.l.b16 %v1586
      %v2059 = vunpack.c.l.b16 %v1587
      %v2060 = vunpack.c.l.b16 %v1588
      %v2061 = vunpack.c.l.b16 %v1589
      %v2062 = vunpack.c.l.b16 %v1590
      %v2063 = vunpack.c.l.b16 %v1591
      %v2064 = vunpack.c.l.b16 %v1592
      %v2065 = vunpack.c.l.b16 %v1593
      %v2066 = vunpack.c.l.b16 %v1594
      %v2067 = vunpack.c.l.b16 %v1595
      %v2068 = vunpack.c.l.b16 %v1596
      %v2069 = vunpack.c.l.b16 %v1597
      %v2070 = vunpack.c.l.b16 %v1598
      %v2071 = vunpack.c.l.b16 %v1599
      %v2072 = vunpack.c.l.b16 %v1600
      %v2073 = vunpack.c.l.b16 %v1601
      %v2074 = vunpack.c.l.b16 %v1602
      %v2075 = vunpack.c.l.b16 %v1603
      %v2076 = vunpack.c.l.b16 %v1604
      %v2077 = vunpack.c.l.b16 %v1605
      %v2078 = vunpack.c.l.b16 %v1606
      %v2079 = vunpack.c.l.b16 %v1607
      %v2080 = vunpack.c.l.b16 %v1608
      %v2081 = vunpack.c.l.b16 %v1609
      %v2082 = vunpack.c.l.b16 %v1610
      %v2083 = vunpack.c.l.b16 %v1611
      %v2084 = vunpack.c.l.b16 %v1612
      %v2085 = vunpack.c.l.b16 %v1613
      %v2086 = vunpack.c.l.b16 %v1614
      %v2087 = vunpack.c.l.b16 %v1615
      %v2088 = vunpack.c.l.b16 %v1616
      %v2089 = vunpack.c.l.b16 %v1617
      %v2090 = vunpack.c.l.b16 %v1618
      %v2091 = vunpack.c.l.b16 %v1619
      %v2092 = vunpack.c.l.b16 %v1620
      %v2093 = vunpack.c.l.b16 %v1621
      %v2094 = vunpack.c.l.b16 %v1622
      %v2095 = vunpack.c.l.b16 %v1623
      %v2096 = vunpack.c.l.b16 %v1624
      %v2097 = vunpack.c.l.b16 %v1625
      %v2098 = vunpack.c.l.b16 %v1626
      %v2099 = vunpack.c.l.b16 %v1627
      %v2100 = vunpack.c.l.b16 %v1628
      %v2101 = vunpack.c.l.b16 %v1629
      %v2102 = vunpack.c.l.b16 %v1630
      %v2103 = vunpack.c.l.b16 %v1631
      %v2104 = vunpack.c.l.b16 %v1632
      %v2105 = vunpack.c.l.b16 %v1633
      %v2106 = vunpack.c.l.b16 %v1634
      %v2107 = vunpack.c.l.b16 %v1635
      %v2108 = vunpack.c.l.b16 %v1636
      %v2109 = vunpack.c.l.b16 %v1637
      %v2110 = vunpack.c.l.b16 %v1638
      %v2111 = vunpack.c.l.b16 %v1639
      %v2112 = vunpack.c.l.b16 %v1640
      %v2113 = vunpack.c.l.b16 %v1641
      %v2114 = vunpack.c.l.b16 %v1642
      %v2115 = vunpack.c.l.b16 %v1643
      %v2116 = vunpack.c.l.b16 %v1644
      %v2117 = vunpack.c.l.b16 %v1645
      %v2118 = vunpack.c.l.b16 %v1646
      %v2119 = vunpack.c.l.b16 %v1647
      %v2120 = vunpack.c.l.b16 %v1648
      %v2121 = vunpack.c.l.b16 %v1649
      %v2122 = vunpack.c.l.b16 %v1650
      %v2123 = vunpack.c.l.b16 %v1651
      %v2124 = vunpack.c.l.b16 %v1652
      %v2125 = vunpack.c.l.b16 %v1653
      %v2126 = vunpack.c.l.b16 %v1654
      %v2127 = vunpack.c.l.b16 %v1655
      %v2128 = vunpack.c.l.b16 %v1656
      %v2129 = vunpack.c.l.b16 %v1657
      %v2130 = vunpack.c.l.b16 %v1658
      %v2131 = vunpack.c.l.b16 %v1659
      %v2132 = vunpack.c.l.b16 %v1660
      %v2133 = vunpack.c.l.b16 %v1661
      %v2134 = vunpack.c.l.b16 %v1662
      %v2135 = vunpack.c.l.b16 %v1663
      %v2136 = vunpack.c.l.b16 %v1664
      %v2137 = vunpack.c.l.b16 %v1665
      %v2138 = vunpack.c.l.b16 %v1666
      %v2139 = vunpack.c.l.b16 %v1667
      %v2140 = vunpack.c.l.b16 %v1668
      %v2141 = vunpack.c.l.b16 %v1669
      %v2142 = vunpack.c.l.b16 %v1670
      %v2143 = vunpack.c.l.b16 %v1671
      %v2144 = vunpack.c.l.b16 %v1672
      %v2145 = vunpack.c.l.b16 %v1673
      %v2146 = vunpack.c.l.b16 %v1674
      %v2147 = vunpack.c.l.b16 %v1675
      %v2148 = vunpack.c.l.b16 %v1676
      %v2149 = vunpack.c.l.b16 %v1677
      %v2150 = vunpack.c.l.b16 %v1678
      %v2151 = vunpack.c.l.b16 %v1679
      %v2152 = vunpack.c.l.b16 %v1680
      %v2153 = vunpack.c.l.b16 %v1681
      %v2154 = vunpack.c.l.b16 %v1682
      %v2155 = vunpack.c.l.b16 %v1683
      %v2156 = vunpack.c.l.b16 %v1684
      %v2157 = vunpack.c.l.b16 %v1685
      %v2158 = vunpack.c.l.b16 %v1686
      %v2159 = vunpack.c.l.b16 %v1687
      %v2160 = vunpack.c.l.b16 %v1688
      %v2161 = vunpack.c.l.b16 %v1689
      %v2162 = vunpack.c.l.b16 %v1690
      %v2163 = vunpack.c.l.b16 %v1691
      %v2164 = vunpack.c.l.b16 %v1692
      %v2165 = vunpack.c.l.b16 %v1693
      %v2166 = vunpack.c.l.b16 %v1694
      %v2167 = vunpack.c.l.b16 %v1695
      %v2168 = vunpack.c.l.b16 %v1696
      %v2169 = vunpack.c.l.b16 %v1697
      %v2170 = vunpack.c.l.b16 %v1698
      %v2171 = vpack.c.b16 %v2028, %v2027
      %v2172 = vpack.c.b16 %v2030, %v2029
      %v2173 = vpack.c.b16 %v2032, %v2031
      %v2174 = vpack.c.b16 %v2034, %v2033
      %v2175 = vpack.c.b16 %v2036, %v2035
      %v2176 = vpack.c.b16 %v2038, %v2037
      %v2177 = vpack.c.b16 %v2040, %v2039
      %v2178 = vpack.c.b16 %v2042, %v2041
      %v2179 = vpack.c.b16 %v2044, %v2043
      %v2180 = vpack.c.b16 %v2046, %v2045
      %v2181 = vpack.c.b16 %v2048, %v2047
      %v2182 = vpack.c.b16 %v2050, %v2049
      %v2183 = vpack.c.b16 %v2052, %v2051
      %v2184 = vpack.c.b16 %v2054, %v2053
      %v2185 = vpack.c.b16 %v2056, %v2055
      %v2186 = vpack.c.b16 %v2058, %v2057
      %v2187 = vpack.c.b16 %v2060, %v2059
      %v2188 = vpack.c.b16 %v2062, %v2061
      %v2189 = vpack.c.b16 %v2064, %v2063
      %v2190 = vpack.c.b16 %v2066, %v2065
      %v2191 = vpack.c.b16 %v2068, %v2067
      %v2192 = vpack.c.b16 %v2070, %v2069
      %v2193 = vpack.c.b16 %v2072, %v2071
      %v2194 = vpack.c.b16 %v2074, %v2073
      %v2195 = vpack.c.b16 %v2076, %v2075
      %v2196 = vpack.c.b16 %v2078, %v2077
      %v2197 = vpack.c.b16 %v2080, %v2079
      %v2198 = vpack.c.b16 %v2082, %v2081
      %v2199 = vpack.c.b16 %v2084, %v2083
      %v2200 = vpack.c.b16 %v2086, %v2085
      %v2201 = vpack.c.b16 %v2088, %v2087
      %v2202 = vpack.c.b16 %v2090, %v2089
      %v2203 = vpack.c.b16 %v2092, %v2091
      %v2204 = vpack.c.b16 %v2094, %v2093
      %v2205 = vpack.c.b16 %v2096, %v2095
      %v2206 = vpack.c.b16 %v2098, %v2097
      %v2207 = vpack.c.b16 %v2100, %v2099
      %v2208 = vpack.c.b16 %v2102, %v2101
      %v2209 = vpack.c.b16 %v2104, %v2103
      %v2210 = vpack.c.b16 %v2106, %v2105
      %v2211 = vpack.c.b16 %v2108, %v2107
      %v2212 = vpack.c.b16 %v2110, %v2109
      %v2213 = vpack.c.b16 %v2112, %v2111
      %v2214 = vpack.c.b16 %v2114, %v2113
      %v2215 = vpack.c.b16 %v2116, %v2115
      %v2216 = vpack.c.b16 %v2118, %v2117
      %v2217 = vpack.c.b16 %v2120, %v2119
      %v2218 = vpack.c.b16 %v2122, %v2121
      %v2219 = vpack.c.b16 %v2124, %v2123
      %v2220 = vpack.c.b16 %v2126, %v2125
      %v2221 = vpack.c.b16 %v2128, %v2127
      %v2222 = vpack.c.b16 %v2130, %v2129
      %v2223 = vpack.c.b16 %v2132, %v2131
      %v2224 = vpack.c.b16 %v2134, %v2133
      %v2225 = vpack.c.b16 %v2136, %v2135
      %v2226 = vpack.c.b16 %v2138, %v2137
      %v2227 = vpack.c.b16 %v2140, %v2139
      %v2228 = vpack.c.b16 %v2142, %v2141
      %v2229 = vpack.c.b16 %v2144, %v2143
      %v2230 = vpack.c.b16 %v2146, %v2145
      %v2231 = vpack.c.b16 %v2148, %v2147
      %v2232 = vpack.c.b16 %v2150, %v2149
      %v2233 = vpack.c.b16 %v2152, %v2151
      %v2234 = vpack.c.b16 %v2154, %v2153
      %v2235 = vpack.c.b16 %v2156, %v2155
      %v2236 = vpack.c.b16 %v2158, %v2157
      %v2237 = vpack.c.b16 %v2160, %v2159
      %v2238 = vpack.c.b16 %v2162, %v2161
      %v2239 = vpack.c.b16 %v2164, %v2163
      %v2240 = vpack.c.b16 %v2166, %v2165
      %v2241 = vpack.c.b16 %v2168, %v2167
      %v2242 = vpack.c.b16 %v2170, %v2169
      %2315 = vmatpush.bf16.msra.mxu0 %v2178
      %2316 = vmatpush.bf16.msra.mxu0 %v2177
      %2317 = vmatpush.bf16.msra.mxu0 %v2176
      %2318 = vmatpush.bf16.msra.mxu0 %v2175
      %2319 = vmatpush.bf16.msra.mxu0 %v2174
      %2320 = vmatpush.bf16.msra.mxu0 %v2173
      %2321 = vmatpush.bf16.msra.mxu0 %v2172
      %2322 = vmatpush.bf16.msra.mxu0 %v2171
      %2323 = vmatmul.bf16.gmra.mxu0 %v1811
      %v2324 = vpop.f32.mrf.mxu0
      %v2325 = vadd.f32 0.0, %v2324
      %v2326 = vpop.f32.mrf.mxu0
      %v2327 = vadd.f32 0.0, %v2326
      %2328 = vmatmul.bf16.gmra.mxu0 %v1820
      %v2329 = vpop.f32.mrf.mxu0
      %v2330 = vadd.f32 0.0, %v2329
      %v2331 = vpop.f32.mrf.mxu0
      %v2332 = vadd.f32 0.0, %v2331
      %2333 = vmatmul.bf16.gmra.mxu0 %v1829
      %v2334 = vpop.f32.mrf.mxu0
      %v2335 = vadd.f32 0.0, %v2334
      %v2336 = vpop.f32.mrf.mxu0
      %v2337 = vadd.f32 0.0, %v2336
      %2338 = vmatmul.bf16.gmra.mxu0 %v1838
      %v2339 = vpop.f32.mrf.mxu0
      %v2340 = vadd.f32 0.0, %v2339
      %v2341 = vpop.f32.mrf.mxu0
      %v2342 = vadd.f32 0.0, %v2341
      %2343 = vdwg.mxu0
      %2344 = vmatpush.bf16.msra.mxu0 %v2186
      %2345 = vmatpush.bf16.msra.mxu0 %v2185
      %2346 = vmatpush.bf16.msra.mxu0 %v2184
      %2347 = vmatpush.bf16.msra.mxu0 %v2183
      %2348 = vmatpush.bf16.msra.mxu0 %v2182
      %2349 = vmatpush.bf16.msra.mxu0 %v2181
      %2350 = vmatpush.bf16.msra.mxu0 %v2180
      %2351 = vmatpush.bf16.msra.mxu0 %v2179
      %2352 = vmatmul.bf16.gmra.mxu0 %v1812
      %v2353 = vpop.f32.mrf.mxu0
      %v2354 = vadd.f32 %v2325, %v2353
      %v2355 = vpop.f32.mrf.mxu0
      %v2356 = vadd.f32 %v2327, %v2355
      %2357 = vmatmul.bf16.gmra.mxu0 %v1821
      %v2358 = vpop.f32.mrf.mxu0
      %v2359 = vadd.f32 %v2330, %v2358
      %v2360 = vpop.f32.mrf.mxu0
      %v2361 = vadd.f32 %v2332, %v2360
      %2362 = vmatmul.bf16.gmra.mxu0 %v1830
      %v2363 = vpop.f32.mrf.mxu0
      %v2364 = vadd.f32 %v2335, %v2363
      %v2365 = vpop.f32.mrf.mxu0
      %v2366 = vadd.f32 %v2337, %v2365
      %2367 = vmatmul.bf16.gmra.mxu0 %v1839
      %v2368 = vpop.f32.mrf.mxu0
      %v2369 = vadd.f32 %v2340, %v2368
      %v2370 = vpop.f32.mrf.mxu0
      %v2371 = vadd.f32 %v2342, %v2370
      %2372 = vdwg.mxu0
      %2373 = vmatpush.bf16.msra.mxu0 %v2194
      %2374 = vmatpush.bf16.msra.mxu0 %v2193
      %2375 = vmatpush.bf16.msra.mxu0 %v2192
      %2376 = vmatpush.bf16.msra.mxu0 %v2191
      %2377 = vmatpush.bf16.msra.mxu0 %v2190
      %2378 = vmatpush.bf16.msra.mxu0 %v2189
      %2379 = vmatpush.bf16.msra.mxu0 %v2188
      %2380 = vmatpush.bf16.msra.mxu0 %v2187
      %2381 = vmatmul.bf16.gmra.mxu0 %v1813
      %v2382 = vpop.f32.mrf.mxu0
      %v2383 = vadd.f32 %v2354, %v2382
      %v2384 = vpop.f32.mrf.mxu0
      %v2385 = vadd.f32 %v2356, %v2384
      %2386 = vmatmul.bf16.gmra.mxu0 %v1822
      %v2387 = vpop.f32.mrf.mxu0
      %v2388 = vadd.f32 %v2359, %v2387
      %v2389 = vpop.f32.mrf.mxu0
      %v2390 = vadd.f32 %v2361, %v2389
      %2391 = vmatmul.bf16.gmra.mxu0 %v1831
      %v2392 = vpop.f32.mrf.mxu0
      %v2393 = vadd.f32 %v2364, %v2392
      %v2394 = vpop.f32.mrf.mxu0
      %v2395 = vadd.f32 %v2366, %v2394
      %2396 = vmatmul.bf16.gmra.mxu0 %v1840
      %v2397 = vpop.f32.mrf.mxu0
      %v2398 = vadd.f32 %v2369, %v2397
      %v2399 = vpop.f32.mrf.mxu0
      %v2400 = vadd.f32 %v2371, %v2399
      %2401 = vdwg.mxu0
      %2402 = vmatpush.bf16.msra.mxu0 %v2202
      %2403 = vmatpush.bf16.msra.mxu0 %v2201
      %2404 = vmatpush.bf16.msra.mxu0 %v2200
      %2405 = vmatpush.bf16.msra.mxu0 %v2199
      %2406 = vmatpush.bf16.msra.mxu0 %v2198
      %2407 = vmatpush.bf16.msra.mxu0 %v2197
      %2408 = vmatpush.bf16.msra.mxu0 %v2196
      %2409 = vmatpush.bf16.msra.mxu0 %v2195
      %2410 = vmatmul.bf16.gmra.mxu0 %v1814
      %v2411 = vpop.f32.mrf.mxu0
      %v2412 = vadd.f32 %v2383, %v2411
      %v2413 = vpop.f32.mrf.mxu0
      %v2414 = vadd.f32 %v2385, %v2413
      %2415 = vmatmul.bf16.gmra.mxu0 %v1823
      %v2416 = vpop.f32.mrf.mxu0
      %v2417 = vadd.f32 %v2388, %v2416
      %v2418 = vpop.f32.mrf.mxu0
      %v2419 = vadd.f32 %v2390, %v2418
      %2420 = vmatmul.bf16.gmra.mxu0 %v1832
      %v2421 = vpop.f32.mrf.mxu0
      %v2422 = vadd.f32 %v2393, %v2421
      %v2423 = vpop.f32.mrf.mxu0
      %v2424 = vadd.f32 %v2395, %v2423
      %2425 = vmatmul.bf16.gmra.mxu0 %v1841
      %v2426 = vpop.f32.mrf.mxu0
      %v2427 = vadd.f32 %v2398, %v2426
      %v2428 = vpop.f32.mrf.mxu0
      %v2429 = vadd.f32 %v2400, %v2428
      %2430 = vdwg.mxu0
      %2431 = vmatpush.bf16.msra.mxu0 %v2210
      %2432 = vmatpush.bf16.msra.mxu0 %v2209
      %2433 = vmatpush.bf16.msra.mxu0 %v2208
      %2434 = vmatpush.bf16.msra.mxu0 %v2207
      %2435 = vmatpush.bf16.msra.mxu0 %v2206
      %2436 = vmatpush.bf16.msra.mxu0 %v2205
      %2437 = vmatpush.bf16.msra.mxu0 %v2204
      %2438 = vmatpush.bf16.msra.mxu0 %v2203
      %2439 = vmatmul.bf16.gmra.mxu0 %v1815
      %v2440 = vpop.f32.mrf.mxu0
      %v2441 = vadd.f32 %v2412, %v2440
      %v2442 = vpop.f32.mrf.mxu0
      %v2443 = vadd.f32 %v2414, %v2442
      %2444 = vmatmul.bf16.gmra.mxu0 %v1824
      %v2445 = vpop.f32.mrf.mxu0
      %v2446 = vadd.f32 %v2417, %v2445
      %v2447 = vpop.f32.mrf.mxu0
      %v2448 = vadd.f32 %v2419, %v2447
      %2449 = vmatmul.bf16.gmra.mxu0 %v1833
      %v2450 = vpop.f32.mrf.mxu0
      %v2451 = vadd.f32 %v2422, %v2450
      %v2452 = vpop.f32.mrf.mxu0
      %v2453 = vadd.f32 %v2424, %v2452
      %2454 = vmatmul.bf16.gmra.mxu0 %v1842
      %v2455 = vpop.f32.mrf.mxu0
      %v2456 = vadd.f32 %v2427, %v2455
      %v2457 = vpop.f32.mrf.mxu0
      %v2458 = vadd.f32 %v2429, %v2457
      %2459 = vdwg.mxu0
      %2460 = vmatpush.bf16.msra.mxu0 %v2218
      %2461 = vmatpush.bf16.msra.mxu0 %v2217
      %2462 = vmatpush.bf16.msra.mxu0 %v2216
      %2463 = vmatpush.bf16.msra.mxu0 %v2215
      %2464 = vmatpush.bf16.msra.mxu0 %v2214
      %2465 = vmatpush.bf16.msra.mxu0 %v2213
      %2466 = vmatpush.bf16.msra.mxu0 %v2212
      %2467 = vmatpush.bf16.msra.mxu0 %v2211
      %2468 = vmatmul.bf16.gmra.mxu0 %v1816
      %v2469 = vpop.f32.mrf.mxu0
      %v2470 = vadd.f32 %v2441, %v2469
      %v2471 = vpop.f32.mrf.mxu0
      %v2472 = vadd.f32 %v2443, %v2471
      %2473 = vmatmul.bf16.gmra.mxu0 %v1825
      %v2474 = vpop.f32.mrf.mxu0
      %v2475 = vadd.f32 %v2446, %v2474
      %v2476 = vpop.f32.mrf.mxu0
      %v2477 = vadd.f32 %v2448, %v2476
      %2478 = vmatmul.bf16.gmra.mxu0 %v1834
      %v2479 = vpop.f32.mrf.mxu0
      %v2480 = vadd.f32 %v2451, %v2479
      %v2481 = vpop.f32.mrf.mxu0
      %v2482 = vadd.f32 %v2453, %v2481
      %2483 = vmatmul.bf16.gmra.mxu0 %v1843
      %v2484 = vpop.f32.mrf.mxu0
      %v2485 = vadd.f32 %v2456, %v2484
      %v2486 = vpop.f32.mrf.mxu0
      %v2487 = vadd.f32 %v2458, %v2486
      %2488 = vdwg.mxu0
      %2489 = vmatpush.bf16.msra.mxu0 %v2226
      %2490 = vmatpush.bf16.msra.mxu0 %v2225
      %2491 = vmatpush.bf16.msra.mxu0 %v2224
      %2492 = vmatpush.bf16.msra.mxu0 %v2223
      %2493 = vmatpush.bf16.msra.mxu0 %v2222
      %2494 = vmatpush.bf16.msra.mxu0 %v2221
      %2495 = vmatpush.bf16.msra.mxu0 %v2220
      %2496 = vmatpush.bf16.msra.mxu0 %v2219
      %2497 = vmatmul.bf16.gmra.mxu0 %v1817
      %v2498 = vpop.f32.mrf.mxu0
      %v2499 = vadd.f32 %v2470, %v2498
      %v2500 = vpop.f32.mrf.mxu0
      %v2501 = vadd.f32 %v2472, %v2500
      %2502 = vmatmul.bf16.gmra.mxu0 %v1826
      %v2503 = vpop.f32.mrf.mxu0
      %v2504 = vadd.f32 %v2475, %v2503
      %v2505 = vpop.f32.mrf.mxu0
      %v2506 = vadd.f32 %v2477, %v2505
      %2507 = vmatmul.bf16.gmra.mxu0 %v1835
      %v2508 = vpop.f32.mrf.mxu0
      %v2509 = vadd.f32 %v2480, %v2508
      %v2510 = vpop.f32.mrf.mxu0
      %v2511 = vadd.f32 %v2482, %v2510
      %2512 = vmatmul.bf16.gmra.mxu0 %v1844
      %v2513 = vpop.f32.mrf.mxu0
      %v2514 = vadd.f32 %v2485, %v2513
      %v2515 = vpop.f32.mrf.mxu0
      %v2516 = vadd.f32 %v2487, %v2515
      %2517 = vdwg.mxu0
      %2518 = vmatpush.bf16.msra.mxu0 %v2234
      %2519 = vmatpush.bf16.msra.mxu0 %v2233
      %2520 = vmatpush.bf16.msra.mxu0 %v2232
      %2521 = vmatpush.bf16.msra.mxu0 %v2231
      %2522 = vmatpush.bf16.msra.mxu0 %v2230
      %2523 = vmatpush.bf16.msra.mxu0 %v2229
      %2524 = vmatpush.bf16.msra.mxu0 %v2228
      %2525 = vmatpush.bf16.msra.mxu0 %v2227
      %2526 = vmatmul.bf16.gmra.mxu0 %v1818
      %v2527 = vpop.f32.mrf.mxu0
      %v2528 = vadd.f32 %v2499, %v2527
      %v2529 = vpop.f32.mrf.mxu0
      %v2530 = vadd.f32 %v2501, %v2529
      %2531 = vmatmul.bf16.gmra.mxu0 %v1827
      %v2532 = vpop.f32.mrf.mxu0
      %v2533 = vadd.f32 %v2504, %v2532
      %v2534 = vpop.f32.mrf.mxu0
      %v2535 = vadd.f32 %v2506, %v2534
      %2536 = vmatmul.bf16.gmra.mxu0 %v1836
      %v2537 = vpop.f32.mrf.mxu0
      %v2538 = vadd.f32 %v2509, %v2537
      %v2539 = vpop.f32.mrf.mxu0
      %v2540 = vadd.f32 %v2511, %v2539
      %2541 = vmatmul.bf16.gmra.mxu0 %v1845
      %v2542 = vpop.f32.mrf.mxu0
      %v2543 = vadd.f32 %v2514, %v2542
      %v2544 = vpop.f32.mrf.mxu0
      %v2545 = vadd.f32 %v2516, %v2544
      %2546 = vdwg.mxu0
      %2547 = vmatpush.bf16.msra.mxu0 %v2242
      %2548 = vmatpush.bf16.msra.mxu0 %v2241
      %2549 = vmatpush.bf16.msra.mxu0 %v2240
      %2550 = vmatpush.bf16.msra.mxu0 %v2239
      %2551 = vmatpush.bf16.msra.mxu0 %v2238
      %2552 = vmatpush.bf16.msra.mxu0 %v2237
      %2553 = vmatpush.bf16.msra.mxu0 %v2236
      %2554 = vmatpush.bf16.msra.mxu0 %v2235
      %2555 = vmatmul.bf16.gmra.mxu0 %v1819
      %v2556 = vpop.f32.mrf.mxu0
      %v2557 = vadd.f32 %v2528, %v2556
      %v2558 = vpop.f32.mrf.mxu0
      %v2559 = vadd.f32 %v2530, %v2558
      %2560 = vmatmul.bf16.gmra.mxu0 %v1828
      %v2561 = vpop.f32.mrf.mxu0
      %v2562 = vadd.f32 %v2533, %v2561
      %v2563 = vpop.f32.mrf.mxu0
      %v2564 = vadd.f32 %v2535, %v2563
      %2565 = vmatmul.bf16.gmra.mxu0 %v1837
      %v2566 = vpop.f32.mrf.mxu0
      %v2567 = vadd.f32 %v2538, %v2566
      %v2568 = vpop.f32.mrf.mxu0
      %v2569 = vadd.f32 %v2540, %v2568
      %2570 = vmatmul.bf16.gmra.mxu0 %v1846
      %v2571 = vpop.f32.mrf.mxu0
      %v2572 = vadd.f32 %v2543, %v2571
      %v2573 = vpop.f32.mrf.mxu0
      %v2574 = vadd.f32 %v2545, %v2573
      %2575 = vdwg.mxu0
      %v2576 = vld [vmem:[%s5] sm:$0x1]
      %v2578 = vperm.slane %v2576, 0
      %v2580 = vmul.f32 %v2557, %v2578
      %v2581 = vmul.f32 %v2559, %v2578
      %v2582 = vmul.f32 %v2562, %v2578
      %v2583 = vmul.f32 %v2564, %v2578
      %v2584 = vmul.f32 %v2567, %v2578
      %v2585 = vmul.f32 %v2569, %v2578
      %v2586 = vmul.f32 %v2572, %v2578
      %v2587 = vmul.f32 %v2574, %v2578
      %v2588 = vld [vmem:[%s6] sm:$0x1]
      %v2590 = vperm.slane %v2588, 0
      %v2592 = vadd.f32 %v2580, %v2590
      %v2593 = vadd.f32 %v2581, %v2590
      %v2594 = vadd.f32 %v2582, %v2590
      %v2595 = vadd.f32 %v2583, %v2590
      %v2596 = vadd.f32 %v2584, %v2590
      %v2597 = vadd.f32 %v2585, %v2590
      %v2598 = vadd.f32 %v2586, %v2590
      %v2599 = vadd.f32 %v2587, %v2590
      %v2600 = vmax.f32 %v2592, 0.0
      %v2601 = vmax.f32 %v2593, 0.0
      %v2602 = vmax.f32 %v2594, 0.0
      %v2603 = vmax.f32 %v2595, 0.0
      %v2604 = vmax.f32 %v2596, 0.0
      %v2605 = vmax.f32 %v2597, 0.0
      %v2606 = vmax.f32 %v2598, 0.0
      %v2607 = vmax.f32 %v2599, 0.0
      %v2608 = vpack.c.bf16 %v2600, %v2600
      %v2609 = vpack.c.bf16 %v2601, %v2601
      %v2610 = vpack.c.bf16 %v2602, %v2602
      %v2611 = vpack.c.bf16 %v2603, %v2603
      %v2612 = vpack.c.bf16 %v2604, %v2604
      %v2613 = vpack.c.bf16 %v2605, %v2605
      %v2614 = vpack.c.bf16 %v2606, %v2606
      %v2615 = vpack.c.bf16 %v2607, %v2607
      %v2617 = vshrl.u32 %v2608, 16
      %v2619 = vrot.slane %v2617, 7
      %v2620 = vshll.u32 %v2608, 16
      %v2622 = vor.u32 %v2619, %v2620
      %v2623 = vrot.slane %v2619, 4
      %v2625 = vshrl.u32 %v2609, 16
      %v2627 = vrot.slane %v2625, 7
      %v2628 = vshll.u32 %v2609, 16
      %v2630 = vor.u32 %v2627, %v2628
      %v2631 = vrot.slane %v2627, 4
      %v2633 = vshrl.u32 %v2610, 16
      %v2635 = vrot.slane %v2633, 7
      %v2636 = vshll.u32 %v2610, 16
      %v2638 = vor.u32 %v2635, %v2636
      %v2639 = vrot.slane %v2635, 4
      %v2641 = vshrl.u32 %v2611, 16
      %v2643 = vrot.slane %v2641, 7
      %v2644 = vshll.u32 %v2611, 16
      %v2646 = vor.u32 %v2643, %v2644
      %v2647 = vrot.slane %v2643, 4
      %v2649 = vshrl.u32 %v2612, 16
      %v2651 = vrot.slane %v2649, 7
      %v2652 = vshll.u32 %v2612, 16
      %v2654 = vor.u32 %v2651, %v2652
      %v2655 = vrot.slane %v2651, 4
      %v2657 = vshrl.u32 %v2613, 16
      %v2659 = vrot.slane %v2657, 7
      %v2660 = vshll.u32 %v2613, 16
      %v2662 = vor.u32 %v2659, %v2660
      %v2663 = vrot.slane %v2659, 4
      %v2665 = vshrl.u32 %v2614, 16
      %v2667 = vrot.slane %v2665, 7
      %v2668 = vshll.u32 %v2614, 16
      %v2670 = vor.u32 %v2667, %v2668
      %v2671 = vrot.slane %v2667, 4
      %v2673 = vshrl.u32 %v2615, 16
      %v2675 = vrot.slane %v2673, 7
      %v2676 = vshll.u32 %v2615, 16
      %v2678 = vor.u32 %v2675, %v2676
      %v2679 = vrot.slane %v2675, 4
      %s2696 = scalar_lea.vmem [#allocation4], 8
      %v2697 = vld [vmem:[%s2696] sm:$0xf]
      %v2698 = vsel %vm683, %v2622, %v2697
      %2699 = vst [vmem:[%s2696] sm:$0xf] %v2698
      %v2700 = vld [vmem:[%s2696 + $0x4] sm:$0x1]
      %v2701 = vsel %vm315, %v2623, %v2700
      %2702 = vst [vmem:[%s2696 + $0x4] sm:$0x1] %v2701
      %v2703 = vld [vmem:[%s2696 + $0x8] sm:$0xf]
      %v2704 = vsel %vm683, %v2630, %v2703
      %2705 = vst [vmem:[%s2696 + $0x8] sm:$0xf] %v2704
      %v2706 = vld [vmem:[%s2696 + $0xc] sm:$0x1]
      %v2707 = vsel %vm315, %v2631, %v2706
      %2708 = vst [vmem:[%s2696 + $0xc] sm:$0x1] %v2707
      %v2709 = vld [vmem:[%s2696 + $0x10] sm:$0xf]
      %v2710 = vsel %vm683, %v2638, %v2709
      %2711 = vst [vmem:[%s2696 + $0x10] sm:$0xf] %v2710
      %v2712 = vld [vmem:[%s2696 + $0x14] sm:$0x1]
      %v2713 = vsel %vm315, %v2639, %v2712
      %2714 = vst [vmem:[%s2696 + $0x14] sm:$0x1] %v2713
      %v2715 = vld [vmem:[%s2696 + $0x18] sm:$0xf]
      %v2716 = vsel %vm683, %v2646, %v2715
      %2717 = vst [vmem:[%s2696 + $0x18] sm:$0xf] %v2716
      %v2718 = vld [vmem:[%s2696 + $0x1c] sm:$0x1]
      %v2719 = vsel %vm315, %v2647, %v2718
      %2720 = vst [vmem:[%s2696 + $0x1c] sm:$0x1] %v2719
      %v2721 = vld [vmem:[%s2696 + $0x20] sm:$0xf]
      %v2722 = vsel %vm683, %v2654, %v2721
      %2723 = vst [vmem:[%s2696 + $0x20] sm:$0xf] %v2722
      %v2724 = vld [vmem:[%s2696 + $0x24] sm:$0x1]
      %v2725 = vsel %vm315, %v2655, %v2724
      %2726 = vst [vmem:[%s2696 + $0x24] sm:$0x1] %v2725
      %v2727 = vld [vmem:[%s2696 + $0x28] sm:$0xf]
      %v2728 = vsel %vm683, %v2662, %v2727
      %2729 = vst [vmem:[%s2696 + $0x28] sm:$0xf] %v2728
      %v2730 = vld [vmem:[%s2696 + $0x2c] sm:$0x1]
      %v2731 = vsel %vm315, %v2663, %v2730
      %2732 = vst [vmem:[%s2696 + $0x2c] sm:$0x1] %v2731
      %v2733 = vld [vmem:[%s2696 + $0x30] sm:$0xf]
      %v2734 = vsel %vm683, %v2670, %v2733
      %2735 = vst [vmem:[%s2696 + $0x30] sm:$0xf] %v2734
      %v2736 = vld [vmem:[%s2696 + $0x34] sm:$0x1]
      %v2737 = vsel %vm315, %v2671, %v2736
      %2738 = vst [vmem:[%s2696 + $0x34] sm:$0x1] %v2737
      %v2739 = vld [vmem:[%s2696 + $0x38] sm:$0xf]
      %v2740 = vsel %vm683, %v2678, %v2739
      %2741 = vst [vmem:[%s2696 + $0x38] sm:$0xf] %v2740
      %v2742 = vld [vmem:[%s2696 + $0x3c] sm:$0x1]
      %v2743 = vsel %vm315, %v2679, %v2742
      %2744 = vst [vmem:[%s2696 + $0x3c] sm:$0x1] %v2743
      %v2745 = vld [vmem:[#allocation4] sm:$0xf]
      %v2746 = vld [vmem:[#allocation4 + $0x8] sm:$0xf]
      %v2747 = vld [vmem:[#allocation4 + $0x10] sm:$0xf]
      %v2748 = vld [vmem:[#allocation4 + $0x18] sm:$0xf]
      %v2749 = vld [vmem:[#allocation4 + $0x20] sm:$0xf]
      %v2750 = vld [vmem:[#allocation4 + $0x28] sm:$0xf]
      %v2751 = vld [vmem:[#allocation4 + $0x30] sm:$0xf]
      %v2752 = vld [vmem:[#allocation4 + $0x38] sm:$0xf]
      %2753 = vst [vmem:[#allocation5] sm:$0xf] %v2745
      %2754 = vst [vmem:[#allocation5 + $0x24] sm:$0xf] %v2746
      %2755 = vst [vmem:[#allocation5 + $0x48] sm:$0xf] %v2747
      %2756 = vst [vmem:[#allocation5 + $0x6c] sm:$0xf] %v2748
      %2757 = vst [vmem:[#allocation5 + $0x90] sm:$0xf] %v2749
      %2758 = vst [vmem:[#allocation5 + $0xb4] sm:$0xf] %v2750
      %2759 = vst [vmem:[#allocation5 + $0xd8] sm:$0xf] %v2751
      %2760 = vst [vmem:[#allocation5 + $0xfc] sm:$0xf] %v2752
      %v2761 = vld [vmem:[#allocation4] sm:$0xf]
      %v2762 = vld [vmem:[#allocation4 + $0x4] sm:$0x1]
      %v2763 = vld [vmem:[#allocation4 + $0x8] sm:$0xf]
      %v2764 = vld [vmem:[#allocation4 + $0xc] sm:$0x1]
      %v2765 = vld [vmem:[#allocation4 + $0x10] sm:$0xf]
      %v2766 = vld [vmem:[#allocation4 + $0x14] sm:$0x1]
      %v2767 = vld [vmem:[#allocation4 + $0x18] sm:$0xf]
      %v2768 = vld [vmem:[#allocation4 + $0x1c] sm:$0x1]
      %v2769 = vld [vmem:[#allocation4 + $0x20] sm:$0xf]
      %v2770 = vld [vmem:[#allocation4 + $0x24] sm:$0x1]
      %v2771 = vld [vmem:[#allocation4 + $0x28] sm:$0xf]
      %v2772 = vld [vmem:[#allocation4 + $0x2c] sm:$0x1]
      %v2773 = vld [vmem:[#allocation4 + $0x30] sm:$0xf]
      %v2774 = vld [vmem:[#allocation4 + $0x34] sm:$0x1]
      %v2775 = vld [vmem:[#allocation4 + $0x38] sm:$0xf]
      %v2776 = vld [vmem:[#allocation4 + $0x3c] sm:$0x1]
      %v2778 = vshrl.u32 %v2761, 16
      %v2780 = vrot.slane %v2778, 4
      %v2781 = vshll.u32 %v2761, 16
      %v2783 = vrot.slane %v2781, 5
      %v2784 = vor.u32 %v2780, %v2783
      %v2785 = vrot.slane %v2784, 4
      %v2787 = vshll.u32 %v2762, 16
      %v2789 = vrot.slane %v2787, 5
      %v2790 = vsel %vm1034, %v2785, %v2789
      %v2792 = vshrl.u32 %v2763, 16
      %v2794 = vrot.slane %v2792, 4
      %v2795 = vshll.u32 %v2763, 16
      %v2797 = vrot.slane %v2795, 5
      %v2798 = vor.u32 %v2794, %v2797
      %v2799 = vrot.slane %v2798, 4
      %v2801 = vshll.u32 %v2764, 16
      %v2803 = vrot.slane %v2801, 5
      %v2804 = vsel %vm1034, %v2799, %v2803
      %v2806 = vshrl.u32 %v2765, 16
      %v2808 = vrot.slane %v2806, 4
      %v2809 = vshll.u32 %v2765, 16
      %v2811 = vrot.slane %v2809, 5
      %v2812 = vor.u32 %v2808, %v2811
      %v2813 = vrot.slane %v2812, 4
      %v2815 = vshll.u32 %v2766, 16
      %v2817 = vrot.slane %v2815, 5
      %v2818 = vsel %vm1034, %v2813, %v2817
      %v2820 = vshrl.u32 %v2767, 16
      %v2822 = vrot.slane %v2820, 4
      %v2823 = vshll.u32 %v2767, 16
      %v2825 = vrot.slane %v2823, 5
      %v2826 = vor.u32 %v2822, %v2825
      %v2827 = vrot.slane %v2826, 4
      %v2829 = vshll.u32 %v2768, 16
      %v2831 = vrot.slane %v2829, 5
      %v2832 = vsel %vm1034, %v2827, %v2831
      %v2834 = vshrl.u32 %v2769, 16
      %v2836 = vrot.slane %v2834, 4
      %v2837 = vshll.u32 %v2769, 16
      %v2839 = vrot.slane %v2837, 5
      %v2840 = vor.u32 %v2836, %v2839
      %v2841 = vrot.slane %v2840, 4
      %v2843 = vshll.u32 %v2770, 16
      %v2845 = vrot.slane %v2843, 5
      %v2846 = vsel %vm1034, %v2841, %v2845
      %v2848 = vshrl.u32 %v2771, 16
      %v2850 = vrot.slane %v2848, 4
      %v2851 = vshll.u32 %v2771, 16
      %v2853 = vrot.slane %v2851, 5
      %v2854 = vor.u32 %v2850, %v2853
      %v2855 = vrot.slane %v2854, 4
      %v2857 = vshll.u32 %v2772, 16
      %v2859 = vrot.slane %v2857, 5
      %v2860 = vsel %vm1034, %v2855, %v2859
      %v2862 = vshrl.u32 %v2773, 16
      %v2864 = vrot.slane %v2862, 4
      %v2865 = vshll.u32 %v2773, 16
      %v2867 = vrot.slane %v2865, 5
      %v2868 = vor.u32 %v2864, %v2867
      %v2869 = vrot.slane %v2868, 4
      %v2871 = vshll.u32 %v2774, 16
      %v2873 = vrot.slane %v2871, 5
      %v2874 = vsel %vm1034, %v2869, %v2873
      %v2876 = vshrl.u32 %v2775, 16
      %v2878 = vrot.slane %v2876, 4
      %v2879 = vshll.u32 %v2775, 16
      %v2881 = vrot.slane %v2879, 5
      %v2882 = vor.u32 %v2878, %v2881
      %v2883 = vrot.slane %v2882, 4
      %v2885 = vshll.u32 %v2776, 16
      %v2887 = vrot.slane %v2885, 5
      %v2888 = vsel %vm1034, %v2883, %v2887
      %2897 = vst [vmem:[#allocation5 + $0x4] sm:$0xf] %v2790
      %2898 = vst [vmem:[#allocation5 + $0x28] sm:$0xf] %v2804
      %2899 = vst [vmem:[#allocation5 + $0x4c] sm:$0xf] %v2818
      %2900 = vst [vmem:[#allocation5 + $0x70] sm:$0xf] %v2832
      %2901 = vst [vmem:[#allocation5 + $0x94] sm:$0xf] %v2846
      %2902 = vst [vmem:[#allocation5 + $0xb8] sm:$0xf] %v2860
      %2903 = vst [vmem:[#allocation5 + $0xdc] sm:$0xf] %v2874
      %2904 = vst [vmem:[#allocation5 + $0x100] sm:$0xf] %v2888
      %v2905 = vld [vmem:[#allocation4] sm:$0xe]
      %v2906 = vld [vmem:[#allocation4 + $0x4] sm:$0x1]
      %v2907 = vld [vmem:[#allocation4 + $0x8] sm:$0xe]
      %v2908 = vld [vmem:[#allocation4 + $0xc] sm:$0x1]
      %v2909 = vld [vmem:[#allocation4 + $0x10] sm:$0xe]
      %v2910 = vld [vmem:[#allocation4 + $0x14] sm:$0x1]
      %v2911 = vld [vmem:[#allocation4 + $0x18] sm:$0xe]
      %v2912 = vld [vmem:[#allocation4 + $0x1c] sm:$0x1]
      %v2913 = vld [vmem:[#allocation4 + $0x20] sm:$0xe]
      %v2914 = vld [vmem:[#allocation4 + $0x24] sm:$0x1]
      %v2915 = vld [vmem:[#allocation4 + $0x28] sm:$0xe]
      %v2916 = vld [vmem:[#allocation4 + $0x2c] sm:$0x1]
      %v2917 = vld [vmem:[#allocation4 + $0x30] sm:$0xe]
      %v2918 = vld [vmem:[#allocation4 + $0x34] sm:$0x1]
      %v2919 = vld [vmem:[#allocation4 + $0x38] sm:$0xe]
      %v2920 = vld [vmem:[#allocation4 + $0x3c] sm:$0x1]
      %vm2937 = vcmask 1042432
      %vm2938 = vcmask 1046532
      %vm2939 = vmor %vm2937, %vm2938
      %v2940 = vrot.slane %v2905, 5
      %v2941 = vrot.slane %v2940, 4
      %v2942 = vrot.slane %v2906, 5
      %v2943 = vsel %vm2939, %v2941, %v2942
      %v2944 = vrot.slane %v2907, 5
      %v2945 = vrot.slane %v2944, 4
      %v2946 = vrot.slane %v2908, 5
      %v2947 = vsel %vm2939, %v2945, %v2946
      %v2948 = vrot.slane %v2909, 5
      %v2949 = vrot.slane %v2948, 4
      %v2950 = vrot.slane %v2910, 5
      %v2951 = vsel %vm2939, %v2949, %v2950
      %v2952 = vrot.slane %v2911, 5
      %v2953 = vrot.slane %v2952, 4
      %v2954 = vrot.slane %v2912, 5
      %v2955 = vsel %vm2939, %v2953, %v2954
      %v2956 = vrot.slane %v2913, 5
      %v2957 = vrot.slane %v2956, 4
      %v2958 = vrot.slane %v2914, 5
      %v2959 = vsel %vm2939, %v2957, %v2958
      %v2960 = vrot.slane %v2915, 5
      %v2961 = vrot.slane %v2960, 4
      %v2962 = vrot.slane %v2916, 5
      %v2963 = vsel %vm2939, %v2961, %v2962
      %v2964 = vrot.slane %v2917, 5
      %v2965 = vrot.slane %v2964, 4
      %v2966 = vrot.slane %v2918, 5
      %v2967 = vsel %vm2939, %v2965, %v2966
      %v2968 = vrot.slane %v2919, 5
      %v2969 = vrot.slane %v2968, 4
      %v2970 = vrot.slane %v2920, 5
      %v2971 = vsel %vm2939, %v2969, %v2970
      %2980 = vst [vmem:[#allocation5 + $0x8] sm:$0xf] %v2943
      %2981 = vst [vmem:[#allocation5 + $0x2c] sm:$0xf] %v2947
      %2982 = vst [vmem:[#allocation5 + $0x50] sm:$0xf] %v2951
      %2983 = vst [vmem:[#allocation5 + $0x74] sm:$0xf] %v2955
      %2984 = vst [vmem:[#allocation5 + $0x98] sm:$0xf] %v2959
      %2985 = vst [vmem:[#allocation5 + $0xbc] sm:$0xf] %v2963
      %2986 = vst [vmem:[#allocation5 + $0xe0] sm:$0xf] %v2967
      %2987 = vst [vmem:[#allocation5 + $0x104] sm:$0xf] %v2971
      %v2988 = vld [vmem:[%s2696] sm:$0xf]
      %v2989 = vld [vmem:[%s2696 + $0x8] sm:$0xf]
      %v2990 = vld [vmem:[%s2696 + $0x10] sm:$0xf]
      %v2991 = vld [vmem:[%s2696 + $0x18] sm:$0xf]
      %v2992 = vld [vmem:[%s2696 + $0x20] sm:$0xf]
      %v2993 = vld [vmem:[%s2696 + $0x28] sm:$0xf]
      %v2994 = vld [vmem:[%s2696 + $0x30] sm:$0xf]
      %v2995 = vld [vmem:[%s2696 + $0x38] sm:$0xf]
      %2996 = vst [vmem:[#allocation5 + $0xc] sm:$0xf] %v2988
      %2997 = vst [vmem:[#allocation5 + $0x30] sm:$0xf] %v2989
      %2998 = vst [vmem:[#allocation5 + $0x54] sm:$0xf] %v2990
      %2999 = vst [vmem:[#allocation5 + $0x78] sm:$0xf] %v2991
      %3000 = vst [vmem:[#allocation5 + $0x9c] sm:$0xf] %v2992
      %3001 = vst [vmem:[#allocation5 + $0xc0] sm:$0xf] %v2993
      %3002 = vst [vmem:[#allocation5 + $0xe4] sm:$0xf] %v2994
      %3003 = vst [vmem:[#allocation5 + $0x108] sm:$0xf] %v2995
      %v3004 = vld [vmem:[%s2696] sm:$0xf]
      %v3005 = vld [vmem:[%s2696 + $0x4] sm:$0x1]
      %v3006 = vld [vmem:[%s2696 + $0x8] sm:$0xf]
      %v3007 = vld [vmem:[%s2696 + $0xc] sm:$0x1]
      %v3008 = vld [vmem:[%s2696 + $0x10] sm:$0xf]
      %v3009 = vld [vmem:[%s2696 + $0x14] sm:$0x1]
      %v3010 = vld [vmem:[%s2696 + $0x18] sm:$0xf]
      %v3011 = vld [vmem:[%s2696 + $0x1c] sm:$0x1]
      %v3012 = vld [vmem:[%s2696 + $0x20] sm:$0xf]
      %v3013 = vld [vmem:[%s2696 + $0x24] sm:$0x1]
      %v3014 = vld [vmem:[%s2696 + $0x28] sm:$0xf]
      %v3015 = vld [vmem:[%s2696 + $0x2c] sm:$0x1]
      %v3016 = vld [vmem:[%s2696 + $0x30] sm:$0xf]
      %v3017 = vld [vmem:[%s2696 + $0x34] sm:$0x1]
      %v3018 = vld [vmem:[%s2696 + $0x38] sm:$0xf]
      %v3019 = vld [vmem:[%s2696 + $0x3c] sm:$0x1]
      %v3021 = vshrl.u32 %v3004, 16
      %v3023 = vrot.slane %v3021, 4
      %v3024 = vshll.u32 %v3004, 16
      %v3026 = vrot.slane %v3024, 5
      %v3027 = vor.u32 %v3023, %v3026
      %v3028 = vrot.slane %v3027, 4
      %v3030 = vshll.u32 %v3005, 16
      %v3032 = vrot.slane %v3030, 5
      %v3033 = vsel %vm1034, %v3028, %v3032
      %v3035 = vshrl.u32 %v3006, 16
      %v3037 = vrot.slane %v3035, 4
      %v3038 = vshll.u32 %v3006, 16
      %v3040 = vrot.slane %v3038, 5
      %v3041 = vor.u32 %v3037, %v3040
      %v3042 = vrot.slane %v3041, 4
      %v3044 = vshll.u32 %v3007, 16
      %v3046 = vrot.slane %v3044, 5
      %v3047 = vsel %vm1034, %v3042, %v3046
      %v3049 = vshrl.u32 %v3008, 16
      %v3051 = vrot.slane %v3049, 4
      %v3052 = vshll.u32 %v3008, 16
      %v3054 = vrot.slane %v3052, 5
      %v3055 = vor.u32 %v3051, %v3054
      %v3056 = vrot.slane %v3055, 4
      %v3058 = vshll.u32 %v3009, 16
      %v3060 = vrot.slane %v3058, 5
      %v3061 = vsel %vm1034, %v3056, %v3060
      %v3063 = vshrl.u32 %v3010, 16
      %v3065 = vrot.slane %v3063, 4
      %v3066 = vshll.u32 %v3010, 16
      %v3068 = vrot.slane %v3066, 5
      %v3069 = vor.u32 %v3065, %v3068
      %v3070 = vrot.slane %v3069, 4
      %v3072 = vshll.u32 %v3011, 16
      %v3074 = vrot.slane %v3072, 5
      %v3075 = vsel %vm1034, %v3070, %v3074
      %v3077 = vshrl.u32 %v3012, 16
      %v3079 = vrot.slane %v3077, 4
      %v3080 = vshll.u32 %v3012, 16
      %v3082 = vrot.slane %v3080, 5
      %v3083 = vor.u32 %v3079, %v3082
      %v3084 = vrot.slane %v3083, 4
      %v3086 = vshll.u32 %v3013, 16
      %v3088 = vrot.slane %v3086, 5
      %v3089 = vsel %vm1034, %v3084, %v3088
      %v3091 = vshrl.u32 %v3014, 16
      %v3093 = vrot.slane %v3091, 4
      %v3094 = vshll.u32 %v3014, 16
      %v3096 = vrot.slane %v3094, 5
      %v3097 = vor.u32 %v3093, %v3096
      %v3098 = vrot.slane %v3097, 4
      %v3100 = vshll.u32 %v3015, 16
      %v3102 = vrot.slane %v3100, 5
      %v3103 = vsel %vm1034, %v3098, %v3102
      %v3105 = vshrl.u32 %v3016, 16
      %v3107 = vrot.slane %v3105, 4
      %v3108 = vshll.u32 %v3016, 16
      %v3110 = vrot.slane %v3108, 5
      %v3111 = vor.u32 %v3107, %v3110
      %v3112 = vrot.slane %v3111, 4
      %v3114 = vshll.u32 %v3017, 16
      %v3116 = vrot.slane %v3114, 5
      %v3117 = vsel %vm1034, %v3112, %v3116
      %v3119 = vshrl.u32 %v3018, 16
      %v3121 = vrot.slane %v3119, 4
      %v3122 = vshll.u32 %v3018, 16
      %v3124 = vrot.slane %v3122, 5
      %v3125 = vor.u32 %v3121, %v3124
      %v3126 = vrot.slane %v3125, 4
      %v3128 = vshll.u32 %v3019, 16
      %v3130 = vrot.slane %v3128, 5
      %v3131 = vsel %vm1034, %v3126, %v3130
      %3140 = vst [vmem:[#allocation5 + $0x10] sm:$0xf] %v3033
      %3141 = vst [vmem:[#allocation5 + $0x34] sm:$0xf] %v3047
      %3142 = vst [vmem:[#allocation5 + $0x58] sm:$0xf] %v3061
      %3143 = vst [vmem:[#allocation5 + $0x7c] sm:$0xf] %v3075
      %3144 = vst [vmem:[#allocation5 + $0xa0] sm:$0xf] %v3089
      %3145 = vst [vmem:[#allocation5 + $0xc4] sm:$0xf] %v3103
      %3146 = vst [vmem:[#allocation5 + $0xe8] sm:$0xf] %v3117
      %3147 = vst [vmem:[#allocation5 + $0x10c] sm:$0xf] %v3131
      %v3148 = vld [vmem:[%s2696] sm:$0xe]
      %v3149 = vld [vmem:[%s2696 + $0x4] sm:$0x1]
      %v3150 = vld [vmem:[%s2696 + $0x8] sm:$0xe]
      %v3151 = vld [vmem:[%s2696 + $0xc] sm:$0x1]
      %v3152 = vld [vmem:[%s2696 + $0x10] sm:$0xe]
      %v3153 = vld [vmem:[%s2696 + $0x14] sm:$0x1]
      %v3154 = vld [vmem:[%s2696 + $0x18] sm:$0xe]
      %v3155 = vld [vmem:[%s2696 + $0x1c] sm:$0x1]
      %v3156 = vld [vmem:[%s2696 + $0x20] sm:$0xe]
      %v3157 = vld [vmem:[%s2696 + $0x24] sm:$0x1]
      %v3158 = vld [vmem:[%s2696 + $0x28] sm:$0xe]
      %v3159 = vld [vmem:[%s2696 + $0x2c] sm:$0x1]
      %v3160 = vld [vmem:[%s2696 + $0x30] sm:$0xe]
      %v3161 = vld [vmem:[%s2696 + $0x34] sm:$0x1]
      %v3162 = vld [vmem:[%s2696 + $0x38] sm:$0xe]
      %v3163 = vld [vmem:[%s2696 + $0x3c] sm:$0x1]
      %v3180 = vrot.slane %v3148, 5
      %v3181 = vrot.slane %v3180, 4
      %v3182 = vrot.slane %v3149, 5
      %v3183 = vsel %vm2939, %v3181, %v3182
      %v3184 = vrot.slane %v3150, 5
      %v3185 = vrot.slane %v3184, 4
      %v3186 = vrot.slane %v3151, 5
      %v3187 = vsel %vm2939, %v3185, %v3186
      %v3188 = vrot.slane %v3152, 5
      %v3189 = vrot.slane %v3188, 4
      %v3190 = vrot.slane %v3153, 5
      %v3191 = vsel %vm2939, %v3189, %v3190
      %v3192 = vrot.slane %v3154, 5
      %v3193 = vrot.slane %v3192, 4
      %v3194 = vrot.slane %v3155, 5
      %v3195 = vsel %vm2939, %v3193, %v3194
      %v3196 = vrot.slane %v3156, 5
      %v3197 = vrot.slane %v3196, 4
      %v3198 = vrot.slane %v3157, 5
      %v3199 = vsel %vm2939, %v3197, %v3198
      %v3200 = vrot.slane %v3158, 5
      %v3201 = vrot.slane %v3200, 4
      %v3202 = vrot.slane %v3159, 5
      %v3203 = vsel %vm2939, %v3201, %v3202
      %v3204 = vrot.slane %v3160, 5
      %v3205 = vrot.slane %v3204, 4
      %v3206 = vrot.slane %v3161, 5
      %v3207 = vsel %vm2939, %v3205, %v3206
      %v3208 = vrot.slane %v3162, 5
      %v3209 = vrot.slane %v3208, 4
      %v3210 = vrot.slane %v3163, 5
      %v3211 = vsel %vm2939, %v3209, %v3210
      %3220 = vst [vmem:[#allocation5 + $0x14] sm:$0xf] %v3183
      %3221 = vst [vmem:[#allocation5 + $0x38] sm:$0xf] %v3187
      %3222 = vst [vmem:[#allocation5 + $0x5c] sm:$0xf] %v3191
      %3223 = vst [vmem:[#allocation5 + $0x80] sm:$0xf] %v3195
      %3224 = vst [vmem:[#allocation5 + $0xa4] sm:$0xf] %v3199
      %3225 = vst [vmem:[#allocation5 + $0xc8] sm:$0xf] %v3203
      %3226 = vst [vmem:[#allocation5 + $0xec] sm:$0xf] %v3207
      %3227 = vst [vmem:[#allocation5 + $0x110] sm:$0xf] %v3211
      %s3228 = scalar_lea.vmem [#allocation4], 16
      %v3229 = vld [vmem:[%s3228] sm:$0xf]
      %v3230 = vld [vmem:[%s3228 + $0x8] sm:$0xf]
      %v3231 = vld [vmem:[%s3228 + $0x10] sm:$0xf]
      %v3232 = vld [vmem:[%s3228 + $0x18] sm:$0xf]
      %v3233 = vld [vmem:[%s3228 + $0x20] sm:$0xf]
      %v3234 = vld [vmem:[%s3228 + $0x28] sm:$0xf]
      %v3235 = vld [vmem:[%s3228 + $0x30] sm:$0xf]
      %v3236 = vld [vmem:[%s3228 + $0x38] sm:$0xf]
      %3237 = vst [vmem:[#allocation5 + $0x18] sm:$0xf] %v3229
      %3238 = vst [vmem:[#allocation5 + $0x3c] sm:$0xf] %v3230
      %3239 = vst [vmem:[#allocation5 + $0x60] sm:$0xf] %v3231
      %3240 = vst [vmem:[#allocation5 + $0x84] sm:$0xf] %v3232
      %3241 = vst [vmem:[#allocation5 + $0xa8] sm:$0xf] %v3233
      %3242 = vst [vmem:[#allocation5 + $0xcc] sm:$0xf] %v3234
      %3243 = vst [vmem:[#allocation5 + $0xf0] sm:$0xf] %v3235
      %3244 = vst [vmem:[#allocation5 + $0x114] sm:$0xf] %v3236
      %v3245 = vld [vmem:[%s3228] sm:$0xf]
      %v3246 = vld [vmem:[%s3228 + $0x4] sm:$0x1]
      %v3247 = vld [vmem:[%s3228 + $0x8] sm:$0xf]
      %v3248 = vld [vmem:[%s3228 + $0xc] sm:$0x1]
      %v3249 = vld [vmem:[%s3228 + $0x10] sm:$0xf]
      %v3250 = vld [vmem:[%s3228 + $0x14] sm:$0x1]
      %v3251 = vld [vmem:[%s3228 + $0x18] sm:$0xf]
      %v3252 = vld [vmem:[%s3228 + $0x1c] sm:$0x1]
      %v3253 = vld [vmem:[%s3228 + $0x20] sm:$0xf]
      %v3254 = vld [vmem:[%s3228 + $0x24] sm:$0x1]
      %v3255 = vld [vmem:[%s3228 + $0x28] sm:$0xf]
      %v3256 = vld [vmem:[%s3228 + $0x2c] sm:$0x1]
      %v3257 = vld [vmem:[%s3228 + $0x30] sm:$0xf]
      %v3258 = vld [vmem:[%s3228 + $0x34] sm:$0x1]
      %v3259 = vld [vmem:[%s3228 + $0x38] sm:$0xf]
      %v3260 = vld [vmem:[%s3228 + $0x3c] sm:$0x1]
      %v3262 = vshrl.u32 %v3245, 16
      %v3264 = vrot.slane %v3262, 4
      %v3265 = vshll.u32 %v3245, 16
      %v3267 = vrot.slane %v3265, 5
      %v3268 = vor.u32 %v3264, %v3267
      %v3269 = vrot.slane %v3268, 4
      %v3271 = vshll.u32 %v3246, 16
      %v3273 = vrot.slane %v3271, 5
      %v3274 = vsel %vm1034, %v3269, %v3273
      %v3276 = vshrl.u32 %v3247, 16
      %v3278 = vrot.slane %v3276, 4
      %v3279 = vshll.u32 %v3247, 16
      %v3281 = vrot.slane %v3279, 5
      %v3282 = vor.u32 %v3278, %v3281
      %v3283 = vrot.slane %v3282, 4
      %v3285 = vshll.u32 %v3248, 16
      %v3287 = vrot.slane %v3285, 5
      %v3288 = vsel %vm1034, %v3283, %v3287
      %v3290 = vshrl.u32 %v3249, 16
      %v3292 = vrot.slane %v3290, 4
      %v3293 = vshll.u32 %v3249, 16
      %v3295 = vrot.slane %v3293, 5
      %v3296 = vor.u32 %v3292, %v3295
      %v3297 = vrot.slane %v3296, 4
      %v3299 = vshll.u32 %v3250, 16
      %v3301 = vrot.slane %v3299, 5
      %v3302 = vsel %vm1034, %v3297, %v3301
      %v3304 = vshrl.u32 %v3251, 16
      %v3306 = vrot.slane %v3304, 4
      %v3307 = vshll.u32 %v3251, 16
      %v3309 = vrot.slane %v3307, 5
      %v3310 = vor.u32 %v3306, %v3309
      %v3311 = vrot.slane %v3310, 4
      %v3313 = vshll.u32 %v3252, 16
      %v3315 = vrot.slane %v3313, 5
      %v3316 = vsel %vm1034, %v3311, %v3315
      %v3318 = vshrl.u32 %v3253, 16
      %v3320 = vrot.slane %v3318, 4
      %v3321 = vshll.u32 %v3253, 16
      %v3323 = vrot.slane %v3321, 5
      %v3324 = vor.u32 %v3320, %v3323
      %v3325 = vrot.slane %v3324, 4
      %v3327 = vshll.u32 %v3254, 16
      %v3329 = vrot.slane %v3327, 5
      %v3330 = vsel %vm1034, %v3325, %v3329
      %v3332 = vshrl.u32 %v3255, 16
      %v3334 = vrot.slane %v3332, 4
      %v3335 = vshll.u32 %v3255, 16
      %v3337 = vrot.slane %v3335, 5
      %v3338 = vor.u32 %v3334, %v3337
      %v3339 = vrot.slane %v3338, 4
      %v3341 = vshll.u32 %v3256, 16
      %v3343 = vrot.slane %v3341, 5
      %v3344 = vsel %vm1034, %v3339, %v3343
      %v3346 = vshrl.u32 %v3257, 16
      %v3348 = vrot.slane %v3346, 4
      %v3349 = vshll.u32 %v3257, 16
      %v3351 = vrot.slane %v3349, 5
      %v3352 = vor.u32 %v3348, %v3351
      %v3353 = vrot.slane %v3352, 4
      %v3355 = vshll.u32 %v3258, 16
      %v3357 = vrot.slane %v3355, 5
      %v3358 = vsel %vm1034, %v3353, %v3357
      %v3360 = vshrl.u32 %v3259, 16
      %v3362 = vrot.slane %v3360, 4
      %v3363 = vshll.u32 %v3259, 16
      %v3365 = vrot.slane %v3363, 5
      %v3366 = vor.u32 %v3362, %v3365
      %v3367 = vrot.slane %v3366, 4
      %v3369 = vshll.u32 %v3260, 16
      %v3371 = vrot.slane %v3369, 5
      %v3372 = vsel %vm1034, %v3367, %v3371
      %3381 = vst [vmem:[#allocation5 + $0x1c] sm:$0xf] %v3274
      %3382 = vst [vmem:[#allocation5 + $0x40] sm:$0xf] %v3288
      %3383 = vst [vmem:[#allocation5 + $0x64] sm:$0xf] %v3302
      %3384 = vst [vmem:[#allocation5 + $0x88] sm:$0xf] %v3316
      %3385 = vst [vmem:[#allocation5 + $0xac] sm:$0xf] %v3330
      %3386 = vst [vmem:[#allocation5 + $0xd0] sm:$0xf] %v3344
      %3387 = vst [vmem:[#allocation5 + $0xf4] sm:$0xf] %v3358
      %3388 = vst [vmem:[#allocation5 + $0x118] sm:$0xf] %v3372
      %v3389 = vld [vmem:[%s3228] sm:$0xe]
      %v3390 = vld [vmem:[%s3228 + $0x4] sm:$0x1]
      %v3391 = vld [vmem:[%s3228 + $0x8] sm:$0xe]
      %v3392 = vld [vmem:[%s3228 + $0xc] sm:$0x1]
      %v3393 = vld [vmem:[%s3228 + $0x10] sm:$0xe]
      %v3394 = vld [vmem:[%s3228 + $0x14] sm:$0x1]
      %v3395 = vld [vmem:[%s3228 + $0x18] sm:$0xe]
      %v3396 = vld [vmem:[%s3228 + $0x1c] sm:$0x1]
      %v3397 = vld [vmem:[%s3228 + $0x20] sm:$0xe]
      %v3398 = vld [vmem:[%s3228 + $0x24] sm:$0x1]
      %v3399 = vld [vmem:[%s3228 + $0x28] sm:$0xe]
      %v3400 = vld [vmem:[%s3228 + $0x2c] sm:$0x1]
      %v3401 = vld [vmem:[%s3228 + $0x30] sm:$0xe]
      %v3402 = vld [vmem:[%s3228 + $0x34] sm:$0x1]
      %v3403 = vld [vmem:[%s3228 + $0x38] sm:$0xe]
      %v3404 = vld [vmem:[%s3228 + $0x3c] sm:$0x1]
      %v3421 = vrot.slane %v3389, 5
      %v3422 = vrot.slane %v3421, 4
      %v3423 = vrot.slane %v3390, 5
      %v3424 = vsel %vm2939, %v3422, %v3423
      %v3425 = vrot.slane %v3391, 5
      %v3426 = vrot.slane %v3425, 4
      %v3427 = vrot.slane %v3392, 5
      %v3428 = vsel %vm2939, %v3426, %v3427
      %v3429 = vrot.slane %v3393, 5
      %v3430 = vrot.slane %v3429, 4
      %v3431 = vrot.slane %v3394, 5
      %v3432 = vsel %vm2939, %v3430, %v3431
      %v3433 = vrot.slane %v3395, 5
      %v3434 = vrot.slane %v3433, 4
      %v3435 = vrot.slane %v3396, 5
      %v3436 = vsel %vm2939, %v3434, %v3435
      %v3437 = vrot.slane %v3397, 5
      %v3438 = vrot.slane %v3437, 4
      %v3439 = vrot.slane %v3398, 5
      %v3440 = vsel %vm2939, %v3438, %v3439
      %v3441 = vrot.slane %v3399, 5
      %v3442 = vrot.slane %v3441, 4
      %v3443 = vrot.slane %v3400, 5
      %v3444 = vsel %vm2939, %v3442, %v3443
      %v3445 = vrot.slane %v3401, 5
      %v3446 = vrot.slane %v3445, 4
      %v3447 = vrot.slane %v3402, 5
      %v3448 = vsel %vm2939, %v3446, %v3447
      %v3449 = vrot.slane %v3403, 5
      %v3450 = vrot.slane %v3449, 4
      %v3451 = vrot.slane %v3404, 5
      %v3452 = vsel %vm2939, %v3450, %v3451
      %3461 = vst [vmem:[#allocation5 + $0x20] sm:$0xf] %v3424
      %3462 = vst [vmem:[#allocation5 + $0x44] sm:$0xf] %v3428
      %3463 = vst [vmem:[#allocation5 + $0x68] sm:$0xf] %v3432
      %3464 = vst [vmem:[#allocation5 + $0x8c] sm:$0xf] %v3436
      %3465 = vst [vmem:[#allocation5 + $0xb0] sm:$0xf] %v3440
      %3466 = vst [vmem:[#allocation5 + $0xd4] sm:$0xf] %v3444
      %3467 = vst [vmem:[#allocation5 + $0xf8] sm:$0xf] %v3448
      %3468 = vst [vmem:[#allocation5 + $0x11c] sm:$0xf] %v3452
      %v3469 = vld [vmem:[%s535] sm:$0xf]
      %v3470 = vld [vmem:[%s535 + $0x8] sm:$0xf]
      %v3471 = vld [vmem:[%s535 + $0x10] sm:$0xf]
      %v3472 = vld [vmem:[%s535 + $0x18] sm:$0xf]
      %v3473 = vld [vmem:[%s535 + $0x20] sm:$0xf]
      %v3474 = vld [vmem:[%s535 + $0x28] sm:$0xf]
      %v3475 = vld [vmem:[%s535 + $0x30] sm:$0xf]
      %v3476 = vld [vmem:[%s535 + $0x38] sm:$0xf]
      %v3477 = vld [vmem:[%s7] sm:$0xf]
      %v3478 = vld [vmem:[%s7 + $0x4] sm:$0xf]
      %v3479 = vld [vmem:[%s7 + $0x8] sm:$0xf]
      %v3480 = vld [vmem:[%s7 + $0xc] sm:$0xf]
      %v3481 = vld [vmem:[%s7 + $0x10] sm:$0xf]
      %v3482 = vld [vmem:[%s7 + $0x14] sm:$0xf]
      %v3483 = vld [vmem:[%s7 + $0x18] sm:$0xf]
      %v3484 = vld [vmem:[%s7 + $0x1c] sm:$0xf]
      %v3485 = vld [vmem:[%s7 + $0x20] sm:$0xf]
      %v3486 = vld [vmem:[%s7 + $0x24] sm:$0xf]
      %v3487 = vld [vmem:[%s7 + $0x28] sm:$0xf]
      %v3488 = vld [vmem:[%s7 + $0x2c] sm:$0xf]
      %v3489 = vld [vmem:[%s7 + $0x30] sm:$0xf]
      %v3490 = vld [vmem:[%s7 + $0x34] sm:$0xf]
      %v3491 = vld [vmem:[%s7 + $0x38] sm:$0xf]
      %v3492 = vld [vmem:[%s7 + $0x3c] sm:$0xf]
      %v3501 = vunpack.c.l.b16 %v3469
      %v3502 = vunpack.c.l.b16 %v3470
      %v3503 = vunpack.c.l.b16 %v3471
      %v3504 = vunpack.c.l.b16 %v3472
      %v3505 = vunpack.c.l.b16 %v3473
      %v3506 = vunpack.c.l.b16 %v3474
      %v3507 = vunpack.c.l.b16 %v3475
      %v3508 = vunpack.c.l.b16 %v3476
      %v3509 = vpack.c.b16 %v3502, %v3501
      %v3510 = vpack.c.b16 %v3504, %v3503
      %v3511 = vpack.c.b16 %v3506, %v3505
      %v3512 = vpack.c.b16 %v3508, %v3507
      %v3533 = vunpack.c.l.b16 %v3477
      %v3534 = vunpack.c.l.b16 %v3478
      %v3535 = vunpack.c.l.b16 %v3479
      %v3536 = vunpack.c.l.b16 %v3480
      %v3537 = vunpack.c.l.b16 %v3481
      %v3538 = vunpack.c.l.b16 %v3482
      %v3539 = vunpack.c.l.b16 %v3483
      %v3540 = vunpack.c.l.b16 %v3484
      %v3541 = vunpack.c.l.b16 %v3485
      %v3542 = vunpack.c.l.b16 %v3486
      %v3543 = vunpack.c.l.b16 %v3487
      %v3544 = vunpack.c.l.b16 %v3488
      %v3545 = vunpack.c.l.b16 %v3489
      %v3546 = vunpack.c.l.b16 %v3490
      %v3547 = vunpack.c.l.b16 %v3491
      %v3548 = vunpack.c.l.b16 %v3492
      %v3549 = vpack.c.b16 %v3534, %v3533
      %v3550 = vpack.c.b16 %v3536, %v3535
      %v3551 = vpack.c.b16 %v3538, %v3537
      %v3552 = vpack.c.b16 %v3540, %v3539
      %v3553 = vpack.c.b16 %v3542, %v3541
      %v3554 = vpack.c.b16 %v3544, %v3543
      %v3555 = vpack.c.b16 %v3546, %v3545
      %v3556 = vpack.c.b16 %v3548, %v3547
      %3565 = vmatpush.bf16.msra.mxu0 %v3556
      %3566 = vmatpush.bf16.msra.mxu0 %v3555
      %3567 = vmatpush.bf16.msra.mxu0 %v3554
      %3568 = vmatpush.bf16.msra.mxu0 %v3553
      %3569 = vmatpush.bf16.msra.mxu0 %v3552
      %3570 = vmatpush.bf16.msra.mxu0 %v3551
      %3571 = vmatpush.bf16.msra.mxu0 %v3550
      %3572 = vmatpush.bf16.msra.mxu0 %v3549
      %3573 = vmatmul.bf16.gmra.mxu0 %v3509
      %v3574 = vpop.f32.mrf.mxu0
      %v3575 = vadd.f32 0.0, %v3574
      %v3576 = vpop.f32.mrf.mxu0
      %v3577 = vadd.f32 0.0, %v3576
      %3578 = vmatmul.bf16.gmra.mxu0 %v3510
      %v3579 = vpop.f32.mrf.mxu0
      %v3580 = vadd.f32 0.0, %v3579
      %v3581 = vpop.f32.mrf.mxu0
      %v3582 = vadd.f32 0.0, %v3581
      %3583 = vmatmul.bf16.gmra.mxu0 %v3511
      %v3584 = vpop.f32.mrf.mxu0
      %v3585 = vadd.f32 0.0, %v3584
      %v3586 = vpop.f32.mrf.mxu0
      %v3587 = vadd.f32 0.0, %v3586
      %3588 = vmatmul.bf16.gmra.mxu0 %v3512
      %v3589 = vpop.f32.mrf.mxu0
      %v3590 = vadd.f32 0.0, %v3589
      %v3591 = vpop.f32.mrf.mxu0
      %v3592 = vadd.f32 0.0, %v3591
      %3593 = vdwg.mxu0
      %v3594 = vld [vmem:[#allocation5] sm:$0xff]
      %v3595 = vld [vmem:[#allocation5 + $0x8] sm:$0xff]
      %v3596 = vld [vmem:[#allocation5 + $0x10] sm:$0xff]
      %v3597 = vld [vmem:[#allocation5 + $0x18] sm:$0xff]
      %v3598 = vld [vmem:[#allocation5 + $0x20] sm:$0xf]
      %v3599 = vld [vmem:[#allocation5 + $0x24] sm:$0xff]
      %v3600 = vld [vmem:[#allocation5 + $0x2c] sm:$0xff]
      %v3601 = vld [vmem:[#allocation5 + $0x34] sm:$0xff]
      %v3602 = vld [vmem:[#allocation5 + $0x3c] sm:$0xff]
      %v3603 = vld [vmem:[#allocation5 + $0x44] sm:$0xf]
      %v3604 = vld [vmem:[#allocation5 + $0x48] sm:$0xff]
      %v3605 = vld [vmem:[#allocation5 + $0x50] sm:$0xff]
      %v3606 = vld [vmem:[#allocation5 + $0x58] sm:$0xff]
      %v3607 = vld [vmem:[#allocation5 + $0x60] sm:$0xff]
      %v3608 = vld [vmem:[#allocation5 + $0x68] sm:$0xf]
      %v3609 = vld [vmem:[#allocation5 + $0x6c] sm:$0xff]
      %v3610 = vld [vmem:[#allocation5 + $0x74] sm:$0xff]
      %v3611 = vld [vmem:[#allocation5 + $0x7c] sm:$0xff]
      %v3612 = vld [vmem:[#allocation5 + $0x84] sm:$0xff]
      %v3613 = vld [vmem:[#allocation5 + $0x8c] sm:$0xf]
      %v3614 = vld [vmem:[#allocation5 + $0x90] sm:$0xff]
      %v3615 = vld [vmem:[#allocation5 + $0x98] sm:$0xff]
      %v3616 = vld [vmem:[#allocation5 + $0xa0] sm:$0xff]
      %v3617 = vld [vmem:[#allocation5 + $0xa8] sm:$0xff]
      %v3618 = vld [vmem:[#allocation5 + $0xb0] sm:$0xf]
      %v3619 = vld [vmem:[#allocation5 + $0xb4] sm:$0xff]
      %v3620 = vld [vmem:[#allocation5 + $0xbc] sm:$0xff]
      %v3621 = vld [vmem:[#allocation5 + $0xc4] sm:$0xff]
      %v3622 = vld [vmem:[#allocation5 + $0xcc] sm:$0xff]
      %v3623 = vld [vmem:[#allocation5 + $0xd4] sm:$0xf]
      %v3624 = vld [vmem:[#allocation5 + $0xd8] sm:$0xff]
      %v3625 = vld [vmem:[#allocation5 + $0xe0] sm:$0xff]
      %v3626 = vld [vmem:[#allocation5 + $0xe8] sm:$0xff]
      %v3627 = vld [vmem:[#allocation5 + $0xf0] sm:$0xff]
      %v3628 = vld [vmem:[#allocation5 + $0xf8] sm:$0xf]
      %v3629 = vld [vmem:[#allocation5 + $0xfc] sm:$0xff]
      %v3630 = vld [vmem:[#allocation5 + $0x104] sm:$0xff]
      %v3631 = vld [vmem:[#allocation5 + $0x10c] sm:$0xff]
      %v3632 = vld [vmem:[#allocation5 + $0x114] sm:$0xff]
      %v3633 = vld [vmem:[#allocation5 + $0x11c] sm:$0xf]
      %v3634 = vld [vmem:[%s2] sm:$0xf]
      %v3635 = vld [vmem:[%s2 + $0x4] sm:$0xf]
      %v3636 = vld [vmem:[%s2 + $0x8] sm:$0xf]
      %v3637 = vld [vmem:[%s2 + $0xc] sm:$0xf]
      %v3638 = vld [vmem:[%s2 + $0x10] sm:$0xf]
      %v3639 = vld [vmem:[%s2 + $0x14] sm:$0xf]
      %v3640 = vld [vmem:[%s2 + $0x18] sm:$0xf]
      %v3641 = vld [vmem:[%s2 + $0x1c] sm:$0xf]
      %v3642 = vld [vmem:[%s2 + $0x20] sm:$0xf]
      %v3643 = vld [vmem:[%s2 + $0x24] sm:$0xf]
      %v3644 = vld [vmem:[%s2 + $0x28] sm:$0xf]
      %v3645 = vld [vmem:[%s2 + $0x2c] sm:$0xf]
      %v3646 = vld [vmem:[%s2 + $0x30] sm:$0xf]
      %v3647 = vld [vmem:[%s2 + $0x34] sm:$0xf]
      %v3648 = vld [vmem:[%s2 + $0x38] sm:$0xf]
      %v3649 = vld [vmem:[%s2 + $0x3c] sm:$0xf]
      %v3650 = vld [vmem:[%s2 + $0x40] sm:$0xf]
      %v3651 = vld [vmem:[%s2 + $0x44] sm:$0xf]
      %v3652 = vld [vmem:[%s2 + $0x48] sm:$0xf]
      %v3653 = vld [vmem:[%s2 + $0x4c] sm:$0xf]
      %v3654 = vld [vmem:[%s2 + $0x50] sm:$0xf]
      %v3655 = vld [vmem:[%s2 + $0x54] sm:$0xf]
      %v3656 = vld [vmem:[%s2 + $0x58] sm:$0xf]
      %v3657 = vld [vmem:[%s2 + $0x5c] sm:$0xf]
      %v3658 = vld [vmem:[%s2 + $0x60] sm:$0xf]
      %v3659 = vld [vmem:[%s2 + $0x64] sm:$0xf]
      %v3660 = vld [vmem:[%s2 + $0x68] sm:$0xf]
      %v3661 = vld [vmem:[%s2 + $0x6c] sm:$0xf]
      %v3662 = vld [vmem:[%s2 + $0x70] sm:$0xf]
      %v3663 = vld [vmem:[%s2 + $0x74] sm:$0xf]
      %v3664 = vld [vmem:[%s2 + $0x78] sm:$0xf]
      %v3665 = vld [vmem:[%s2 + $0x7c] sm:$0xf]
      %v3666 = vld [vmem:[%s2 + $0x80] sm:$0xf]
      %v3667 = vld [vmem:[%s2 + $0x84] sm:$0xf]
      %v3668 = vld [vmem:[%s2 + $0x88] sm:$0xf]
      %v3669 = vld [vmem:[%s2 + $0x8c] sm:$0xf]
      %v3670 = vld [vmem:[%s2 + $0x90] sm:$0xf]
      %v3671 = vld [vmem:[%s2 + $0x94] sm:$0xf]
      %v3672 = vld [vmem:[%s2 + $0x98] sm:$0xf]
      %v3673 = vld [vmem:[%s2 + $0x9c] sm:$0xf]
      %v3674 = vld [vmem:[%s2 + $0xa0] sm:$0xf]
      %v3675 = vld [vmem:[%s2 + $0xa4] sm:$0xf]
      %v3676 = vld [vmem:[%s2 + $0xa8] sm:$0xf]
      %v3677 = vld [vmem:[%s2 + $0xac] sm:$0xf]
      %v3678 = vld [vmem:[%s2 + $0xb0] sm:$0xf]
      %v3679 = vld [vmem:[%s2 + $0xb4] sm:$0xf]
      %v3680 = vld [vmem:[%s2 + $0xb8] sm:$0xf]
      %v3681 = vld [vmem:[%s2 + $0xbc] sm:$0xf]
      %v3682 = vld [vmem:[%s2 + $0xc0] sm:$0xf]
      %v3683 = vld [vmem:[%s2 + $0xc4] sm:$0xf]
      %v3684 = vld [vmem:[%s2 + $0xc8] sm:$0xf]
      %v3685 = vld [vmem:[%s2 + $0xcc] sm:$0xf]
      %v3686 = vld [vmem:[%s2 + $0xd0] sm:$0xf]
      %v3687 = vld [vmem:[%s2 + $0xd4] sm:$0xf]
      %v3688 = vld [vmem:[%s2 + $0xd8] sm:$0xf]
      %v3689 = vld [vmem:[%s2 + $0xdc] sm:$0xf]
      %v3690 = vld [vmem:[%s2 + $0xe0] sm:$0xf]
      %v3691 = vld [vmem:[%s2 + $0xe4] sm:$0xf]
      %v3692 = vld [vmem:[%s2 + $0xe8] sm:$0xf]
      %v3693 = vld [vmem:[%s2 + $0xec] sm:$0xf]
      %v3694 = vld [vmem:[%s2 + $0xf0] sm:$0xf]
      %v3695 = vld [vmem:[%s2 + $0xf4] sm:$0xf]
      %v3696 = vld [vmem:[%s2 + $0xf8] sm:$0xf]
      %v3697 = vld [vmem:[%s2 + $0xfc] sm:$0xf]
      %v3698 = vld [vmem:[%s2 + $0x100] sm:$0xf]
      %v3699 = vld [vmem:[%s2 + $0x104] sm:$0xf]
      %v3700 = vld [vmem:[%s2 + $0x108] sm:$0xf]
      %v3701 = vld [vmem:[%s2 + $0x10c] sm:$0xf]
      %v3702 = vld [vmem:[%s2 + $0x110] sm:$0xf]
      %v3703 = vld [vmem:[%s2 + $0x114] sm:$0xf]
      %v3704 = vld [vmem:[%s2 + $0x118] sm:$0xf]
      %v3705 = vld [vmem:[%s2 + $0x11c] sm:$0xf]
      %v3706 = vld [vmem:[%s2 + $0x120] sm:$0xf]
      %v3707 = vld [vmem:[%s2 + $0x124] sm:$0xf]
      %v3708 = vld [vmem:[%s2 + $0x128] sm:$0xf]
      %v3709 = vld [vmem:[%s2 + $0x12c] sm:$0xf]
      %v3710 = vld [vmem:[%s2 + $0x130] sm:$0xf]
      %v3711 = vld [vmem:[%s2 + $0x134] sm:$0xf]
      %v3712 = vld [vmem:[%s2 + $0x138] sm:$0xf]
      %v3713 = vld [vmem:[%s2 + $0x13c] sm:$0xf]
      %v3714 = vld [vmem:[%s2 + $0x140] sm:$0xf]
      %v3715 = vld [vmem:[%s2 + $0x144] sm:$0xf]
      %v3716 = vld [vmem:[%s2 + $0x148] sm:$0xf]
      %v3717 = vld [vmem:[%s2 + $0x14c] sm:$0xf]
      %v3718 = vld [vmem:[%s2 + $0x150] sm:$0xf]
      %v3719 = vld [vmem:[%s2 + $0x154] sm:$0xf]
      %v3720 = vld [vmem:[%s2 + $0x158] sm:$0xf]
      %v3721 = vld [vmem:[%s2 + $0x15c] sm:$0xf]
      %v3722 = vld [vmem:[%s2 + $0x160] sm:$0xf]
      %v3723 = vld [vmem:[%s2 + $0x164] sm:$0xf]
      %v3724 = vld [vmem:[%s2 + $0x168] sm:$0xf]
      %v3725 = vld [vmem:[%s2 + $0x16c] sm:$0xf]
      %v3726 = vld [vmem:[%s2 + $0x170] sm:$0xf]
      %v3727 = vld [vmem:[%s2 + $0x174] sm:$0xf]
      %v3728 = vld [vmem:[%s2 + $0x178] sm:$0xf]
      %v3729 = vld [vmem:[%s2 + $0x17c] sm:$0xf]
      %v3730 = vld [vmem:[%s2 + $0x180] sm:$0xf]
      %v3731 = vld [vmem:[%s2 + $0x184] sm:$0xf]
      %v3732 = vld [vmem:[%s2 + $0x188] sm:$0xf]
      %v3733 = vld [vmem:[%s2 + $0x18c] sm:$0xf]
      %v3734 = vld [vmem:[%s2 + $0x190] sm:$0xf]
      %v3735 = vld [vmem:[%s2 + $0x194] sm:$0xf]
      %v3736 = vld [vmem:[%s2 + $0x198] sm:$0xf]
      %v3737 = vld [vmem:[%s2 + $0x19c] sm:$0xf]
      %v3738 = vld [vmem:[%s2 + $0x1a0] sm:$0xf]
      %v3739 = vld [vmem:[%s2 + $0x1a4] sm:$0xf]
      %v3740 = vld [vmem:[%s2 + $0x1a8] sm:$0xf]
      %v3741 = vld [vmem:[%s2 + $0x1ac] sm:$0xf]
      %v3742 = vld [vmem:[%s2 + $0x1b0] sm:$0xf]
      %v3743 = vld [vmem:[%s2 + $0x1b4] sm:$0xf]
      %v3744 = vld [vmem:[%s2 + $0x1b8] sm:$0xf]
      %v3745 = vld [vmem:[%s2 + $0x1bc] sm:$0xf]
      %v3746 = vld [vmem:[%s2 + $0x1c0] sm:$0xf]
      %v3747 = vld [vmem:[%s2 + $0x1c4] sm:$0xf]
      %v3748 = vld [vmem:[%s2 + $0x1c8] sm:$0xf]
      %v3749 = vld [vmem:[%s2 + $0x1cc] sm:$0xf]
      %v3750 = vld [vmem:[%s2 + $0x1d0] sm:$0xf]
      %v3751 = vld [vmem:[%s2 + $0x1d4] sm:$0xf]
      %v3752 = vld [vmem:[%s2 + $0x1d8] sm:$0xf]
      %v3753 = vld [vmem:[%s2 + $0x1dc] sm:$0xf]
      %v3754 = vld [vmem:[%s2 + $0x1e0] sm:$0xf]
      %v3755 = vld [vmem:[%s2 + $0x1e4] sm:$0xf]
      %v3756 = vld [vmem:[%s2 + $0x1e8] sm:$0xf]
      %v3757 = vld [vmem:[%s2 + $0x1ec] sm:$0xf]
      %v3758 = vld [vmem:[%s2 + $0x1f0] sm:$0xf]
      %v3759 = vld [vmem:[%s2 + $0x1f4] sm:$0xf]
      %v3760 = vld [vmem:[%s2 + $0x1f8] sm:$0xf]
      %v3761 = vld [vmem:[%s2 + $0x1fc] sm:$0xf]
      %v3762 = vld [vmem:[%s2 + $0x200] sm:$0xf]
      %v3763 = vld [vmem:[%s2 + $0x204] sm:$0xf]
      %v3764 = vld [vmem:[%s2 + $0x208] sm:$0xf]
      %v3765 = vld [vmem:[%s2 + $0x20c] sm:$0xf]
      %v3766 = vld [vmem:[%s2 + $0x210] sm:$0xf]
      %v3767 = vld [vmem:[%s2 + $0x214] sm:$0xf]
      %v3768 = vld [vmem:[%s2 + $0x218] sm:$0xf]
      %v3769 = vld [vmem:[%s2 + $0x21c] sm:$0xf]
      %v3770 = vld [vmem:[%s2 + $0x220] sm:$0xf]
      %v3771 = vld [vmem:[%s2 + $0x224] sm:$0xf]
      %v3772 = vld [vmem:[%s2 + $0x228] sm:$0xf]
      %v3773 = vld [vmem:[%s2 + $0x22c] sm:$0xf]
      %v3774 = vld [vmem:[%s2 + $0x230] sm:$0xf]
      %v3775 = vld [vmem:[%s2 + $0x234] sm:$0xf]
      %v3776 = vld [vmem:[%s2 + $0x238] sm:$0xf]
      %v3777 = vld [vmem:[%s2 + $0x23c] sm:$0xf]
      %v3818 = vunpack.c.l.b16 %v3594
      %v3819 = vunpack.c.h.b16 %v3594
      %v3820 = vunpack.c.l.b16 %v3595
      %v3821 = vunpack.c.h.b16 %v3595
      %v3822 = vunpack.c.l.b16 %v3596
      %v3823 = vunpack.c.h.b16 %v3596
      %v3824 = vunpack.c.l.b16 %v3597
      %v3825 = vunpack.c.h.b16 %v3597
      %v3826 = vunpack.c.l.b16 %v3598
      %v3827 = vunpack.c.l.b16 %v3599
      %v3828 = vunpack.c.h.b16 %v3599
      %v3829 = vunpack.c.l.b16 %v3600
      %v3830 = vunpack.c.h.b16 %v3600
      %v3831 = vunpack.c.l.b16 %v3601
      %v3832 = vunpack.c.h.b16 %v3601
      %v3833 = vunpack.c.l.b16 %v3602
      %v3834 = vunpack.c.h.b16 %v3602
      %v3835 = vunpack.c.l.b16 %v3603
      %v3836 = vunpack.c.l.b16 %v3604
      %v3837 = vunpack.c.h.b16 %v3604
      %v3838 = vunpack.c.l.b16 %v3605
      %v3839 = vunpack.c.h.b16 %v3605
      %v3840 = vunpack.c.l.b16 %v3606
      %v3841 = vunpack.c.h.b16 %v3606
      %v3842 = vunpack.c.l.b16 %v3607
      %v3843 = vunpack.c.h.b16 %v3607
      %v3844 = vunpack.c.l.b16 %v3608
      %v3845 = vunpack.c.l.b16 %v3609
      %v3846 = vunpack.c.h.b16 %v3609
      %v3847 = vunpack.c.l.b16 %v3610
      %v3848 = vunpack.c.h.b16 %v3610
      %v3849 = vunpack.c.l.b16 %v3611
      %v3850 = vunpack.c.h.b16 %v3611
      %v3851 = vunpack.c.l.b16 %v3612
      %v3852 = vunpack.c.h.b16 %v3612
      %v3853 = vunpack.c.l.b16 %v3613
      %v3854 = vunpack.c.l.b16 %v3614
      %v3855 = vunpack.c.h.b16 %v3614
      %v3856 = vunpack.c.l.b16 %v3615
      %v3857 = vunpack.c.h.b16 %v3615
      %v3858 = vunpack.c.l.b16 %v3616
      %v3859 = vunpack.c.h.b16 %v3616
      %v3860 = vunpack.c.l.b16 %v3617
      %v3861 = vunpack.c.h.b16 %v3617
      %v3862 = vunpack.c.l.b16 %v3618
      %v3863 = vunpack.c.l.b16 %v3619
      %v3864 = vunpack.c.h.b16 %v3619
      %v3865 = vunpack.c.l.b16 %v3620
      %v3866 = vunpack.c.h.b16 %v3620
      %v3867 = vunpack.c.l.b16 %v3621
      %v3868 = vunpack.c.h.b16 %v3621
      %v3869 = vunpack.c.l.b16 %v3622
      %v3870 = vunpack.c.h.b16 %v3622
      %v3871 = vunpack.c.l.b16 %v3623
      %v3872 = vunpack.c.l.b16 %v3624
      %v3873 = vunpack.c.h.b16 %v3624
      %v3874 = vunpack.c.l.b16 %v3625
      %v3875 = vunpack.c.h.b16 %v3625
      %v3876 = vunpack.c.l.b16 %v3626
      %v3877 = vunpack.c.h.b16 %v3626
      %v3878 = vunpack.c.l.b16 %v3627
      %v3879 = vunpack.c.h.b16 %v3627
      %v3880 = vunpack.c.l.b16 %v3628
      %v3881 = vunpack.c.l.b16 %v3629
      %v3882 = vunpack.c.h.b16 %v3629
      %v3883 = vunpack.c.l.b16 %v3630
      %v3884 = vunpack.c.h.b16 %v3630
      %v3885 = vunpack.c.l.b16 %v3631
      %v3886 = vunpack.c.h.b16 %v3631
      %v3887 = vunpack.c.l.b16 %v3632
      %v3888 = vunpack.c.h.b16 %v3632
      %v3889 = vunpack.c.l.b16 %v3633
      %v3890 = vpack.c.b16 %v3827, %v3818
      %v3891 = vpack.c.b16 %v3828, %v3819
      %v3892 = vpack.c.b16 %v3829, %v3820
      %v3893 = vpack.c.b16 %v3830, %v3821
      %v3894 = vpack.c.b16 %v3831, %v3822
      %v3895 = vpack.c.b16 %v3832, %v3823
      %v3896 = vpack.c.b16 %v3833, %v3824
      %v3897 = vpack.c.b16 %v3834, %v3825
      %v3898 = vpack.c.b16 %v3835, %v3826
      %v3899 = vpack.c.b16 %v3845, %v3836
      %v3900 = vpack.c.b16 %v3846, %v3837
      %v3901 = vpack.c.b16 %v3847, %v3838
      %v3902 = vpack.c.b16 %v3848, %v3839
      %v3903 = vpack.c.b16 %v3849, %v3840
      %v3904 = vpack.c.b16 %v3850, %v3841
      %v3905 = vpack.c.b16 %v3851, %v3842
      %v3906 = vpack.c.b16 %v3852, %v3843
      %v3907 = vpack.c.b16 %v3853, %v3844
      %v3908 = vpack.c.b16 %v3863, %v3854
      %v3909 = vpack.c.b16 %v3864, %v3855
      %v3910 = vpack.c.b16 %v3865, %v3856
      %v3911 = vpack.c.b16 %v3866, %v3857
      %v3912 = vpack.c.b16 %v3867, %v3858
      %v3913 = vpack.c.b16 %v3868, %v3859
      %v3914 = vpack.c.b16 %v3869, %v3860
      %v3915 = vpack.c.b16 %v3870, %v3861
      %v3916 = vpack.c.b16 %v3871, %v3862
      %v3917 = vpack.c.b16 %v3881, %v3872
      %v3918 = vpack.c.b16 %v3882, %v3873
      %v3919 = vpack.c.b16 %v3883, %v3874
      %v3920 = vpack.c.b16 %v3884, %v3875
      %v3921 = vpack.c.b16 %v3885, %v3876
      %v3922 = vpack.c.b16 %v3886, %v3877
      %v3923 = vpack.c.b16 %v3887, %v3878
      %v3924 = vpack.c.b16 %v3888, %v3879
      %v3925 = vpack.c.b16 %v3889, %v3880
      %v4106 = vunpack.c.l.b16 %v3634
      %v4107 = vunpack.c.l.b16 %v3635
      %v4108 = vunpack.c.l.b16 %v3636
      %v4109 = vunpack.c.l.b16 %v3637
      %v4110 = vunpack.c.l.b16 %v3638
      %v4111 = vunpack.c.l.b16 %v3639
      %v4112 = vunpack.c.l.b16 %v3640
      %v4113 = vunpack.c.l.b16 %v3641
      %v4114 = vunpack.c.l.b16 %v3642
      %v4115 = vunpack.c.l.b16 %v3643
      %v4116 = vunpack.c.l.b16 %v3644
      %v4117 = vunpack.c.l.b16 %v3645
      %v4118 = vunpack.c.l.b16 %v3646
      %v4119 = vunpack.c.l.b16 %v3647
      %v4120 = vunpack.c.l.b16 %v3648
      %v4121 = vunpack.c.l.b16 %v3649
      %v4122 = vunpack.c.l.b16 %v3650
      %v4123 = vunpack.c.l.b16 %v3651
      %v4124 = vunpack.c.l.b16 %v3652
      %v4125 = vunpack.c.l.b16 %v3653
      %v4126 = vunpack.c.l.b16 %v3654
      %v4127 = vunpack.c.l.b16 %v3655
      %v4128 = vunpack.c.l.b16 %v3656
      %v4129 = vunpack.c.l.b16 %v3657
      %v4130 = vunpack.c.l.b16 %v3658
      %v4131 = vunpack.c.l.b16 %v3659
      %v4132 = vunpack.c.l.b16 %v3660
      %v4133 = vunpack.c.l.b16 %v3661
      %v4134 = vunpack.c.l.b16 %v3662
      %v4135 = vunpack.c.l.b16 %v3663
      %v4136 = vunpack.c.l.b16 %v3664
      %v4137 = vunpack.c.l.b16 %v3665
      %v4138 = vunpack.c.l.b16 %v3666
      %v4139 = vunpack.c.l.b16 %v3667
      %v4140 = vunpack.c.l.b16 %v3668
      %v4141 = vunpack.c.l.b16 %v3669
      %v4142 = vunpack.c.l.b16 %v3670
      %v4143 = vunpack.c.l.b16 %v3671
      %v4144 = vunpack.c.l.b16 %v3672
      %v4145 = vunpack.c.l.b16 %v3673
      %v4146 = vunpack.c.l.b16 %v3674
      %v4147 = vunpack.c.l.b16 %v3675
      %v4148 = vunpack.c.l.b16 %v3676
      %v4149 = vunpack.c.l.b16 %v3677
      %v4150 = vunpack.c.l.b16 %v3678
      %v4151 = vunpack.c.l.b16 %v3679
      %v4152 = vunpack.c.l.b16 %v3680
      %v4153 = vunpack.c.l.b16 %v3681
      %v4154 = vunpack.c.l.b16 %v3682
      %v4155 = vunpack.c.l.b16 %v3683
      %v4156 = vunpack.c.l.b16 %v3684
      %v4157 = vunpack.c.l.b16 %v3685
      %v4158 = vunpack.c.l.b16 %v3686
      %v4159 = vunpack.c.l.b16 %v3687
      %v4160 = vunpack.c.l.b16 %v3688
      %v4161 = vunpack.c.l.b16 %v3689
      %v4162 = vunpack.c.l.b16 %v3690
      %v4163 = vunpack.c.l.b16 %v3691
      %v4164 = vunpack.c.l.b16 %v3692
      %v4165 = vunpack.c.l.b16 %v3693
      %v4166 = vunpack.c.l.b16 %v3694
      %v4167 = vunpack.c.l.b16 %v3695
      %v4168 = vunpack.c.l.b16 %v3696
      %v4169 = vunpack.c.l.b16 %v3697
      %v4170 = vunpack.c.l.b16 %v3698
      %v4171 = vunpack.c.l.b16 %v3699
      %v4172 = vunpack.c.l.b16 %v3700
      %v4173 = vunpack.c.l.b16 %v3701
      %v4174 = vunpack.c.l.b16 %v3702
      %v4175 = vunpack.c.l.b16 %v3703
      %v4176 = vunpack.c.l.b16 %v3704
      %v4177 = vunpack.c.l.b16 %v3705
      %v4178 = vunpack.c.l.b16 %v3706
      %v4179 = vunpack.c.l.b16 %v3707
      %v4180 = vunpack.c.l.b16 %v3708
      %v4181 = vunpack.c.l.b16 %v3709
      %v4182 = vunpack.c.l.b16 %v3710
      %v4183 = vunpack.c.l.b16 %v3711
      %v4184 = vunpack.c.l.b16 %v3712
      %v4185 = vunpack.c.l.b16 %v3713
      %v4186 = vunpack.c.l.b16 %v3714
      %v4187 = vunpack.c.l.b16 %v3715
      %v4188 = vunpack.c.l.b16 %v3716
      %v4189 = vunpack.c.l.b16 %v3717
      %v4190 = vunpack.c.l.b16 %v3718
      %v4191 = vunpack.c.l.b16 %v3719
      %v4192 = vunpack.c.l.b16 %v3720
      %v4193 = vunpack.c.l.b16 %v3721
      %v4194 = vunpack.c.l.b16 %v3722
      %v4195 = vunpack.c.l.b16 %v3723
      %v4196 = vunpack.c.l.b16 %v3724
      %v4197 = vunpack.c.l.b16 %v3725
      %v4198 = vunpack.c.l.b16 %v3726
      %v4199 = vunpack.c.l.b16 %v3727
      %v4200 = vunpack.c.l.b16 %v3728
      %v4201 = vunpack.c.l.b16 %v3729
      %v4202 = vunpack.c.l.b16 %v3730
      %v4203 = vunpack.c.l.b16 %v3731
      %v4204 = vunpack.c.l.b16 %v3732
      %v4205 = vunpack.c.l.b16 %v3733
      %v4206 = vunpack.c.l.b16 %v3734
      %v4207 = vunpack.c.l.b16 %v3735
      %v4208 = vunpack.c.l.b16 %v3736
      %v4209 = vunpack.c.l.b16 %v3737
      %v4210 = vunpack.c.l.b16 %v3738
      %v4211 = vunpack.c.l.b16 %v3739
      %v4212 = vunpack.c.l.b16 %v3740
      %v4213 = vunpack.c.l.b16 %v3741
      %v4214 = vunpack.c.l.b16 %v3742
      %v4215 = vunpack.c.l.b16 %v3743
      %v4216 = vunpack.c.l.b16 %v3744
      %v4217 = vunpack.c.l.b16 %v3745
      %v4218 = vunpack.c.l.b16 %v3746
      %v4219 = vunpack.c.l.b16 %v3747
      %v4220 = vunpack.c.l.b16 %v3748
      %v4221 = vunpack.c.l.b16 %v3749
      %v4222 = vunpack.c.l.b16 %v3750
      %v4223 = vunpack.c.l.b16 %v3751
      %v4224 = vunpack.c.l.b16 %v3752
      %v4225 = vunpack.c.l.b16 %v3753
      %v4226 = vunpack.c.l.b16 %v3754
      %v4227 = vunpack.c.l.b16 %v3755
      %v4228 = vunpack.c.l.b16 %v3756
      %v4229 = vunpack.c.l.b16 %v3757
      %v4230 = vunpack.c.l.b16 %v3758
      %v4231 = vunpack.c.l.b16 %v3759
      %v4232 = vunpack.c.l.b16 %v3760
      %v4233 = vunpack.c.l.b16 %v3761
      %v4234 = vunpack.c.l.b16 %v3762
      %v4235 = vunpack.c.l.b16 %v3763
      %v4236 = vunpack.c.l.b16 %v3764
      %v4237 = vunpack.c.l.b16 %v3765
      %v4238 = vunpack.c.l.b16 %v3766
      %v4239 = vunpack.c.l.b16 %v3767
      %v4240 = vunpack.c.l.b16 %v3768
      %v4241 = vunpack.c.l.b16 %v3769
      %v4242 = vunpack.c.l.b16 %v3770
      %v4243 = vunpack.c.l.b16 %v3771
      %v4244 = vunpack.c.l.b16 %v3772
      %v4245 = vunpack.c.l.b16 %v3773
      %v4246 = vunpack.c.l.b16 %v3774
      %v4247 = vunpack.c.l.b16 %v3775
      %v4248 = vunpack.c.l.b16 %v3776
      %v4249 = vunpack.c.l.b16 %v3777
      %v4250 = vpack.c.b16 %v4107, %v4106
      %v4251 = vpack.c.b16 %v4109, %v4108
      %v4252 = vpack.c.b16 %v4111, %v4110
      %v4253 = vpack.c.b16 %v4113, %v4112
      %v4254 = vpack.c.b16 %v4115, %v4114
      %v4255 = vpack.c.b16 %v4117, %v4116
      %v4256 = vpack.c.b16 %v4119, %v4118
      %v4257 = vpack.c.b16 %v4121, %v4120
      %v4258 = vpack.c.b16 %v4123, %v4122
      %v4259 = vpack.c.b16 %v4125, %v4124
      %v4260 = vpack.c.b16 %v4127, %v4126
      %v4261 = vpack.c.b16 %v4129, %v4128
      %v4262 = vpack.c.b16 %v4131, %v4130
      %v4263 = vpack.c.b16 %v4133, %v4132
      %v4264 = vpack.c.b16 %v4135, %v4134
      %v4265 = vpack.c.b16 %v4137, %v4136
      %v4266 = vpack.c.b16 %v4139, %v4138
      %v4267 = vpack.c.b16 %v4141, %v4140
      %v4268 = vpack.c.b16 %v4143, %v4142
      %v4269 = vpack.c.b16 %v4145, %v4144
      %v4270 = vpack.c.b16 %v4147, %v4146
      %v4271 = vpack.c.b16 %v4149, %v4148
      %v4272 = vpack.c.b16 %v4151, %v4150
      %v4273 = vpack.c.b16 %v4153, %v4152
      %v4274 = vpack.c.b16 %v4155, %v4154
      %v4275 = vpack.c.b16 %v4157, %v4156
      %v4276 = vpack.c.b16 %v4159, %v4158
      %v4277 = vpack.c.b16 %v4161, %v4160
      %v4278 = vpack.c.b16 %v4163, %v4162
      %v4279 = vpack.c.b16 %v4165, %v4164
      %v4280 = vpack.c.b16 %v4167, %v4166
      %v4281 = vpack.c.b16 %v4169, %v4168
      %v4282 = vpack.c.b16 %v4171, %v4170
      %v4283 = vpack.c.b16 %v4173, %v4172
      %v4284 = vpack.c.b16 %v4175, %v4174
      %v4285 = vpack.c.b16 %v4177, %v4176
      %v4286 = vpack.c.b16 %v4179, %v4178
      %v4287 = vpack.c.b16 %v4181, %v4180
      %v4288 = vpack.c.b16 %v4183, %v4182
      %v4289 = vpack.c.b16 %v4185, %v4184
      %v4290 = vpack.c.b16 %v4187, %v4186
      %v4291 = vpack.c.b16 %v4189, %v4188
      %v4292 = vpack.c.b16 %v4191, %v4190
      %v4293 = vpack.c.b16 %v4193, %v4192
      %v4294 = vpack.c.b16 %v4195, %v4194
      %v4295 = vpack.c.b16 %v4197, %v4196
      %v4296 = vpack.c.b16 %v4199, %v4198
      %v4297 = vpack.c.b16 %v4201, %v4200
      %v4298 = vpack.c.b16 %v4203, %v4202
      %v4299 = vpack.c.b16 %v4205, %v4204
      %v4300 = vpack.c.b16 %v4207, %v4206
      %v4301 = vpack.c.b16 %v4209, %v4208
      %v4302 = vpack.c.b16 %v4211, %v4210
      %v4303 = vpack.c.b16 %v4213, %v4212
      %v4304 = vpack.c.b16 %v4215, %v4214
      %v4305 = vpack.c.b16 %v4217, %v4216
      %v4306 = vpack.c.b16 %v4219, %v4218
      %v4307 = vpack.c.b16 %v4221, %v4220
      %v4308 = vpack.c.b16 %v4223, %v4222
      %v4309 = vpack.c.b16 %v4225, %v4224
      %v4310 = vpack.c.b16 %v4227, %v4226
      %v4311 = vpack.c.b16 %v4229, %v4228
      %v4312 = vpack.c.b16 %v4231, %v4230
      %v4313 = vpack.c.b16 %v4233, %v4232
      %v4314 = vpack.c.b16 %v4235, %v4234
      %v4315 = vpack.c.b16 %v4237, %v4236
      %v4316 = vpack.c.b16 %v4239, %v4238
      %v4317 = vpack.c.b16 %v4241, %v4240
      %v4318 = vpack.c.b16 %v4243, %v4242
      %v4319 = vpack.c.b16 %v4245, %v4244
      %v4320 = vpack.c.b16 %v4247, %v4246
      %v4321 = vpack.c.b16 %v4249, %v4248
      %4394 = vmatpush.bf16.msra.mxu0 %v4257
      %4395 = vmatpush.bf16.msra.mxu0 %v4256
      %4396 = vmatpush.bf16.msra.mxu0 %v4255
      %4397 = vmatpush.bf16.msra.mxu0 %v4254
      %4398 = vmatpush.bf16.msra.mxu0 %v4253
      %4399 = vmatpush.bf16.msra.mxu0 %v4252
      %4400 = vmatpush.bf16.msra.mxu0 %v4251
      %4401 = vmatpush.bf16.msra.mxu0 %v4250
      %4402 = vmatmul.bf16.gmra.mxu0 %v3890
      %v4403 = vpop.f32.mrf.mxu0
      %v4404 = vadd.f32 %v3575, %v4403
      %v4405 = vpop.f32.mrf.mxu0
      %v4406 = vadd.f32 %v3577, %v4405
      %4407 = vmatmul.bf16.gmra.mxu0 %v3899
      %v4408 = vpop.f32.mrf.mxu0
      %v4409 = vadd.f32 %v3580, %v4408
      %v4410 = vpop.f32.mrf.mxu0
      %v4411 = vadd.f32 %v3582, %v4410
      %4412 = vmatmul.bf16.gmra.mxu0 %v3908
      %v4413 = vpop.f32.mrf.mxu0
      %v4414 = vadd.f32 %v3585, %v4413
      %v4415 = vpop.f32.mrf.mxu0
      %v4416 = vadd.f32 %v3587, %v4415
      %4417 = vmatmul.bf16.gmra.mxu0 %v3917
      %v4418 = vpop.f32.mrf.mxu0
      %v4419 = vadd.f32 %v3590, %v4418
      %v4420 = vpop.f32.mrf.mxu0
      %v4421 = vadd.f32 %v3592, %v4420
      %4422 = vdwg.mxu0
      %4423 = vmatpush.bf16.msra.mxu0 %v4265
      %4424 = vmatpush.bf16.msra.mxu0 %v4264
      %4425 = vmatpush.bf16.msra.mxu0 %v4263
      %4426 = vmatpush.bf16.msra.mxu0 %v4262
      %4427 = vmatpush.bf16.msra.mxu0 %v4261
      %4428 = vmatpush.bf16.msra.mxu0 %v4260
      %4429 = vmatpush.bf16.msra.mxu0 %v4259
      %4430 = vmatpush.bf16.msra.mxu0 %v4258
      %4431 = vmatmul.bf16.gmra.mxu0 %v3891
      %v4432 = vpop.f32.mrf.mxu0
      %v4433 = vadd.f32 %v4404, %v4432
      %v4434 = vpop.f32.mrf.mxu0
      %v4435 = vadd.f32 %v4406, %v4434
      %4436 = vmatmul.bf16.gmra.mxu0 %v3900
      %v4437 = vpop.f32.mrf.mxu0
      %v4438 = vadd.f32 %v4409, %v4437
      %v4439 = vpop.f32.mrf.mxu0
      %v4440 = vadd.f32 %v4411, %v4439
      %4441 = vmatmul.bf16.gmra.mxu0 %v3909
      %v4442 = vpop.f32.mrf.mxu0
      %v4443 = vadd.f32 %v4414, %v4442
      %v4444 = vpop.f32.mrf.mxu0
      %v4445 = vadd.f32 %v4416, %v4444
      %4446 = vmatmul.bf16.gmra.mxu0 %v3918
      %v4447 = vpop.f32.mrf.mxu0
      %v4448 = vadd.f32 %v4419, %v4447
      %v4449 = vpop.f32.mrf.mxu0
      %v4450 = vadd.f32 %v4421, %v4449
      %4451 = vdwg.mxu0
      %4452 = vmatpush.bf16.msra.mxu0 %v4273
      %4453 = vmatpush.bf16.msra.mxu0 %v4272
      %4454 = vmatpush.bf16.msra.mxu0 %v4271
      %4455 = vmatpush.bf16.msra.mxu0 %v4270
      %4456 = vmatpush.bf16.msra.mxu0 %v4269
      %4457 = vmatpush.bf16.msra.mxu0 %v4268
      %4458 = vmatpush.bf16.msra.mxu0 %v4267
      %4459 = vmatpush.bf16.msra.mxu0 %v4266
      %4460 = vmatmul.bf16.gmra.mxu0 %v3892
      %v4461 = vpop.f32.mrf.mxu0
      %v4462 = vadd.f32 %v4433, %v4461
      %v4463 = vpop.f32.mrf.mxu0
      %v4464 = vadd.f32 %v4435, %v4463
      %4465 = vmatmul.bf16.gmra.mxu0 %v3901
      %v4466 = vpop.f32.mrf.mxu0
      %v4467 = vadd.f32 %v4438, %v4466
      %v4468 = vpop.f32.mrf.mxu0
      %v4469 = vadd.f32 %v4440, %v4468
      %4470 = vmatmul.bf16.gmra.mxu0 %v3910
      %v4471 = vpop.f32.mrf.mxu0
      %v4472 = vadd.f32 %v4443, %v4471
      %v4473 = vpop.f32.mrf.mxu0
      %v4474 = vadd.f32 %v4445, %v4473
      %4475 = vmatmul.bf16.gmra.mxu0 %v3919
      %v4476 = vpop.f32.mrf.mxu0
      %v4477 = vadd.f32 %v4448, %v4476
      %v4478 = vpop.f32.mrf.mxu0
      %v4479 = vadd.f32 %v4450, %v4478
      %4480 = vdwg.mxu0
      %4481 = vmatpush.bf16.msra.mxu0 %v4281
      %4482 = vmatpush.bf16.msra.mxu0 %v4280
      %4483 = vmatpush.bf16.msra.mxu0 %v4279
      %4484 = vmatpush.bf16.msra.mxu0 %v4278
      %4485 = vmatpush.bf16.msra.mxu0 %v4277
      %4486 = vmatpush.bf16.msra.mxu0 %v4276
      %4487 = vmatpush.bf16.msra.mxu0 %v4275
      %4488 = vmatpush.bf16.msra.mxu0 %v4274
      %4489 = vmatmul.bf16.gmra.mxu0 %v3893
      %v4490 = vpop.f32.mrf.mxu0
      %v4491 = vadd.f32 %v4462, %v4490
      %v4492 = vpop.f32.mrf.mxu0
      %v4493 = vadd.f32 %v4464, %v4492
      %4494 = vmatmul.bf16.gmra.mxu0 %v3902
      %v4495 = vpop.f32.mrf.mxu0
      %v4496 = vadd.f32 %v4467, %v4495
      %v4497 = vpop.f32.mrf.mxu0
      %v4498 = vadd.f32 %v4469, %v4497
      %4499 = vmatmul.bf16.gmra.mxu0 %v3911
      %v4500 = vpop.f32.mrf.mxu0
      %v4501 = vadd.f32 %v4472, %v4500
      %v4502 = vpop.f32.mrf.mxu0
      %v4503 = vadd.f32 %v4474, %v4502
      %4504 = vmatmul.bf16.gmra.mxu0 %v3920
      %v4505 = vpop.f32.mrf.mxu0
      %v4506 = vadd.f32 %v4477, %v4505
      %v4507 = vpop.f32.mrf.mxu0
      %v4508 = vadd.f32 %v4479, %v4507
      %4509 = vdwg.mxu0
      %4510 = vmatpush.bf16.msra.mxu0 %v4289
      %4511 = vmatpush.bf16.msra.mxu0 %v4288
      %4512 = vmatpush.bf16.msra.mxu0 %v4287
      %4513 = vmatpush.bf16.msra.mxu0 %v4286
      %4514 = vmatpush.bf16.msra.mxu0 %v4285
      %4515 = vmatpush.bf16.msra.mxu0 %v4284
      %4516 = vmatpush.bf16.msra.mxu0 %v4283
      %4517 = vmatpush.bf16.msra.mxu0 %v4282
      %4518 = vmatmul.bf16.gmra.mxu0 %v3894
      %v4519 = vpop.f32.mrf.mxu0
      %v4520 = vadd.f32 %v4491, %v4519
      %v4521 = vpop.f32.mrf.mxu0
      %v4522 = vadd.f32 %v4493, %v4521
      %4523 = vmatmul.bf16.gmra.mxu0 %v3903
      %v4524 = vpop.f32.mrf.mxu0
      %v4525 = vadd.f32 %v4496, %v4524
      %v4526 = vpop.f32.mrf.mxu0
      %v4527 = vadd.f32 %v4498, %v4526
      %4528 = vmatmul.bf16.gmra.mxu0 %v3912
      %v4529 = vpop.f32.mrf.mxu0
      %v4530 = vadd.f32 %v4501, %v4529
      %v4531 = vpop.f32.mrf.mxu0
      %v4532 = vadd.f32 %v4503, %v4531
      %4533 = vmatmul.bf16.gmra.mxu0 %v3921
      %v4534 = vpop.f32.mrf.mxu0
      %v4535 = vadd.f32 %v4506, %v4534
      %v4536 = vpop.f32.mrf.mxu0
      %v4537 = vadd.f32 %v4508, %v4536
      %4538 = vdwg.mxu0
      %4539 = vmatpush.bf16.msra.mxu0 %v4297
      %4540 = vmatpush.bf16.msra.mxu0 %v4296
      %4541 = vmatpush.bf16.msra.mxu0 %v4295
      %4542 = vmatpush.bf16.msra.mxu0 %v4294
      %4543 = vmatpush.bf16.msra.mxu0 %v4293
      %4544 = vmatpush.bf16.msra.mxu0 %v4292
      %4545 = vmatpush.bf16.msra.mxu0 %v4291
      %4546 = vmatpush.bf16.msra.mxu0 %v4290
      %4547 = vmatmul.bf16.gmra.mxu0 %v3895
      %v4548 = vpop.f32.mrf.mxu0
      %v4549 = vadd.f32 %v4520, %v4548
      %v4550 = vpop.f32.mrf.mxu0
      %v4551 = vadd.f32 %v4522, %v4550
      %4552 = vmatmul.bf16.gmra.mxu0 %v3904
      %v4553 = vpop.f32.mrf.mxu0
      %v4554 = vadd.f32 %v4525, %v4553
      %v4555 = vpop.f32.mrf.mxu0
      %v4556 = vadd.f32 %v4527, %v4555
      %4557 = vmatmul.bf16.gmra.mxu0 %v3913
      %v4558 = vpop.f32.mrf.mxu0
      %v4559 = vadd.f32 %v4530, %v4558
      %v4560 = vpop.f32.mrf.mxu0
      %v4561 = vadd.f32 %v4532, %v4560
      %4562 = vmatmul.bf16.gmra.mxu0 %v3922
      %v4563 = vpop.f32.mrf.mxu0
      %v4564 = vadd.f32 %v4535, %v4563
      %v4565 = vpop.f32.mrf.mxu0
      %v4566 = vadd.f32 %v4537, %v4565
      %4567 = vdwg.mxu0
      %4568 = vmatpush.bf16.msra.mxu0 %v4305
      %4569 = vmatpush.bf16.msra.mxu0 %v4304
      %4570 = vmatpush.bf16.msra.mxu0 %v4303
      %4571 = vmatpush.bf16.msra.mxu0 %v4302
      %4572 = vmatpush.bf16.msra.mxu0 %v4301
      %4573 = vmatpush.bf16.msra.mxu0 %v4300
      %4574 = vmatpush.bf16.msra.mxu0 %v4299
      %4575 = vmatpush.bf16.msra.mxu0 %v4298
      %4576 = vmatmul.bf16.gmra.mxu0 %v3896
      %v4577 = vpop.f32.mrf.mxu0
      %v4578 = vadd.f32 %v4549, %v4577
      %v4579 = vpop.f32.mrf.mxu0
      %v4580 = vadd.f32 %v4551, %v4579
      %4581 = vmatmul.bf16.gmra.mxu0 %v3905
      %v4582 = vpop.f32.mrf.mxu0
      %v4583 = vadd.f32 %v4554, %v4582
      %v4584 = vpop.f32.mrf.mxu0
      %v4585 = vadd.f32 %v4556, %v4584
      %4586 = vmatmul.bf16.gmra.mxu0 %v3914
      %v4587 = vpop.f32.mrf.mxu0
      %v4588 = vadd.f32 %v4559, %v4587
      %v4589 = vpop.f32.mrf.mxu0
      %v4590 = vadd.f32 %v4561, %v4589
      %4591 = vmatmul.bf16.gmra.mxu0 %v3923
      %v4592 = vpop.f32.mrf.mxu0
      %v4593 = vadd.f32 %v4564, %v4592
      %v4594 = vpop.f32.mrf.mxu0
      %v4595 = vadd.f32 %v4566, %v4594
      %4596 = vdwg.mxu0
      %4597 = vmatpush.bf16.msra.mxu0 %v4313
      %4598 = vmatpush.bf16.msra.mxu0 %v4312
      %4599 = vmatpush.bf16.msra.mxu0 %v4311
      %4600 = vmatpush.bf16.msra.mxu0 %v4310
      %4601 = vmatpush.bf16.msra.mxu0 %v4309
      %4602 = vmatpush.bf16.msra.mxu0 %v4308
      %4603 = vmatpush.bf16.msra.mxu0 %v4307
      %4604 = vmatpush.bf16.msra.mxu0 %v4306
      %4605 = vmatmul.bf16.gmra.mxu0 %v3897
      %v4606 = vpop.f32.mrf.mxu0
      %v4607 = vadd.f32 %v4578, %v4606
      %v4608 = vpop.f32.mrf.mxu0
      %v4609 = vadd.f32 %v4580, %v4608
      %4610 = vmatmul.bf16.gmra.mxu0 %v3906
      %v4611 = vpop.f32.mrf.mxu0
      %v4612 = vadd.f32 %v4583, %v4611
      %v4613 = vpop.f32.mrf.mxu0
      %v4614 = vadd.f32 %v4585, %v4613
      %4615 = vmatmul.bf16.gmra.mxu0 %v3915
      %v4616 = vpop.f32.mrf.mxu0
      %v4617 = vadd.f32 %v4588, %v4616
      %v4618 = vpop.f32.mrf.mxu0
      %v4619 = vadd.f32 %v4590, %v4618
      %4620 = vmatmul.bf16.gmra.mxu0 %v3924
      %v4621 = vpop.f32.mrf.mxu0
      %v4622 = vadd.f32 %v4593, %v4621
      %v4623 = vpop.f32.mrf.mxu0
      %v4624 = vadd.f32 %v4595, %v4623
      %4625 = vdwg.mxu0
      %4626 = vmatpush.bf16.msra.mxu0 %v4321
      %4627 = vmatpush.bf16.msra.mxu0 %v4320
      %4628 = vmatpush.bf16.msra.mxu0 %v4319
      %4629 = vmatpush.bf16.msra.mxu0 %v4318
      %4630 = vmatpush.bf16.msra.mxu0 %v4317
      %4631 = vmatpush.bf16.msra.mxu0 %v4316
      %4632 = vmatpush.bf16.msra.mxu0 %v4315
      %4633 = vmatpush.bf16.msra.mxu0 %v4314
      %4634 = vmatmul.bf16.gmra.mxu0 %v3898
      %v4635 = vpop.f32.mrf.mxu0
      %v4636 = vadd.f32 %v4607, %v4635
      %v4637 = vpop.f32.mrf.mxu0
      %v4638 = vadd.f32 %v4609, %v4637
      %4639 = vmatmul.bf16.gmra.mxu0 %v3907
      %v4640 = vpop.f32.mrf.mxu0
      %v4641 = vadd.f32 %v4612, %v4640
      %v4642 = vpop.f32.mrf.mxu0
      %v4643 = vadd.f32 %v4614, %v4642
      %4644 = vmatmul.bf16.gmra.mxu0 %v3916
      %v4645 = vpop.f32.mrf.mxu0
      %v4646 = vadd.f32 %v4617, %v4645
      %v4647 = vpop.f32.mrf.mxu0
      %v4648 = vadd.f32 %v4619, %v4647
      %4649 = vmatmul.bf16.gmra.mxu0 %v3925
      %v4650 = vpop.f32.mrf.mxu0
      %v4651 = vadd.f32 %v4622, %v4650
      %v4652 = vpop.f32.mrf.mxu0
      %v4653 = vadd.f32 %v4624, %v4652
      %4654 = vdwg.mxu0
      %v4655 = vpack.c.bf16 %v4636, %v4636
      %v4656 = vpack.c.bf16 %v4638, %v4638
      %v4657 = vpack.c.bf16 %v4641, %v4641
      %v4658 = vpack.c.bf16 %v4643, %v4643
      %v4659 = vpack.c.bf16 %v4646, %v4646
      %v4660 = vpack.c.bf16 %v4648, %v4648
      %v4661 = vpack.c.bf16 %v4651, %v4651
      %v4662 = vpack.c.bf16 %v4653, %v4653
      %4663 = vst [vmem:[%s310] sm:$0xf] %v4655
      %4664 = vst [vmem:[%s310 + $0x4] sm:$0xf] %v4656
      %4665 = vst [vmem:[%s310 + $0x8] sm:$0xf] %v4657
      %4666 = vst [vmem:[%s310 + $0xc] sm:$0xf] %v4658
      %4667 = vst [vmem:[%s310 + $0x10] sm:$0xf] %v4659
      %4668 = vst [vmem:[%s310 + $0x14] sm:$0xf] %v4660
      %4669 = vst [vmem:[%s310 + $0x18] sm:$0xf] %v4661
      %4670 = vst [vmem:[%s310 + $0x1c] sm:$0xf] %v4662
      %p4671 = scmp.lt.s32.totalorder %s19, 1
      %s4672 = scalar_select %p4671, %s19, 1
      %s4673 = smul.addr %s4672, 8
      %s4674 = smul.addr %s4673, 4
      %s4675 = scalar_lea.vmem %s8, %s4674
      // Predicated region
      $region53: #{_lambda_.2} parent=51 // pred_check
        %p4676 = pneg %p210
      $region54: #{_lambda_.2} parent=51 // pred_check_branch
        %4678 = sbr.rel (%p4676) target = $region56
      $region55: #{_lambda_.2} parent=51 // pred_region
        _
      $region56: #{_lambda_.2} parent=51 // pred_fallthru
        _
    $region52: #{_lambda_.2} parent=5 // pred_fallthru
      _
    %p4679 = scmp.le.s32.totalorder 2, %s14
    // Predicated region
    $region57: #{_lambda_.2} parent=5 // pred_check
      %p4680 = pneg %p4679
    $region58: #{_lambda_.2} parent=5 // pred_check_branch
      %4682 = sbr.rel (%p4680) target = $region60
    $region59: #{_lambda_.2} parent=5 // pred_region
      %s4683 = ssub.s32 %s14, 2
      // Predicated region
      $region61: #{_lambda_.2} parent=59 // pred_check
        %p4684 = pneg %p216
      $region62: #{_lambda_.2} parent=59 // pred_check_branch
        %4686 = sbr.rel (%p4684) target = $region64
      $region63: #{_lambda_.2} parent=59 // pred_region
        %p4687 = scmp.lt.s32.totalorder %s20, 1
        %s4688 = scalar_select %p4687, %s20, 1
        %s4689 = smul.addr %s4688, 8
        %s4690 = smul.addr %s4689, 4
        %s4691 = scalar_lea.vmem %s8, %s4690
      $region64: #{_lambda_.2} parent=59 // pred_fallthru
        _
    $region60: #{_lambda_.2} parent=5 // pred_fallthru
      _
  $region6: #{_lambda_.2} parent=0 // loop_footer
    %s18 = sadd.s32 1, %s14
  $region7: #{_lambda_.2} parent=0 // loop_footer_branch
    %13 = sbr.rel target = $region3
  $region8: #{_lambda_.2} parent=0 // loop_exit
    _

</llo_original>
